<compile_context>
chip_gen: v7x
topology: tpu7x:2x2x1
jax: 0.10.0
libtpu: 0.0.40
codegen_flags: <defaults>
</compile_context>

<pallas_src>
import math
from functools import partial

import jax
import jax.numpy as jnp
from jax.experimental import pallas as pl
from jax.experimental.pallas import tpu as pltpu

# Make the pure-JAX reference use full-precision f32 matmuls so the
# correctness check against the Pallas (f32-accumulating) kernel is tight.
jax.config.update("jax_default_matmul_precision", "highest")

_EPS = 1e-12  # torch F.normalize default eps


def _sigmoid(x):
    # One EUP tanh instead of exp + divide (exact identity).
    return 0.5 * (jnp.tanh(0.5 * x) + 1.0)


# ---------------------------------------------------------------------------
# Host-side weight re-layout helpers (one-time, outside the kernel)
# ---------------------------------------------------------------------------
def _gate_cols(w, h, direction):
    """w: (4h, K) torch-order [i,f,g,o]. Returns (K, 8h) with this direction's
    gate blocks placed in the interleaved column layout
    [i_f,i_b,f_f,f_b,g_f,g_b,o_f,o_b], zeros in the other direction's slots."""
    K = w.shape[1]
    wi, wf, wg, wo = (w[g * h:(g + 1) * h, :].T for g in range(4))  # (K, h)
    z = jnp.zeros((K, h), w.dtype)
    if direction == 0:
        blocks = [wi, z, wf, z, wg, z, wo, z]
    else:
        blocks = [z, wi, z, wf, z, wg, z, wo]
    return jnp.concatenate(blocks, axis=1)


def _gate_bias(bf, bb, h):
    """bf/bb: (4h,) combined biases per direction -> (8h,) interleaved."""
    blocks = []
    for g in range(4):
        blocks += [bf[g * h:(g + 1) * h], bb[g * h:(g + 1) * h]]
    return jnp.concatenate(blocks)


# ---------------------------------------------------------------------------
# Single fused kernel: bi-LSTM layer + uni-LSTM layer + sigmoid head + L2 norm
# ---------------------------------------------------------------------------
def _fused_kernel(xaug_ref, w1in_ref, b1_ref, w1hh_ref,
                  w2in_ref, b2_ref, w2hh_ref, wlin_ref, blin_ref,
                  out_ref, rep_ref, *, T, B, h_bi, Hd):
    f32 = jnp.float32
    H2 = 2 * h_bi  # == hidden_dim of the model

    # ---- layer 1: both directions fused ------------------------------------
    # Hoisted input projection for BOTH directions in one MXU matmul.
    # Row t*B+b already holds fwd gates for time t and bwd gates for time
    # T-1-t (the wrapper lane-augmented x with its time-reverse).
    xp1 = jnp.dot(xaug_ref[...], w1in_ref[...],
                  preferred_element_type=f32) + b1_ref[...]      # (T*B, 8h_bi)
    w1hh = w1hh_ref[...]                                         # (2h_bi, 8h_bi)

    h1 = jnp.zeros((B, H2), f32)   # [h_fwd | h_bwd]
    c1 = jnp.zeros((B, H2), f32)
    hf = [None] * T
    hb = [None] * T
    # T is small and static -> fully unrolled serial loop (static indices).
    for s in range(T):
        gates = xp1[s * B:(s + 1) * B, :] + jnp.dot(
            h1, w1hh, preferred_element_type=f32)                # (B, 8h_bi)
        i_g = _sigmoid(gates[:, 0 * H2:1 * H2])
        f_g = _sigmoid(gates[:, 1 * H2:2 * H2])
        g_g = jnp.tanh(gates[:, 2 * H2:3 * H2])
        o_g = _sigmoid(gates[:, 3 * H2:4 * H2])
        c1 = f_g * c1 + i_g * g_g
        h1 = o_g * jnp.tanh(c1)
        hf[s] = h1[:, :h_bi]            # fwd direction is at time s
        hb[T - 1 - s] = h1[:, h_bi:]    # bwd direction is at time T-1-s

    # Layer-1 output sequence, time-major rows (t*B+b), [fwd|bwd] lanes.
    hs1 = jnp.concatenate(
        [jnp.concatenate([hf[t], hb[t]], axis=1) for t in range(T)],
        axis=0)                                                  # (T*B, Hd)

    # ---- layer 2: unidirectional -------------------------------------------
    xp2 = jnp.dot(hs1, w2in_ref[...],
                  preferred_element_type=f32) + b2_ref[...]      # (T*B, 4Hd)
    w2hh = w2hh_ref[...]                                         # (Hd, 4Hd)

    h2 = jnp.zeros((B, Hd), f32)
    c2 = jnp.zeros((B, Hd), f32)
    for t in range(T):
        gates = xp2[t * B:(t + 1) * B, :] + jnp.dot(
            h2, w2hh, preferred_element_type=f32)                # (B, 4Hd)
        i_g = _sigmoid(gates[:, 0 * Hd:1 * Hd])
        f_g = _sigmoid(gates[:, 1 * Hd:2 * Hd])
        g_g = jnp.tanh(gates[:, 2 * Hd:3 * Hd])
        o_g = _sigmoid(gates[:, 3 * Hd:4 * Hd])
        c2 = f_g * c2 + i_g * g_g
        h2 = o_g * jnp.tanh(c2)

    # ---- head: sigmoid(Linear(h_T)) and F.normalize(h_T, dim=1) ------------
    logits = jnp.dot(h2, wlin_ref[...],
                     preferred_element_type=f32) + blin_ref[...]
    out_ref[...] = _sigmoid(logits).astype(out_ref.dtype)
    sq = jnp.sum(h2 * h2, axis=1, keepdims=True)
    inv = 1.0 / jnp.maximum(jnp.sqrt(sq), _EPS)
    rep_ref[...] = (h2 * inv).astype(rep_ref.dtype)


# ---------------------------------------------------------------------------
# Full LSTM_PT forward (num_layers=2, bidirectional, task='ihm', eval mode)
# ---------------------------------------------------------------------------
def lstm_pt_forward(x, params):
    B, T, D = x.shape
    h_bi = params["w_hh_f"].shape[1]
    Hd = params["w_hh_o"].shape[1]
    C = params["w_lin"].shape[0]

    # Lane-augmented, time-major input: row t*B+b = [x[b,t,:], x[b,T-1-t,:]].
    xt = jnp.transpose(x, (1, 0, 2)).astype(jnp.float32)         # (T, B, D)
    x_aug = jnp.concatenate([xt, xt[::-1]], axis=-1).reshape(T * B, 2 * D)

    # One-time weight re-layout (pre-transposed; no in-kernel transposes).
    w1_in = jnp.concatenate([_gate_cols(params["w_ih_f"], h_bi, 0),
                             _gate_cols(params["w_ih_b"], h_bi, 1)],
                            axis=0)                              # (2D, 8h_bi)
    b1 = _gate_bias(params["b_ih_f"] + params["b_hh_f"],
                    params["b_ih_b"] + params["b_hh_b"],
                    h_bi).reshape(1, 8 * h_bi)
    w1_hh = jnp.concatenate([_gate_cols(params["w_hh_f"], h_bi, 0),
                             _gate_cols(params["w_hh_b"], h_bi, 1)],
                            axis=0)                              # (2h_bi, 8h_bi)
    w2_in = params["w_ih_o"].T                                   # (Hd, 4Hd)
    b2 = (params["b_ih_o"] + params["b_hh_o"]).reshape(1, 4 * Hd)
    w2_hh = params["w_hh_o"].T                                   # (Hd, 4Hd)
    w_lin = params["w_lin"].T                                    # (Hd, C)
    b_lin = params["b_lin"].reshape(1, C)

    def _spec(shape):
        return pl.BlockSpec(shape, lambda i: (0, 0))

    out, rep = pl.pallas_call(
        partial(_fused_kernel, T=T, B=B, h_bi=h_bi, Hd=Hd),
        out_shape=(jax.ShapeDtypeStruct((B, C), jnp.float32),
                   jax.ShapeDtypeStruct((B, Hd), jnp.float32)),
        grid=(1,),
        in_specs=[
            _spec((T * B, 2 * D)),       # x_aug
            _spec((2 * D, 8 * h_bi)),    # w1_in
            _spec((1, 8 * h_bi)),        # b1
            _spec((2 * h_bi, 8 * h_bi)), # w1_hh (block-diag, gate-interleaved)
            _spec((Hd, 4 * Hd)),         # w2_in
            _spec((1, 4 * Hd)),          # b2
            _spec((Hd, 4 * Hd)),         # w2_hh
            _spec((Hd, C)),              # w_lin
            _spec((1, C)),               # b_lin
        ],
        out_specs=(_spec((B, C)), _spec((B, Hd))),
        compiler_params=pltpu.CompilerParams(
            dimension_semantics=("arbitrary",)),
    )(x_aug, w1_in, b1, w1_hh, w2_in, b2, w2_hh, w_lin, b_lin)

    return jnp.squeeze(out), rep


# ---------------------------------------------------------------------------
# Pure-JAX reference (same math as torch nn.LSTM + Linear + Sigmoid/normalize)
# ---------------------------------------------------------------------------
def _lstm_layer_ref(x_tbd, w_ih, w_hh, b_ih, b_hh, reverse):
    T, B, _ = x_tbd.shape
    H = w_hh.shape[1]
    xs = x_tbd[::-1] if reverse else x_tbd

    def step(carry, x_t):
        h, c = carry
        gates = x_t @ w_ih.T + b_ih + h @ w_hh.T + b_hh
        i = jax.nn.sigmoid(gates[:, 0 * H:1 * H])
        f = jax.nn.sigmoid(gates[:, 1 * H:2 * H])
        g = jnp.tanh(gates[:, 2 * H:3 * H])
        o = jax.nn.sigmoid(gates[:, 3 * H:4 * H])
        c = f * c + i * g
        h = o * jnp.tanh(c)
        return (h, c), h

    init = (jnp.zeros((B, H), jnp.float32), jnp.zeros((B, H), jnp.float32))
    _, hs = jax.lax.scan(step, init, xs)
    return hs[::-1] if reverse else hs


def lstm_pt_forward_ref(x, params):
    x_tbd = jnp.transpose(x, (1, 0, 2))
    h_f = _lstm_layer_ref(x_tbd, params["w_ih_f"], params["w_hh_f"],
                          params["b_ih_f"], params["b_hh_f"], False)
    h_b = _lstm_layer_ref(x_tbd, params["w_ih_b"], params["w_hh_b"],
                          params["b_ih_b"], params["b_hh_b"], True)
    layer1 = jnp.concatenate([h_f, h_b], axis=-1)
    h_seq = _lstm_layer_ref(layer1, params["w_ih_o"], params["w_hh_o"],
                            params["b_ih_o"], params["b_hh_o"], False)
    h_last = h_seq[-1]
    logits = h_last @ params["w_lin"].T + params["b_lin"]
    out = jax.nn.sigmoid(logits)
    rep = h_last / jnp.maximum(
        jnp.linalg.norm(h_last, axis=1, keepdims=True), _EPS)
    return jnp.squeeze(out), rep


# ---------------------------------------------------------------------------
# Deterministic parameter construction (shapes follow torch nn.LSTM / Linear)
# ---------------------------------------------------------------------------
def _xavier_uniform(key, shape):
    fan_out, fan_in = shape
    bound = math.sqrt(6.0 / (fan_in + fan_out))
    return jax.random.uniform(key, shape, jnp.float32, -bound, bound)


def make_params(key, input_dim, hidden_dim, num_classes):
    h_bi = hidden_dim // 2
    k = jax.random.split(key, 14)
    return {
        # bidirectional layer, forward direction
        "w_ih_f": _xavier_uniform(k[0], (4 * h_bi, input_dim)),
        "w_hh_f": _xavier_uniform(k[1], (4 * h_bi, h_bi)),
        "b_ih_f": 0.1 * jax.random.normal(k[2], (4 * h_bi,), jnp.float32),
        "b_hh_f": 0.1 * jax.random.normal(k[3], (4 * h_bi,), jnp.float32),
        # bidirectional layer, reverse direction
        "w_ih_b": _xavier_uniform(k[4], (4 * h_bi, input_dim)),
        "w_hh_b": _xavier_uniform(k[5], (4 * h_bi, h_bi)),
        "b_ih_b": 0.1 * jax.random.normal(k[6], (4 * h_bi,), jnp.float32),
        "b_hh_b": 0.1 * jax.random.normal(k[7], (4 * h_bi,), jnp.float32),
        # output unidirectional layer
        "w_ih_o": _xavier_uniform(k[8], (4 * hidden_dim, hidden_dim)),
        "w_hh_o": _xavier_uniform(k[9], (4 * hidden_dim, hidden_dim)),
        "b_ih_o": 0.1 * jax.random.normal(k[10], (4 * hidden_dim,), jnp.float32),
        "b_hh_o": 0.1 * jax.random.normal(k[11], (4 * hidden_dim,), jnp.float32),
        # output linear head
        "w_lin": _xavier_uniform(k[12], (num_classes, hidden_dim)),
        "b_lin": 0.1 * jax.random.normal(k[13], (num_classes,), jnp.float32),
    }


if __name__ == "__main__":
    batch, seq, input_dim, hidden_dim, num_classes = 2, 8, 16, 32, 2

    key = jax.random.PRNGKey(0)
    kx, kp = jax.random.split(key)
    x = jax.random.normal(kx, (batch, seq, input_dim), jnp.float32)
    params = make_params(kp, input_dim, hidden_dim, num_classes)

    fwd = jax.jit(lstm_pt_forward)
    out, rep = fwd(x, params)
    out, rep = jax.block_until_ready((out, rep))

    ref_out, ref_rep = lstm_pt_forward_ref(x, params)
    assert out.shape == (batch, num_classes)
    assert rep.shape == (batch, hidden_dim)
    assert jnp.allclose(out, ref_out, atol=1e-4, rtol=1e-4)
    assert jnp.allclose(rep, ref_rep, atol=1e-4, rtol=1e-4)

    print("KERNEL_OK")
</pallas_src>

<mosaic_0001>
module attributes {stable_mosaic.version = 11 : i64} {
  func.func @_fused_kernel(%arg0: i32, %arg1: memref<16x32xf32, #tpu.memory_space<vmem>>, %arg2: memref<32x128xf32, #tpu.memory_space<vmem>>, %arg3: memref<1x128xf32, #tpu.memory_space<vmem>>, %arg4: memref<32x128xf32, #tpu.memory_space<vmem>>, %arg5: memref<32x128xf32, #tpu.memory_space<vmem>>, %arg6: memref<1x128xf32, #tpu.memory_space<vmem>>, %arg7: memref<32x128xf32, #tpu.memory_space<vmem>>, %arg8: memref<32x2xf32, #tpu.memory_space<vmem>>, %arg9: memref<1x2xf32, #tpu.memory_space<vmem>>, %arg10: memref<2x2xf32, #tpu.memory_space<vmem>>, %arg11: memref<2x32xf32, #tpu.memory_space<vmem>>) attributes {dimension_semantics = [#tpu.dimension_semantics<arbitrary>], iteration_bounds = array<i64: 1>, scalar_prefetch = 0 : i64, scratch_operands = 0 : i64, tpu.core_type = #tpu.core_type<tc>, window_params = [{pipeline_mode = #tpu.pipeline_mode<synchronous>, transform_indices = @transform_0, window_bounds = array<i64: 16, 32>}, {pipeline_mode = #tpu.pipeline_mode<synchronous>, transform_indices = @transform_1, window_bounds = array<i64: 32, 128>}, {pipeline_mode = #tpu.pipeline_mode<synchronous>, transform_indices = @transform_2, window_bounds = array<i64: 1, 128>}, {pipeline_mode = #tpu.pipeline_mode<synchronous>, transform_indices = @transform_3, window_bounds = array<i64: 32, 128>}, {pipeline_mode = #tpu.pipeline_mode<synchronous>, transform_indices = @transform_4, window_bounds = array<i64: 32, 128>}, {pipeline_mode = #tpu.pipeline_mode<synchronous>, transform_indices = @transform_5, window_bounds = array<i64: 1, 128>}, {pipeline_mode = #tpu.pipeline_mode<synchronous>, transform_indices = @transform_6, window_bounds = array<i64: 32, 128>}, {pipeline_mode = #tpu.pipeline_mode<synchronous>, transform_indices = @transform_7, window_bounds = array<i64: 32, 2>}, {pipeline_mode = #tpu.pipeline_mode<synchronous>, transform_indices = @transform_8, window_bounds = array<i64: 1, 2>}, {pipeline_mode = #tpu.pipeline_mode<synchronous>, transform_indices = @transform_9, window_bounds = array<i64: 2, 2>}, {pipeline_mode = #tpu.pipeline_mode<synchronous>, transform_indices = @transform_10, window_bounds = array<i64: 2, 32>}]} {
    %c0 = arith.constant 0 : index
    %c0_0 = arith.constant 0 : index
    %0 = vector.load %arg1[%c0, %c0_0] : memref<16x32xf32, #tpu.memory_space<vmem>>, vector<16x32xf32>
    %c0_1 = arith.constant 0 : index
    %c0_2 = arith.constant 0 : index
    %1 = vector.load %arg2[%c0_1, %c0_2] : memref<32x128xf32, #tpu.memory_space<vmem>>, vector<32x128xf32>
    %cst = arith.constant dense<0.000000e+00> : vector<16x128xf32>
    %2 = tpu.matmul %0, %1, %cst {dimension_numbers = #tpu.dot_dimension_numbers<[1], [0], [0], [1], [0, 0, 1, 1], [], []>, precision = #tpu.contract_precision<fp32>} : vector<16x32xf32>, vector<32x128xf32>, vector<16x128xf32> -> vector<16x128xf32>
    %c0_3 = arith.constant 0 : index
    %c0_4 = arith.constant 0 : index
    %3 = vector.load %arg3[%c0_3, %c0_4] : memref<1x128xf32, #tpu.memory_space<vmem>>, vector<1x128xf32>
    %4 = vector.broadcast %3 : vector<1x128xf32> to vector<16x128xf32>
    %5 = arith.addf %2, %4 : vector<16x128xf32>
    %c0_5 = arith.constant 0 : index
    %c0_6 = arith.constant 0 : index
    %6 = vector.load %arg4[%c0_5, %c0_6] : memref<32x128xf32, #tpu.memory_space<vmem>>, vector<32x128xf32>
    %cst_7 = arith.constant 0.000000e+00 : f32
    %7 = vector.broadcast %cst_7 : f32 to vector<2x32xf32>
    %cst_8 = arith.constant 0.000000e+00 : f32
    %8 = vector.broadcast %cst_8 : f32 to vector<2x32xf32>
    %9 = vector.extract_strided_slice %5 {offsets = [0, 0], sizes = [2, 128], strides = [1, 1]} : vector<16x128xf32> to vector<2x128xf32>
    %cst_9 = arith.constant dense<0.000000e+00> : vector<2x128xf32>
    %10 = tpu.matmul %7, %6, %cst_9 {dimension_numbers = #tpu.dot_dimension_numbers<[1], [0], [0], [1], [0, 0, 1, 1], [], []>, precision = #tpu.contract_precision<fp32>} : vector<2x32xf32>, vector<32x128xf32>, vector<2x128xf32> -> vector<2x128xf32>
    %11 = arith.addf %9, %10 : vector<2x128xf32>
    %12 = vector.extract_strided_slice %11 {offsets = [0, 0], sizes = [2, 32], strides = [1, 1]} : vector<2x128xf32> to vector<2x32xf32>
    %cst_10 = arith.constant 5.000000e-01 : f32
    %13 = vector.broadcast %cst_10 : f32 to vector<2x32xf32>
    %14 = arith.mulf %13, %12 : vector<2x32xf32>
    %15 = math.tanh %14 : vector<2x32xf32>
    %cst_11 = arith.constant 1.000000e+00 : f32
    %16 = vector.broadcast %cst_11 : f32 to vector<2x32xf32>
    %17 = arith.addf %15, %16 : vector<2x32xf32>
    %cst_12 = arith.constant 5.000000e-01 : f32
    %18 = vector.broadcast %cst_12 : f32 to vector<2x32xf32>
    %19 = arith.mulf %18, %17 : vector<2x32xf32>
    %20 = vector.extract_strided_slice %11 {offsets = [0, 32], sizes = [2, 32], strides = [1, 1]} : vector<2x128xf32> to vector<2x32xf32>
    %cst_13 = arith.constant 5.000000e-01 : f32
    %21 = vector.broadcast %cst_13 : f32 to vector<2x32xf32>
    %22 = arith.mulf %21, %20 : vector<2x32xf32>
    %23 = math.tanh %22 : vector<2x32xf32>
    %cst_14 = arith.constant 1.000000e+00 : f32
    %24 = vector.broadcast %cst_14 : f32 to vector<2x32xf32>
    %25 = arith.addf %23, %24 : vector<2x32xf32>
    %cst_15 = arith.constant 5.000000e-01 : f32
    %26 = vector.broadcast %cst_15 : f32 to vector<2x32xf32>
    %27 = arith.mulf %26, %25 : vector<2x32xf32>
    %28 = vector.extract_strided_slice %11 {offsets = [0, 64], sizes = [2, 32], strides = [1, 1]} : vector<2x128xf32> to vector<2x32xf32>
    %29 = math.tanh %28 : vector<2x32xf32>
    %30 = vector.extract_strided_slice %11 {offsets = [0, 96], sizes = [2, 32], strides = [1, 1]} : vector<2x128xf32> to vector<2x32xf32>
    %cst_16 = arith.constant 5.000000e-01 : f32
    %31 = vector.broadcast %cst_16 : f32 to vector<2x32xf32>
    %32 = arith.mulf %31, %30 : vector<2x32xf32>
    %33 = math.tanh %32 : vector<2x32xf32>
    %cst_17 = arith.constant 1.000000e+00 : f32
    %34 = vector.broadcast %cst_17 : f32 to vector<2x32xf32>
    %35 = arith.addf %33, %34 : vector<2x32xf32>
    %cst_18 = arith.constant 5.000000e-01 : f32
    %36 = vector.broadcast %cst_18 : f32 to vector<2x32xf32>
    %37 = arith.mulf %36, %35 : vector<2x32xf32>
    %38 = arith.mulf %27, %8 : vector<2x32xf32>
    %39 = arith.mulf %19, %29 : vector<2x32xf32>
    %40 = arith.addf %38, %39 : vector<2x32xf32>
    %41 = math.tanh %40 : vector<2x32xf32>
    %42 = arith.mulf %37, %41 : vector<2x32xf32>
    %43 = vector.extract_strided_slice %42 {offsets = [0, 0], sizes = [2, 16], strides = [1, 1]} : vector<2x32xf32> to vector<2x16xf32>
    %44 = vector.extract_strided_slice %42 {offsets = [0, 16], sizes = [2, 16], strides = [1, 1]} : vector<2x32xf32> to vector<2x16xf32>
    %45 = vector.extract_strided_slice %5 {offsets = [2, 0], sizes = [2, 128], strides = [1, 1]} : vector<16x128xf32> to vector<2x128xf32>
    %cst_19 = arith.constant dense<0.000000e+00> : vector<2x128xf32>
    %46 = tpu.matmul %42, %6, %cst_19 {dimension_numbers = #tpu.dot_dimension_numbers<[1], [0], [0], [1], [0, 0, 1, 1], [], []>, precision = #tpu.contract_precision<fp32>} : vector<2x32xf32>, vector<32x128xf32>, vector<2x128xf32> -> vector<2x128xf32>
    %47 = arith.addf %45, %46 : vector<2x128xf32>
    %48 = vector.extract_strided_slice %47 {offsets = [0, 0], sizes = [2, 32], strides = [1, 1]} : vector<2x128xf32> to vector<2x32xf32>
    %cst_20 = arith.constant 5.000000e-01 : f32
    %49 = vector.broadcast %cst_20 : f32 to vector<2x32xf32>
    %50 = arith.mulf %49, %48 : vector<2x32xf32>
    %51 = math.tanh %50 : vector<2x32xf32>
    %cst_21 = arith.constant 1.000000e+00 : f32
    %52 = vector.broadcast %cst_21 : f32 to vector<2x32xf32>
    %53 = arith.addf %51, %52 : vector<2x32xf32>
    %cst_22 = arith.constant 5.000000e-01 : f32
    %54 = vector.broadcast %cst_22 : f32 to vector<2x32xf32>
    %55 = arith.mulf %54, %53 : vector<2x32xf32>
    %56 = vector.extract_strided_slice %47 {offsets = [0, 32], sizes = [2, 32], strides = [1, 1]} : vector<2x128xf32> to vector<2x32xf32>
    %cst_23 = arith.constant 5.000000e-01 : f32
    %57 = vector.broadcast %cst_23 : f32 to vector<2x32xf32>
    %58 = arith.mulf %57, %56 : vector<2x32xf32>
    %59 = math.tanh %58 : vector<2x32xf32>
    %cst_24 = arith.constant 1.000000e+00 : f32
    %60 = vector.broadcast %cst_24 : f32 to vector<2x32xf32>
    %61 = arith.addf %59, %60 : vector<2x32xf32>
    %cst_25 = arith.constant 5.000000e-01 : f32
    %62 = vector.broadcast %cst_25 : f32 to vector<2x32xf32>
    %63 = arith.mulf %62, %61 : vector<2x32xf32>
    %64 = vector.extract_strided_slice %47 {offsets = [0, 64], sizes = [2, 32], strides = [1, 1]} : vector<2x128xf32> to vector<2x32xf32>
    %65 = math.tanh %64 : vector<2x32xf32>
    %66 = vector.extract_strided_slice %47 {offsets = [0, 96], sizes = [2, 32], strides = [1, 1]} : vector<2x128xf32> to vector<2x32xf32>
    %cst_26 = arith.constant 5.000000e-01 : f32
    %67 = vector.broadcast %cst_26 : f32 to vector<2x32xf32>
    %68 = arith.mulf %67, %66 : vector<2x32xf32>
    %69 = math.tanh %68 : vector<2x32xf32>
    %cst_27 = arith.constant 1.000000e+00 : f32
    %70 = vector.broadcast %cst_27 : f32 to vector<2x32xf32>
    %71 = arith.addf %69, %70 : vector<2x32xf32>
    %cst_28 = arith.constant 5.000000e-01 : f32
    %72 = vector.broadcast %cst_28 : f32 to vector<2x32xf32>
    %73 = arith.mulf %72, %71 : vector<2x32xf32>
    %74 = arith.mulf %63, %40 : vector<2x32xf32>
    %75 = arith.mulf %55, %65 : vector<2x32xf32>
    %76 = arith.addf %74, %75 : vector<2x32xf32>
    %77 = math.tanh %76 : vector<2x32xf32>
    %78 = arith.mulf %73, %77 : vector<2x32xf32>
    %79 = vector.extract_strided_slice %78 {offsets = [0, 0], sizes = [2, 16], strides = [1, 1]} : vector<2x32xf32> to vector<2x16xf32>
    %80 = vector.extract_strided_slice %78 {offsets = [0, 16], sizes = [2, 16], strides = [1, 1]} : vector<2x32xf32> to vector<2x16xf32>
    %81 = vector.extract_strided_slice %5 {offsets = [4, 0], sizes = [2, 128], strides = [1, 1]} : vector<16x128xf32> to vector<2x128xf32>
    %cst_29 = arith.constant dense<0.000000e+00> : vector<2x128xf32>
    %82 = tpu.matmul %78, %6, %cst_29 {dimension_numbers = #tpu.dot_dimension_numbers<[1], [0], [0], [1], [0, 0, 1, 1], [], []>, precision = #tpu.contract_precision<fp32>} : vector<2x32xf32>, vector<32x128xf32>, vector<2x128xf32> -> vector<2x128xf32>
    %83 = arith.addf %81, %82 : vector<2x128xf32>
    %84 = vector.extract_strided_slice %83 {offsets = [0, 0], sizes = [2, 32], strides = [1, 1]} : vector<2x128xf32> to vector<2x32xf32>
    %cst_30 = arith.constant 5.000000e-01 : f32
    %85 = vector.broadcast %cst_30 : f32 to vector<2x32xf32>
    %86 = arith.mulf %85, %84 : vector<2x32xf32>
    %87 = math.tanh %86 : vector<2x32xf32>
    %cst_31 = arith.constant 1.000000e+00 : f32
    %88 = vector.broadcast %cst_31 : f32 to vector<2x32xf32>
    %89 = arith.addf %87, %88 : vector<2x32xf32>
    %cst_32 = arith.constant 5.000000e-01 : f32
    %90 = vector.broadcast %cst_32 : f32 to vector<2x32xf32>
    %91 = arith.mulf %90, %89 : vector<2x32xf32>
    %92 = vector.extract_strided_slice %83 {offsets = [0, 32], sizes = [2, 32], strides = [1, 1]} : vector<2x128xf32> to vector<2x32xf32>
    %cst_33 = arith.constant 5.000000e-01 : f32
    %93 = vector.broadcast %cst_33 : f32 to vector<2x32xf32>
    %94 = arith.mulf %93, %92 : vector<2x32xf32>
    %95 = math.tanh %94 : vector<2x32xf32>
    %cst_34 = arith.constant 1.000000e+00 : f32
    %96 = vector.broadcast %cst_34 : f32 to vector<2x32xf32>
    %97 = arith.addf %95, %96 : vector<2x32xf32>
    %cst_35 = arith.constant 5.000000e-01 : f32
    %98 = vector.broadcast %cst_35 : f32 to vector<2x32xf32>
    %99 = arith.mulf %98, %97 : vector<2x32xf32>
    %100 = vector.extract_strided_slice %83 {offsets = [0, 64], sizes = [2, 32], strides = [1, 1]} : vector<2x128xf32> to vector<2x32xf32>
    %101 = math.tanh %100 : vector<2x32xf32>
    %102 = vector.extract_strided_slice %83 {offsets = [0, 96], sizes = [2, 32], strides = [1, 1]} : vector<2x128xf32> to vector<2x32xf32>
    %cst_36 = arith.constant 5.000000e-01 : f32
    %103 = vector.broadcast %cst_36 : f32 to vector<2x32xf32>
    %104 = arith.mulf %103, %102 : vector<2x32xf32>
    %105 = math.tanh %104 : vector<2x32xf32>
    %cst_37 = arith.constant 1.000000e+00 : f32
    %106 = vector.broadcast %cst_37 : f32 to vector<2x32xf32>
    %107 = arith.addf %105, %106 : vector<2x32xf32>
    %cst_38 = arith.constant 5.000000e-01 : f32
    %108 = vector.broadcast %cst_38 : f32 to vector<2x32xf32>
    %109 = arith.mulf %108, %107 : vector<2x32xf32>
    %110 = arith.mulf %99, %76 : vector<2x32xf32>
    %111 = arith.mulf %91, %101 : vector<2x32xf32>
    %112 = arith.addf %110, %111 : vector<2x32xf32>
    %113 = math.tanh %112 : vector<2x32xf32>
    %114 = arith.mulf %109, %113 : vector<2x32xf32>
    %115 = vector.extract_strided_slice %114 {offsets = [0, 0], sizes = [2, 16], strides = [1, 1]} : vector<2x32xf32> to vector<2x16xf32>
    %116 = vector.extract_strided_slice %114 {offsets = [0, 16], sizes = [2, 16], strides = [1, 1]} : vector<2x32xf32> to vector<2x16xf32>
    %117 = vector.extract_strided_slice %5 {offsets = [6, 0], sizes = [2, 128], strides = [1, 1]} : vector<16x128xf32> to vector<2x128xf32>
    %cst_39 = arith.constant dense<0.000000e+00> : vector<2x128xf32>
    %118 = tpu.matmul %114, %6, %cst_39 {dimension_numbers = #tpu.dot_dimension_numbers<[1], [0], [0], [1], [0, 0, 1, 1], [], []>, precision = #tpu.contract_precision<fp32>} : vector<2x32xf32>, vector<32x128xf32>, vector<2x128xf32> -> vector<2x128xf32>
    %119 = arith.addf %117, %118 : vector<2x128xf32>
    %120 = vector.extract_strided_slice %119 {offsets = [0, 0], sizes = [2, 32], strides = [1, 1]} : vector<2x128xf32> to vector<2x32xf32>
    %cst_40 = arith.constant 5.000000e-01 : f32
    %121 = vector.broadcast %cst_40 : f32 to vector<2x32xf32>
    %122 = arith.mulf %121, %120 : vector<2x32xf32>
    %123 = math.tanh %122 : vector<2x32xf32>
    %cst_41 = arith.constant 1.000000e+00 : f32
    %124 = vector.broadcast %cst_41 : f32 to vector<2x32xf32>
    %125 = arith.addf %123, %124 : vector<2x32xf32>
    %cst_42 = arith.constant 5.000000e-01 : f32
    %126 = vector.broadcast %cst_42 : f32 to vector<2x32xf32>
    %127 = arith.mulf %126, %125 : vector<2x32xf32>
    %128 = vector.extract_strided_slice %119 {offsets = [0, 32], sizes = [2, 32], strides = [1, 1]} : vector<2x128xf32> to vector<2x32xf32>
    %cst_43 = arith.constant 5.000000e-01 : f32
    %129 = vector.broadcast %cst_43 : f32 to vector<2x32xf32>
    %130 = arith.mulf %129, %128 : vector<2x32xf32>
    %131 = math.tanh %130 : vector<2x32xf32>
    %cst_44 = arith.constant 1.000000e+00 : f32
    %132 = vector.broadcast %cst_44 : f32 to vector<2x32xf32>
    %133 = arith.addf %131, %132 : vector<2x32xf32>
    %cst_45 = arith.constant 5.000000e-01 : f32
    %134 = vector.broadcast %cst_45 : f32 to vector<2x32xf32>
    %135 = arith.mulf %134, %133 : vector<2x32xf32>
    %136 = vector.extract_strided_slice %119 {offsets = [0, 64], sizes = [2, 32], strides = [1, 1]} : vector<2x128xf32> to vector<2x32xf32>
    %137 = math.tanh %136 : vector<2x32xf32>
    %138 = vector.extract_strided_slice %119 {offsets = [0, 96], sizes = [2, 32], strides = [1, 1]} : vector<2x128xf32> to vector<2x32xf32>
    %cst_46 = arith.constant 5.000000e-01 : f32
    %139 = vector.broadcast %cst_46 : f32 to vector<2x32xf32>
    %140 = arith.mulf %139, %138 : vector<2x32xf32>
    %141 = math.tanh %140 : vector<2x32xf32>
    %cst_47 = arith.constant 1.000000e+00 : f32
    %142 = vector.broadcast %cst_47 : f32 to vector<2x32xf32>
    %143 = arith.addf %141, %142 : vector<2x32xf32>
    %cst_48 = arith.constant 5.000000e-01 : f32
    %144 = vector.broadcast %cst_48 : f32 to vector<2x32xf32>
    %145 = arith.mulf %144, %143 : vector<2x32xf32>
    %146 = arith.mulf %135, %112 : vector<2x32xf32>
    %147 = arith.mulf %127, %137 : vector<2x32xf32>
    %148 = arith.addf %146, %147 : vector<2x32xf32>
    %149 = math.tanh %148 : vector<2x32xf32>
    %150 = arith.mulf %145, %149 : vector<2x32xf32>
    %151 = vector.extract_strided_slice %150 {offsets = [0, 0], sizes = [2, 16], strides = [1, 1]} : vector<2x32xf32> to vector<2x16xf32>
    %152 = vector.extract_strided_slice %150 {offsets = [0, 16], sizes = [2, 16], strides = [1, 1]} : vector<2x32xf32> to vector<2x16xf32>
    %153 = vector.extract_strided_slice %5 {offsets = [8, 0], sizes = [2, 128], strides = [1, 1]} : vector<16x128xf32> to vector<2x128xf32>
    %cst_49 = arith.constant dense<0.000000e+00> : vector<2x128xf32>
    %154 = tpu.matmul %150, %6, %cst_49 {dimension_numbers = #tpu.dot_dimension_numbers<[1], [0], [0], [1], [0, 0, 1, 1], [], []>, precision = #tpu.contract_precision<fp32>} : vector<2x32xf32>, vector<32x128xf32>, vector<2x128xf32> -> vector<2x128xf32>
    %155 = arith.addf %153, %154 : vector<2x128xf32>
    %156 = vector.extract_strided_slice %155 {offsets = [0, 0], sizes = [2, 32], strides = [1, 1]} : vector<2x128xf32> to vector<2x32xf32>
    %cst_50 = arith.constant 5.000000e-01 : f32
    %157 = vector.broadcast %cst_50 : f32 to vector<2x32xf32>
    %158 = arith.mulf %157, %156 : vector<2x32xf32>
    %159 = math.tanh %158 : vector<2x32xf32>
    %cst_51 = arith.constant 1.000000e+00 : f32
    %160 = vector.broadcast %cst_51 : f32 to vector<2x32xf32>
    %161 = arith.addf %159, %160 : vector<2x32xf32>
    %cst_52 = arith.constant 5.000000e-01 : f32
    %162 = vector.broadcast %cst_52 : f32 to vector<2x32xf32>
    %163 = arith.mulf %162, %161 : vector<2x32xf32>
    %164 = vector.extract_strided_slice %155 {offsets = [0, 32], sizes = [2, 32], strides = [1, 1]} : vector<2x128xf32> to vector<2x32xf32>
    %cst_53 = arith.constant 5.000000e-01 : f32
    %165 = vector.broadcast %cst_53 : f32 to vector<2x32xf32>
    %166 = arith.mulf %165, %164 : vector<2x32xf32>
    %167 = math.tanh %166 : vector<2x32xf32>
    %cst_54 = arith.constant 1.000000e+00 : f32
    %168 = vector.broadcast %cst_54 : f32 to vector<2x32xf32>
    %169 = arith.addf %167, %168 : vector<2x32xf32>
    %cst_55 = arith.constant 5.000000e-01 : f32
    %170 = vector.broadcast %cst_55 : f32 to vector<2x32xf32>
    %171 = arith.mulf %170, %169 : vector<2x32xf32>
    %172 = vector.extract_strided_slice %155 {offsets = [0, 64], sizes = [2, 32], strides = [1, 1]} : vector<2x128xf32> to vector<2x32xf32>
    %173 = math.tanh %172 : vector<2x32xf32>
    %174 = vector.extract_strided_slice %155 {offsets = [0, 96], sizes = [2, 32], strides = [1, 1]} : vector<2x128xf32> to vector<2x32xf32>
    %cst_56 = arith.constant 5.000000e-01 : f32
    %175 = vector.broadcast %cst_56 : f32 to vector<2x32xf32>
    %176 = arith.mulf %175, %174 : vector<2x32xf32>
    %177 = math.tanh %176 : vector<2x32xf32>
    %cst_57 = arith.constant 1.000000e+00 : f32
    %178 = vector.broadcast %cst_57 : f32 to vector<2x32xf32>
    %179 = arith.addf %177, %178 : vector<2x32xf32>
    %cst_58 = arith.constant 5.000000e-01 : f32
    %180 = vector.broadcast %cst_58 : f32 to vector<2x32xf32>
    %181 = arith.mulf %180, %179 : vector<2x32xf32>
    %182 = arith.mulf %171, %148 : vector<2x32xf32>
    %183 = arith.mulf %163, %173 : vector<2x32xf32>
    %184 = arith.addf %182, %183 : vector<2x32xf32>
    %185 = math.tanh %184 : vector<2x32xf32>
    %186 = arith.mulf %181, %185 : vector<2x32xf32>
    %187 = vector.extract_strided_slice %186 {offsets = [0, 0], sizes = [2, 16], strides = [1, 1]} : vector<2x32xf32> to vector<2x16xf32>
    %188 = vector.extract_strided_slice %186 {offsets = [0, 16], sizes = [2, 16], strides = [1, 1]} : vector<2x32xf32> to vector<2x16xf32>
    %189 = vector.extract_strided_slice %5 {offsets = [10, 0], sizes = [2, 128], strides = [1, 1]} : vector<16x128xf32> to vector<2x128xf32>
    %cst_59 = arith.constant dense<0.000000e+00> : vector<2x128xf32>
    %190 = tpu.matmul %186, %6, %cst_59 {dimension_numbers = #tpu.dot_dimension_numbers<[1], [0], [0], [1], [0, 0, 1, 1], [], []>, precision = #tpu.contract_precision<fp32>} : vector<2x32xf32>, vector<32x128xf32>, vector<2x128xf32> -> vector<2x128xf32>
    %191 = arith.addf %189, %190 : vector<2x128xf32>
    %192 = vector.extract_strided_slice %191 {offsets = [0, 0], sizes = [2, 32], strides = [1, 1]} : vector<2x128xf32> to vector<2x32xf32>
    %cst_60 = arith.constant 5.000000e-01 : f32
    %193 = vector.broadcast %cst_60 : f32 to vector<2x32xf32>
    %194 = arith.mulf %193, %192 : vector<2x32xf32>
    %195 = math.tanh %194 : vector<2x32xf32>
    %cst_61 = arith.constant 1.000000e+00 : f32
    %196 = vector.broadcast %cst_61 : f32 to vector<2x32xf32>
    %197 = arith.addf %195, %196 : vector<2x32xf32>
    %cst_62 = arith.constant 5.000000e-01 : f32
    %198 = vector.broadcast %cst_62 : f32 to vector<2x32xf32>
    %199 = arith.mulf %198, %197 : vector<2x32xf32>
    %200 = vector.extract_strided_slice %191 {offsets = [0, 32], sizes = [2, 32], strides = [1, 1]} : vector<2x128xf32> to vector<2x32xf32>
    %cst_63 = arith.constant 5.000000e-01 : f32
    %201 = vector.broadcast %cst_63 : f32 to vector<2x32xf32>
    %202 = arith.mulf %201, %200 : vector<2x32xf32>
    %203 = math.tanh %202 : vector<2x32xf32>
    %cst_64 = arith.constant 1.000000e+00 : f32
    %204 = vector.broadcast %cst_64 : f32 to vector<2x32xf32>
    %205 = arith.addf %203, %204 : vector<2x32xf32>
    %cst_65 = arith.constant 5.000000e-01 : f32
    %206 = vector.broadcast %cst_65 : f32 to vector<2x32xf32>
    %207 = arith.mulf %206, %205 : vector<2x32xf32>
    %208 = vector.extract_strided_slice %191 {offsets = [0, 64], sizes = [2, 32], strides = [1, 1]} : vector<2x128xf32> to vector<2x32xf32>
    %209 = math.tanh %208 : vector<2x32xf32>
    %210 = vector.extract_strided_slice %191 {offsets = [0, 96], sizes = [2, 32], strides = [1, 1]} : vector<2x128xf32> to vector<2x32xf32>
    %cst_66 = arith.constant 5.000000e-01 : f32
    %211 = vector.broadcast %cst_66 : f32 to vector<2x32xf32>
    %212 = arith.mulf %211, %210 : vector<2x32xf32>
    %213 = math.tanh %212 : vector<2x32xf32>
    %cst_67 = arith.constant 1.000000e+00 : f32
    %214 = vector.broadcast %cst_67 : f32 to vector<2x32xf32>
    %215 = arith.addf %213, %214 : vector<2x32xf32>
    %cst_68 = arith.constant 5.000000e-01 : f32
    %216 = vector.broadcast %cst_68 : f32 to vector<2x32xf32>
    %217 = arith.mulf %216, %215 : vector<2x32xf32>
    %218 = arith.mulf %207, %184 : vector<2x32xf32>
    %219 = arith.mulf %199, %209 : vector<2x32xf32>
    %220 = arith.addf %218, %219 : vector<2x32xf32>
    %221 = math.tanh %220 : vector<2x32xf32>
    %222 = arith.mulf %217, %221 : vector<2x32xf32>
    %223 = vector.extract_strided_slice %222 {offsets = [0, 0], sizes = [2, 16], strides = [1, 1]} : vector<2x32xf32> to vector<2x16xf32>
    %224 = vector.extract_strided_slice %222 {offsets = [0, 16], sizes = [2, 16], strides = [1, 1]} : vector<2x32xf32> to vector<2x16xf32>
    %225 = vector.extract_strided_slice %5 {offsets = [12, 0], sizes = [2, 128], strides = [1, 1]} : vector<16x128xf32> to vector<2x128xf32>
    %cst_69 = arith.constant dense<0.000000e+00> : vector<2x128xf32>
    %226 = tpu.matmul %222, %6, %cst_69 {dimension_numbers = #tpu.dot_dimension_numbers<[1], [0], [0], [1], [0, 0, 1, 1], [], []>, precision = #tpu.contract_precision<fp32>} : vector<2x32xf32>, vector<32x128xf32>, vector<2x128xf32> -> vector<2x128xf32>
    %227 = arith.addf %225, %226 : vector<2x128xf32>
    %228 = vector.extract_strided_slice %227 {offsets = [0, 0], sizes = [2, 32], strides = [1, 1]} : vector<2x128xf32> to vector<2x32xf32>
    %cst_70 = arith.constant 5.000000e-01 : f32
    %229 = vector.broadcast %cst_70 : f32 to vector<2x32xf32>
    %230 = arith.mulf %229, %228 : vector<2x32xf32>
    %231 = math.tanh %230 : vector<2x32xf32>
    %cst_71 = arith.constant 1.000000e+00 : f32
    %232 = vector.broadcast %cst_71 : f32 to vector<2x32xf32>
    %233 = arith.addf %231, %232 : vector<2x32xf32>
    %cst_72 = arith.constant 5.000000e-01 : f32
    %234 = vector.broadcast %cst_72 : f32 to vector<2x32xf32>
    %235 = arith.mulf %234, %233 : vector<2x32xf32>
    %236 = vector.extract_strided_slice %227 {offsets = [0, 32], sizes = [2, 32], strides = [1, 1]} : vector<2x128xf32> to vector<2x32xf32>
    %cst_73 = arith.constant 5.000000e-01 : f32
    %237 = vector.broadcast %cst_73 : f32 to vector<2x32xf32>
    %238 = arith.mulf %237, %236 : vector<2x32xf32>
    %239 = math.tanh %238 : vector<2x32xf32>
    %cst_74 = arith.constant 1.000000e+00 : f32
    %240 = vector.broadcast %cst_74 : f32 to vector<2x32xf32>
    %241 = arith.addf %239, %240 : vector<2x32xf32>
    %cst_75 = arith.constant 5.000000e-01 : f32
    %242 = vector.broadcast %cst_75 : f32 to vector<2x32xf32>
    %243 = arith.mulf %242, %241 : vector<2x32xf32>
    %244 = vector.extract_strided_slice %227 {offsets = [0, 64], sizes = [2, 32], strides = [1, 1]} : vector<2x128xf32> to vector<2x32xf32>
    %245 = math.tanh %244 : vector<2x32xf32>
    %246 = vector.extract_strided_slice %227 {offsets = [0, 96], sizes = [2, 32], strides = [1, 1]} : vector<2x128xf32> to vector<2x32xf32>
    %cst_76 = arith.constant 5.000000e-01 : f32
    %247 = vector.broadcast %cst_76 : f32 to vector<2x32xf32>
    %248 = arith.mulf %247, %246 : vector<2x32xf32>
    %249 = math.tanh %248 : vector<2x32xf32>
    %cst_77 = arith.constant 1.000000e+00 : f32
    %250 = vector.broadcast %cst_77 : f32 to vector<2x32xf32>
    %251 = arith.addf %249, %250 : vector<2x32xf32>
    %cst_78 = arith.constant 5.000000e-01 : f32
    %252 = vector.broadcast %cst_78 : f32 to vector<2x32xf32>
    %253 = arith.mulf %252, %251 : vector<2x32xf32>
    %254 = arith.mulf %243, %220 : vector<2x32xf32>
    %255 = arith.mulf %235, %245 : vector<2x32xf32>
    %256 = arith.addf %254, %255 : vector<2x32xf32>
    %257 = math.tanh %256 : vector<2x32xf32>
    %258 = arith.mulf %253, %257 : vector<2x32xf32>
    %259 = vector.extract_strided_slice %258 {offsets = [0, 0], sizes = [2, 16], strides = [1, 1]} : vector<2x32xf32> to vector<2x16xf32>
    %260 = vector.extract_strided_slice %258 {offsets = [0, 16], sizes = [2, 16], strides = [1, 1]} : vector<2x32xf32> to vector<2x16xf32>
    %261 = vector.extract_strided_slice %5 {offsets = [14, 0], sizes = [2, 128], strides = [1, 1]} : vector<16x128xf32> to vector<2x128xf32>
    %cst_79 = arith.constant dense<0.000000e+00> : vector<2x128xf32>
    %262 = tpu.matmul %258, %6, %cst_79 {dimension_numbers = #tpu.dot_dimension_numbers<[1], [0], [0], [1], [0, 0, 1, 1], [], []>, precision = #tpu.contract_precision<fp32>} : vector<2x32xf32>, vector<32x128xf32>, vector<2x128xf32> -> vector<2x128xf32>
    %263 = arith.addf %261, %262 : vector<2x128xf32>
    %264 = vector.extract_strided_slice %263 {offsets = [0, 0], sizes = [2, 32], strides = [1, 1]} : vector<2x128xf32> to vector<2x32xf32>
    %cst_80 = arith.constant 5.000000e-01 : f32
    %265 = vector.broadcast %cst_80 : f32 to vector<2x32xf32>
    %266 = arith.mulf %265, %264 : vector<2x32xf32>
    %267 = math.tanh %266 : vector<2x32xf32>
    %cst_81 = arith.constant 1.000000e+00 : f32
    %268 = vector.broadcast %cst_81 : f32 to vector<2x32xf32>
    %269 = arith.addf %267, %268 : vector<2x32xf32>
    %cst_82 = arith.constant 5.000000e-01 : f32
    %270 = vector.broadcast %cst_82 : f32 to vector<2x32xf32>
    %271 = arith.mulf %270, %269 : vector<2x32xf32>
    %272 = vector.extract_strided_slice %263 {offsets = [0, 32], sizes = [2, 32], strides = [1, 1]} : vector<2x128xf32> to vector<2x32xf32>
    %cst_83 = arith.constant 5.000000e-01 : f32
    %273 = vector.broadcast %cst_83 : f32 to vector<2x32xf32>
    %274 = arith.mulf %273, %272 : vector<2x32xf32>
    %275 = math.tanh %274 : vector<2x32xf32>
    %cst_84 = arith.constant 1.000000e+00 : f32
    %276 = vector.broadcast %cst_84 : f32 to vector<2x32xf32>
    %277 = arith.addf %275, %276 : vector<2x32xf32>
    %cst_85 = arith.constant 5.000000e-01 : f32
    %278 = vector.broadcast %cst_85 : f32 to vector<2x32xf32>
    %279 = arith.mulf %278, %277 : vector<2x32xf32>
    %280 = vector.extract_strided_slice %263 {offsets = [0, 64], sizes = [2, 32], strides = [1, 1]} : vector<2x128xf32> to vector<2x32xf32>
    %281 = math.tanh %280 : vector<2x32xf32>
    %282 = vector.extract_strided_slice %263 {offsets = [0, 96], sizes = [2, 32], strides = [1, 1]} : vector<2x128xf32> to vector<2x32xf32>
    %cst_86 = arith.constant 5.000000e-01 : f32
    %283 = vector.broadcast %cst_86 : f32 to vector<2x32xf32>
    %284 = arith.mulf %283, %282 : vector<2x32xf32>
    %285 = math.tanh %284 : vector<2x32xf32>
    %cst_87 = arith.constant 1.000000e+00 : f32
    %286 = vector.broadcast %cst_87 : f32 to vector<2x32xf32>
    %287 = arith.addf %285, %286 : vector<2x32xf32>
    %cst_88 = arith.constant 5.000000e-01 : f32
    %288 = vector.broadcast %cst_88 : f32 to vector<2x32xf32>
    %289 = arith.mulf %288, %287 : vector<2x32xf32>
    %290 = arith.mulf %279, %256 : vector<2x32xf32>
    %291 = arith.mulf %271, %281 : vector<2x32xf32>
    %292 = arith.addf %290, %291 : vector<2x32xf32>
    %293 = math.tanh %292 : vector<2x32xf32>
    %294 = arith.mulf %289, %293 : vector<2x32xf32>
    %295 = vector.extract_strided_slice %294 {offsets = [0, 0], sizes = [2, 16], strides = [1, 1]} : vector<2x32xf32> to vector<2x16xf32>
    %296 = vector.extract_strided_slice %294 {offsets = [0, 16], sizes = [2, 16], strides = [1, 1]} : vector<2x32xf32> to vector<2x16xf32>
    %297 = tpu.concatenate %43, %296 in 1 : vector<2x16xf32>, vector<2x16xf32> -> vector<2x32xf32>
    %298 = tpu.concatenate %79, %260 in 1 : vector<2x16xf32>, vector<2x16xf32> -> vector<2x32xf32>
    %299 = tpu.concatenate %115, %224 in 1 : vector<2x16xf32>, vector<2x16xf32> -> vector<2x32xf32>
    %300 = tpu.concatenate %151, %188 in 1 : vector<2x16xf32>, vector<2x16xf32> -> vector<2x32xf32>
    %301 = tpu.concatenate %187, %152 in 1 : vector<2x16xf32>, vector<2x16xf32> -> vector<2x32xf32>
    %302 = tpu.concatenate %223, %116 in 1 : vector<2x16xf32>, vector<2x16xf32> -> vector<2x32xf32>
    %303 = tpu.concatenate %259, %80 in 1 : vector<2x16xf32>, vector<2x16xf32> -> vector<2x32xf32>
    %304 = tpu.concatenate %295, %44 in 1 : vector<2x16xf32>, vector<2x16xf32> -> vector<2x32xf32>
    %305 = tpu.concatenate %297, %298, %299, %300, %301, %302, %303, %304 in 0 : vector<2x32xf32>, vector<2x32xf32>, vector<2x32xf32>, vector<2x32xf32>, vector<2x32xf32>, vector<2x32xf32>, vector<2x32xf32>, vector<2x32xf32> -> vector<16x32xf32>
    %c0_89 = arith.constant 0 : index
    %c0_90 = arith.constant 0 : index
    %306 = vector.load %arg5[%c0_89, %c0_90] : memref<32x128xf32, #tpu.memory_space<vmem>>, vector<32x128xf32>
    %cst_91 = arith.constant dense<0.000000e+00> : vector<16x128xf32>
    %307 = tpu.matmul %305, %306, %cst_91 {dimension_numbers = #tpu.dot_dimension_numbers<[1], [0], [0], [1], [0, 0, 1, 1], [], []>, precision = #tpu.contract_precision<fp32>} : vector<16x32xf32>, vector<32x128xf32>, vector<16x128xf32> -> vector<16x128xf32>
    %c0_92 = arith.constant 0 : index
    %c0_93 = arith.constant 0 : index
    %308 = vector.load %arg6[%c0_92, %c0_93] : memref<1x128xf32, #tpu.memory_space<vmem>>, vector<1x128xf32>
    %309 = vector.broadcast %308 : vector<1x128xf32> to vector<16x128xf32>
    %310 = arith.addf %307, %309 : vector<16x128xf32>
    %c0_94 = arith.constant 0 : index
    %c0_95 = arith.constant 0 : index
    %311 = vector.load %arg7[%c0_94, %c0_95] : memref<32x128xf32, #tpu.memory_space<vmem>>, vector<32x128xf32>
    %cst_96 = arith.constant 0.000000e+00 : f32
    %312 = vector.broadcast %cst_96 : f32 to vector<2x32xf32>
    %cst_97 = arith.constant 0.000000e+00 : f32
    %313 = vector.broadcast %cst_97 : f32 to vector<2x32xf32>
    %314 = vector.extract_strided_slice %310 {offsets = [0, 0], sizes = [2, 128], strides = [1, 1]} : vector<16x128xf32> to vector<2x128xf32>
    %cst_98 = arith.constant dense<0.000000e+00> : vector<2x128xf32>
    %315 = tpu.matmul %312, %311, %cst_98 {dimension_numbers = #tpu.dot_dimension_numbers<[1], [0], [0], [1], [0, 0, 1, 1], [], []>, precision = #tpu.contract_precision<fp32>} : vector<2x32xf32>, vector<32x128xf32>, vector<2x128xf32> -> vector<2x128xf32>
    %316 = arith.addf %314, %315 : vector<2x128xf32>
    %317 = vector.extract_strided_slice %316 {offsets = [0, 0], sizes = [2, 32], strides = [1, 1]} : vector<2x128xf32> to vector<2x32xf32>
    %cst_99 = arith.constant 5.000000e-01 : f32
    %318 = vector.broadcast %cst_99 : f32 to vector<2x32xf32>
    %319 = arith.mulf %318, %317 : vector<2x32xf32>
    %320 = math.tanh %319 : vector<2x32xf32>
    %cst_100 = arith.constant 1.000000e+00 : f32
    %321 = vector.broadcast %cst_100 : f32 to vector<2x32xf32>
    %322 = arith.addf %320, %321 : vector<2x32xf32>
    %cst_101 = arith.constant 5.000000e-01 : f32
    %323 = vector.broadcast %cst_101 : f32 to vector<2x32xf32>
    %324 = arith.mulf %323, %322 : vector<2x32xf32>
    %325 = vector.extract_strided_slice %316 {offsets = [0, 32], sizes = [2, 32], strides = [1, 1]} : vector<2x128xf32> to vector<2x32xf32>
    %cst_102 = arith.constant 5.000000e-01 : f32
    %326 = vector.broadcast %cst_102 : f32 to vector<2x32xf32>
    %327 = arith.mulf %326, %325 : vector<2x32xf32>
    %328 = math.tanh %327 : vector<2x32xf32>
    %cst_103 = arith.constant 1.000000e+00 : f32
    %329 = vector.broadcast %cst_103 : f32 to vector<2x32xf32>
    %330 = arith.addf %328, %329 : vector<2x32xf32>
    %cst_104 = arith.constant 5.000000e-01 : f32
    %331 = vector.broadcast %cst_104 : f32 to vector<2x32xf32>
    %332 = arith.mulf %331, %330 : vector<2x32xf32>
    %333 = vector.extract_strided_slice %316 {offsets = [0, 64], sizes = [2, 32], strides = [1, 1]} : vector<2x128xf32> to vector<2x32xf32>
    %334 = math.tanh %333 : vector<2x32xf32>
    %335 = vector.extract_strided_slice %316 {offsets = [0, 96], sizes = [2, 32], strides = [1, 1]} : vector<2x128xf32> to vector<2x32xf32>
    %cst_105 = arith.constant 5.000000e-01 : f32
    %336 = vector.broadcast %cst_105 : f32 to vector<2x32xf32>
    %337 = arith.mulf %336, %335 : vector<2x32xf32>
    %338 = math.tanh %337 : vector<2x32xf32>
    %cst_106 = arith.constant 1.000000e+00 : f32
    %339 = vector.broadcast %cst_106 : f32 to vector<2x32xf32>
    %340 = arith.addf %338, %339 : vector<2x32xf32>
    %cst_107 = arith.constant 5.000000e-01 : f32
    %341 = vector.broadcast %cst_107 : f32 to vector<2x32xf32>
    %342 = arith.mulf %341, %340 : vector<2x32xf32>
    %343 = arith.mulf %332, %313 : vector<2x32xf32>
    %344 = arith.mulf %324, %334 : vector<2x32xf32>
    %345 = arith.addf %343, %344 : vector<2x32xf32>
    %346 = math.tanh %345 : vector<2x32xf32>
    %347 = arith.mulf %342, %346 : vector<2x32xf32>
    %348 = vector.extract_strided_slice %310 {offsets = [2, 0], sizes = [2, 128], strides = [1, 1]} : vector<16x128xf32> to vector<2x128xf32>
    %cst_108 = arith.constant dense<0.000000e+00> : vector<2x128xf32>
    %349 = tpu.matmul %347, %311, %cst_108 {dimension_numbers = #tpu.dot_dimension_numbers<[1], [0], [0], [1], [0, 0, 1, 1], [], []>, precision = #tpu.contract_precision<fp32>} : vector<2x32xf32>, vector<32x128xf32>, vector<2x128xf32> -> vector<2x128xf32>
    %350 = arith.addf %348, %349 : vector<2x128xf32>
    %351 = vector.extract_strided_slice %350 {offsets = [0, 0], sizes = [2, 32], strides = [1, 1]} : vector<2x128xf32> to vector<2x32xf32>
    %cst_109 = arith.constant 5.000000e-01 : f32
    %352 = vector.broadcast %cst_109 : f32 to vector<2x32xf32>
    %353 = arith.mulf %352, %351 : vector<2x32xf32>
    %354 = math.tanh %353 : vector<2x32xf32>
    %cst_110 = arith.constant 1.000000e+00 : f32
    %355 = vector.broadcast %cst_110 : f32 to vector<2x32xf32>
    %356 = arith.addf %354, %355 : vector<2x32xf32>
    %cst_111 = arith.constant 5.000000e-01 : f32
    %357 = vector.broadcast %cst_111 : f32 to vector<2x32xf32>
    %358 = arith.mulf %357, %356 : vector<2x32xf32>
    %359 = vector.extract_strided_slice %350 {offsets = [0, 32], sizes = [2, 32], strides = [1, 1]} : vector<2x128xf32> to vector<2x32xf32>
    %cst_112 = arith.constant 5.000000e-01 : f32
    %360 = vector.broadcast %cst_112 : f32 to vector<2x32xf32>
    %361 = arith.mulf %360, %359 : vector<2x32xf32>
    %362 = math.tanh %361 : vector<2x32xf32>
    %cst_113 = arith.constant 1.000000e+00 : f32
    %363 = vector.broadcast %cst_113 : f32 to vector<2x32xf32>
    %364 = arith.addf %362, %363 : vector<2x32xf32>
    %cst_114 = arith.constant 5.000000e-01 : f32
    %365 = vector.broadcast %cst_114 : f32 to vector<2x32xf32>
    %366 = arith.mulf %365, %364 : vector<2x32xf32>
    %367 = vector.extract_strided_slice %350 {offsets = [0, 64], sizes = [2, 32], strides = [1, 1]} : vector<2x128xf32> to vector<2x32xf32>
    %368 = math.tanh %367 : vector<2x32xf32>
    %369 = vector.extract_strided_slice %350 {offsets = [0, 96], sizes = [2, 32], strides = [1, 1]} : vector<2x128xf32> to vector<2x32xf32>
    %cst_115 = arith.constant 5.000000e-01 : f32
    %370 = vector.broadcast %cst_115 : f32 to vector<2x32xf32>
    %371 = arith.mulf %370, %369 : vector<2x32xf32>
    %372 = math.tanh %371 : vector<2x32xf32>
    %cst_116 = arith.constant 1.000000e+00 : f32
    %373 = vector.broadcast %cst_116 : f32 to vector<2x32xf32>
    %374 = arith.addf %372, %373 : vector<2x32xf32>
    %cst_117 = arith.constant 5.000000e-01 : f32
    %375 = vector.broadcast %cst_117 : f32 to vector<2x32xf32>
    %376 = arith.mulf %375, %374 : vector<2x32xf32>
    %377 = arith.mulf %366, %345 : vector<2x32xf32>
    %378 = arith.mulf %358, %368 : vector<2x32xf32>
    %379 = arith.addf %377, %378 : vector<2x32xf32>
    %380 = math.tanh %379 : vector<2x32xf32>
    %381 = arith.mulf %376, %380 : vector<2x32xf32>
    %382 = vector.extract_strided_slice %310 {offsets = [4, 0], sizes = [2, 128], strides = [1, 1]} : vector<16x128xf32> to vector<2x128xf32>
    %cst_118 = arith.constant dense<0.000000e+00> : vector<2x128xf32>
    %383 = tpu.matmul %381, %311, %cst_118 {dimension_numbers = #tpu.dot_dimension_numbers<[1], [0], [0], [1], [0, 0, 1, 1], [], []>, precision = #tpu.contract_precision<fp32>} : vector<2x32xf32>, vector<32x128xf32>, vector<2x128xf32> -> vector<2x128xf32>
    %384 = arith.addf %382, %383 : vector<2x128xf32>
    %385 = vector.extract_strided_slice %384 {offsets = [0, 0], sizes = [2, 32], strides = [1, 1]} : vector<2x128xf32> to vector<2x32xf32>
    %cst_119 = arith.constant 5.000000e-01 : f32
    %386 = vector.broadcast %cst_119 : f32 to vector<2x32xf32>
    %387 = arith.mulf %386, %385 : vector<2x32xf32>
    %388 = math.tanh %387 : vector<2x32xf32>
    %cst_120 = arith.constant 1.000000e+00 : f32
    %389 = vector.broadcast %cst_120 : f32 to vector<2x32xf32>
    %390 = arith.addf %388, %389 : vector<2x32xf32>
    %cst_121 = arith.constant 5.000000e-01 : f32
    %391 = vector.broadcast %cst_121 : f32 to vector<2x32xf32>
    %392 = arith.mulf %391, %390 : vector<2x32xf32>
    %393 = vector.extract_strided_slice %384 {offsets = [0, 32], sizes = [2, 32], strides = [1, 1]} : vector<2x128xf32> to vector<2x32xf32>
    %cst_122 = arith.constant 5.000000e-01 : f32
    %394 = vector.broadcast %cst_122 : f32 to vector<2x32xf32>
    %395 = arith.mulf %394, %393 : vector<2x32xf32>
    %396 = math.tanh %395 : vector<2x32xf32>
    %cst_123 = arith.constant 1.000000e+00 : f32
    %397 = vector.broadcast %cst_123 : f32 to vector<2x32xf32>
    %398 = arith.addf %396, %397 : vector<2x32xf32>
    %cst_124 = arith.constant 5.000000e-01 : f32
    %399 = vector.broadcast %cst_124 : f32 to vector<2x32xf32>
    %400 = arith.mulf %399, %398 : vector<2x32xf32>
    %401 = vector.extract_strided_slice %384 {offsets = [0, 64], sizes = [2, 32], strides = [1, 1]} : vector<2x128xf32> to vector<2x32xf32>
    %402 = math.tanh %401 : vector<2x32xf32>
    %403 = vector.extract_strided_slice %384 {offsets = [0, 96], sizes = [2, 32], strides = [1, 1]} : vector<2x128xf32> to vector<2x32xf32>
    %cst_125 = arith.constant 5.000000e-01 : f32
    %404 = vector.broadcast %cst_125 : f32 to vector<2x32xf32>
    %405 = arith.mulf %404, %403 : vector<2x32xf32>
    %406 = math.tanh %405 : vector<2x32xf32>
    %cst_126 = arith.constant 1.000000e+00 : f32
    %407 = vector.broadcast %cst_126 : f32 to vector<2x32xf32>
    %408 = arith.addf %406, %407 : vector<2x32xf32>
    %cst_127 = arith.constant 5.000000e-01 : f32
    %409 = vector.broadcast %cst_127 : f32 to vector<2x32xf32>
    %410 = arith.mulf %409, %408 : vector<2x32xf32>
    %411 = arith.mulf %400, %379 : vector<2x32xf32>
    %412 = arith.mulf %392, %402 : vector<2x32xf32>
    %413 = arith.addf %411, %412 : vector<2x32xf32>
    %414 = math.tanh %413 : vector<2x32xf32>
    %415 = arith.mulf %410, %414 : vector<2x32xf32>
    %416 = vector.extract_strided_slice %310 {offsets = [6, 0], sizes = [2, 128], strides = [1, 1]} : vector<16x128xf32> to vector<2x128xf32>
    %cst_128 = arith.constant dense<0.000000e+00> : vector<2x128xf32>
    %417 = tpu.matmul %415, %311, %cst_128 {dimension_numbers = #tpu.dot_dimension_numbers<[1], [0], [0], [1], [0, 0, 1, 1], [], []>, precision = #tpu.contract_precision<fp32>} : vector<2x32xf32>, vector<32x128xf32>, vector<2x128xf32> -> vector<2x128xf32>
    %418 = arith.addf %416, %417 : vector<2x128xf32>
    %419 = vector.extract_strided_slice %418 {offsets = [0, 0], sizes = [2, 32], strides = [1, 1]} : vector<2x128xf32> to vector<2x32xf32>
    %cst_129 = arith.constant 5.000000e-01 : f32
    %420 = vector.broadcast %cst_129 : f32 to vector<2x32xf32>
    %421 = arith.mulf %420, %419 : vector<2x32xf32>
    %422 = math.tanh %421 : vector<2x32xf32>
    %cst_130 = arith.constant 1.000000e+00 : f32
    %423 = vector.broadcast %cst_130 : f32 to vector<2x32xf32>
    %424 = arith.addf %422, %423 : vector<2x32xf32>
    %cst_131 = arith.constant 5.000000e-01 : f32
    %425 = vector.broadcast %cst_131 : f32 to vector<2x32xf32>
    %426 = arith.mulf %425, %424 : vector<2x32xf32>
    %427 = vector.extract_strided_slice %418 {offsets = [0, 32], sizes = [2, 32], strides = [1, 1]} : vector<2x128xf32> to vector<2x32xf32>
    %cst_132 = arith.constant 5.000000e-01 : f32
    %428 = vector.broadcast %cst_132 : f32 to vector<2x32xf32>
    %429 = arith.mulf %428, %427 : vector<2x32xf32>
    %430 = math.tanh %429 : vector<2x32xf32>
    %cst_133 = arith.constant 1.000000e+00 : f32
    %431 = vector.broadcast %cst_133 : f32 to vector<2x32xf32>
    %432 = arith.addf %430, %431 : vector<2x32xf32>
    %cst_134 = arith.constant 5.000000e-01 : f32
    %433 = vector.broadcast %cst_134 : f32 to vector<2x32xf32>
    %434 = arith.mulf %433, %432 : vector<2x32xf32>
    %435 = vector.extract_strided_slice %418 {offsets = [0, 64], sizes = [2, 32], strides = [1, 1]} : vector<2x128xf32> to vector<2x32xf32>
    %436 = math.tanh %435 : vector<2x32xf32>
    %437 = vector.extract_strided_slice %418 {offsets = [0, 96], sizes = [2, 32], strides = [1, 1]} : vector<2x128xf32> to vector<2x32xf32>
    %cst_135 = arith.constant 5.000000e-01 : f32
    %438 = vector.broadcast %cst_135 : f32 to vector<2x32xf32>
    %439 = arith.mulf %438, %437 : vector<2x32xf32>
    %440 = math.tanh %439 : vector<2x32xf32>
    %cst_136 = arith.constant 1.000000e+00 : f32
    %441 = vector.broadcast %cst_136 : f32 to vector<2x32xf32>
    %442 = arith.addf %440, %441 : vector<2x32xf32>
    %cst_137 = arith.constant 5.000000e-01 : f32
    %443 = vector.broadcast %cst_137 : f32 to vector<2x32xf32>
    %444 = arith.mulf %443, %442 : vector<2x32xf32>
    %445 = arith.mulf %434, %413 : vector<2x32xf32>
    %446 = arith.mulf %426, %436 : vector<2x32xf32>
    %447 = arith.addf %445, %446 : vector<2x32xf32>
    %448 = math.tanh %447 : vector<2x32xf32>
    %449 = arith.mulf %444, %448 : vector<2x32xf32>
    %450 = vector.extract_strided_slice %310 {offsets = [8, 0], sizes = [2, 128], strides = [1, 1]} : vector<16x128xf32> to vector<2x128xf32>
    %cst_138 = arith.constant dense<0.000000e+00> : vector<2x128xf32>
    %451 = tpu.matmul %449, %311, %cst_138 {dimension_numbers = #tpu.dot_dimension_numbers<[1], [0], [0], [1], [0, 0, 1, 1], [], []>, precision = #tpu.contract_precision<fp32>} : vector<2x32xf32>, vector<32x128xf32>, vector<2x128xf32> -> vector<2x128xf32>
    %452 = arith.addf %450, %451 : vector<2x128xf32>
    %453 = vector.extract_strided_slice %452 {offsets = [0, 0], sizes = [2, 32], strides = [1, 1]} : vector<2x128xf32> to vector<2x32xf32>
    %cst_139 = arith.constant 5.000000e-01 : f32
    %454 = vector.broadcast %cst_139 : f32 to vector<2x32xf32>
    %455 = arith.mulf %454, %453 : vector<2x32xf32>
    %456 = math.tanh %455 : vector<2x32xf32>
    %cst_140 = arith.constant 1.000000e+00 : f32
    %457 = vector.broadcast %cst_140 : f32 to vector<2x32xf32>
    %458 = arith.addf %456, %457 : vector<2x32xf32>
    %cst_141 = arith.constant 5.000000e-01 : f32
    %459 = vector.broadcast %cst_141 : f32 to vector<2x32xf32>
    %460 = arith.mulf %459, %458 : vector<2x32xf32>
    %461 = vector.extract_strided_slice %452 {offsets = [0, 32], sizes = [2, 32], strides = [1, 1]} : vector<2x128xf32> to vector<2x32xf32>
    %cst_142 = arith.constant 5.000000e-01 : f32
    %462 = vector.broadcast %cst_142 : f32 to vector<2x32xf32>
    %463 = arith.mulf %462, %461 : vector<2x32xf32>
    %464 = math.tanh %463 : vector<2x32xf32>
    %cst_143 = arith.constant 1.000000e+00 : f32
    %465 = vector.broadcast %cst_143 : f32 to vector<2x32xf32>
    %466 = arith.addf %464, %465 : vector<2x32xf32>
    %cst_144 = arith.constant 5.000000e-01 : f32
    %467 = vector.broadcast %cst_144 : f32 to vector<2x32xf32>
    %468 = arith.mulf %467, %466 : vector<2x32xf32>
    %469 = vector.extract_strided_slice %452 {offsets = [0, 64], sizes = [2, 32], strides = [1, 1]} : vector<2x128xf32> to vector<2x32xf32>
    %470 = math.tanh %469 : vector<2x32xf32>
    %471 = vector.extract_strided_slice %452 {offsets = [0, 96], sizes = [2, 32], strides = [1, 1]} : vector<2x128xf32> to vector<2x32xf32>
    %cst_145 = arith.constant 5.000000e-01 : f32
    %472 = vector.broadcast %cst_145 : f32 to vector<2x32xf32>
    %473 = arith.mulf %472, %471 : vector<2x32xf32>
    %474 = math.tanh %473 : vector<2x32xf32>
    %cst_146 = arith.constant 1.000000e+00 : f32
    %475 = vector.broadcast %cst_146 : f32 to vector<2x32xf32>
    %476 = arith.addf %474, %475 : vector<2x32xf32>
    %cst_147 = arith.constant 5.000000e-01 : f32
    %477 = vector.broadcast %cst_147 : f32 to vector<2x32xf32>
    %478 = arith.mulf %477, %476 : vector<2x32xf32>
    %479 = arith.mulf %468, %447 : vector<2x32xf32>
    %480 = arith.mulf %460, %470 : vector<2x32xf32>
    %481 = arith.addf %479, %480 : vector<2x32xf32>
    %482 = math.tanh %481 : vector<2x32xf32>
    %483 = arith.mulf %478, %482 : vector<2x32xf32>
    %484 = vector.extract_strided_slice %310 {offsets = [10, 0], sizes = [2, 128], strides = [1, 1]} : vector<16x128xf32> to vector<2x128xf32>
    %cst_148 = arith.constant dense<0.000000e+00> : vector<2x128xf32>
    %485 = tpu.matmul %483, %311, %cst_148 {dimension_numbers = #tpu.dot_dimension_numbers<[1], [0], [0], [1], [0, 0, 1, 1], [], []>, precision = #tpu.contract_precision<fp32>} : vector<2x32xf32>, vector<32x128xf32>, vector<2x128xf32> -> vector<2x128xf32>
    %486 = arith.addf %484, %485 : vector<2x128xf32>
    %487 = vector.extract_strided_slice %486 {offsets = [0, 0], sizes = [2, 32], strides = [1, 1]} : vector<2x128xf32> to vector<2x32xf32>
    %cst_149 = arith.constant 5.000000e-01 : f32
    %488 = vector.broadcast %cst_149 : f32 to vector<2x32xf32>
    %489 = arith.mulf %488, %487 : vector<2x32xf32>
    %490 = math.tanh %489 : vector<2x32xf32>
    %cst_150 = arith.constant 1.000000e+00 : f32
    %491 = vector.broadcast %cst_150 : f32 to vector<2x32xf32>
    %492 = arith.addf %490, %491 : vector<2x32xf32>
    %cst_151 = arith.constant 5.000000e-01 : f32
    %493 = vector.broadcast %cst_151 : f32 to vector<2x32xf32>
    %494 = arith.mulf %493, %492 : vector<2x32xf32>
    %495 = vector.extract_strided_slice %486 {offsets = [0, 32], sizes = [2, 32], strides = [1, 1]} : vector<2x128xf32> to vector<2x32xf32>
    %cst_152 = arith.constant 5.000000e-01 : f32
    %496 = vector.broadcast %cst_152 : f32 to vector<2x32xf32>
    %497 = arith.mulf %496, %495 : vector<2x32xf32>
    %498 = math.tanh %497 : vector<2x32xf32>
    %cst_153 = arith.constant 1.000000e+00 : f32
    %499 = vector.broadcast %cst_153 : f32 to vector<2x32xf32>
    %500 = arith.addf %498, %499 : vector<2x32xf32>
    %cst_154 = arith.constant 5.000000e-01 : f32
    %501 = vector.broadcast %cst_154 : f32 to vector<2x32xf32>
    %502 = arith.mulf %501, %500 : vector<2x32xf32>
    %503 = vector.extract_strided_slice %486 {offsets = [0, 64], sizes = [2, 32], strides = [1, 1]} : vector<2x128xf32> to vector<2x32xf32>
    %504 = math.tanh %503 : vector<2x32xf32>
    %505 = vector.extract_strided_slice %486 {offsets = [0, 96], sizes = [2, 32], strides = [1, 1]} : vector<2x128xf32> to vector<2x32xf32>
    %cst_155 = arith.constant 5.000000e-01 : f32
    %506 = vector.broadcast %cst_155 : f32 to vector<2x32xf32>
    %507 = arith.mulf %506, %505 : vector<2x32xf32>
    %508 = math.tanh %507 : vector<2x32xf32>
    %cst_156 = arith.constant 1.000000e+00 : f32
    %509 = vector.broadcast %cst_156 : f32 to vector<2x32xf32>
    %510 = arith.addf %508, %509 : vector<2x32xf32>
    %cst_157 = arith.constant 5.000000e-01 : f32
    %511 = vector.broadcast %cst_157 : f32 to vector<2x32xf32>
    %512 = arith.mulf %511, %510 : vector<2x32xf32>
    %513 = arith.mulf %502, %481 : vector<2x32xf32>
    %514 = arith.mulf %494, %504 : vector<2x32xf32>
    %515 = arith.addf %513, %514 : vector<2x32xf32>
    %516 = math.tanh %515 : vector<2x32xf32>
    %517 = arith.mulf %512, %516 : vector<2x32xf32>
    %518 = vector.extract_strided_slice %310 {offsets = [12, 0], sizes = [2, 128], strides = [1, 1]} : vector<16x128xf32> to vector<2x128xf32>
    %cst_158 = arith.constant dense<0.000000e+00> : vector<2x128xf32>
    %519 = tpu.matmul %517, %311, %cst_158 {dimension_numbers = #tpu.dot_dimension_numbers<[1], [0], [0], [1], [0, 0, 1, 1], [], []>, precision = #tpu.contract_precision<fp32>} : vector<2x32xf32>, vector<32x128xf32>, vector<2x128xf32> -> vector<2x128xf32>
    %520 = arith.addf %518, %519 : vector<2x128xf32>
    %521 = vector.extract_strided_slice %520 {offsets = [0, 0], sizes = [2, 32], strides = [1, 1]} : vector<2x128xf32> to vector<2x32xf32>
    %cst_159 = arith.constant 5.000000e-01 : f32
    %522 = vector.broadcast %cst_159 : f32 to vector<2x32xf32>
    %523 = arith.mulf %522, %521 : vector<2x32xf32>
    %524 = math.tanh %523 : vector<2x32xf32>
    %cst_160 = arith.constant 1.000000e+00 : f32
    %525 = vector.broadcast %cst_160 : f32 to vector<2x32xf32>
    %526 = arith.addf %524, %525 : vector<2x32xf32>
    %cst_161 = arith.constant 5.000000e-01 : f32
    %527 = vector.broadcast %cst_161 : f32 to vector<2x32xf32>
    %528 = arith.mulf %527, %526 : vector<2x32xf32>
    %529 = vector.extract_strided_slice %520 {offsets = [0, 32], sizes = [2, 32], strides = [1, 1]} : vector<2x128xf32> to vector<2x32xf32>
    %cst_162 = arith.constant 5.000000e-01 : f32
    %530 = vector.broadcast %cst_162 : f32 to vector<2x32xf32>
    %531 = arith.mulf %530, %529 : vector<2x32xf32>
    %532 = math.tanh %531 : vector<2x32xf32>
    %cst_163 = arith.constant 1.000000e+00 : f32
    %533 = vector.broadcast %cst_163 : f32 to vector<2x32xf32>
    %534 = arith.addf %532, %533 : vector<2x32xf32>
    %cst_164 = arith.constant 5.000000e-01 : f32
    %535 = vector.broadcast %cst_164 : f32 to vector<2x32xf32>
    %536 = arith.mulf %535, %534 : vector<2x32xf32>
    %537 = vector.extract_strided_slice %520 {offsets = [0, 64], sizes = [2, 32], strides = [1, 1]} : vector<2x128xf32> to vector<2x32xf32>
    %538 = math.tanh %537 : vector<2x32xf32>
    %539 = vector.extract_strided_slice %520 {offsets = [0, 96], sizes = [2, 32], strides = [1, 1]} : vector<2x128xf32> to vector<2x32xf32>
    %cst_165 = arith.constant 5.000000e-01 : f32
    %540 = vector.broadcast %cst_165 : f32 to vector<2x32xf32>
    %541 = arith.mulf %540, %539 : vector<2x32xf32>
    %542 = math.tanh %541 : vector<2x32xf32>
    %cst_166 = arith.constant 1.000000e+00 : f32
    %543 = vector.broadcast %cst_166 : f32 to vector<2x32xf32>
    %544 = arith.addf %542, %543 : vector<2x32xf32>
    %cst_167 = arith.constant 5.000000e-01 : f32
    %545 = vector.broadcast %cst_167 : f32 to vector<2x32xf32>
    %546 = arith.mulf %545, %544 : vector<2x32xf32>
    %547 = arith.mulf %536, %515 : vector<2x32xf32>
    %548 = arith.mulf %528, %538 : vector<2x32xf32>
    %549 = arith.addf %547, %548 : vector<2x32xf32>
    %550 = math.tanh %549 : vector<2x32xf32>
    %551 = arith.mulf %546, %550 : vector<2x32xf32>
    %552 = vector.extract_strided_slice %310 {offsets = [14, 0], sizes = [2, 128], strides = [1, 1]} : vector<16x128xf32> to vector<2x128xf32>
    %cst_168 = arith.constant dense<0.000000e+00> : vector<2x128xf32>
    %553 = tpu.matmul %551, %311, %cst_168 {dimension_numbers = #tpu.dot_dimension_numbers<[1], [0], [0], [1], [0, 0, 1, 1], [], []>, precision = #tpu.contract_precision<fp32>} : vector<2x32xf32>, vector<32x128xf32>, vector<2x128xf32> -> vector<2x128xf32>
    %554 = arith.addf %552, %553 : vector<2x128xf32>
    %555 = vector.extract_strided_slice %554 {offsets = [0, 0], sizes = [2, 32], strides = [1, 1]} : vector<2x128xf32> to vector<2x32xf32>
    %cst_169 = arith.constant 5.000000e-01 : f32
    %556 = vector.broadcast %cst_169 : f32 to vector<2x32xf32>
    %557 = arith.mulf %556, %555 : vector<2x32xf32>
    %558 = math.tanh %557 : vector<2x32xf32>
    %cst_170 = arith.constant 1.000000e+00 : f32
    %559 = vector.broadcast %cst_170 : f32 to vector<2x32xf32>
    %560 = arith.addf %558, %559 : vector<2x32xf32>
    %cst_171 = arith.constant 5.000000e-01 : f32
    %561 = vector.broadcast %cst_171 : f32 to vector<2x32xf32>
    %562 = arith.mulf %561, %560 : vector<2x32xf32>
    %563 = vector.extract_strided_slice %554 {offsets = [0, 32], sizes = [2, 32], strides = [1, 1]} : vector<2x128xf32> to vector<2x32xf32>
    %cst_172 = arith.constant 5.000000e-01 : f32
    %564 = vector.broadcast %cst_172 : f32 to vector<2x32xf32>
    %565 = arith.mulf %564, %563 : vector<2x32xf32>
    %566 = math.tanh %565 : vector<2x32xf32>
    %cst_173 = arith.constant 1.000000e+00 : f32
    %567 = vector.broadcast %cst_173 : f32 to vector<2x32xf32>
    %568 = arith.addf %566, %567 : vector<2x32xf32>
    %cst_174 = arith.constant 5.000000e-01 : f32
    %569 = vector.broadcast %cst_174 : f32 to vector<2x32xf32>
    %570 = arith.mulf %569, %568 : vector<2x32xf32>
    %571 = vector.extract_strided_slice %554 {offsets = [0, 64], sizes = [2, 32], strides = [1, 1]} : vector<2x128xf32> to vector<2x32xf32>
    %572 = math.tanh %571 : vector<2x32xf32>
    %573 = vector.extract_strided_slice %554 {offsets = [0, 96], sizes = [2, 32], strides = [1, 1]} : vector<2x128xf32> to vector<2x32xf32>
    %cst_175 = arith.constant 5.000000e-01 : f32
    %574 = vector.broadcast %cst_175 : f32 to vector<2x32xf32>
    %575 = arith.mulf %574, %573 : vector<2x32xf32>
    %576 = math.tanh %575 : vector<2x32xf32>
    %cst_176 = arith.constant 1.000000e+00 : f32
    %577 = vector.broadcast %cst_176 : f32 to vector<2x32xf32>
    %578 = arith.addf %576, %577 : vector<2x32xf32>
    %cst_177 = arith.constant 5.000000e-01 : f32
    %579 = vector.broadcast %cst_177 : f32 to vector<2x32xf32>
    %580 = arith.mulf %579, %578 : vector<2x32xf32>
    %581 = arith.mulf %570, %549 : vector<2x32xf32>
    %582 = arith.mulf %562, %572 : vector<2x32xf32>
    %583 = arith.addf %581, %582 : vector<2x32xf32>
    %584 = math.tanh %583 : vector<2x32xf32>
    %585 = arith.mulf %580, %584 : vector<2x32xf32>
    %c0_178 = arith.constant 0 : index
    %c0_179 = arith.constant 0 : index
    %586 = vector.load %arg8[%c0_178, %c0_179] : memref<32x2xf32, #tpu.memory_space<vmem>>, vector<32x2xf32>
    %cst_180 = arith.constant dense<0.000000e+00> : vector<2x2xf32>
    %587 = tpu.matmul %585, %586, %cst_180 {dimension_numbers = #tpu.dot_dimension_numbers<[1], [0], [0], [1], [0, 0, 1, 1], [], []>, precision = #tpu.contract_precision<fp32>} : vector<2x32xf32>, vector<32x2xf32>, vector<2x2xf32> -> vector<2x2xf32>
    %c0_181 = arith.constant 0 : index
    %c0_182 = arith.constant 0 : index
    %588 = vector.load %arg9[%c0_181, %c0_182] : memref<1x2xf32, #tpu.memory_space<vmem>>, vector<1x2xf32>
    %589 = vector.broadcast %588 : vector<1x2xf32> to vector<2x2xf32>
    %590 = arith.addf %587, %589 : vector<2x2xf32>
    %cst_183 = arith.constant 5.000000e-01 : f32
    %591 = vector.broadcast %cst_183 : f32 to vector<2x2xf32>
    %592 = arith.mulf %591, %590 : vector<2x2xf32>
    %593 = math.tanh %592 : vector<2x2xf32>
    %cst_184 = arith.constant 1.000000e+00 : f32
    %594 = vector.broadcast %cst_184 : f32 to vector<2x2xf32>
    %595 = arith.addf %593, %594 : vector<2x2xf32>
    %cst_185 = arith.constant 5.000000e-01 : f32
    %596 = vector.broadcast %cst_185 : f32 to vector<2x2xf32>
    %597 = arith.mulf %596, %595 : vector<2x2xf32>
    %c0_186 = arith.constant 0 : index
    %c0_187 = arith.constant 0 : index
    %598 = vector.load %arg10[%c0_186, %c0_187] : memref<2x2xf32, #tpu.memory_space<vmem>>, vector<2x2xf32>
    tpu.vector_store %arg10[%c0_186, %c0_187], %597 {strides = array<i32>} : memref<2x2xf32, #tpu.memory_space<vmem>>, vector<2x2xf32>,
    %599 = arith.mulf %585, %585 : vector<2x32xf32>
    %cst_188 = arith.constant dense<0.000000e+00> : vector<2xf32>
    %600 = vector.multi_reduction <add>, %599, %cst_188 [1] : vector<2x32xf32> to vector<2xf32>
    %601 = vector.shape_cast %600 : vector<2xf32> to vector<2x1xf32>
    %602 = math.sqrt %601 : vector<2x1xf32>
    %cst_189 = arith.constant 9.99999996E-13 : f32
    %603 = vector.broadcast %cst_189 : f32 to vector<2x1xf32>
    %604 = arith.maximumf %602, %603 : vector<2x1xf32>
    %cst_190 = arith.constant 1.000000e+00 : f32
    %605 = vector.broadcast %cst_190 : f32 to vector<2x1xf32>
    %606 = arith.divf %605, %604 : vector<2x1xf32>
    %607 = vector.broadcast %606 : vector<2x1xf32> to vector<2x32xf32>
    %608 = arith.mulf %585, %607 : vector<2x32xf32>
    %c0_191 = arith.constant 0 : index
    %c0_192 = arith.constant 0 : index
    %609 = vector.load %arg11[%c0_191, %c0_192] : memref<2x32xf32, #tpu.memory_space<vmem>>, vector<2x32xf32>
    tpu.vector_store %arg11[%c0_191, %c0_192], %608 {strides = array<i32>} : memref<2x32xf32, #tpu.memory_space<vmem>>, vector<2x32xf32>,
    return
  }
  func.func @transform_0(%arg0: i32) -> (i32, i32) {
    %c0_i32 = arith.constant 0 : i32
    %c0_i32_0 = arith.constant 0 : i32
    %c0_i32_1 = arith.constant 0 : i32
    return %c0_i32, %c0_i32_0 : i32, i32
  }
  func.func @transform_1(%arg0: i32) -> (i32, i32) {
    %c0_i32 = arith.constant 0 : i32
    %c0_i32_0 = arith.constant 0 : i32
    %c0_i32_1 = arith.constant 0 : i32
    return %c0_i32, %c0_i32_0 : i32, i32
  }
  func.func @transform_2(%arg0: i32) -> (i32, i32) {
    %c0_i32 = arith.constant 0 : i32
    %c0_i32_0 = arith.constant 0 : i32
    %c0_i32_1 = arith.constant 0 : i32
    return %c0_i32, %c0_i32_0 : i32, i32
  }
  func.func @transform_3(%arg0: i32) -> (i32, i32) {
    %c0_i32 = arith.constant 0 : i32
    %c0_i32_0 = arith.constant 0 : i32
    %c0_i32_1 = arith.constant 0 : i32
    return %c0_i32, %c0_i32_0 : i32, i32
  }
  func.func @transform_4(%arg0: i32) -> (i32, i32) {
    %c0_i32 = arith.constant 0 : i32
    %c0_i32_0 = arith.constant 0 : i32
    %c0_i32_1 = arith.constant 0 : i32
    return %c0_i32, %c0_i32_0 : i32, i32
  }
  func.func @transform_5(%arg0: i32) -> (i32, i32) {
    %c0_i32 = arith.constant 0 : i32
    %c0_i32_0 = arith.constant 0 : i32
    %c0_i32_1 = arith.constant 0 : i32
    return %c0_i32, %c0_i32_0 : i32, i32
  }
  func.func @transform_6(%arg0: i32) -> (i32, i32) {
    %c0_i32 = arith.constant 0 : i32
    %c0_i32_0 = arith.constant 0 : i32
    %c0_i32_1 = arith.constant 0 : i32
    return %c0_i32, %c0_i32_0 : i32, i32
  }
  func.func @transform_7(%arg0: i32) -> (i32, i32) {
    %c0_i32 = arith.constant 0 : i32
    %c0_i32_0 = arith.constant 0 : i32
    %c0_i32_1 = arith.constant 0 : i32
    return %c0_i32, %c0_i32_0 : i32, i32
  }
  func.func @transform_8(%arg0: i32) -> (i32, i32) {
    %c0_i32 = arith.constant 0 : i32
    %c0_i32_0 = arith.constant 0 : i32
    %c0_i32_1 = arith.constant 0 : i32
    return %c0_i32, %c0_i32_0 : i32, i32
  }
  func.func @transform_9(%arg0: i32) -> (i32, i32) {
    %c0_i32 = arith.constant 0 : i32
    %c0_i32_0 = arith.constant 0 : i32
    %c0_i32_1 = arith.constant 0 : i32
    return %c0_i32, %c0_i32_0 : i32, i32
  }
  func.func @transform_10(%arg0: i32) -> (i32, i32) {
    %c0_i32 = arith.constant 0 : i32
    %c0_i32_0 = arith.constant 0 : i32
    %c0_i32_1 = arith.constant 0 : i32
    return %c0_i32, %c0_i32_0 : i32, i32
  }
}

</mosaic_0001>

<llo_original>
// kernel: lstm_pt_forward.1
$region0: #{lstm_pt_forward.1}
  #allocation0 [shape = 'u32[]', space=smem, size = 0x4, offset = 0x4, fixed_abs, tag = 'smem constant byte address 0x4 - core index']
  #allocation1 [shape = 'u32[144,128]{1,0:T(1,128)}', space=vmem, size = 0x12000, scoped, tag = 'internal scratch']
  %s0 = inlined_call_operand.vmem [shape: f32[16,32], index: 0, kind: input, shape index: {}]
  %s1 = inlined_call_operand.vmem [shape: f32[32,128], index: 1, kind: input, shape index: {}]
  %s2 = inlined_call_operand.vmem [shape: f32[1,128], index: 2, kind: input, shape index: {}]
  %s3 = inlined_call_operand.vmem [shape: f32[32,128], index: 3, kind: input, shape index: {}]
  %s4 = inlined_call_operand.vmem [shape: f32[32,128], index: 4, kind: input, shape index: {}]
  %s5 = inlined_call_operand.vmem [shape: f32[1,128], index: 5, kind: input, shape index: {}]
  %s6 = inlined_call_operand.vmem [shape: f32[32,128], index: 6, kind: input, shape index: {}]
  %s7 = inlined_call_operand.vmem [shape: f32[32,2], index: 7, kind: input, shape index: {}]
  %s8 = inlined_call_operand.vmem [shape: f32[1,2], index: 8, kind: input, shape index: {}]
  %s9 = inlined_call_operand.hbm [shape: f32[2,2], index: 9, kind: output, shape index: {0}]
  %s10 = inlined_call_operand.hbm [shape: f32[2,32], index: 10, kind: output, shape index: {1}]
  %11 = xla_tuple %s9, %s10
  %s12 = sld [smem:[#allocation0]]
  $region54: #{lstm_pt_forward.1} parent=0
    _
  %s14 = ssub.s32 1, %s12
  %s15 = scalar_select 0, %s14, %s12
  $region1: #{lstm_pt_forward.1} parent=0
    #allocation2 [shape = 'u8[1024]{0}', space=vmem, size = 0x400, scoped, tag = 'output window, operand 0, single buffered']
    #allocation3 [shape = 's32[1]{0}', space=sflag, size = 0x4, scoped, tag = 'scoped memory for lstm_pt_forward.1']
    #allocation4 [shape = 'u8[1024]{0}', space=vmem, size = 0x400, scoped, tag = 'output window, operand 1, single buffered']
    #allocation5 [shape = 's32[1]{0}', space=sflag, size = 0x4, scoped, tag = 'scoped memory for lstm_pt_forward.1']
    %16 = vsyncpa [#allocation3], 0
    %17 = vsyncpa [#allocation5], 0
    // Predicated region
    $region2: #{lstm_pt_forward.1} parent=1 // pred_check
      _
    $region3: #{lstm_pt_forward.1} parent=1 // pred_check_branch
      %19 = sbr.rel (0) target = $region5
    $region4: #{lstm_pt_forward.1} parent=1 // pred_region
      _
    $region5: #{lstm_pt_forward.1} parent=1 // pred_fallthru
      _
    // Predicated region
    $region6: #{lstm_pt_forward.1} parent=1 // pred_check
      _
    $region7: #{lstm_pt_forward.1} parent=1 // pred_check_branch
      %21 = sbr.rel (0) target = $region9
    $region8: #{lstm_pt_forward.1} parent=1 // pred_region
      _
    $region9: #{lstm_pt_forward.1} parent=1 // pred_fallthru
      _
    // Predicated region
    $region10: #{lstm_pt_forward.1} parent=1 // pred_check
      _
    $region11: #{lstm_pt_forward.1} parent=1 // pred_check_branch
      %23 = sbr.rel (0) target = $region13
    $region12: #{lstm_pt_forward.1} parent=1 // pred_region
      _
    $region13: #{lstm_pt_forward.1} parent=1 // pred_fallthru
      _
    // Predicated region
    $region14: #{lstm_pt_forward.1} parent=1 // pred_check
      _
    $region15: #{lstm_pt_forward.1} parent=1 // pred_check_branch
      %25 = sbr.rel (0) target = $region17
    $region16: #{lstm_pt_forward.1} parent=1 // pred_region
      _
    $region17: #{lstm_pt_forward.1} parent=1 // pred_fallthru
      _
    // Predicated region
    $region18: #{lstm_pt_forward.1} parent=1 // pred_check
      _
    $region19: #{lstm_pt_forward.1} parent=1 // pred_check_branch
      %27 = sbr.rel (0) target = $region21
    $region20: #{lstm_pt_forward.1} parent=1 // pred_region
      _
    $region21: #{lstm_pt_forward.1} parent=1 // pred_fallthru
      _
    // Predicated region
    $region22: #{lstm_pt_forward.1} parent=1 // pred_check
      _
    $region23: #{lstm_pt_forward.1} parent=1 // pred_check_branch
      %29 = sbr.rel (0) target = $region25
    $region24: #{lstm_pt_forward.1} parent=1 // pred_region
      _
    $region25: #{lstm_pt_forward.1} parent=1 // pred_fallthru
      _
    // Predicated region
    $region26: #{lstm_pt_forward.1} parent=1 // pred_check
      _
    $region27: #{lstm_pt_forward.1} parent=1 // pred_check_branch
      %31 = sbr.rel (0) target = $region29
    $region28: #{lstm_pt_forward.1} parent=1 // pred_region
      _
    $region29: #{lstm_pt_forward.1} parent=1 // pred_fallthru
      _
    // Predicated region
    $region30: #{lstm_pt_forward.1} parent=1 // pred_check
      _
    $region31: #{lstm_pt_forward.1} parent=1 // pred_check_branch
      %33 = sbr.rel (0) target = $region33
    $region32: #{lstm_pt_forward.1} parent=1 // pred_region
      _
    $region33: #{lstm_pt_forward.1} parent=1 // pred_fallthru
      _
    // Predicated region
    $region34: #{lstm_pt_forward.1} parent=1 // pred_check
      _
    $region35: #{lstm_pt_forward.1} parent=1 // pred_check_branch
      %35 = sbr.rel (0) target = $region37
    $region36: #{lstm_pt_forward.1} parent=1 // pred_region
      _
    $region37: #{lstm_pt_forward.1} parent=1 // pred_fallthru
      _
    %v36 = vld [vmem:[%s0] sm:$0xff]
    %v37 = vld [vmem:[%s0 + $0x8] sm:$0xff]
    %v38 = vld [vmem:[%s1] sm:$0xff]
    %v39 = vld [vmem:[%s1 + $0x8] sm:$0xff]
    %v40 = vld [vmem:[%s1 + $0x10] sm:$0xff]
    %v41 = vld [vmem:[%s1 + $0x18] sm:$0xff]
    %v42 = vld [vmem:[%s2] sm:$0x1]
    %v44 = vlaneseq
    %v45 = vshrl.u32 %v44, 7
    %v46 = vsub.s32 0, %v45
    %v47 = vrot.slane %v42, %v46
    %vm49 = vcmask 261120
    %v51 = vsel %vm49, %v36, 0
    %v54 = vsel %vm49, %v37, 0
    %56 = vmatprep.subr.mxu0 0.0
    %v57 = vand.u32 %v38, 4294901760
    %58 = vmatpush1.msra.mxu0 %v57
    %59 = vmatprep.subr.mxu0 0.0
    %v60 = vand.u32 %v39, 4294901760
    %61 = vmatpush1.msra.mxu0 %v60
    %62 = vmatprep.subr.mxu0 0.0
    %v63 = vand.u32 %v40, 4294901760
    %64 = vmatpush1.msra.mxu0 %v63
    %65 = vmatprep.subr.mxu0 0.0
    %v66 = vand.u32 %v41, 4294901760
    %67 = vmatpush1.msra.mxu0 %v66
    %68 = vmatprep.subr.mxu0 0.0
    %69 = vmatpush1.msra.mxu0 0.0
    %70 = vmatprep.subr.mxu0 0.0
    %71 = vmatpush1.msra.mxu0 0.0
    %72 = vmatprep.subr.mxu0 0.0
    %73 = vmatpush1.msra.mxu0 0.0
    %74 = vmatprep.subr.mxu0 0.0
    %75 = vmatpush1.msra.mxu0 0.0
    %76 = vmatprep.subr.mxu0 0.0
    %77 = vmatpush1.msra.mxu0 0.0
    %78 = vmatprep.subr.mxu0 0.0
    %79 = vmatpush1.msra.mxu0 0.0
    %80 = vmatprep.subr.mxu0 0.0
    %81 = vmatpush1.msra.mxu0 0.0
    %82 = vmatprep.subr.mxu0 0.0
    %83 = vmatpush1.msra.mxu0 0.0
    %84 = vmatprep.subr.mxu0 0.0
    %85 = vmatpush1.msra.mxu0 0.0
    %86 = vmatprep.subr.mxu0 0.0
    %87 = vmatpush1.msra.mxu0 0.0
    %88 = vmatprep.subr.mxu0 0.0
    %89 = vmatpush1.msra.mxu0 0.0
    %90 = vmatprep.subr.mxu0 0.0
    %91 = vmatpush1.msra.mxu0 0.0
    %92 = vmatprep.subr.mxu0 0.0
    %93 = vmatpush1.msra.mxu0 0.0
    %94 = vmatprep.subr.mxu0 0.0
    %95 = vmatpush1.msra.mxu0 0.0
    %96 = vmatprep.subr.mxu0 0.0
    %97 = vmatpush1.msra.mxu0 0.0
    %98 = vmatprep.subr.mxu0 0.0
    %99 = vmatpush1.msra.mxu0 0.0
    %100 = vmatprep.subr.mxu0 0.0
    %101 = vmatpush1.msra.mxu0 0.0
    %102 = vmatprep.subr.mxu0 0.0
    %103 = vmatpush1.msra.mxu0 0.0
    %104 = vmatprep.subr.mxu0 0.0
    %105 = vmatpush1.msra.mxu0 0.0
    %106 = vmatprep.subr.mxu0 0.0
    %107 = vmatpush1.msra.mxu0 0.0
    %108 = vmatprep.subr.mxu0 0.0
    %109 = vmatpush1.msra.mxu0 0.0
    %110 = vmatprep.subr.mxu0 0.0
    %111 = vmatpush1.msra.mxu0 0.0
    %112 = vmatprep.subr.mxu0 0.0
    %113 = vmatpush1.msra.mxu0 0.0
    %114 = vmatprep.subr.mxu0 0.0
    %115 = vmatpush1.msra.mxu0 0.0
    %116 = vmatprep.subr.mxu0 0.0
    %117 = vmatpush1.msra.mxu0 0.0
    %118 = vmatprep.subr.mxu0 0.0
    %119 = vmatpush1.msra.mxu0 0.0
    %120 = vmatprep.subr.mxu0 0.0
    %121 = vmatpush1.msra.mxu0 0.0
    %122 = vmatprep.subr.mxu0 0.0
    %123 = vmatpush1.msra.mxu0 0.0
    %124 = vmatprep.mubr.f32.mxu0 0.0
    %v125 = vand.u32 %v51, 4294901760
    %v126 = vsub.f32 %v51, %v125
    %v127 = vand.u32 %v126, 4294901760
    %v128 = vsub.f32 %v126, %v127
    %v129 = vand.u32 %v128, 4294901760
    %130 = vmatmul.mubr.f32.gmra.mrb[0].mxu0 %v129
    %v131 = vpop.f32.mrb[0].mxu0
    %v132 = vadd.f32 %v47, %v131
    %v133 = vpop.f32.mrb[0].mxu0
    %134 = vmatprep.mubr.f32.mxu0 0.0
    %v135 = vand.u32 %v54, 4294901760
    %v136 = vsub.f32 %v54, %v135
    %v137 = vand.u32 %v136, 4294901760
    %v138 = vsub.f32 %v136, %v137
    %v139 = vand.u32 %v138, 4294901760
    %140 = vmatmul.mubr.f32.gmra.mrb[0].mxu0 %v139
    %v141 = vpop.f32.mrb[0].mxu0
    %v142 = vadd.f32 %v47, %v141
    %v143 = vpop.f32.mrb[0].mxu0
    %144 = vdwg.mxu0
    %145 = vmatprep.subr.mxu0 0.0
    %v146 = vand.u32 %v38, 4294901760
    %v147 = vsub.f32 %v38, %v146
    %v148 = vand.u32 %v147, 4294901760
    %v149 = vsub.f32 %v147, %v148
    %v150 = vand.u32 %v149, 4294901760
    %151 = vmatpush1.msra.mxu0 %v150
    %152 = vmatprep.subr.mxu0 0.0
    %v153 = vand.u32 %v39, 4294901760
    %v154 = vsub.f32 %v39, %v153
    %v155 = vand.u32 %v154, 4294901760
    %v156 = vsub.f32 %v154, %v155
    %v157 = vand.u32 %v156, 4294901760
    %158 = vmatpush1.msra.mxu0 %v157
    %159 = vmatprep.subr.mxu0 0.0
    %v160 = vand.u32 %v40, 4294901760
    %v161 = vsub.f32 %v40, %v160
    %v162 = vand.u32 %v161, 4294901760
    %v163 = vsub.f32 %v161, %v162
    %v164 = vand.u32 %v163, 4294901760
    %165 = vmatpush1.msra.mxu0 %v164
    %166 = vmatprep.subr.mxu0 0.0
    %v167 = vand.u32 %v41, 4294901760
    %v168 = vsub.f32 %v41, %v167
    %v169 = vand.u32 %v168, 4294901760
    %v170 = vsub.f32 %v168, %v169
    %v171 = vand.u32 %v170, 4294901760
    %172 = vmatpush1.msra.mxu0 %v171
    %173 = vmatprep.subr.mxu0 0.0
    %174 = vmatpush1.msra.mxu0 0.0
    %175 = vmatprep.subr.mxu0 0.0
    %176 = vmatpush1.msra.mxu0 0.0
    %177 = vmatprep.subr.mxu0 0.0
    %178 = vmatpush1.msra.mxu0 0.0
    %179 = vmatprep.subr.mxu0 0.0
    %180 = vmatpush1.msra.mxu0 0.0
    %181 = vmatprep.subr.mxu0 0.0
    %182 = vmatpush1.msra.mxu0 0.0
    %183 = vmatprep.subr.mxu0 0.0
    %184 = vmatpush1.msra.mxu0 0.0
    %185 = vmatprep.subr.mxu0 0.0
    %186 = vmatpush1.msra.mxu0 0.0
    %187 = vmatprep.subr.mxu0 0.0
    %188 = vmatpush1.msra.mxu0 0.0
    %189 = vmatprep.subr.mxu0 0.0
    %190 = vmatpush1.msra.mxu0 0.0
    %191 = vmatprep.subr.mxu0 0.0
    %192 = vmatpush1.msra.mxu0 0.0
    %193 = vmatprep.subr.mxu0 0.0
    %194 = vmatpush1.msra.mxu0 0.0
    %195 = vmatprep.subr.mxu0 0.0
    %196 = vmatpush1.msra.mxu0 0.0
    %197 = vmatprep.subr.mxu0 0.0
    %198 = vmatpush1.msra.mxu0 0.0
    %199 = vmatprep.subr.mxu0 0.0
    %200 = vmatpush1.msra.mxu0 0.0
    %201 = vmatprep.subr.mxu0 0.0
    %202 = vmatpush1.msra.mxu0 0.0
    %203 = vmatprep.subr.mxu0 0.0
    %204 = vmatpush1.msra.mxu0 0.0
    %205 = vmatprep.subr.mxu0 0.0
    %206 = vmatpush1.msra.mxu0 0.0
    %207 = vmatprep.subr.mxu0 0.0
    %208 = vmatpush1.msra.mxu0 0.0
    %209 = vmatprep.subr.mxu0 0.0
    %210 = vmatpush1.msra.mxu0 0.0
    %211 = vmatprep.subr.mxu0 0.0
    %212 = vmatpush1.msra.mxu0 0.0
    %213 = vmatprep.subr.mxu0 0.0
    %214 = vmatpush1.msra.mxu0 0.0
    %215 = vmatprep.subr.mxu0 0.0
    %216 = vmatpush1.msra.mxu0 0.0
    %217 = vmatprep.subr.mxu0 0.0
    %218 = vmatpush1.msra.mxu0 0.0
    %219 = vmatprep.subr.mxu0 0.0
    %220 = vmatpush1.msra.mxu0 0.0
    %221 = vmatprep.subr.mxu0 0.0
    %222 = vmatpush1.msra.mxu0 0.0
    %223 = vmatprep.subr.mxu0 0.0
    %224 = vmatpush1.msra.mxu0 0.0
    %225 = vmatprep.subr.mxu0 0.0
    %226 = vmatpush1.msra.mxu0 0.0
    %227 = vmatprep.subr.mxu0 0.0
    %228 = vmatpush1.msra.mxu0 0.0
    %229 = vmatprep.mubr.f32.mxu0 0.0
    %v230 = vand.u32 %v51, 4294901760
    %231 = vmatmul.mubr.f32.gmra.mrb[0].mxu0 %v230
    %v232 = vpop.f32.mrb[0].mxu0
    %v233 = vadd.f32 %v132, %v232
    %v234 = vpop.f32.mrb[0].mxu0
    %235 = vmatprep.mubr.f32.mxu0 0.0
    %v236 = vand.u32 %v54, 4294901760
    %237 = vmatmul.mubr.f32.gmra.mrb[0].mxu0 %v236
    %v238 = vpop.f32.mrb[0].mxu0
    %v239 = vadd.f32 %v142, %v238
    %v240 = vpop.f32.mrb[0].mxu0
    %241 = vdwg.mxu0
    %242 = vmatprep.subr.mxu0 0.0
    %v243 = vand.u32 %v38, 4294901760
    %v244 = vsub.f32 %v38, %v243
    %245 = vmatpush1.msra.mxu0 %v244
    %246 = vmatprep.subr.mxu0 0.0
    %v247 = vand.u32 %v39, 4294901760
    %v248 = vsub.f32 %v39, %v247
    %249 = vmatpush1.msra.mxu0 %v248
    %250 = vmatprep.subr.mxu0 0.0
    %v251 = vand.u32 %v40, 4294901760
    %v252 = vsub.f32 %v40, %v251
    %253 = vmatpush1.msra.mxu0 %v252
    %254 = vmatprep.subr.mxu0 0.0
    %v255 = vand.u32 %v41, 4294901760
    %v256 = vsub.f32 %v41, %v255
    %257 = vmatpush1.msra.mxu0 %v256
    %258 = vmatprep.subr.mxu0 0.0
    %259 = vmatpush1.msra.mxu0 0.0
    %260 = vmatprep.subr.mxu0 0.0
    %261 = vmatpush1.msra.mxu0 0.0
    %262 = vmatprep.subr.mxu0 0.0
    %263 = vmatpush1.msra.mxu0 0.0
    %264 = vmatprep.subr.mxu0 0.0
    %265 = vmatpush1.msra.mxu0 0.0
    %266 = vmatprep.subr.mxu0 0.0
    %267 = vmatpush1.msra.mxu0 0.0
    %268 = vmatprep.subr.mxu0 0.0
    %269 = vmatpush1.msra.mxu0 0.0
    %270 = vmatprep.subr.mxu0 0.0
    %271 = vmatpush1.msra.mxu0 0.0
    %272 = vmatprep.subr.mxu0 0.0
    %273 = vmatpush1.msra.mxu0 0.0
    %274 = vmatprep.subr.mxu0 0.0
    %275 = vmatpush1.msra.mxu0 0.0
    %276 = vmatprep.subr.mxu0 0.0
    %277 = vmatpush1.msra.mxu0 0.0
    %278 = vmatprep.subr.mxu0 0.0
    %279 = vmatpush1.msra.mxu0 0.0
    %280 = vmatprep.subr.mxu0 0.0
    %281 = vmatpush1.msra.mxu0 0.0
    %282 = vmatprep.subr.mxu0 0.0
    %283 = vmatpush1.msra.mxu0 0.0
    %284 = vmatprep.subr.mxu0 0.0
    %285 = vmatpush1.msra.mxu0 0.0
    %286 = vmatprep.subr.mxu0 0.0
    %287 = vmatpush1.msra.mxu0 0.0
    %288 = vmatprep.subr.mxu0 0.0
    %289 = vmatpush1.msra.mxu0 0.0
    %290 = vmatprep.subr.mxu0 0.0
    %291 = vmatpush1.msra.mxu0 0.0
    %292 = vmatprep.subr.mxu0 0.0
    %293 = vmatpush1.msra.mxu0 0.0
    %294 = vmatprep.subr.mxu0 0.0
    %295 = vmatpush1.msra.mxu0 0.0
    %296 = vmatprep.subr.mxu0 0.0
    %297 = vmatpush1.msra.mxu0 0.0
    %298 = vmatprep.subr.mxu0 0.0
    %299 = vmatpush1.msra.mxu0 0.0
    %300 = vmatprep.subr.mxu0 0.0
    %301 = vmatpush1.msra.mxu0 0.0
    %302 = vmatprep.subr.mxu0 0.0
    %303 = vmatpush1.msra.mxu0 0.0
    %304 = vmatprep.subr.mxu0 0.0
    %305 = vmatpush1.msra.mxu0 0.0
    %306 = vmatprep.subr.mxu0 0.0
    %307 = vmatpush1.msra.mxu0 0.0
    %308 = vmatprep.subr.mxu0 0.0
    %309 = vmatpush1.msra.mxu0 0.0
    %310 = vmatprep.subr.mxu0 0.0
    %311 = vmatpush1.msra.mxu0 0.0
    %312 = vmatprep.subr.mxu0 0.0
    %313 = vmatpush1.msra.mxu0 0.0
    %314 = vmatprep.mubr.f32.mxu0 0.0
    %v315 = vand.u32 %v51, 4294901760
    %v316 = vsub.f32 %v51, %v315
    %317 = vmatmul.mubr.f32.gmra.mrb[0].mxu0 %v316
    %v318 = vpop.f32.mrb[0].mxu0
    %v319 = vadd.f32 %v233, %v318
    %v320 = vpop.f32.mrb[0].mxu0
    %321 = vmatprep.mubr.f32.mxu0 0.0
    %v322 = vand.u32 %v54, 4294901760
    %v323 = vsub.f32 %v54, %v322
    %324 = vmatmul.mubr.f32.gmra.mrb[0].mxu0 %v323
    %v325 = vpop.f32.mrb[0].mxu0
    %v326 = vadd.f32 %v239, %v325
    %v327 = vpop.f32.mrb[0].mxu0
    %328 = vdwg.mxu0
    %329 = vmatprep.subr.mxu0 0.0
    %v330 = vand.u32 %v38, 4294901760
    %331 = vmatpush1.msra.mxu0 %v330
    %332 = vmatprep.subr.mxu0 0.0
    %v333 = vand.u32 %v39, 4294901760
    %334 = vmatpush1.msra.mxu0 %v333
    %335 = vmatprep.subr.mxu0 0.0
    %v336 = vand.u32 %v40, 4294901760
    %337 = vmatpush1.msra.mxu0 %v336
    %338 = vmatprep.subr.mxu0 0.0
    %v339 = vand.u32 %v41, 4294901760
    %340 = vmatpush1.msra.mxu0 %v339
    %341 = vmatprep.subr.mxu0 0.0
    %342 = vmatpush1.msra.mxu0 0.0
    %343 = vmatprep.subr.mxu0 0.0
    %344 = vmatpush1.msra.mxu0 0.0
    %345 = vmatprep.subr.mxu0 0.0
    %346 = vmatpush1.msra.mxu0 0.0
    %347 = vmatprep.subr.mxu0 0.0
    %348 = vmatpush1.msra.mxu0 0.0
    %349 = vmatprep.subr.mxu0 0.0
    %350 = vmatpush1.msra.mxu0 0.0
    %351 = vmatprep.subr.mxu0 0.0
    %352 = vmatpush1.msra.mxu0 0.0
    %353 = vmatprep.subr.mxu0 0.0
    %354 = vmatpush1.msra.mxu0 0.0
    %355 = vmatprep.subr.mxu0 0.0
    %356 = vmatpush1.msra.mxu0 0.0
    %357 = vmatprep.subr.mxu0 0.0
    %358 = vmatpush1.msra.mxu0 0.0
    %359 = vmatprep.subr.mxu0 0.0
    %360 = vmatpush1.msra.mxu0 0.0
    %361 = vmatprep.subr.mxu0 0.0
    %362 = vmatpush1.msra.mxu0 0.0
    %363 = vmatprep.subr.mxu0 0.0
    %364 = vmatpush1.msra.mxu0 0.0
    %365 = vmatprep.subr.mxu0 0.0
    %366 = vmatpush1.msra.mxu0 0.0
    %367 = vmatprep.subr.mxu0 0.0
    %368 = vmatpush1.msra.mxu0 0.0
    %369 = vmatprep.subr.mxu0 0.0
    %370 = vmatpush1.msra.mxu0 0.0
    %371 = vmatprep.subr.mxu0 0.0
    %372 = vmatpush1.msra.mxu0 0.0
    %373 = vmatprep.subr.mxu0 0.0
    %374 = vmatpush1.msra.mxu0 0.0
    %375 = vmatprep.subr.mxu0 0.0
    %376 = vmatpush1.msra.mxu0 0.0
    %377 = vmatprep.subr.mxu0 0.0
    %378 = vmatpush1.msra.mxu0 0.0
    %379 = vmatprep.subr.mxu0 0.0
    %380 = vmatpush1.msra.mxu0 0.0
    %381 = vmatprep.subr.mxu0 0.0
    %382 = vmatpush1.msra.mxu0 0.0
    %383 = vmatprep.subr.mxu0 0.0
    %384 = vmatpush1.msra.mxu0 0.0
    %385 = vmatprep.subr.mxu0 0.0
    %386 = vmatpush1.msra.mxu0 0.0
    %387 = vmatprep.subr.mxu0 0.0
    %388 = vmatpush1.msra.mxu0 0.0
    %389 = vmatprep.subr.mxu0 0.0
    %390 = vmatpush1.msra.mxu0 0.0
    %391 = vmatprep.subr.mxu0 0.0
    %392 = vmatpush1.msra.mxu0 0.0
    %393 = vmatprep.subr.mxu0 0.0
    %394 = vmatpush1.msra.mxu0 0.0
    %395 = vmatprep.subr.mxu0 0.0
    %396 = vmatpush1.msra.mxu0 0.0
    %397 = vmatprep.mubr.f32.mxu0 0.0
    %v398 = vand.u32 %v51, 4294901760
    %v399 = vsub.f32 %v51, %v398
    %v400 = vand.u32 %v399, 4294901760
    %401 = vmatmul.mubr.f32.gmra.mrb[0].mxu0 %v400
    %v402 = vpop.f32.mrb[0].mxu0
    %v403 = vadd.f32 %v319, %v402
    %v404 = vpop.f32.mrb[0].mxu0
    %405 = vmatprep.mubr.f32.mxu0 0.0
    %v406 = vand.u32 %v54, 4294901760
    %v407 = vsub.f32 %v54, %v406
    %v408 = vand.u32 %v407, 4294901760
    %409 = vmatmul.mubr.f32.gmra.mrb[0].mxu0 %v408
    %v410 = vpop.f32.mrb[0].mxu0
    %v411 = vadd.f32 %v326, %v410
    %v412 = vpop.f32.mrb[0].mxu0
    %413 = vdwg.mxu0
    %414 = vmatprep.subr.mxu0 0.0
    %v415 = vand.u32 %v38, 4294901760
    %v416 = vsub.f32 %v38, %v415
    %v417 = vand.u32 %v416, 4294901760
    %418 = vmatpush1.msra.mxu0 %v417
    %419 = vmatprep.subr.mxu0 0.0
    %v420 = vand.u32 %v39, 4294901760
    %v421 = vsub.f32 %v39, %v420
    %v422 = vand.u32 %v421, 4294901760
    %423 = vmatpush1.msra.mxu0 %v422
    %424 = vmatprep.subr.mxu0 0.0
    %v425 = vand.u32 %v40, 4294901760
    %v426 = vsub.f32 %v40, %v425
    %v427 = vand.u32 %v426, 4294901760
    %428 = vmatpush1.msra.mxu0 %v427
    %429 = vmatprep.subr.mxu0 0.0
    %v430 = vand.u32 %v41, 4294901760
    %v431 = vsub.f32 %v41, %v430
    %v432 = vand.u32 %v431, 4294901760
    %433 = vmatpush1.msra.mxu0 %v432
    %434 = vmatprep.subr.mxu0 0.0
    %435 = vmatpush1.msra.mxu0 0.0
    %436 = vmatprep.subr.mxu0 0.0
    %437 = vmatpush1.msra.mxu0 0.0
    %438 = vmatprep.subr.mxu0 0.0
    %439 = vmatpush1.msra.mxu0 0.0
    %440 = vmatprep.subr.mxu0 0.0
    %441 = vmatpush1.msra.mxu0 0.0
    %442 = vmatprep.subr.mxu0 0.0
    %443 = vmatpush1.msra.mxu0 0.0
    %444 = vmatprep.subr.mxu0 0.0
    %445 = vmatpush1.msra.mxu0 0.0
    %446 = vmatprep.subr.mxu0 0.0
    %447 = vmatpush1.msra.mxu0 0.0
    %448 = vmatprep.subr.mxu0 0.0
    %449 = vmatpush1.msra.mxu0 0.0
    %450 = vmatprep.subr.mxu0 0.0
    %451 = vmatpush1.msra.mxu0 0.0
    %452 = vmatprep.subr.mxu0 0.0
    %453 = vmatpush1.msra.mxu0 0.0
    %454 = vmatprep.subr.mxu0 0.0
    %455 = vmatpush1.msra.mxu0 0.0
    %456 = vmatprep.subr.mxu0 0.0
    %457 = vmatpush1.msra.mxu0 0.0
    %458 = vmatprep.subr.mxu0 0.0
    %459 = vmatpush1.msra.mxu0 0.0
    %460 = vmatprep.subr.mxu0 0.0
    %461 = vmatpush1.msra.mxu0 0.0
    %462 = vmatprep.subr.mxu0 0.0
    %463 = vmatpush1.msra.mxu0 0.0
    %464 = vmatprep.subr.mxu0 0.0
    %465 = vmatpush1.msra.mxu0 0.0
    %466 = vmatprep.subr.mxu0 0.0
    %467 = vmatpush1.msra.mxu0 0.0
    %468 = vmatprep.subr.mxu0 0.0
    %469 = vmatpush1.msra.mxu0 0.0
    %470 = vmatprep.subr.mxu0 0.0
    %471 = vmatpush1.msra.mxu0 0.0
    %472 = vmatprep.subr.mxu0 0.0
    %473 = vmatpush1.msra.mxu0 0.0
    %474 = vmatprep.subr.mxu0 0.0
    %475 = vmatpush1.msra.mxu0 0.0
    %476 = vmatprep.subr.mxu0 0.0
    %477 = vmatpush1.msra.mxu0 0.0
    %478 = vmatprep.subr.mxu0 0.0
    %479 = vmatpush1.msra.mxu0 0.0
    %480 = vmatprep.subr.mxu0 0.0
    %481 = vmatpush1.msra.mxu0 0.0
    %482 = vmatprep.subr.mxu0 0.0
    %483 = vmatpush1.msra.mxu0 0.0
    %484 = vmatprep.subr.mxu0 0.0
    %485 = vmatpush1.msra.mxu0 0.0
    %486 = vmatprep.subr.mxu0 0.0
    %487 = vmatpush1.msra.mxu0 0.0
    %488 = vmatprep.subr.mxu0 0.0
    %489 = vmatpush1.msra.mxu0 0.0
    %490 = vmatprep.mubr.f32.mxu0 0.0
    %v491 = vand.u32 %v51, 4294901760
    %492 = vmatmul.mubr.f32.gmra.mrb[0].mxu0 %v491
    %v493 = vpop.f32.mrb[0].mxu0
    %v494 = vadd.f32 %v403, %v493
    %v495 = vpop.f32.mrb[0].mxu0
    %496 = vmatprep.mubr.f32.mxu0 0.0
    %v497 = vand.u32 %v54, 4294901760
    %498 = vmatmul.mubr.f32.gmra.mrb[0].mxu0 %v497
    %v499 = vpop.f32.mrb[0].mxu0
    %v500 = vadd.f32 %v411, %v499
    %v501 = vpop.f32.mrb[0].mxu0
    %502 = vdwg.mxu0
    %503 = vmatprep.subr.mxu0 0.0
    %v504 = vand.u32 %v38, 4294901760
    %505 = vmatpush1.msra.mxu0 %v504
    %506 = vmatprep.subr.mxu0 0.0
    %v507 = vand.u32 %v39, 4294901760
    %508 = vmatpush1.msra.mxu0 %v507
    %509 = vmatprep.subr.mxu0 0.0
    %v510 = vand.u32 %v40, 4294901760
    %511 = vmatpush1.msra.mxu0 %v510
    %512 = vmatprep.subr.mxu0 0.0
    %v513 = vand.u32 %v41, 4294901760
    %514 = vmatpush1.msra.mxu0 %v513
    %515 = vmatprep.subr.mxu0 0.0
    %516 = vmatpush1.msra.mxu0 0.0
    %517 = vmatprep.subr.mxu0 0.0
    %518 = vmatpush1.msra.mxu0 0.0
    %519 = vmatprep.subr.mxu0 0.0
    %520 = vmatpush1.msra.mxu0 0.0
    %521 = vmatprep.subr.mxu0 0.0
    %522 = vmatpush1.msra.mxu0 0.0
    %523 = vmatprep.subr.mxu0 0.0
    %524 = vmatpush1.msra.mxu0 0.0
    %525 = vmatprep.subr.mxu0 0.0
    %526 = vmatpush1.msra.mxu0 0.0
    %527 = vmatprep.subr.mxu0 0.0
    %528 = vmatpush1.msra.mxu0 0.0
    %529 = vmatprep.subr.mxu0 0.0
    %530 = vmatpush1.msra.mxu0 0.0
    %531 = vmatprep.subr.mxu0 0.0
    %532 = vmatpush1.msra.mxu0 0.0
    %533 = vmatprep.subr.mxu0 0.0
    %534 = vmatpush1.msra.mxu0 0.0
    %535 = vmatprep.subr.mxu0 0.0
    %536 = vmatpush1.msra.mxu0 0.0
    %537 = vmatprep.subr.mxu0 0.0
    %538 = vmatpush1.msra.mxu0 0.0
    %539 = vmatprep.subr.mxu0 0.0
    %540 = vmatpush1.msra.mxu0 0.0
    %541 = vmatprep.subr.mxu0 0.0
    %542 = vmatpush1.msra.mxu0 0.0
    %543 = vmatprep.subr.mxu0 0.0
    %544 = vmatpush1.msra.mxu0 0.0
    %545 = vmatprep.subr.mxu0 0.0
    %546 = vmatpush1.msra.mxu0 0.0
    %547 = vmatprep.subr.mxu0 0.0
    %548 = vmatpush1.msra.mxu0 0.0
    %549 = vmatprep.subr.mxu0 0.0
    %550 = vmatpush1.msra.mxu0 0.0
    %551 = vmatprep.subr.mxu0 0.0
    %552 = vmatpush1.msra.mxu0 0.0
    %553 = vmatprep.subr.mxu0 0.0
    %554 = vmatpush1.msra.mxu0 0.0
    %555 = vmatprep.subr.mxu0 0.0
    %556 = vmatpush1.msra.mxu0 0.0
    %557 = vmatprep.subr.mxu0 0.0
    %558 = vmatpush1.msra.mxu0 0.0
    %559 = vmatprep.subr.mxu0 0.0
    %560 = vmatpush1.msra.mxu0 0.0
    %561 = vmatprep.subr.mxu0 0.0
    %562 = vmatpush1.msra.mxu0 0.0
    %563 = vmatprep.subr.mxu0 0.0
    %564 = vmatpush1.msra.mxu0 0.0
    %565 = vmatprep.subr.mxu0 0.0
    %566 = vmatpush1.msra.mxu0 0.0
    %567 = vmatprep.subr.mxu0 0.0
    %568 = vmatpush1.msra.mxu0 0.0
    %569 = vmatprep.subr.mxu0 0.0
    %570 = vmatpush1.msra.mxu0 0.0
    %571 = vmatprep.mubr.f32.mxu0 0.0
    %v572 = vand.u32 %v51, 4294901760
    %573 = vmatmul.mubr.f32.gmra.mrb[0].mxu0 %v572
    %v574 = vpop.f32.mrb[0].mxu0
    %v575 = vadd.f32 %v494, %v574
    %v576 = vpop.f32.mrb[0].mxu0
    %577 = vmatprep.mubr.f32.mxu0 0.0
    %v578 = vand.u32 %v54, 4294901760
    %579 = vmatmul.mubr.f32.gmra.mrb[0].mxu0 %v578
    %v580 = vpop.f32.mrb[0].mxu0
    %v581 = vadd.f32 %v500, %v580
    %v582 = vpop.f32.mrb[0].mxu0
    %583 = vdwg.mxu0
    %v584 = vld [vmem:[%s3] sm:$0xff]
    %v585 = vld [vmem:[%s3 + $0x8] sm:$0xff]
    %v586 = vld [vmem:[%s3 + $0x10] sm:$0xff]
    %v587 = vld [vmem:[%s3 + $0x18] sm:$0xff]
    %v589 = vsel %vm49, 0.0, 0
    %591 = vmatprep.subr.mxu0 0.0
    %v592 = vand.u32 %v584, 4294901760
    %593 = vmatpush1.msra.mxu0 %v592
    %594 = vmatprep.subr.mxu0 0.0
    %v595 = vand.u32 %v585, 4294901760
    %596 = vmatpush1.msra.mxu0 %v595
    %597 = vmatprep.subr.mxu0 0.0
    %v598 = vand.u32 %v586, 4294901760
    %599 = vmatpush1.msra.mxu0 %v598
    %600 = vmatprep.subr.mxu0 0.0
    %v601 = vand.u32 %v587, 4294901760
    %602 = vmatpush1.msra.mxu0 %v601
    %603 = vmatprep.subr.mxu0 0.0
    %604 = vmatpush1.msra.mxu0 0.0
    %605 = vmatprep.subr.mxu0 0.0
    %606 = vmatpush1.msra.mxu0 0.0
    %607 = vmatprep.subr.mxu0 0.0
    %608 = vmatpush1.msra.mxu0 0.0
    %609 = vmatprep.subr.mxu0 0.0
    %610 = vmatpush1.msra.mxu0 0.0
    %611 = vmatprep.subr.mxu0 0.0
    %612 = vmatpush1.msra.mxu0 0.0
    %613 = vmatprep.subr.mxu0 0.0
    %614 = vmatpush1.msra.mxu0 0.0
    %615 = vmatprep.subr.mxu0 0.0
    %616 = vmatpush1.msra.mxu0 0.0
    %617 = vmatprep.subr.mxu0 0.0
    %618 = vmatpush1.msra.mxu0 0.0
    %619 = vmatprep.subr.mxu0 0.0
    %620 = vmatpush1.msra.mxu0 0.0
    %621 = vmatprep.subr.mxu0 0.0
    %622 = vmatpush1.msra.mxu0 0.0
    %623 = vmatprep.subr.mxu0 0.0
    %624 = vmatpush1.msra.mxu0 0.0
    %625 = vmatprep.subr.mxu0 0.0
    %626 = vmatpush1.msra.mxu0 0.0
    %627 = vmatprep.subr.mxu0 0.0
    %628 = vmatpush1.msra.mxu0 0.0
    %629 = vmatprep.subr.mxu0 0.0
    %630 = vmatpush1.msra.mxu0 0.0
    %631 = vmatprep.subr.mxu0 0.0
    %632 = vmatpush1.msra.mxu0 0.0
    %633 = vmatprep.subr.mxu0 0.0
    %634 = vmatpush1.msra.mxu0 0.0
    %635 = vmatprep.subr.mxu0 0.0
    %636 = vmatpush1.msra.mxu0 0.0
    %637 = vmatprep.subr.mxu0 0.0
    %638 = vmatpush1.msra.mxu0 0.0
    %639 = vmatprep.subr.mxu0 0.0
    %640 = vmatpush1.msra.mxu0 0.0
    %641 = vmatprep.subr.mxu0 0.0
    %642 = vmatpush1.msra.mxu0 0.0
    %643 = vmatprep.subr.mxu0 0.0
    %644 = vmatpush1.msra.mxu0 0.0
    %645 = vmatprep.subr.mxu0 0.0
    %646 = vmatpush1.msra.mxu0 0.0
    %647 = vmatprep.subr.mxu0 0.0
    %648 = vmatpush1.msra.mxu0 0.0
    %649 = vmatprep.subr.mxu0 0.0
    %650 = vmatpush1.msra.mxu0 0.0
    %651 = vmatprep.subr.mxu0 0.0
    %652 = vmatpush1.msra.mxu0 0.0
    %653 = vmatprep.subr.mxu0 0.0
    %654 = vmatpush1.msra.mxu0 0.0
    %655 = vmatprep.subr.mxu0 0.0
    %656 = vmatpush1.msra.mxu0 0.0
    %657 = vmatprep.subr.mxu0 0.0
    %658 = vmatpush1.msra.mxu0 0.0
    %659 = vmatprep.mubr.f32.mxu0 0.0
    %v660 = vand.u32 %v589, 4294901760
    %v661 = vsub.f32 %v589, %v660
    %v662 = vand.u32 %v661, 4294901760
    %v663 = vsub.f32 %v661, %v662
    %v664 = vand.u32 %v663, 4294901760
    %665 = vmatmul.mubr.f32.gmra.mrb[0].mxu0 %v664
    %v666 = vpop.f32.mrb[0].mxu0
    %v667 = vadd.f32 0.0, %v666
    %v668 = vpop.f32.mrb[0].mxu0
    %669 = vdwg.mxu0
    %670 = vmatprep.subr.mxu0 0.0
    %v671 = vand.u32 %v584, 4294901760
    %v672 = vsub.f32 %v584, %v671
    %v673 = vand.u32 %v672, 4294901760
    %v674 = vsub.f32 %v672, %v673
    %v675 = vand.u32 %v674, 4294901760
    %676 = vmatpush1.msra.mxu0 %v675
    %677 = vmatprep.subr.mxu0 0.0
    %v678 = vand.u32 %v585, 4294901760
    %v679 = vsub.f32 %v585, %v678
    %v680 = vand.u32 %v679, 4294901760
    %v681 = vsub.f32 %v679, %v680
    %v682 = vand.u32 %v681, 4294901760
    %683 = vmatpush1.msra.mxu0 %v682
    %684 = vmatprep.subr.mxu0 0.0
    %v685 = vand.u32 %v586, 4294901760
    %v686 = vsub.f32 %v586, %v685
    %v687 = vand.u32 %v686, 4294901760
    %v688 = vsub.f32 %v686, %v687
    %v689 = vand.u32 %v688, 4294901760
    %690 = vmatpush1.msra.mxu0 %v689
    %691 = vmatprep.subr.mxu0 0.0
    %v692 = vand.u32 %v587, 4294901760
    %v693 = vsub.f32 %v587, %v692
    %v694 = vand.u32 %v693, 4294901760
    %v695 = vsub.f32 %v693, %v694
    %v696 = vand.u32 %v695, 4294901760
    %697 = vmatpush1.msra.mxu0 %v696
    %698 = vmatprep.subr.mxu0 0.0
    %699 = vmatpush1.msra.mxu0 0.0
    %700 = vmatprep.subr.mxu0 0.0
    %701 = vmatpush1.msra.mxu0 0.0
    %702 = vmatprep.subr.mxu0 0.0
    %703 = vmatpush1.msra.mxu0 0.0
    %704 = vmatprep.subr.mxu0 0.0
    %705 = vmatpush1.msra.mxu0 0.0
    %706 = vmatprep.subr.mxu0 0.0
    %707 = vmatpush1.msra.mxu0 0.0
    %708 = vmatprep.subr.mxu0 0.0
    %709 = vmatpush1.msra.mxu0 0.0
    %710 = vmatprep.subr.mxu0 0.0
    %711 = vmatpush1.msra.mxu0 0.0
    %712 = vmatprep.subr.mxu0 0.0
    %713 = vmatpush1.msra.mxu0 0.0
    %714 = vmatprep.subr.mxu0 0.0
    %715 = vmatpush1.msra.mxu0 0.0
    %716 = vmatprep.subr.mxu0 0.0
    %717 = vmatpush1.msra.mxu0 0.0
    %718 = vmatprep.subr.mxu0 0.0
    %719 = vmatpush1.msra.mxu0 0.0
    %720 = vmatprep.subr.mxu0 0.0
    %721 = vmatpush1.msra.mxu0 0.0
    %722 = vmatprep.subr.mxu0 0.0
    %723 = vmatpush1.msra.mxu0 0.0
    %724 = vmatprep.subr.mxu0 0.0
    %725 = vmatpush1.msra.mxu0 0.0
    %726 = vmatprep.subr.mxu0 0.0
    %727 = vmatpush1.msra.mxu0 0.0
    %728 = vmatprep.subr.mxu0 0.0
    %729 = vmatpush1.msra.mxu0 0.0
    %730 = vmatprep.subr.mxu0 0.0
    %731 = vmatpush1.msra.mxu0 0.0
    %732 = vmatprep.subr.mxu0 0.0
    %733 = vmatpush1.msra.mxu0 0.0
    %734 = vmatprep.subr.mxu0 0.0
    %735 = vmatpush1.msra.mxu0 0.0
    %736 = vmatprep.subr.mxu0 0.0
    %737 = vmatpush1.msra.mxu0 0.0
    %738 = vmatprep.subr.mxu0 0.0
    %739 = vmatpush1.msra.mxu0 0.0
    %740 = vmatprep.subr.mxu0 0.0
    %741 = vmatpush1.msra.mxu0 0.0
    %742 = vmatprep.subr.mxu0 0.0
    %743 = vmatpush1.msra.mxu0 0.0
    %744 = vmatprep.subr.mxu0 0.0
    %745 = vmatpush1.msra.mxu0 0.0
    %746 = vmatprep.subr.mxu0 0.0
    %747 = vmatpush1.msra.mxu0 0.0
    %748 = vmatprep.subr.mxu0 0.0
    %749 = vmatpush1.msra.mxu0 0.0
    %750 = vmatprep.subr.mxu0 0.0
    %751 = vmatpush1.msra.mxu0 0.0
    %752 = vmatprep.subr.mxu0 0.0
    %753 = vmatpush1.msra.mxu0 0.0
    %754 = vmatprep.mubr.f32.mxu0 0.0
    %v755 = vand.u32 %v589, 4294901760
    %756 = vmatmul.mubr.f32.gmra.mrb[0].mxu0 %v755
    %v757 = vpop.f32.mrb[0].mxu0
    %v758 = vadd.f32 %v667, %v757
    %v759 = vpop.f32.mrb[0].mxu0
    %760 = vdwg.mxu0
    %761 = vmatprep.subr.mxu0 0.0
    %v762 = vand.u32 %v584, 4294901760
    %v763 = vsub.f32 %v584, %v762
    %764 = vmatpush1.msra.mxu0 %v763
    %765 = vmatprep.subr.mxu0 0.0
    %v766 = vand.u32 %v585, 4294901760
    %v767 = vsub.f32 %v585, %v766
    %768 = vmatpush1.msra.mxu0 %v767
    %769 = vmatprep.subr.mxu0 0.0
    %v770 = vand.u32 %v586, 4294901760
    %v771 = vsub.f32 %v586, %v770
    %772 = vmatpush1.msra.mxu0 %v771
    %773 = vmatprep.subr.mxu0 0.0
    %v774 = vand.u32 %v587, 4294901760
    %v775 = vsub.f32 %v587, %v774
    %776 = vmatpush1.msra.mxu0 %v775
    %777 = vmatprep.subr.mxu0 0.0
    %778 = vmatpush1.msra.mxu0 0.0
    %779 = vmatprep.subr.mxu0 0.0
    %780 = vmatpush1.msra.mxu0 0.0
    %781 = vmatprep.subr.mxu0 0.0
    %782 = vmatpush1.msra.mxu0 0.0
    %783 = vmatprep.subr.mxu0 0.0
    %784 = vmatpush1.msra.mxu0 0.0
    %785 = vmatprep.subr.mxu0 0.0
    %786 = vmatpush1.msra.mxu0 0.0
    %787 = vmatprep.subr.mxu0 0.0
    %788 = vmatpush1.msra.mxu0 0.0
    %789 = vmatprep.subr.mxu0 0.0
    %790 = vmatpush1.msra.mxu0 0.0
    %791 = vmatprep.subr.mxu0 0.0
    %792 = vmatpush1.msra.mxu0 0.0
    %793 = vmatprep.subr.mxu0 0.0
    %794 = vmatpush1.msra.mxu0 0.0
    %795 = vmatprep.subr.mxu0 0.0
    %796 = vmatpush1.msra.mxu0 0.0
    %797 = vmatprep.subr.mxu0 0.0
    %798 = vmatpush1.msra.mxu0 0.0
    %799 = vmatprep.subr.mxu0 0.0
    %800 = vmatpush1.msra.mxu0 0.0
    %801 = vmatprep.subr.mxu0 0.0
    %802 = vmatpush1.msra.mxu0 0.0
    %803 = vmatprep.subr.mxu0 0.0
    %804 = vmatpush1.msra.mxu0 0.0
    %805 = vmatprep.subr.mxu0 0.0
    %806 = vmatpush1.msra.mxu0 0.0
    %807 = vmatprep.subr.mxu0 0.0
    %808 = vmatpush1.msra.mxu0 0.0
    %809 = vmatprep.subr.mxu0 0.0
    %810 = vmatpush1.msra.mxu0 0.0
    %811 = vmatprep.subr.mxu0 0.0
    %812 = vmatpush1.msra.mxu0 0.0
    %813 = vmatprep.subr.mxu0 0.0
    %814 = vmatpush1.msra.mxu0 0.0
    %815 = vmatprep.subr.mxu0 0.0
    %816 = vmatpush1.msra.mxu0 0.0
    %817 = vmatprep.subr.mxu0 0.0
    %818 = vmatpush1.msra.mxu0 0.0
    %819 = vmatprep.subr.mxu0 0.0
    %820 = vmatpush1.msra.mxu0 0.0
    %821 = vmatprep.subr.mxu0 0.0
    %822 = vmatpush1.msra.mxu0 0.0
    %823 = vmatprep.subr.mxu0 0.0
    %824 = vmatpush1.msra.mxu0 0.0
    %825 = vmatprep.subr.mxu0 0.0
    %826 = vmatpush1.msra.mxu0 0.0
    %827 = vmatprep.subr.mxu0 0.0
    %828 = vmatpush1.msra.mxu0 0.0
    %829 = vmatprep.subr.mxu0 0.0
    %830 = vmatpush1.msra.mxu0 0.0
    %831 = vmatprep.subr.mxu0 0.0
    %832 = vmatpush1.msra.mxu0 0.0
    %833 = vmatprep.mubr.f32.mxu0 0.0
    %v834 = vand.u32 %v589, 4294901760
    %v835 = vsub.f32 %v589, %v834
    %836 = vmatmul.mubr.f32.gmra.mrb[0].mxu0 %v835
    %v837 = vpop.f32.mrb[0].mxu0
    %v838 = vadd.f32 %v758, %v837
    %v839 = vpop.f32.mrb[0].mxu0
    %840 = vdwg.mxu0
    %841 = vmatprep.subr.mxu0 0.0
    %v842 = vand.u32 %v584, 4294901760
    %843 = vmatpush1.msra.mxu0 %v842
    %844 = vmatprep.subr.mxu0 0.0
    %v845 = vand.u32 %v585, 4294901760
    %846 = vmatpush1.msra.mxu0 %v845
    %847 = vmatprep.subr.mxu0 0.0
    %v848 = vand.u32 %v586, 4294901760
    %849 = vmatpush1.msra.mxu0 %v848
    %850 = vmatprep.subr.mxu0 0.0
    %v851 = vand.u32 %v587, 4294901760
    %852 = vmatpush1.msra.mxu0 %v851
    %853 = vmatprep.subr.mxu0 0.0
    %854 = vmatpush1.msra.mxu0 0.0
    %855 = vmatprep.subr.mxu0 0.0
    %856 = vmatpush1.msra.mxu0 0.0
    %857 = vmatprep.subr.mxu0 0.0
    %858 = vmatpush1.msra.mxu0 0.0
    %859 = vmatprep.subr.mxu0 0.0
    %860 = vmatpush1.msra.mxu0 0.0
    %861 = vmatprep.subr.mxu0 0.0
    %862 = vmatpush1.msra.mxu0 0.0
    %863 = vmatprep.subr.mxu0 0.0
    %864 = vmatpush1.msra.mxu0 0.0
    %865 = vmatprep.subr.mxu0 0.0
    %866 = vmatpush1.msra.mxu0 0.0
    %867 = vmatprep.subr.mxu0 0.0
    %868 = vmatpush1.msra.mxu0 0.0
    %869 = vmatprep.subr.mxu0 0.0
    %870 = vmatpush1.msra.mxu0 0.0
    %871 = vmatprep.subr.mxu0 0.0
    %872 = vmatpush1.msra.mxu0 0.0
    %873 = vmatprep.subr.mxu0 0.0
    %874 = vmatpush1.msra.mxu0 0.0
    %875 = vmatprep.subr.mxu0 0.0
    %876 = vmatpush1.msra.mxu0 0.0
    %877 = vmatprep.subr.mxu0 0.0
    %878 = vmatpush1.msra.mxu0 0.0
    %879 = vmatprep.subr.mxu0 0.0
    %880 = vmatpush1.msra.mxu0 0.0
    %881 = vmatprep.subr.mxu0 0.0
    %882 = vmatpush1.msra.mxu0 0.0
    %883 = vmatprep.subr.mxu0 0.0
    %884 = vmatpush1.msra.mxu0 0.0
    %885 = vmatprep.subr.mxu0 0.0
    %886 = vmatpush1.msra.mxu0 0.0
    %887 = vmatprep.subr.mxu0 0.0
    %888 = vmatpush1.msra.mxu0 0.0
    %889 = vmatprep.subr.mxu0 0.0
    %890 = vmatpush1.msra.mxu0 0.0
    %891 = vmatprep.subr.mxu0 0.0
    %892 = vmatpush1.msra.mxu0 0.0
    %893 = vmatprep.subr.mxu0 0.0
    %894 = vmatpush1.msra.mxu0 0.0
    %895 = vmatprep.subr.mxu0 0.0
    %896 = vmatpush1.msra.mxu0 0.0
    %897 = vmatprep.subr.mxu0 0.0
    %898 = vmatpush1.msra.mxu0 0.0
    %899 = vmatprep.subr.mxu0 0.0
    %900 = vmatpush1.msra.mxu0 0.0
    %901 = vmatprep.subr.mxu0 0.0
    %902 = vmatpush1.msra.mxu0 0.0
    %903 = vmatprep.subr.mxu0 0.0
    %904 = vmatpush1.msra.mxu0 0.0
    %905 = vmatprep.subr.mxu0 0.0
    %906 = vmatpush1.msra.mxu0 0.0
    %907 = vmatprep.subr.mxu0 0.0
    %908 = vmatpush1.msra.mxu0 0.0
    %909 = vmatprep.mubr.f32.mxu0 0.0
    %v910 = vand.u32 %v589, 4294901760
    %v911 = vsub.f32 %v589, %v910
    %v912 = vand.u32 %v911, 4294901760
    %913 = vmatmul.mubr.f32.gmra.mrb[0].mxu0 %v912
    %v914 = vpop.f32.mrb[0].mxu0
    %v915 = vadd.f32 %v838, %v914
    %v916 = vpop.f32.mrb[0].mxu0
    %917 = vdwg.mxu0
    %918 = vmatprep.subr.mxu0 0.0
    %v919 = vand.u32 %v584, 4294901760
    %v920 = vsub.f32 %v584, %v919
    %v921 = vand.u32 %v920, 4294901760
    %922 = vmatpush1.msra.mxu0 %v921
    %923 = vmatprep.subr.mxu0 0.0
    %v924 = vand.u32 %v585, 4294901760
    %v925 = vsub.f32 %v585, %v924
    %v926 = vand.u32 %v925, 4294901760
    %927 = vmatpush1.msra.mxu0 %v926
    %928 = vmatprep.subr.mxu0 0.0
    %v929 = vand.u32 %v586, 4294901760
    %v930 = vsub.f32 %v586, %v929
    %v931 = vand.u32 %v930, 4294901760
    %932 = vmatpush1.msra.mxu0 %v931
    %933 = vmatprep.subr.mxu0 0.0
    %v934 = vand.u32 %v587, 4294901760
    %v935 = vsub.f32 %v587, %v934
    %v936 = vand.u32 %v935, 4294901760
    %937 = vmatpush1.msra.mxu0 %v936
    %938 = vmatprep.subr.mxu0 0.0
    %939 = vmatpush1.msra.mxu0 0.0
    %940 = vmatprep.subr.mxu0 0.0
    %941 = vmatpush1.msra.mxu0 0.0
    %942 = vmatprep.subr.mxu0 0.0
    %943 = vmatpush1.msra.mxu0 0.0
    %944 = vmatprep.subr.mxu0 0.0
    %945 = vmatpush1.msra.mxu0 0.0
    %946 = vmatprep.subr.mxu0 0.0
    %947 = vmatpush1.msra.mxu0 0.0
    %948 = vmatprep.subr.mxu0 0.0
    %949 = vmatpush1.msra.mxu0 0.0
    %950 = vmatprep.subr.mxu0 0.0
    %951 = vmatpush1.msra.mxu0 0.0
    %952 = vmatprep.subr.mxu0 0.0
    %953 = vmatpush1.msra.mxu0 0.0
    %954 = vmatprep.subr.mxu0 0.0
    %955 = vmatpush1.msra.mxu0 0.0
    %956 = vmatprep.subr.mxu0 0.0
    %957 = vmatpush1.msra.mxu0 0.0
    %958 = vmatprep.subr.mxu0 0.0
    %959 = vmatpush1.msra.mxu0 0.0
    %960 = vmatprep.subr.mxu0 0.0
    %961 = vmatpush1.msra.mxu0 0.0
    %962 = vmatprep.subr.mxu0 0.0
    %963 = vmatpush1.msra.mxu0 0.0
    %964 = vmatprep.subr.mxu0 0.0
    %965 = vmatpush1.msra.mxu0 0.0
    %966 = vmatprep.subr.mxu0 0.0
    %967 = vmatpush1.msra.mxu0 0.0
    %968 = vmatprep.subr.mxu0 0.0
    %969 = vmatpush1.msra.mxu0 0.0
    %970 = vmatprep.subr.mxu0 0.0
    %971 = vmatpush1.msra.mxu0 0.0
    %972 = vmatprep.subr.mxu0 0.0
    %973 = vmatpush1.msra.mxu0 0.0
    %974 = vmatprep.subr.mxu0 0.0
    %975 = vmatpush1.msra.mxu0 0.0
    %976 = vmatprep.subr.mxu0 0.0
    %977 = vmatpush1.msra.mxu0 0.0
    %978 = vmatprep.subr.mxu0 0.0
    %979 = vmatpush1.msra.mxu0 0.0
    %980 = vmatprep.subr.mxu0 0.0
    %981 = vmatpush1.msra.mxu0 0.0
    %982 = vmatprep.subr.mxu0 0.0
    %983 = vmatpush1.msra.mxu0 0.0
    %984 = vmatprep.subr.mxu0 0.0
    %985 = vmatpush1.msra.mxu0 0.0
    %986 = vmatprep.subr.mxu0 0.0
    %987 = vmatpush1.msra.mxu0 0.0
    %988 = vmatprep.subr.mxu0 0.0
    %989 = vmatpush1.msra.mxu0 0.0
    %990 = vmatprep.subr.mxu0 0.0
    %991 = vmatpush1.msra.mxu0 0.0
    %992 = vmatprep.subr.mxu0 0.0
    %993 = vmatpush1.msra.mxu0 0.0
    %994 = vmatprep.mubr.f32.mxu0 0.0
    %v995 = vand.u32 %v589, 4294901760
    %996 = vmatmul.mubr.f32.gmra.mrb[0].mxu0 %v995
    %v997 = vpop.f32.mrb[0].mxu0
    %v998 = vadd.f32 %v915, %v997
    %v999 = vpop.f32.mrb[0].mxu0
    %1000 = vdwg.mxu0
    %1001 = vmatprep.subr.mxu0 0.0
    %v1002 = vand.u32 %v584, 4294901760
    %1003 = vmatpush1.msra.mxu0 %v1002
    %1004 = vmatprep.subr.mxu0 0.0
    %v1005 = vand.u32 %v585, 4294901760
    %1006 = vmatpush1.msra.mxu0 %v1005
    %1007 = vmatprep.subr.mxu0 0.0
    %v1008 = vand.u32 %v586, 4294901760
    %1009 = vmatpush1.msra.mxu0 %v1008
    %1010 = vmatprep.subr.mxu0 0.0
    %v1011 = vand.u32 %v587, 4294901760
    %1012 = vmatpush1.msra.mxu0 %v1011
    %1013 = vmatprep.subr.mxu0 0.0
    %1014 = vmatpush1.msra.mxu0 0.0
    %1015 = vmatprep.subr.mxu0 0.0
    %1016 = vmatpush1.msra.mxu0 0.0
    %1017 = vmatprep.subr.mxu0 0.0
    %1018 = vmatpush1.msra.mxu0 0.0
    %1019 = vmatprep.subr.mxu0 0.0
    %1020 = vmatpush1.msra.mxu0 0.0
    %1021 = vmatprep.subr.mxu0 0.0
    %1022 = vmatpush1.msra.mxu0 0.0
    %1023 = vmatprep.subr.mxu0 0.0
    %1024 = vmatpush1.msra.mxu0 0.0
    %1025 = vmatprep.subr.mxu0 0.0
    %1026 = vmatpush1.msra.mxu0 0.0
    %1027 = vmatprep.subr.mxu0 0.0
    %1028 = vmatpush1.msra.mxu0 0.0
    %1029 = vmatprep.subr.mxu0 0.0
    %1030 = vmatpush1.msra.mxu0 0.0
    %1031 = vmatprep.subr.mxu0 0.0
    %1032 = vmatpush1.msra.mxu0 0.0
    %1033 = vmatprep.subr.mxu0 0.0
    %1034 = vmatpush1.msra.mxu0 0.0
    %1035 = vmatprep.subr.mxu0 0.0
    %1036 = vmatpush1.msra.mxu0 0.0
    %1037 = vmatprep.subr.mxu0 0.0
    %1038 = vmatpush1.msra.mxu0 0.0
    %1039 = vmatprep.subr.mxu0 0.0
    %1040 = vmatpush1.msra.mxu0 0.0
    %1041 = vmatprep.subr.mxu0 0.0
    %1042 = vmatpush1.msra.mxu0 0.0
    %1043 = vmatprep.subr.mxu0 0.0
    %1044 = vmatpush1.msra.mxu0 0.0
    %1045 = vmatprep.subr.mxu0 0.0
    %1046 = vmatpush1.msra.mxu0 0.0
    %1047 = vmatprep.subr.mxu0 0.0
    %1048 = vmatpush1.msra.mxu0 0.0
    %1049 = vmatprep.subr.mxu0 0.0
    %1050 = vmatpush1.msra.mxu0 0.0
    %1051 = vmatprep.subr.mxu0 0.0
    %1052 = vmatpush1.msra.mxu0 0.0
    %1053 = vmatprep.subr.mxu0 0.0
    %1054 = vmatpush1.msra.mxu0 0.0
    %1055 = vmatprep.subr.mxu0 0.0
    %1056 = vmatpush1.msra.mxu0 0.0
    %1057 = vmatprep.subr.mxu0 0.0
    %1058 = vmatpush1.msra.mxu0 0.0
    %1059 = vmatprep.subr.mxu0 0.0
    %1060 = vmatpush1.msra.mxu0 0.0
    %1061 = vmatprep.subr.mxu0 0.0
    %1062 = vmatpush1.msra.mxu0 0.0
    %1063 = vmatprep.subr.mxu0 0.0
    %1064 = vmatpush1.msra.mxu0 0.0
    %1065 = vmatprep.subr.mxu0 0.0
    %1066 = vmatpush1.msra.mxu0 0.0
    %1067 = vmatprep.subr.mxu0 0.0
    %1068 = vmatpush1.msra.mxu0 0.0
    %1069 = vmatprep.mubr.f32.mxu0 0.0
    %v1070 = vand.u32 %v589, 4294901760
    %1071 = vmatmul.mubr.f32.gmra.mrb[0].mxu0 %v1070
    %v1072 = vpop.f32.mrb[0].mxu0
    %v1073 = vadd.f32 %v998, %v1072
    %v1074 = vpop.f32.mrb[0].mxu0
    %1075 = vdwg.mxu0
    %v1076 = vadd.f32 %v575, %v1073
    %v1077 = vmul.f32 %v1076, 0.5
    %v1078 = vtanh.pop %v1077
    %v1079 = vadd.f32 %v1078, 1.0
    %v1080 = vmul.f32 %v1079, 0.5
    %v1081 = vtanh.pop %v1076
    %v1082 = vmul.f32 %v1080, 0.0
    %1084 = vrot.lane.b32.xlu0 %v1081, 64
    %v1085 = vpop.permute.xlu0 %1084
    %v1087 = vmul.f32 %v1080, %v1085
    %1089 = vrot.lane.b32.xlu0 %v1087, 32
    %v1090 = vpop.permute.xlu0 %1089
    %v1092 = vadd.f32 %v1082, %v1090
    %v1093 = vtanh.pop %v1092
    %1095 = vrot.lane.b32.xlu0 %v1093, 64
    %v1096 = vpop.permute.xlu0 %1095
    %v1098 = vmul.f32 %v1080, %v1096
    %1100 = vrot.lane.b32.xlu0 %v1098, 32
    %v1101 = vpop.permute.xlu0 %1100
    %v1102 = vsel %vm49, %v1101, 0
    %1104 = vmatprep.subr.mxu0 0.0
    %v1105 = vand.u32 %v584, 4294901760
    %1106 = vmatpush1.msra.mxu0 %v1105
    %1107 = vmatprep.subr.mxu0 0.0
    %v1108 = vand.u32 %v585, 4294901760
    %1109 = vmatpush1.msra.mxu0 %v1108
    %1110 = vmatprep.subr.mxu0 0.0
    %v1111 = vand.u32 %v586, 4294901760
    %1112 = vmatpush1.msra.mxu0 %v1111
    %1113 = vmatprep.subr.mxu0 0.0
    %v1114 = vand.u32 %v587, 4294901760
    %1115 = vmatpush1.msra.mxu0 %v1114
    %1116 = vmatprep.subr.mxu0 0.0
    %1117 = vmatpush1.msra.mxu0 0.0
    %1118 = vmatprep.subr.mxu0 0.0
    %1119 = vmatpush1.msra.mxu0 0.0
    %1120 = vmatprep.subr.mxu0 0.0
    %1121 = vmatpush1.msra.mxu0 0.0
    %1122 = vmatprep.subr.mxu0 0.0
    %1123 = vmatpush1.msra.mxu0 0.0
    %1124 = vmatprep.subr.mxu0 0.0
    %1125 = vmatpush1.msra.mxu0 0.0
    %1126 = vmatprep.subr.mxu0 0.0
    %1127 = vmatpush1.msra.mxu0 0.0
    %1128 = vmatprep.subr.mxu0 0.0
    %1129 = vmatpush1.msra.mxu0 0.0
    %1130 = vmatprep.subr.mxu0 0.0
    %1131 = vmatpush1.msra.mxu0 0.0
    %1132 = vmatprep.subr.mxu0 0.0
    %1133 = vmatpush1.msra.mxu0 0.0
    %1134 = vmatprep.subr.mxu0 0.0
    %1135 = vmatpush1.msra.mxu0 0.0
    %1136 = vmatprep.subr.mxu0 0.0
    %1137 = vmatpush1.msra.mxu0 0.0
    %1138 = vmatprep.subr.mxu0 0.0
    %1139 = vmatpush1.msra.mxu0 0.0
    %1140 = vmatprep.subr.mxu0 0.0
    %1141 = vmatpush1.msra.mxu0 0.0
    %1142 = vmatprep.subr.mxu0 0.0
    %1143 = vmatpush1.msra.mxu0 0.0
    %1144 = vmatprep.subr.mxu0 0.0
    %1145 = vmatpush1.msra.mxu0 0.0
    %1146 = vmatprep.subr.mxu0 0.0
    %1147 = vmatpush1.msra.mxu0 0.0
    %1148 = vmatprep.subr.mxu0 0.0
    %1149 = vmatpush1.msra.mxu0 0.0
    %1150 = vmatprep.subr.mxu0 0.0
    %1151 = vmatpush1.msra.mxu0 0.0
    %1152 = vmatprep.subr.mxu0 0.0
    %1153 = vmatpush1.msra.mxu0 0.0
    %1154 = vmatprep.subr.mxu0 0.0
    %1155 = vmatpush1.msra.mxu0 0.0
    %1156 = vmatprep.subr.mxu0 0.0
    %1157 = vmatpush1.msra.mxu0 0.0
    %1158 = vmatprep.subr.mxu0 0.0
    %1159 = vmatpush1.msra.mxu0 0.0
    %1160 = vmatprep.subr.mxu0 0.0
    %1161 = vmatpush1.msra.mxu0 0.0
    %1162 = vmatprep.subr.mxu0 0.0
    %1163 = vmatpush1.msra.mxu0 0.0
    %1164 = vmatprep.subr.mxu0 0.0
    %1165 = vmatpush1.msra.mxu0 0.0
    %1166 = vmatprep.subr.mxu0 0.0
    %1167 = vmatpush1.msra.mxu0 0.0
    %1168 = vmatprep.subr.mxu0 0.0
    %1169 = vmatpush1.msra.mxu0 0.0
    %1170 = vmatprep.subr.mxu0 0.0
    %1171 = vmatpush1.msra.mxu0 0.0
    %1172 = vmatprep.mubr.f32.mxu0 0.0
    %v1173 = vand.u32 %v1102, 4294901760
    %v1174 = vsub.f32 %v1102, %v1173
    %v1175 = vand.u32 %v1174, 4294901760
    %v1176 = vsub.f32 %v1174, %v1175
    %v1177 = vand.u32 %v1176, 4294901760
    %1178 = vmatmul.mubr.f32.gmra.mrb[0].mxu0 %v1177
    %v1179 = vpop.f32.mrb[0].mxu0
    %v1180 = vadd.f32 0.0, %v1179
    %v1181 = vpop.f32.mrb[0].mxu0
    %1182 = vdwg.mxu0
    %1183 = vmatprep.subr.mxu0 0.0
    %v1184 = vand.u32 %v584, 4294901760
    %v1185 = vsub.f32 %v584, %v1184
    %v1186 = vand.u32 %v1185, 4294901760
    %v1187 = vsub.f32 %v1185, %v1186
    %v1188 = vand.u32 %v1187, 4294901760
    %1189 = vmatpush1.msra.mxu0 %v1188
    %1190 = vmatprep.subr.mxu0 0.0
    %v1191 = vand.u32 %v585, 4294901760
    %v1192 = vsub.f32 %v585, %v1191
    %v1193 = vand.u32 %v1192, 4294901760
    %v1194 = vsub.f32 %v1192, %v1193
    %v1195 = vand.u32 %v1194, 4294901760
    %1196 = vmatpush1.msra.mxu0 %v1195
    %1197 = vmatprep.subr.mxu0 0.0
    %v1198 = vand.u32 %v586, 4294901760
    %v1199 = vsub.f32 %v586, %v1198
    %v1200 = vand.u32 %v1199, 4294901760
    %v1201 = vsub.f32 %v1199, %v1200
    %v1202 = vand.u32 %v1201, 4294901760
    %1203 = vmatpush1.msra.mxu0 %v1202
    %1204 = vmatprep.subr.mxu0 0.0
    %v1205 = vand.u32 %v587, 4294901760
    %v1206 = vsub.f32 %v587, %v1205
    %v1207 = vand.u32 %v1206, 4294901760
    %v1208 = vsub.f32 %v1206, %v1207
    %v1209 = vand.u32 %v1208, 4294901760
    %1210 = vmatpush1.msra.mxu0 %v1209
    %1211 = vmatprep.subr.mxu0 0.0
    %1212 = vmatpush1.msra.mxu0 0.0
    %1213 = vmatprep.subr.mxu0 0.0
    %1214 = vmatpush1.msra.mxu0 0.0
    %1215 = vmatprep.subr.mxu0 0.0
    %1216 = vmatpush1.msra.mxu0 0.0
    %1217 = vmatprep.subr.mxu0 0.0
    %1218 = vmatpush1.msra.mxu0 0.0
    %1219 = vmatprep.subr.mxu0 0.0
    %1220 = vmatpush1.msra.mxu0 0.0
    %1221 = vmatprep.subr.mxu0 0.0
    %1222 = vmatpush1.msra.mxu0 0.0
    %1223 = vmatprep.subr.mxu0 0.0
    %1224 = vmatpush1.msra.mxu0 0.0
    %1225 = vmatprep.subr.mxu0 0.0
    %1226 = vmatpush1.msra.mxu0 0.0
    %1227 = vmatprep.subr.mxu0 0.0
    %1228 = vmatpush1.msra.mxu0 0.0
    %1229 = vmatprep.subr.mxu0 0.0
    %1230 = vmatpush1.msra.mxu0 0.0
    %1231 = vmatprep.subr.mxu0 0.0
    %1232 = vmatpush1.msra.mxu0 0.0
    %1233 = vmatprep.subr.mxu0 0.0
    %1234 = vmatpush1.msra.mxu0 0.0
    %1235 = vmatprep.subr.mxu0 0.0
    %1236 = vmatpush1.msra.mxu0 0.0
    %1237 = vmatprep.subr.mxu0 0.0
    %1238 = vmatpush1.msra.mxu0 0.0
    %1239 = vmatprep.subr.mxu0 0.0
    %1240 = vmatpush1.msra.mxu0 0.0
    %1241 = vmatprep.subr.mxu0 0.0
    %1242 = vmatpush1.msra.mxu0 0.0
    %1243 = vmatprep.subr.mxu0 0.0
    %1244 = vmatpush1.msra.mxu0 0.0
    %1245 = vmatprep.subr.mxu0 0.0
    %1246 = vmatpush1.msra.mxu0 0.0
    %1247 = vmatprep.subr.mxu0 0.0
    %1248 = vmatpush1.msra.mxu0 0.0
    %1249 = vmatprep.subr.mxu0 0.0
    %1250 = vmatpush1.msra.mxu0 0.0
    %1251 = vmatprep.subr.mxu0 0.0
    %1252 = vmatpush1.msra.mxu0 0.0
    %1253 = vmatprep.subr.mxu0 0.0
    %1254 = vmatpush1.msra.mxu0 0.0
    %1255 = vmatprep.subr.mxu0 0.0
    %1256 = vmatpush1.msra.mxu0 0.0
    %1257 = vmatprep.subr.mxu0 0.0
    %1258 = vmatpush1.msra.mxu0 0.0
    %1259 = vmatprep.subr.mxu0 0.0
    %1260 = vmatpush1.msra.mxu0 0.0
    %1261 = vmatprep.subr.mxu0 0.0
    %1262 = vmatpush1.msra.mxu0 0.0
    %1263 = vmatprep.subr.mxu0 0.0
    %1264 = vmatpush1.msra.mxu0 0.0
    %1265 = vmatprep.subr.mxu0 0.0
    %1266 = vmatpush1.msra.mxu0 0.0
    %1267 = vmatprep.mubr.f32.mxu0 0.0
    %v1268 = vand.u32 %v1102, 4294901760
    %1269 = vmatmul.mubr.f32.gmra.mrb[0].mxu0 %v1268
    %v1270 = vpop.f32.mrb[0].mxu0
    %v1271 = vadd.f32 %v1180, %v1270
    %v1272 = vpop.f32.mrb[0].mxu0
    %1273 = vdwg.mxu0
    %1274 = vmatprep.subr.mxu0 0.0
    %v1275 = vand.u32 %v584, 4294901760
    %v1276 = vsub.f32 %v584, %v1275
    %1277 = vmatpush1.msra.mxu0 %v1276
    %1278 = vmatprep.subr.mxu0 0.0
    %v1279 = vand.u32 %v585, 4294901760
    %v1280 = vsub.f32 %v585, %v1279
    %1281 = vmatpush1.msra.mxu0 %v1280
    %1282 = vmatprep.subr.mxu0 0.0
    %v1283 = vand.u32 %v586, 4294901760
    %v1284 = vsub.f32 %v586, %v1283
    %1285 = vmatpush1.msra.mxu0 %v1284
    %1286 = vmatprep.subr.mxu0 0.0
    %v1287 = vand.u32 %v587, 4294901760
    %v1288 = vsub.f32 %v587, %v1287
    %1289 = vmatpush1.msra.mxu0 %v1288
    %1290 = vmatprep.subr.mxu0 0.0
    %1291 = vmatpush1.msra.mxu0 0.0
    %1292 = vmatprep.subr.mxu0 0.0
    %1293 = vmatpush1.msra.mxu0 0.0
    %1294 = vmatprep.subr.mxu0 0.0
    %1295 = vmatpush1.msra.mxu0 0.0
    %1296 = vmatprep.subr.mxu0 0.0
    %1297 = vmatpush1.msra.mxu0 0.0
    %1298 = vmatprep.subr.mxu0 0.0
    %1299 = vmatpush1.msra.mxu0 0.0
    %1300 = vmatprep.subr.mxu0 0.0
    %1301 = vmatpush1.msra.mxu0 0.0
    %1302 = vmatprep.subr.mxu0 0.0
    %1303 = vmatpush1.msra.mxu0 0.0
    %1304 = vmatprep.subr.mxu0 0.0
    %1305 = vmatpush1.msra.mxu0 0.0
    %1306 = vmatprep.subr.mxu0 0.0
    %1307 = vmatpush1.msra.mxu0 0.0
    %1308 = vmatprep.subr.mxu0 0.0
    %1309 = vmatpush1.msra.mxu0 0.0
    %1310 = vmatprep.subr.mxu0 0.0
    %1311 = vmatpush1.msra.mxu0 0.0
    %1312 = vmatprep.subr.mxu0 0.0
    %1313 = vmatpush1.msra.mxu0 0.0
    %1314 = vmatprep.subr.mxu0 0.0
    %1315 = vmatpush1.msra.mxu0 0.0
    %1316 = vmatprep.subr.mxu0 0.0
    %1317 = vmatpush1.msra.mxu0 0.0
    %1318 = vmatprep.subr.mxu0 0.0
    %1319 = vmatpush1.msra.mxu0 0.0
    %1320 = vmatprep.subr.mxu0 0.0
    %1321 = vmatpush1.msra.mxu0 0.0
    %1322 = vmatprep.subr.mxu0 0.0
    %1323 = vmatpush1.msra.mxu0 0.0
    %1324 = vmatprep.subr.mxu0 0.0
    %1325 = vmatpush1.msra.mxu0 0.0
    %1326 = vmatprep.subr.mxu0 0.0
    %1327 = vmatpush1.msra.mxu0 0.0
    %1328 = vmatprep.subr.mxu0 0.0
    %1329 = vmatpush1.msra.mxu0 0.0
    %1330 = vmatprep.subr.mxu0 0.0
    %1331 = vmatpush1.msra.mxu0 0.0
    %1332 = vmatprep.subr.mxu0 0.0
    %1333 = vmatpush1.msra.mxu0 0.0
    %1334 = vmatprep.subr.mxu0 0.0
    %1335 = vmatpush1.msra.mxu0 0.0
    %1336 = vmatprep.subr.mxu0 0.0
    %1337 = vmatpush1.msra.mxu0 0.0
    %1338 = vmatprep.subr.mxu0 0.0
    %1339 = vmatpush1.msra.mxu0 0.0
    %1340 = vmatprep.subr.mxu0 0.0
    %1341 = vmatpush1.msra.mxu0 0.0
    %1342 = vmatprep.subr.mxu0 0.0
    %1343 = vmatpush1.msra.mxu0 0.0
    %1344 = vmatprep.subr.mxu0 0.0
    %1345 = vmatpush1.msra.mxu0 0.0
    %1346 = vmatprep.mubr.f32.mxu0 0.0
    %v1347 = vand.u32 %v1102, 4294901760
    %v1348 = vsub.f32 %v1102, %v1347
    %1349 = vmatmul.mubr.f32.gmra.mrb[0].mxu0 %v1348
    %v1350 = vpop.f32.mrb[0].mxu0
    %v1351 = vadd.f32 %v1271, %v1350
    %v1352 = vpop.f32.mrb[0].mxu0
    %1353 = vdwg.mxu0
    %1354 = vmatprep.subr.mxu0 0.0
    %v1355 = vand.u32 %v584, 4294901760
    %1356 = vmatpush1.msra.mxu0 %v1355
    %1357 = vmatprep.subr.mxu0 0.0
    %v1358 = vand.u32 %v585, 4294901760
    %1359 = vmatpush1.msra.mxu0 %v1358
    %1360 = vmatprep.subr.mxu0 0.0
    %v1361 = vand.u32 %v586, 4294901760
    %1362 = vmatpush1.msra.mxu0 %v1361
    %1363 = vmatprep.subr.mxu0 0.0
    %v1364 = vand.u32 %v587, 4294901760
    %1365 = vmatpush1.msra.mxu0 %v1364
    %1366 = vmatprep.subr.mxu0 0.0
    %1367 = vmatpush1.msra.mxu0 0.0
    %1368 = vmatprep.subr.mxu0 0.0
    %1369 = vmatpush1.msra.mxu0 0.0
    %1370 = vmatprep.subr.mxu0 0.0
    %1371 = vmatpush1.msra.mxu0 0.0
    %1372 = vmatprep.subr.mxu0 0.0
    %1373 = vmatpush1.msra.mxu0 0.0
    %1374 = vmatprep.subr.mxu0 0.0
    %1375 = vmatpush1.msra.mxu0 0.0
    %1376 = vmatprep.subr.mxu0 0.0
    %1377 = vmatpush1.msra.mxu0 0.0
    %1378 = vmatprep.subr.mxu0 0.0
    %1379 = vmatpush1.msra.mxu0 0.0
    %1380 = vmatprep.subr.mxu0 0.0
    %1381 = vmatpush1.msra.mxu0 0.0
    %1382 = vmatprep.subr.mxu0 0.0
    %1383 = vmatpush1.msra.mxu0 0.0
    %1384 = vmatprep.subr.mxu0 0.0
    %1385 = vmatpush1.msra.mxu0 0.0
    %1386 = vmatprep.subr.mxu0 0.0
    %1387 = vmatpush1.msra.mxu0 0.0
    %1388 = vmatprep.subr.mxu0 0.0
    %1389 = vmatpush1.msra.mxu0 0.0
    %1390 = vmatprep.subr.mxu0 0.0
    %1391 = vmatpush1.msra.mxu0 0.0
    %1392 = vmatprep.subr.mxu0 0.0
    %1393 = vmatpush1.msra.mxu0 0.0
    %1394 = vmatprep.subr.mxu0 0.0
    %1395 = vmatpush1.msra.mxu0 0.0
    %1396 = vmatprep.subr.mxu0 0.0
    %1397 = vmatpush1.msra.mxu0 0.0
    %1398 = vmatprep.subr.mxu0 0.0
    %1399 = vmatpush1.msra.mxu0 0.0
    %1400 = vmatprep.subr.mxu0 0.0
    %1401 = vmatpush1.msra.mxu0 0.0
    %1402 = vmatprep.subr.mxu0 0.0
    %1403 = vmatpush1.msra.mxu0 0.0
    %1404 = vmatprep.subr.mxu0 0.0
    %1405 = vmatpush1.msra.mxu0 0.0
    %1406 = vmatprep.subr.mxu0 0.0
    %1407 = vmatpush1.msra.mxu0 0.0
    %1408 = vmatprep.subr.mxu0 0.0
    %1409 = vmatpush1.msra.mxu0 0.0
    %1410 = vmatprep.subr.mxu0 0.0
    %1411 = vmatpush1.msra.mxu0 0.0
    %1412 = vmatprep.subr.mxu0 0.0
    %1413 = vmatpush1.msra.mxu0 0.0
    %1414 = vmatprep.subr.mxu0 0.0
    %1415 = vmatpush1.msra.mxu0 0.0
    %1416 = vmatprep.subr.mxu0 0.0
    %1417 = vmatpush1.msra.mxu0 0.0
    %1418 = vmatprep.subr.mxu0 0.0
    %1419 = vmatpush1.msra.mxu0 0.0
    %1420 = vmatprep.subr.mxu0 0.0
    %1421 = vmatpush1.msra.mxu0 0.0
    %1422 = vmatprep.mubr.f32.mxu0 0.0
    %v1423 = vand.u32 %v1102, 4294901760
    %v1424 = vsub.f32 %v1102, %v1423
    %v1425 = vand.u32 %v1424, 4294901760
    %1426 = vmatmul.mubr.f32.gmra.mrb[0].mxu0 %v1425
    %v1427 = vpop.f32.mrb[0].mxu0
    %v1428 = vadd.f32 %v1351, %v1427
    %v1429 = vpop.f32.mrb[0].mxu0
    %1430 = vdwg.mxu0
    %1431 = vmatprep.subr.mxu0 0.0
    %v1432 = vand.u32 %v584, 4294901760
    %v1433 = vsub.f32 %v584, %v1432
    %v1434 = vand.u32 %v1433, 4294901760
    %1435 = vmatpush1.msra.mxu0 %v1434
    %1436 = vmatprep.subr.mxu0 0.0
    %v1437 = vand.u32 %v585, 4294901760
    %v1438 = vsub.f32 %v585, %v1437
    %v1439 = vand.u32 %v1438, 4294901760
    %1440 = vmatpush1.msra.mxu0 %v1439
    %1441 = vmatprep.subr.mxu0 0.0
    %v1442 = vand.u32 %v586, 4294901760
    %v1443 = vsub.f32 %v586, %v1442
    %v1444 = vand.u32 %v1443, 4294901760
    %1445 = vmatpush1.msra.mxu0 %v1444
    %1446 = vmatprep.subr.mxu0 0.0
    %v1447 = vand.u32 %v587, 4294901760
    %v1448 = vsub.f32 %v587, %v1447
    %v1449 = vand.u32 %v1448, 4294901760
    %1450 = vmatpush1.msra.mxu0 %v1449
    %1451 = vmatprep.subr.mxu0 0.0
    %1452 = vmatpush1.msra.mxu0 0.0
    %1453 = vmatprep.subr.mxu0 0.0
    %1454 = vmatpush1.msra.mxu0 0.0
    %1455 = vmatprep.subr.mxu0 0.0
    %1456 = vmatpush1.msra.mxu0 0.0
    %1457 = vmatprep.subr.mxu0 0.0
    %1458 = vmatpush1.msra.mxu0 0.0
    %1459 = vmatprep.subr.mxu0 0.0
    %1460 = vmatpush1.msra.mxu0 0.0
    %1461 = vmatprep.subr.mxu0 0.0
    %1462 = vmatpush1.msra.mxu0 0.0
    %1463 = vmatprep.subr.mxu0 0.0
    %1464 = vmatpush1.msra.mxu0 0.0
    %1465 = vmatprep.subr.mxu0 0.0
    %1466 = vmatpush1.msra.mxu0 0.0
    %1467 = vmatprep.subr.mxu0 0.0
    %1468 = vmatpush1.msra.mxu0 0.0
    %1469 = vmatprep.subr.mxu0 0.0
    %1470 = vmatpush1.msra.mxu0 0.0
    %1471 = vmatprep.subr.mxu0 0.0
    %1472 = vmatpush1.msra.mxu0 0.0
    %1473 = vmatprep.subr.mxu0 0.0
    %1474 = vmatpush1.msra.mxu0 0.0
    %1475 = vmatprep.subr.mxu0 0.0
    %1476 = vmatpush1.msra.mxu0 0.0
    %1477 = vmatprep.subr.mxu0 0.0
    %1478 = vmatpush1.msra.mxu0 0.0
    %1479 = vmatprep.subr.mxu0 0.0
    %1480 = vmatpush1.msra.mxu0 0.0
    %1481 = vmatprep.subr.mxu0 0.0
    %1482 = vmatpush1.msra.mxu0 0.0
    %1483 = vmatprep.subr.mxu0 0.0
    %1484 = vmatpush1.msra.mxu0 0.0
    %1485 = vmatprep.subr.mxu0 0.0
    %1486 = vmatpush1.msra.mxu0 0.0
    %1487 = vmatprep.subr.mxu0 0.0
    %1488 = vmatpush1.msra.mxu0 0.0
    %1489 = vmatprep.subr.mxu0 0.0
    %1490 = vmatpush1.msra.mxu0 0.0
    %1491 = vmatprep.subr.mxu0 0.0
    %1492 = vmatpush1.msra.mxu0 0.0
    %1493 = vmatprep.subr.mxu0 0.0
    %1494 = vmatpush1.msra.mxu0 0.0
    %1495 = vmatprep.subr.mxu0 0.0
    %1496 = vmatpush1.msra.mxu0 0.0
    %1497 = vmatprep.subr.mxu0 0.0
    %1498 = vmatpush1.msra.mxu0 0.0
    %1499 = vmatprep.subr.mxu0 0.0
    %1500 = vmatpush1.msra.mxu0 0.0
    %1501 = vmatprep.subr.mxu0 0.0
    %1502 = vmatpush1.msra.mxu0 0.0
    %1503 = vmatprep.subr.mxu0 0.0
    %1504 = vmatpush1.msra.mxu0 0.0
    %1505 = vmatprep.subr.mxu0 0.0
    %1506 = vmatpush1.msra.mxu0 0.0
    %1507 = vmatprep.mubr.f32.mxu0 0.0
    %v1508 = vand.u32 %v1102, 4294901760
    %1509 = vmatmul.mubr.f32.gmra.mrb[0].mxu0 %v1508
    %v1510 = vpop.f32.mrb[0].mxu0
    %v1511 = vadd.f32 %v1428, %v1510
    %v1512 = vpop.f32.mrb[0].mxu0
    %1513 = vdwg.mxu0
    %1514 = vmatprep.subr.mxu0 0.0
    %v1515 = vand.u32 %v584, 4294901760
    %1516 = vmatpush1.msra.mxu0 %v1515
    %1517 = vmatprep.subr.mxu0 0.0
    %v1518 = vand.u32 %v585, 4294901760
    %1519 = vmatpush1.msra.mxu0 %v1518
    %1520 = vmatprep.subr.mxu0 0.0
    %v1521 = vand.u32 %v586, 4294901760
    %1522 = vmatpush1.msra.mxu0 %v1521
    %1523 = vmatprep.subr.mxu0 0.0
    %v1524 = vand.u32 %v587, 4294901760
    %1525 = vmatpush1.msra.mxu0 %v1524
    %1526 = vmatprep.subr.mxu0 0.0
    %1527 = vmatpush1.msra.mxu0 0.0
    %1528 = vmatprep.subr.mxu0 0.0
    %1529 = vmatpush1.msra.mxu0 0.0
    %1530 = vmatprep.subr.mxu0 0.0
    %1531 = vmatpush1.msra.mxu0 0.0
    %1532 = vmatprep.subr.mxu0 0.0
    %1533 = vmatpush1.msra.mxu0 0.0
    %1534 = vmatprep.subr.mxu0 0.0
    %1535 = vmatpush1.msra.mxu0 0.0
    %1536 = vmatprep.subr.mxu0 0.0
    %1537 = vmatpush1.msra.mxu0 0.0
    %1538 = vmatprep.subr.mxu0 0.0
    %1539 = vmatpush1.msra.mxu0 0.0
    %1540 = vmatprep.subr.mxu0 0.0
    %1541 = vmatpush1.msra.mxu0 0.0
    %1542 = vmatprep.subr.mxu0 0.0
    %1543 = vmatpush1.msra.mxu0 0.0
    %1544 = vmatprep.subr.mxu0 0.0
    %1545 = vmatpush1.msra.mxu0 0.0
    %1546 = vmatprep.subr.mxu0 0.0
    %1547 = vmatpush1.msra.mxu0 0.0
    %1548 = vmatprep.subr.mxu0 0.0
    %1549 = vmatpush1.msra.mxu0 0.0
    %1550 = vmatprep.subr.mxu0 0.0
    %1551 = vmatpush1.msra.mxu0 0.0
    %1552 = vmatprep.subr.mxu0 0.0
    %1553 = vmatpush1.msra.mxu0 0.0
    %1554 = vmatprep.subr.mxu0 0.0
    %1555 = vmatpush1.msra.mxu0 0.0
    %1556 = vmatprep.subr.mxu0 0.0
    %1557 = vmatpush1.msra.mxu0 0.0
    %1558 = vmatprep.subr.mxu0 0.0
    %1559 = vmatpush1.msra.mxu0 0.0
    %1560 = vmatprep.subr.mxu0 0.0
    %1561 = vmatpush1.msra.mxu0 0.0
    %1562 = vmatprep.subr.mxu0 0.0
    %1563 = vmatpush1.msra.mxu0 0.0
    %1564 = vmatprep.subr.mxu0 0.0
    %1565 = vmatpush1.msra.mxu0 0.0
    %1566 = vmatprep.subr.mxu0 0.0
    %1567 = vmatpush1.msra.mxu0 0.0
    %1568 = vmatprep.subr.mxu0 0.0
    %1569 = vmatpush1.msra.mxu0 0.0
    %1570 = vmatprep.subr.mxu0 0.0
    %1571 = vmatpush1.msra.mxu0 0.0
    %1572 = vmatprep.subr.mxu0 0.0
    %1573 = vmatpush1.msra.mxu0 0.0
    %1574 = vmatprep.subr.mxu0 0.0
    %1575 = vmatpush1.msra.mxu0 0.0
    %1576 = vmatprep.subr.mxu0 0.0
    %1577 = vmatpush1.msra.mxu0 0.0
    %1578 = vmatprep.subr.mxu0 0.0
    %1579 = vmatpush1.msra.mxu0 0.0
    %1580 = vmatprep.subr.mxu0 0.0
    %1581 = vmatpush1.msra.mxu0 0.0
    %1582 = vmatprep.mubr.f32.mxu0 0.0
    %v1583 = vand.u32 %v1102, 4294901760
    %1584 = vmatmul.mubr.f32.gmra.mrb[0].mxu0 %v1583
    %v1585 = vpop.f32.mrb[0].mxu0
    %v1586 = vadd.f32 %v1511, %v1585
    %v1587 = vpop.f32.mrb[0].mxu0
    %1588 = vdwg.mxu0
    %v1590 = vrot.slane %v1586, 6
    %v1592 = vadd.f32 %v575, %v1590
    %v1593 = vmul.f32 %v1592, 0.5
    %v1594 = vtanh.pop %v1593
    %v1595 = vadd.f32 %v1594, 1.0
    %v1596 = vmul.f32 %v1595, 0.5
    %v1597 = vtanh.pop %v1592
    %v1599 = vrot.slane %v1092, 6
    %v1601 = vmul.f32 %v1596, %v1599
    %1603 = vrot.lane.b32.xlu0 %v1597, 64
    %v1604 = vpop.permute.xlu0 %1603
    %v1606 = vmul.f32 %v1596, %v1604
    %1608 = vrot.lane.b32.xlu0 %v1606, 32
    %v1609 = vpop.permute.xlu0 %1608
    %v1611 = vadd.f32 %v1601, %v1609
    %v1612 = vtanh.pop %v1611
    %1614 = vrot.lane.b32.xlu0 %v1612, 64
    %v1615 = vpop.permute.xlu0 %1614
    %v1617 = vmul.f32 %v1596, %v1615
    %v1619 = vrot.slane %v1617, 2
    %1620 = vrot.lane.b32.xlu0 %v1619, 32
    %v1621 = vpop.permute.xlu0 %1620
    %v1622 = vsel %vm49, %v1621, 0
    %1624 = vmatprep.subr.mxu0 0.0
    %v1625 = vand.u32 %v584, 4294901760
    %1626 = vmatpush1.msra.mxu0 %v1625
    %1627 = vmatprep.subr.mxu0 0.0
    %v1628 = vand.u32 %v585, 4294901760
    %1629 = vmatpush1.msra.mxu0 %v1628
    %1630 = vmatprep.subr.mxu0 0.0
    %v1631 = vand.u32 %v586, 4294901760
    %1632 = vmatpush1.msra.mxu0 %v1631
    %1633 = vmatprep.subr.mxu0 0.0
    %v1634 = vand.u32 %v587, 4294901760
    %1635 = vmatpush1.msra.mxu0 %v1634
    %1636 = vmatprep.subr.mxu0 0.0
    %1637 = vmatpush1.msra.mxu0 0.0
    %1638 = vmatprep.subr.mxu0 0.0
    %1639 = vmatpush1.msra.mxu0 0.0
    %1640 = vmatprep.subr.mxu0 0.0
    %1641 = vmatpush1.msra.mxu0 0.0
    %1642 = vmatprep.subr.mxu0 0.0
    %1643 = vmatpush1.msra.mxu0 0.0
    %1644 = vmatprep.subr.mxu0 0.0
    %1645 = vmatpush1.msra.mxu0 0.0
    %1646 = vmatprep.subr.mxu0 0.0
    %1647 = vmatpush1.msra.mxu0 0.0
    %1648 = vmatprep.subr.mxu0 0.0
    %1649 = vmatpush1.msra.mxu0 0.0
    %1650 = vmatprep.subr.mxu0 0.0
    %1651 = vmatpush1.msra.mxu0 0.0
    %1652 = vmatprep.subr.mxu0 0.0
    %1653 = vmatpush1.msra.mxu0 0.0
    %1654 = vmatprep.subr.mxu0 0.0
    %1655 = vmatpush1.msra.mxu0 0.0
    %1656 = vmatprep.subr.mxu0 0.0
    %1657 = vmatpush1.msra.mxu0 0.0
    %1658 = vmatprep.subr.mxu0 0.0
    %1659 = vmatpush1.msra.mxu0 0.0
    %1660 = vmatprep.subr.mxu0 0.0
    %1661 = vmatpush1.msra.mxu0 0.0
    %1662 = vmatprep.subr.mxu0 0.0
    %1663 = vmatpush1.msra.mxu0 0.0
    %1664 = vmatprep.subr.mxu0 0.0
    %1665 = vmatpush1.msra.mxu0 0.0
    %1666 = vmatprep.subr.mxu0 0.0
    %1667 = vmatpush1.msra.mxu0 0.0
    %1668 = vmatprep.subr.mxu0 0.0
    %1669 = vmatpush1.msra.mxu0 0.0
    %1670 = vmatprep.subr.mxu0 0.0
    %1671 = vmatpush1.msra.mxu0 0.0
    %1672 = vmatprep.subr.mxu0 0.0
    %1673 = vmatpush1.msra.mxu0 0.0
    %1674 = vmatprep.subr.mxu0 0.0
    %1675 = vmatpush1.msra.mxu0 0.0
    %1676 = vmatprep.subr.mxu0 0.0
    %1677 = vmatpush1.msra.mxu0 0.0
    %1678 = vmatprep.subr.mxu0 0.0
    %1679 = vmatpush1.msra.mxu0 0.0
    %1680 = vmatprep.subr.mxu0 0.0
    %1681 = vmatpush1.msra.mxu0 0.0
    %1682 = vmatprep.subr.mxu0 0.0
    %1683 = vmatpush1.msra.mxu0 0.0
    %1684 = vmatprep.subr.mxu0 0.0
    %1685 = vmatpush1.msra.mxu0 0.0
    %1686 = vmatprep.subr.mxu0 0.0
    %1687 = vmatpush1.msra.mxu0 0.0
    %1688 = vmatprep.subr.mxu0 0.0
    %1689 = vmatpush1.msra.mxu0 0.0
    %1690 = vmatprep.subr.mxu0 0.0
    %1691 = vmatpush1.msra.mxu0 0.0
    %1692 = vmatprep.mubr.f32.mxu0 0.0
    %v1693 = vand.u32 %v1622, 4294901760
    %v1694 = vsub.f32 %v1622, %v1693
    %v1695 = vand.u32 %v1694, 4294901760
    %v1696 = vsub.f32 %v1694, %v1695
    %v1697 = vand.u32 %v1696, 4294901760
    %1698 = vmatmul.mubr.f32.gmra.mrb[0].mxu0 %v1697
    %v1699 = vpop.f32.mrb[0].mxu0
    %v1700 = vadd.f32 0.0, %v1699
    %v1701 = vpop.f32.mrb[0].mxu0
    %1702 = vdwg.mxu0
    %1703 = vmatprep.subr.mxu0 0.0
    %v1704 = vand.u32 %v584, 4294901760
    %v1705 = vsub.f32 %v584, %v1704
    %v1706 = vand.u32 %v1705, 4294901760
    %v1707 = vsub.f32 %v1705, %v1706
    %v1708 = vand.u32 %v1707, 4294901760
    %1709 = vmatpush1.msra.mxu0 %v1708
    %1710 = vmatprep.subr.mxu0 0.0
    %v1711 = vand.u32 %v585, 4294901760
    %v1712 = vsub.f32 %v585, %v1711
    %v1713 = vand.u32 %v1712, 4294901760
    %v1714 = vsub.f32 %v1712, %v1713
    %v1715 = vand.u32 %v1714, 4294901760
    %1716 = vmatpush1.msra.mxu0 %v1715
    %1717 = vmatprep.subr.mxu0 0.0
    %v1718 = vand.u32 %v586, 4294901760
    %v1719 = vsub.f32 %v586, %v1718
    %v1720 = vand.u32 %v1719, 4294901760
    %v1721 = vsub.f32 %v1719, %v1720
    %v1722 = vand.u32 %v1721, 4294901760
    %1723 = vmatpush1.msra.mxu0 %v1722
    %1724 = vmatprep.subr.mxu0 0.0
    %v1725 = vand.u32 %v587, 4294901760
    %v1726 = vsub.f32 %v587, %v1725
    %v1727 = vand.u32 %v1726, 4294901760
    %v1728 = vsub.f32 %v1726, %v1727
    %v1729 = vand.u32 %v1728, 4294901760
    %1730 = vmatpush1.msra.mxu0 %v1729
    %1731 = vmatprep.subr.mxu0 0.0
    %1732 = vmatpush1.msra.mxu0 0.0
    %1733 = vmatprep.subr.mxu0 0.0
    %1734 = vmatpush1.msra.mxu0 0.0
    %1735 = vmatprep.subr.mxu0 0.0
    %1736 = vmatpush1.msra.mxu0 0.0
    %1737 = vmatprep.subr.mxu0 0.0
    %1738 = vmatpush1.msra.mxu0 0.0
    %1739 = vmatprep.subr.mxu0 0.0
    %1740 = vmatpush1.msra.mxu0 0.0
    %1741 = vmatprep.subr.mxu0 0.0
    %1742 = vmatpush1.msra.mxu0 0.0
    %1743 = vmatprep.subr.mxu0 0.0
    %1744 = vmatpush1.msra.mxu0 0.0
    %1745 = vmatprep.subr.mxu0 0.0
    %1746 = vmatpush1.msra.mxu0 0.0
    %1747 = vmatprep.subr.mxu0 0.0
    %1748 = vmatpush1.msra.mxu0 0.0
    %1749 = vmatprep.subr.mxu0 0.0
    %1750 = vmatpush1.msra.mxu0 0.0
    %1751 = vmatprep.subr.mxu0 0.0
    %1752 = vmatpush1.msra.mxu0 0.0
    %1753 = vmatprep.subr.mxu0 0.0
    %1754 = vmatpush1.msra.mxu0 0.0
    %1755 = vmatprep.subr.mxu0 0.0
    %1756 = vmatpush1.msra.mxu0 0.0
    %1757 = vmatprep.subr.mxu0 0.0
    %1758 = vmatpush1.msra.mxu0 0.0
    %1759 = vmatprep.subr.mxu0 0.0
    %1760 = vmatpush1.msra.mxu0 0.0
    %1761 = vmatprep.subr.mxu0 0.0
    %1762 = vmatpush1.msra.mxu0 0.0
    %1763 = vmatprep.subr.mxu0 0.0
    %1764 = vmatpush1.msra.mxu0 0.0
    %1765 = vmatprep.subr.mxu0 0.0
    %1766 = vmatpush1.msra.mxu0 0.0
    %1767 = vmatprep.subr.mxu0 0.0
    %1768 = vmatpush1.msra.mxu0 0.0
    %1769 = vmatprep.subr.mxu0 0.0
    %1770 = vmatpush1.msra.mxu0 0.0
    %1771 = vmatprep.subr.mxu0 0.0
    %1772 = vmatpush1.msra.mxu0 0.0
    %1773 = vmatprep.subr.mxu0 0.0
    %1774 = vmatpush1.msra.mxu0 0.0
    %1775 = vmatprep.subr.mxu0 0.0
    %1776 = vmatpush1.msra.mxu0 0.0
    %1777 = vmatprep.subr.mxu0 0.0
    %1778 = vmatpush1.msra.mxu0 0.0
    %1779 = vmatprep.subr.mxu0 0.0
    %1780 = vmatpush1.msra.mxu0 0.0
    %1781 = vmatprep.subr.mxu0 0.0
    %1782 = vmatpush1.msra.mxu0 0.0
    %1783 = vmatprep.subr.mxu0 0.0
    %1784 = vmatpush1.msra.mxu0 0.0
    %1785 = vmatprep.subr.mxu0 0.0
    %1786 = vmatpush1.msra.mxu0 0.0
    %1787 = vmatprep.mubr.f32.mxu0 0.0
    %v1788 = vand.u32 %v1622, 4294901760
    %1789 = vmatmul.mubr.f32.gmra.mrb[0].mxu0 %v1788
    %v1790 = vpop.f32.mrb[0].mxu0
    %v1791 = vadd.f32 %v1700, %v1790
    %v1792 = vpop.f32.mrb[0].mxu0
    %1793 = vdwg.mxu0
    %1794 = vmatprep.subr.mxu0 0.0
    %v1795 = vand.u32 %v584, 4294901760
    %v1796 = vsub.f32 %v584, %v1795
    %1797 = vmatpush1.msra.mxu0 %v1796
    %1798 = vmatprep.subr.mxu0 0.0
    %v1799 = vand.u32 %v585, 4294901760
    %v1800 = vsub.f32 %v585, %v1799
    %1801 = vmatpush1.msra.mxu0 %v1800
    %1802 = vmatprep.subr.mxu0 0.0
    %v1803 = vand.u32 %v586, 4294901760
    %v1804 = vsub.f32 %v586, %v1803
    %1805 = vmatpush1.msra.mxu0 %v1804
    %1806 = vmatprep.subr.mxu0 0.0
    %v1807 = vand.u32 %v587, 4294901760
    %v1808 = vsub.f32 %v587, %v1807
    %1809 = vmatpush1.msra.mxu0 %v1808
    %1810 = vmatprep.subr.mxu0 0.0
    %1811 = vmatpush1.msra.mxu0 0.0
    %1812 = vmatprep.subr.mxu0 0.0
    %1813 = vmatpush1.msra.mxu0 0.0
    %1814 = vmatprep.subr.mxu0 0.0
    %1815 = vmatpush1.msra.mxu0 0.0
    %1816 = vmatprep.subr.mxu0 0.0
    %1817 = vmatpush1.msra.mxu0 0.0
    %1818 = vmatprep.subr.mxu0 0.0
    %1819 = vmatpush1.msra.mxu0 0.0
    %1820 = vmatprep.subr.mxu0 0.0
    %1821 = vmatpush1.msra.mxu0 0.0
    %1822 = vmatprep.subr.mxu0 0.0
    %1823 = vmatpush1.msra.mxu0 0.0
    %1824 = vmatprep.subr.mxu0 0.0
    %1825 = vmatpush1.msra.mxu0 0.0
    %1826 = vmatprep.subr.mxu0 0.0
    %1827 = vmatpush1.msra.mxu0 0.0
    %1828 = vmatprep.subr.mxu0 0.0
    %1829 = vmatpush1.msra.mxu0 0.0
    %1830 = vmatprep.subr.mxu0 0.0
    %1831 = vmatpush1.msra.mxu0 0.0
    %1832 = vmatprep.subr.mxu0 0.0
    %1833 = vmatpush1.msra.mxu0 0.0
    %1834 = vmatprep.subr.mxu0 0.0
    %1835 = vmatpush1.msra.mxu0 0.0
    %1836 = vmatprep.subr.mxu0 0.0
    %1837 = vmatpush1.msra.mxu0 0.0
    %1838 = vmatprep.subr.mxu0 0.0
    %1839 = vmatpush1.msra.mxu0 0.0
    %1840 = vmatprep.subr.mxu0 0.0
    %1841 = vmatpush1.msra.mxu0 0.0
    %1842 = vmatprep.subr.mxu0 0.0
    %1843 = vmatpush1.msra.mxu0 0.0
    %1844 = vmatprep.subr.mxu0 0.0
    %1845 = vmatpush1.msra.mxu0 0.0
    %1846 = vmatprep.subr.mxu0 0.0
    %1847 = vmatpush1.msra.mxu0 0.0
    %1848 = vmatprep.subr.mxu0 0.0
    %1849 = vmatpush1.msra.mxu0 0.0
    %1850 = vmatprep.subr.mxu0 0.0
    %1851 = vmatpush1.msra.mxu0 0.0
    %1852 = vmatprep.subr.mxu0 0.0
    %1853 = vmatpush1.msra.mxu0 0.0
    %1854 = vmatprep.subr.mxu0 0.0
    %1855 = vmatpush1.msra.mxu0 0.0
    %1856 = vmatprep.subr.mxu0 0.0
    %1857 = vmatpush1.msra.mxu0 0.0
    %1858 = vmatprep.subr.mxu0 0.0
    %1859 = vmatpush1.msra.mxu0 0.0
    %1860 = vmatprep.subr.mxu0 0.0
    %1861 = vmatpush1.msra.mxu0 0.0
    %1862 = vmatprep.subr.mxu0 0.0
    %1863 = vmatpush1.msra.mxu0 0.0
    %1864 = vmatprep.subr.mxu0 0.0
    %1865 = vmatpush1.msra.mxu0 0.0
    %1866 = vmatprep.mubr.f32.mxu0 0.0
    %v1867 = vand.u32 %v1622, 4294901760
    %v1868 = vsub.f32 %v1622, %v1867
    %1869 = vmatmul.mubr.f32.gmra.mrb[0].mxu0 %v1868
    %v1870 = vpop.f32.mrb[0].mxu0
    %v1871 = vadd.f32 %v1791, %v1870
    %v1872 = vpop.f32.mrb[0].mxu0
    %1873 = vdwg.mxu0
    %1874 = vmatprep.subr.mxu0 0.0
    %v1875 = vand.u32 %v584, 4294901760
    %1876 = vmatpush1.msra.mxu0 %v1875
    %1877 = vmatprep.subr.mxu0 0.0
    %v1878 = vand.u32 %v585, 4294901760
    %1879 = vmatpush1.msra.mxu0 %v1878
    %1880 = vmatprep.subr.mxu0 0.0
    %v1881 = vand.u32 %v586, 4294901760
    %1882 = vmatpush1.msra.mxu0 %v1881
    %1883 = vmatprep.subr.mxu0 0.0
    %v1884 = vand.u32 %v587, 4294901760
    %1885 = vmatpush1.msra.mxu0 %v1884
    %1886 = vmatprep.subr.mxu0 0.0
    %1887 = vmatpush1.msra.mxu0 0.0
    %1888 = vmatprep.subr.mxu0 0.0
    %1889 = vmatpush1.msra.mxu0 0.0
    %1890 = vmatprep.subr.mxu0 0.0
    %1891 = vmatpush1.msra.mxu0 0.0
    %1892 = vmatprep.subr.mxu0 0.0
    %1893 = vmatpush1.msra.mxu0 0.0
    %1894 = vmatprep.subr.mxu0 0.0
    %1895 = vmatpush1.msra.mxu0 0.0
    %1896 = vmatprep.subr.mxu0 0.0
    %1897 = vmatpush1.msra.mxu0 0.0
    %1898 = vmatprep.subr.mxu0 0.0
    %1899 = vmatpush1.msra.mxu0 0.0
    %1900 = vmatprep.subr.mxu0 0.0
    %1901 = vmatpush1.msra.mxu0 0.0
    %1902 = vmatprep.subr.mxu0 0.0
    %1903 = vmatpush1.msra.mxu0 0.0
    %1904 = vmatprep.subr.mxu0 0.0
    %1905 = vmatpush1.msra.mxu0 0.0
    %1906 = vmatprep.subr.mxu0 0.0
    %1907 = vmatpush1.msra.mxu0 0.0
    %1908 = vmatprep.subr.mxu0 0.0
    %1909 = vmatpush1.msra.mxu0 0.0
    %1910 = vmatprep.subr.mxu0 0.0
    %1911 = vmatpush1.msra.mxu0 0.0
    %1912 = vmatprep.subr.mxu0 0.0
    %1913 = vmatpush1.msra.mxu0 0.0
    %1914 = vmatprep.subr.mxu0 0.0
    %1915 = vmatpush1.msra.mxu0 0.0
    %1916 = vmatprep.subr.mxu0 0.0
    %1917 = vmatpush1.msra.mxu0 0.0
    %1918 = vmatprep.subr.mxu0 0.0
    %1919 = vmatpush1.msra.mxu0 0.0
    %1920 = vmatprep.subr.mxu0 0.0
    %1921 = vmatpush1.msra.mxu0 0.0
    %1922 = vmatprep.subr.mxu0 0.0
    %1923 = vmatpush1.msra.mxu0 0.0
    %1924 = vmatprep.subr.mxu0 0.0
    %1925 = vmatpush1.msra.mxu0 0.0
    %1926 = vmatprep.subr.mxu0 0.0
    %1927 = vmatpush1.msra.mxu0 0.0
    %1928 = vmatprep.subr.mxu0 0.0
    %1929 = vmatpush1.msra.mxu0 0.0
    %1930 = vmatprep.subr.mxu0 0.0
    %1931 = vmatpush1.msra.mxu0 0.0
    %1932 = vmatprep.subr.mxu0 0.0
    %1933 = vmatpush1.msra.mxu0 0.0
    %1934 = vmatprep.subr.mxu0 0.0
    %1935 = vmatpush1.msra.mxu0 0.0
    %1936 = vmatprep.subr.mxu0 0.0
    %1937 = vmatpush1.msra.mxu0 0.0
    %1938 = vmatprep.subr.mxu0 0.0
    %1939 = vmatpush1.msra.mxu0 0.0
    %1940 = vmatprep.subr.mxu0 0.0
    %1941 = vmatpush1.msra.mxu0 0.0
    %1942 = vmatprep.mubr.f32.mxu0 0.0
    %v1943 = vand.u32 %v1622, 4294901760
    %v1944 = vsub.f32 %v1622, %v1943
    %v1945 = vand.u32 %v1944, 4294901760
    %1946 = vmatmul.mubr.f32.gmra.mrb[0].mxu0 %v1945
    %v1947 = vpop.f32.mrb[0].mxu0
    %v1948 = vadd.f32 %v1871, %v1947
    %v1949 = vpop.f32.mrb[0].mxu0
    %1950 = vdwg.mxu0
    %1951 = vmatprep.subr.mxu0 0.0
    %v1952 = vand.u32 %v584, 4294901760
    %v1953 = vsub.f32 %v584, %v1952
    %v1954 = vand.u32 %v1953, 4294901760
    %1955 = vmatpush1.msra.mxu0 %v1954
    %1956 = vmatprep.subr.mxu0 0.0
    %v1957 = vand.u32 %v585, 4294901760
    %v1958 = vsub.f32 %v585, %v1957
    %v1959 = vand.u32 %v1958, 4294901760
    %1960 = vmatpush1.msra.mxu0 %v1959
    %1961 = vmatprep.subr.mxu0 0.0
    %v1962 = vand.u32 %v586, 4294901760
    %v1963 = vsub.f32 %v586, %v1962
    %v1964 = vand.u32 %v1963, 4294901760
    %1965 = vmatpush1.msra.mxu0 %v1964
    %1966 = vmatprep.subr.mxu0 0.0
    %v1967 = vand.u32 %v587, 4294901760
    %v1968 = vsub.f32 %v587, %v1967
    %v1969 = vand.u32 %v1968, 4294901760
    %1970 = vmatpush1.msra.mxu0 %v1969
    %1971 = vmatprep.subr.mxu0 0.0
    %1972 = vmatpush1.msra.mxu0 0.0
    %1973 = vmatprep.subr.mxu0 0.0
    %1974 = vmatpush1.msra.mxu0 0.0
    %1975 = vmatprep.subr.mxu0 0.0
    %1976 = vmatpush1.msra.mxu0 0.0
    %1977 = vmatprep.subr.mxu0 0.0
    %1978 = vmatpush1.msra.mxu0 0.0
    %1979 = vmatprep.subr.mxu0 0.0
    %1980 = vmatpush1.msra.mxu0 0.0
    %1981 = vmatprep.subr.mxu0 0.0
    %1982 = vmatpush1.msra.mxu0 0.0
    %1983 = vmatprep.subr.mxu0 0.0
    %1984 = vmatpush1.msra.mxu0 0.0
    %1985 = vmatprep.subr.mxu0 0.0
    %1986 = vmatpush1.msra.mxu0 0.0
    %1987 = vmatprep.subr.mxu0 0.0
    %1988 = vmatpush1.msra.mxu0 0.0
    %1989 = vmatprep.subr.mxu0 0.0
    %1990 = vmatpush1.msra.mxu0 0.0
    %1991 = vmatprep.subr.mxu0 0.0
    %1992 = vmatpush1.msra.mxu0 0.0
    %1993 = vmatprep.subr.mxu0 0.0
    %1994 = vmatpush1.msra.mxu0 0.0
    %1995 = vmatprep.subr.mxu0 0.0
    %1996 = vmatpush1.msra.mxu0 0.0
    %1997 = vmatprep.subr.mxu0 0.0
    %1998 = vmatpush1.msra.mxu0 0.0
    %1999 = vmatprep.subr.mxu0 0.0
    %2000 = vmatpush1.msra.mxu0 0.0
    %2001 = vmatprep.subr.mxu0 0.0
    %2002 = vmatpush1.msra.mxu0 0.0
    %2003 = vmatprep.subr.mxu0 0.0
    %2004 = vmatpush1.msra.mxu0 0.0
    %2005 = vmatprep.subr.mxu0 0.0
    %2006 = vmatpush1.msra.mxu0 0.0
    %2007 = vmatprep.subr.mxu0 0.0
    %2008 = vmatpush1.msra.mxu0 0.0
    %2009 = vmatprep.subr.mxu0 0.0
    %2010 = vmatpush1.msra.mxu0 0.0
    %2011 = vmatprep.subr.mxu0 0.0
    %2012 = vmatpush1.msra.mxu0 0.0
    %2013 = vmatprep.subr.mxu0 0.0
    %2014 = vmatpush1.msra.mxu0 0.0
    %2015 = vmatprep.subr.mxu0 0.0
    %2016 = vmatpush1.msra.mxu0 0.0
    %2017 = vmatprep.subr.mxu0 0.0
    %2018 = vmatpush1.msra.mxu0 0.0
    %2019 = vmatprep.subr.mxu0 0.0
    %2020 = vmatpush1.msra.mxu0 0.0
    %2021 = vmatprep.subr.mxu0 0.0
    %2022 = vmatpush1.msra.mxu0 0.0
    %2023 = vmatprep.subr.mxu0 0.0
    %2024 = vmatpush1.msra.mxu0 0.0
    %2025 = vmatprep.subr.mxu0 0.0
    %2026 = vmatpush1.msra.mxu0 0.0
    %2027 = vmatprep.mubr.f32.mxu0 0.0
    %v2028 = vand.u32 %v1622, 4294901760
    %2029 = vmatmul.mubr.f32.gmra.mrb[0].mxu0 %v2028
    %v2030 = vpop.f32.mrb[0].mxu0
    %v2031 = vadd.f32 %v1948, %v2030
    %v2032 = vpop.f32.mrb[0].mxu0
    %2033 = vdwg.mxu0
    %2034 = vmatprep.subr.mxu0 0.0
    %v2035 = vand.u32 %v584, 4294901760
    %2036 = vmatpush1.msra.mxu0 %v2035
    %2037 = vmatprep.subr.mxu0 0.0
    %v2038 = vand.u32 %v585, 4294901760
    %2039 = vmatpush1.msra.mxu0 %v2038
    %2040 = vmatprep.subr.mxu0 0.0
    %v2041 = vand.u32 %v586, 4294901760
    %2042 = vmatpush1.msra.mxu0 %v2041
    %2043 = vmatprep.subr.mxu0 0.0
    %v2044 = vand.u32 %v587, 4294901760
    %2045 = vmatpush1.msra.mxu0 %v2044
    %2046 = vmatprep.subr.mxu0 0.0
    %2047 = vmatpush1.msra.mxu0 0.0
    %2048 = vmatprep.subr.mxu0 0.0
    %2049 = vmatpush1.msra.mxu0 0.0
    %2050 = vmatprep.subr.mxu0 0.0
    %2051 = vmatpush1.msra.mxu0 0.0
    %2052 = vmatprep.subr.mxu0 0.0
    %2053 = vmatpush1.msra.mxu0 0.0
    %2054 = vmatprep.subr.mxu0 0.0
    %2055 = vmatpush1.msra.mxu0 0.0
    %2056 = vmatprep.subr.mxu0 0.0
    %2057 = vmatpush1.msra.mxu0 0.0
    %2058 = vmatprep.subr.mxu0 0.0
    %2059 = vmatpush1.msra.mxu0 0.0
    %2060 = vmatprep.subr.mxu0 0.0
    %2061 = vmatpush1.msra.mxu0 0.0
    %2062 = vmatprep.subr.mxu0 0.0
    %2063 = vmatpush1.msra.mxu0 0.0
    %2064 = vmatprep.subr.mxu0 0.0
    %2065 = vmatpush1.msra.mxu0 0.0
    %2066 = vmatprep.subr.mxu0 0.0
    %2067 = vmatpush1.msra.mxu0 0.0
    %2068 = vmatprep.subr.mxu0 0.0
    %2069 = vmatpush1.msra.mxu0 0.0
    %2070 = vmatprep.subr.mxu0 0.0
    %2071 = vmatpush1.msra.mxu0 0.0
    %2072 = vmatprep.subr.mxu0 0.0
    %2073 = vmatpush1.msra.mxu0 0.0
    %2074 = vmatprep.subr.mxu0 0.0
    %2075 = vmatpush1.msra.mxu0 0.0
    %2076 = vmatprep.subr.mxu0 0.0
    %2077 = vmatpush1.msra.mxu0 0.0
    %2078 = vmatprep.subr.mxu0 0.0
    %2079 = vmatpush1.msra.mxu0 0.0
    %2080 = vmatprep.subr.mxu0 0.0
    %2081 = vmatpush1.msra.mxu0 0.0
    %2082 = vmatprep.subr.mxu0 0.0
    %2083 = vmatpush1.msra.mxu0 0.0
    %2084 = vmatprep.subr.mxu0 0.0
    %2085 = vmatpush1.msra.mxu0 0.0
    %2086 = vmatprep.subr.mxu0 0.0
    %2087 = vmatpush1.msra.mxu0 0.0
    %2088 = vmatprep.subr.mxu0 0.0
    %2089 = vmatpush1.msra.mxu0 0.0
    %2090 = vmatprep.subr.mxu0 0.0
    %2091 = vmatpush1.msra.mxu0 0.0
    %2092 = vmatprep.subr.mxu0 0.0
    %2093 = vmatpush1.msra.mxu0 0.0
    %2094 = vmatprep.subr.mxu0 0.0
    %2095 = vmatpush1.msra.mxu0 0.0
    %2096 = vmatprep.subr.mxu0 0.0
    %2097 = vmatpush1.msra.mxu0 0.0
    %2098 = vmatprep.subr.mxu0 0.0
    %2099 = vmatpush1.msra.mxu0 0.0
    %2100 = vmatprep.subr.mxu0 0.0
    %2101 = vmatpush1.msra.mxu0 0.0
    %2102 = vmatprep.mubr.f32.mxu0 0.0
    %v2103 = vand.u32 %v1622, 4294901760
    %2104 = vmatmul.mubr.f32.gmra.mrb[0].mxu0 %v2103
    %v2105 = vpop.f32.mrb[0].mxu0
    %v2106 = vadd.f32 %v2031, %v2105
    %v2107 = vpop.f32.mrb[0].mxu0
    %2108 = vdwg.mxu0
    %v2110 = vrot.slane %v2106, 4
    %v2112 = vadd.f32 %v575, %v2110
    %v2113 = vmul.f32 %v2112, 0.5
    %v2114 = vtanh.pop %v2113
    %v2115 = vadd.f32 %v2114, 1.0
    %v2116 = vmul.f32 %v2115, 0.5
    %v2117 = vtanh.pop %v2112
    %v2119 = vrot.slane %v1611, 6
    %v2121 = vmul.f32 %v2116, %v2119
    %2123 = vrot.lane.b32.xlu0 %v2117, 64
    %v2124 = vpop.permute.xlu0 %2123
    %v2126 = vmul.f32 %v2116, %v2124
    %2128 = vrot.lane.b32.xlu0 %v2126, 32
    %v2129 = vpop.permute.xlu0 %2128
    %v2131 = vadd.f32 %v2121, %v2129
    %v2132 = vtanh.pop %v2131
    %2134 = vrot.lane.b32.xlu0 %v2132, 64
    %v2135 = vpop.permute.xlu0 %2134
    %v2137 = vmul.f32 %v2116, %v2135
    %v2139 = vrot.slane %v2137, 4
    %2140 = vrot.lane.b32.xlu0 %v2139, 32
    %v2141 = vpop.permute.xlu0 %2140
    %v2142 = vsel %vm49, %v2141, 0
    %2144 = vmatprep.subr.mxu0 0.0
    %v2145 = vand.u32 %v584, 4294901760
    %2146 = vmatpush1.msra.mxu0 %v2145
    %2147 = vmatprep.subr.mxu0 0.0
    %v2148 = vand.u32 %v585, 4294901760
    %2149 = vmatpush1.msra.mxu0 %v2148
    %2150 = vmatprep.subr.mxu0 0.0
    %v2151 = vand.u32 %v586, 4294901760
    %2152 = vmatpush1.msra.mxu0 %v2151
    %2153 = vmatprep.subr.mxu0 0.0
    %v2154 = vand.u32 %v587, 4294901760
    %2155 = vmatpush1.msra.mxu0 %v2154
    %2156 = vmatprep.subr.mxu0 0.0
    %2157 = vmatpush1.msra.mxu0 0.0
    %2158 = vmatprep.subr.mxu0 0.0
    %2159 = vmatpush1.msra.mxu0 0.0
    %2160 = vmatprep.subr.mxu0 0.0
    %2161 = vmatpush1.msra.mxu0 0.0
    %2162 = vmatprep.subr.mxu0 0.0
    %2163 = vmatpush1.msra.mxu0 0.0
    %2164 = vmatprep.subr.mxu0 0.0
    %2165 = vmatpush1.msra.mxu0 0.0
    %2166 = vmatprep.subr.mxu0 0.0
    %2167 = vmatpush1.msra.mxu0 0.0
    %2168 = vmatprep.subr.mxu0 0.0
    %2169 = vmatpush1.msra.mxu0 0.0
    %2170 = vmatprep.subr.mxu0 0.0
    %2171 = vmatpush1.msra.mxu0 0.0
    %2172 = vmatprep.subr.mxu0 0.0
    %2173 = vmatpush1.msra.mxu0 0.0
    %2174 = vmatprep.subr.mxu0 0.0
    %2175 = vmatpush1.msra.mxu0 0.0
    %2176 = vmatprep.subr.mxu0 0.0
    %2177 = vmatpush1.msra.mxu0 0.0
    %2178 = vmatprep.subr.mxu0 0.0
    %2179 = vmatpush1.msra.mxu0 0.0
    %2180 = vmatprep.subr.mxu0 0.0
    %2181 = vmatpush1.msra.mxu0 0.0
    %2182 = vmatprep.subr.mxu0 0.0
    %2183 = vmatpush1.msra.mxu0 0.0
    %2184 = vmatprep.subr.mxu0 0.0
    %2185 = vmatpush1.msra.mxu0 0.0
    %2186 = vmatprep.subr.mxu0 0.0
    %2187 = vmatpush1.msra.mxu0 0.0
    %2188 = vmatprep.subr.mxu0 0.0
    %2189 = vmatpush1.msra.mxu0 0.0
    %2190 = vmatprep.subr.mxu0 0.0
    %2191 = vmatpush1.msra.mxu0 0.0
    %2192 = vmatprep.subr.mxu0 0.0
    %2193 = vmatpush1.msra.mxu0 0.0
    %2194 = vmatprep.subr.mxu0 0.0
    %2195 = vmatpush1.msra.mxu0 0.0
    %2196 = vmatprep.subr.mxu0 0.0
    %2197 = vmatpush1.msra.mxu0 0.0
    %2198 = vmatprep.subr.mxu0 0.0
    %2199 = vmatpush1.msra.mxu0 0.0
    %2200 = vmatprep.subr.mxu0 0.0
    %2201 = vmatpush1.msra.mxu0 0.0
    %2202 = vmatprep.subr.mxu0 0.0
    %2203 = vmatpush1.msra.mxu0 0.0
    %2204 = vmatprep.subr.mxu0 0.0
    %2205 = vmatpush1.msra.mxu0 0.0
    %2206 = vmatprep.subr.mxu0 0.0
    %2207 = vmatpush1.msra.mxu0 0.0
    %2208 = vmatprep.subr.mxu0 0.0
    %2209 = vmatpush1.msra.mxu0 0.0
    %2210 = vmatprep.subr.mxu0 0.0
    %2211 = vmatpush1.msra.mxu0 0.0
    %2212 = vmatprep.mubr.f32.mxu0 0.0
    %v2213 = vand.u32 %v2142, 4294901760
    %v2214 = vsub.f32 %v2142, %v2213
    %v2215 = vand.u32 %v2214, 4294901760
    %v2216 = vsub.f32 %v2214, %v2215
    %v2217 = vand.u32 %v2216, 4294901760
    %2218 = vmatmul.mubr.f32.gmra.mrb[0].mxu0 %v2217
    %v2219 = vpop.f32.mrb[0].mxu0
    %v2220 = vadd.f32 0.0, %v2219
    %v2221 = vpop.f32.mrb[0].mxu0
    %2222 = vdwg.mxu0
    %2223 = vmatprep.subr.mxu0 0.0
    %v2224 = vand.u32 %v584, 4294901760
    %v2225 = vsub.f32 %v584, %v2224
    %v2226 = vand.u32 %v2225, 4294901760
    %v2227 = vsub.f32 %v2225, %v2226
    %v2228 = vand.u32 %v2227, 4294901760
    %2229 = vmatpush1.msra.mxu0 %v2228
    %2230 = vmatprep.subr.mxu0 0.0
    %v2231 = vand.u32 %v585, 4294901760
    %v2232 = vsub.f32 %v585, %v2231
    %v2233 = vand.u32 %v2232, 4294901760
    %v2234 = vsub.f32 %v2232, %v2233
    %v2235 = vand.u32 %v2234, 4294901760
    %2236 = vmatpush1.msra.mxu0 %v2235
    %2237 = vmatprep.subr.mxu0 0.0
    %v2238 = vand.u32 %v586, 4294901760
    %v2239 = vsub.f32 %v586, %v2238
    %v2240 = vand.u32 %v2239, 4294901760
    %v2241 = vsub.f32 %v2239, %v2240
    %v2242 = vand.u32 %v2241, 4294901760
    %2243 = vmatpush1.msra.mxu0 %v2242
    %2244 = vmatprep.subr.mxu0 0.0
    %v2245 = vand.u32 %v587, 4294901760
    %v2246 = vsub.f32 %v587, %v2245
    %v2247 = vand.u32 %v2246, 4294901760
    %v2248 = vsub.f32 %v2246, %v2247
    %v2249 = vand.u32 %v2248, 4294901760
    %2250 = vmatpush1.msra.mxu0 %v2249
    %2251 = vmatprep.subr.mxu0 0.0
    %2252 = vmatpush1.msra.mxu0 0.0
    %2253 = vmatprep.subr.mxu0 0.0
    %2254 = vmatpush1.msra.mxu0 0.0
    %2255 = vmatprep.subr.mxu0 0.0
    %2256 = vmatpush1.msra.mxu0 0.0
    %2257 = vmatprep.subr.mxu0 0.0
    %2258 = vmatpush1.msra.mxu0 0.0
    %2259 = vmatprep.subr.mxu0 0.0
    %2260 = vmatpush1.msra.mxu0 0.0
    %2261 = vmatprep.subr.mxu0 0.0
    %2262 = vmatpush1.msra.mxu0 0.0
    %2263 = vmatprep.subr.mxu0 0.0
    %2264 = vmatpush1.msra.mxu0 0.0
    %2265 = vmatprep.subr.mxu0 0.0
    %2266 = vmatpush1.msra.mxu0 0.0
    %2267 = vmatprep.subr.mxu0 0.0
    %2268 = vmatpush1.msra.mxu0 0.0
    %2269 = vmatprep.subr.mxu0 0.0
    %2270 = vmatpush1.msra.mxu0 0.0
    %2271 = vmatprep.subr.mxu0 0.0
    %2272 = vmatpush1.msra.mxu0 0.0
    %2273 = vmatprep.subr.mxu0 0.0
    %2274 = vmatpush1.msra.mxu0 0.0
    %2275 = vmatprep.subr.mxu0 0.0
    %2276 = vmatpush1.msra.mxu0 0.0
    %2277 = vmatprep.subr.mxu0 0.0
    %2278 = vmatpush1.msra.mxu0 0.0
    %2279 = vmatprep.subr.mxu0 0.0
    %2280 = vmatpush1.msra.mxu0 0.0
    %2281 = vmatprep.subr.mxu0 0.0
    %2282 = vmatpush1.msra.mxu0 0.0
    %2283 = vmatprep.subr.mxu0 0.0
    %2284 = vmatpush1.msra.mxu0 0.0
    %2285 = vmatprep.subr.mxu0 0.0
    %2286 = vmatpush1.msra.mxu0 0.0
    %2287 = vmatprep.subr.mxu0 0.0
    %2288 = vmatpush1.msra.mxu0 0.0
    %2289 = vmatprep.subr.mxu0 0.0
    %2290 = vmatpush1.msra.mxu0 0.0
    %2291 = vmatprep.subr.mxu0 0.0
    %2292 = vmatpush1.msra.mxu0 0.0
    %2293 = vmatprep.subr.mxu0 0.0
    %2294 = vmatpush1.msra.mxu0 0.0
    %2295 = vmatprep.subr.mxu0 0.0
    %2296 = vmatpush1.msra.mxu0 0.0
    %2297 = vmatprep.subr.mxu0 0.0
    %2298 = vmatpush1.msra.mxu0 0.0
    %2299 = vmatprep.subr.mxu0 0.0
    %2300 = vmatpush1.msra.mxu0 0.0
    %2301 = vmatprep.subr.mxu0 0.0
    %2302 = vmatpush1.msra.mxu0 0.0
    %2303 = vmatprep.subr.mxu0 0.0
    %2304 = vmatpush1.msra.mxu0 0.0
    %2305 = vmatprep.subr.mxu0 0.0
    %2306 = vmatpush1.msra.mxu0 0.0
    %2307 = vmatprep.mubr.f32.mxu0 0.0
    %v2308 = vand.u32 %v2142, 4294901760
    %2309 = vmatmul.mubr.f32.gmra.mrb[0].mxu0 %v2308
    %v2310 = vpop.f32.mrb[0].mxu0
    %v2311 = vadd.f32 %v2220, %v2310
    %v2312 = vpop.f32.mrb[0].mxu0
    %2313 = vdwg.mxu0
    %2314 = vmatprep.subr.mxu0 0.0
    %v2315 = vand.u32 %v584, 4294901760
    %v2316 = vsub.f32 %v584, %v2315
    %2317 = vmatpush1.msra.mxu0 %v2316
    %2318 = vmatprep.subr.mxu0 0.0
    %v2319 = vand.u32 %v585, 4294901760
    %v2320 = vsub.f32 %v585, %v2319
    %2321 = vmatpush1.msra.mxu0 %v2320
    %2322 = vmatprep.subr.mxu0 0.0
    %v2323 = vand.u32 %v586, 4294901760
    %v2324 = vsub.f32 %v586, %v2323
    %2325 = vmatpush1.msra.mxu0 %v2324
    %2326 = vmatprep.subr.mxu0 0.0
    %v2327 = vand.u32 %v587, 4294901760
    %v2328 = vsub.f32 %v587, %v2327
    %2329 = vmatpush1.msra.mxu0 %v2328
    %2330 = vmatprep.subr.mxu0 0.0
    %2331 = vmatpush1.msra.mxu0 0.0
    %2332 = vmatprep.subr.mxu0 0.0
    %2333 = vmatpush1.msra.mxu0 0.0
    %2334 = vmatprep.subr.mxu0 0.0
    %2335 = vmatpush1.msra.mxu0 0.0
    %2336 = vmatprep.subr.mxu0 0.0
    %2337 = vmatpush1.msra.mxu0 0.0
    %2338 = vmatprep.subr.mxu0 0.0
    %2339 = vmatpush1.msra.mxu0 0.0
    %2340 = vmatprep.subr.mxu0 0.0
    %2341 = vmatpush1.msra.mxu0 0.0
    %2342 = vmatprep.subr.mxu0 0.0
    %2343 = vmatpush1.msra.mxu0 0.0
    %2344 = vmatprep.subr.mxu0 0.0
    %2345 = vmatpush1.msra.mxu0 0.0
    %2346 = vmatprep.subr.mxu0 0.0
    %2347 = vmatpush1.msra.mxu0 0.0
    %2348 = vmatprep.subr.mxu0 0.0
    %2349 = vmatpush1.msra.mxu0 0.0
    %2350 = vmatprep.subr.mxu0 0.0
    %2351 = vmatpush1.msra.mxu0 0.0
    %2352 = vmatprep.subr.mxu0 0.0
    %2353 = vmatpush1.msra.mxu0 0.0
    %2354 = vmatprep.subr.mxu0 0.0
    %2355 = vmatpush1.msra.mxu0 0.0
    %2356 = vmatprep.subr.mxu0 0.0
    %2357 = vmatpush1.msra.mxu0 0.0
    %2358 = vmatprep.subr.mxu0 0.0
    %2359 = vmatpush1.msra.mxu0 0.0
    %2360 = vmatprep.subr.mxu0 0.0
    %2361 = vmatpush1.msra.mxu0 0.0
    %2362 = vmatprep.subr.mxu0 0.0
    %2363 = vmatpush1.msra.mxu0 0.0
    %2364 = vmatprep.subr.mxu0 0.0
    %2365 = vmatpush1.msra.mxu0 0.0
    %2366 = vmatprep.subr.mxu0 0.0
    %2367 = vmatpush1.msra.mxu0 0.0
    %2368 = vmatprep.subr.mxu0 0.0
    %2369 = vmatpush1.msra.mxu0 0.0
    %2370 = vmatprep.subr.mxu0 0.0
    %2371 = vmatpush1.msra.mxu0 0.0
    %2372 = vmatprep.subr.mxu0 0.0
    %2373 = vmatpush1.msra.mxu0 0.0
    %2374 = vmatprep.subr.mxu0 0.0
    %2375 = vmatpush1.msra.mxu0 0.0
    %2376 = vmatprep.subr.mxu0 0.0
    %2377 = vmatpush1.msra.mxu0 0.0
    %2378 = vmatprep.subr.mxu0 0.0
    %2379 = vmatpush1.msra.mxu0 0.0
    %2380 = vmatprep.subr.mxu0 0.0
    %2381 = vmatpush1.msra.mxu0 0.0
    %2382 = vmatprep.subr.mxu0 0.0
    %2383 = vmatpush1.msra.mxu0 0.0
    %2384 = vmatprep.subr.mxu0 0.0
    %2385 = vmatpush1.msra.mxu0 0.0
    %2386 = vmatprep.mubr.f32.mxu0 0.0
    %v2387 = vand.u32 %v2142, 4294901760
    %v2388 = vsub.f32 %v2142, %v2387
    %2389 = vmatmul.mubr.f32.gmra.mrb[0].mxu0 %v2388
    %v2390 = vpop.f32.mrb[0].mxu0
    %v2391 = vadd.f32 %v2311, %v2390
    %v2392 = vpop.f32.mrb[0].mxu0
    %2393 = vdwg.mxu0
    %2394 = vmatprep.subr.mxu0 0.0
    %v2395 = vand.u32 %v584, 4294901760
    %2396 = vmatpush1.msra.mxu0 %v2395
    %2397 = vmatprep.subr.mxu0 0.0
    %v2398 = vand.u32 %v585, 4294901760
    %2399 = vmatpush1.msra.mxu0 %v2398
    %2400 = vmatprep.subr.mxu0 0.0
    %v2401 = vand.u32 %v586, 4294901760
    %2402 = vmatpush1.msra.mxu0 %v2401
    %2403 = vmatprep.subr.mxu0 0.0
    %v2404 = vand.u32 %v587, 4294901760
    %2405 = vmatpush1.msra.mxu0 %v2404
    %2406 = vmatprep.subr.mxu0 0.0
    %2407 = vmatpush1.msra.mxu0 0.0
    %2408 = vmatprep.subr.mxu0 0.0
    %2409 = vmatpush1.msra.mxu0 0.0
    %2410 = vmatprep.subr.mxu0 0.0
    %2411 = vmatpush1.msra.mxu0 0.0
    %2412 = vmatprep.subr.mxu0 0.0
    %2413 = vmatpush1.msra.mxu0 0.0
    %2414 = vmatprep.subr.mxu0 0.0
    %2415 = vmatpush1.msra.mxu0 0.0
    %2416 = vmatprep.subr.mxu0 0.0
    %2417 = vmatpush1.msra.mxu0 0.0
    %2418 = vmatprep.subr.mxu0 0.0
    %2419 = vmatpush1.msra.mxu0 0.0
    %2420 = vmatprep.subr.mxu0 0.0
    %2421 = vmatpush1.msra.mxu0 0.0
    %2422 = vmatprep.subr.mxu0 0.0
    %2423 = vmatpush1.msra.mxu0 0.0
    %2424 = vmatprep.subr.mxu0 0.0
    %2425 = vmatpush1.msra.mxu0 0.0
    %2426 = vmatprep.subr.mxu0 0.0
    %2427 = vmatpush1.msra.mxu0 0.0
    %2428 = vmatprep.subr.mxu0 0.0
    %2429 = vmatpush1.msra.mxu0 0.0
    %2430 = vmatprep.subr.mxu0 0.0
    %2431 = vmatpush1.msra.mxu0 0.0
    %2432 = vmatprep.subr.mxu0 0.0
    %2433 = vmatpush1.msra.mxu0 0.0
    %2434 = vmatprep.subr.mxu0 0.0
    %2435 = vmatpush1.msra.mxu0 0.0
    %2436 = vmatprep.subr.mxu0 0.0
    %2437 = vmatpush1.msra.mxu0 0.0
    %2438 = vmatprep.subr.mxu0 0.0
    %2439 = vmatpush1.msra.mxu0 0.0
    %2440 = vmatprep.subr.mxu0 0.0
    %2441 = vmatpush1.msra.mxu0 0.0
    %2442 = vmatprep.subr.mxu0 0.0
    %2443 = vmatpush1.msra.mxu0 0.0
    %2444 = vmatprep.subr.mxu0 0.0
    %2445 = vmatpush1.msra.mxu0 0.0
    %2446 = vmatprep.subr.mxu0 0.0
    %2447 = vmatpush1.msra.mxu0 0.0
    %2448 = vmatprep.subr.mxu0 0.0
    %2449 = vmatpush1.msra.mxu0 0.0
    %2450 = vmatprep.subr.mxu0 0.0
    %2451 = vmatpush1.msra.mxu0 0.0
    %2452 = vmatprep.subr.mxu0 0.0
    %2453 = vmatpush1.msra.mxu0 0.0
    %2454 = vmatprep.subr.mxu0 0.0
    %2455 = vmatpush1.msra.mxu0 0.0
    %2456 = vmatprep.subr.mxu0 0.0
    %2457 = vmatpush1.msra.mxu0 0.0
    %2458 = vmatprep.subr.mxu0 0.0
    %2459 = vmatpush1.msra.mxu0 0.0
    %2460 = vmatprep.subr.mxu0 0.0
    %2461 = vmatpush1.msra.mxu0 0.0
    %2462 = vmatprep.mubr.f32.mxu0 0.0
    %v2463 = vand.u32 %v2142, 4294901760
    %v2464 = vsub.f32 %v2142, %v2463
    %v2465 = vand.u32 %v2464, 4294901760
    %2466 = vmatmul.mubr.f32.gmra.mrb[0].mxu0 %v2465
    %v2467 = vpop.f32.mrb[0].mxu0
    %v2468 = vadd.f32 %v2391, %v2467
    %v2469 = vpop.f32.mrb[0].mxu0
    %2470 = vdwg.mxu0
    %2471 = vmatprep.subr.mxu0 0.0
    %v2472 = vand.u32 %v584, 4294901760
    %v2473 = vsub.f32 %v584, %v2472
    %v2474 = vand.u32 %v2473, 4294901760
    %2475 = vmatpush1.msra.mxu0 %v2474
    %2476 = vmatprep.subr.mxu0 0.0
    %v2477 = vand.u32 %v585, 4294901760
    %v2478 = vsub.f32 %v585, %v2477
    %v2479 = vand.u32 %v2478, 4294901760
    %2480 = vmatpush1.msra.mxu0 %v2479
    %2481 = vmatprep.subr.mxu0 0.0
    %v2482 = vand.u32 %v586, 4294901760
    %v2483 = vsub.f32 %v586, %v2482
    %v2484 = vand.u32 %v2483, 4294901760
    %2485 = vmatpush1.msra.mxu0 %v2484
    %2486 = vmatprep.subr.mxu0 0.0
    %v2487 = vand.u32 %v587, 4294901760
    %v2488 = vsub.f32 %v587, %v2487
    %v2489 = vand.u32 %v2488, 4294901760
    %2490 = vmatpush1.msra.mxu0 %v2489
    %2491 = vmatprep.subr.mxu0 0.0
    %2492 = vmatpush1.msra.mxu0 0.0
    %2493 = vmatprep.subr.mxu0 0.0
    %2494 = vmatpush1.msra.mxu0 0.0
    %2495 = vmatprep.subr.mxu0 0.0
    %2496 = vmatpush1.msra.mxu0 0.0
    %2497 = vmatprep.subr.mxu0 0.0
    %2498 = vmatpush1.msra.mxu0 0.0
    %2499 = vmatprep.subr.mxu0 0.0
    %2500 = vmatpush1.msra.mxu0 0.0
    %2501 = vmatprep.subr.mxu0 0.0
    %2502 = vmatpush1.msra.mxu0 0.0
    %2503 = vmatprep.subr.mxu0 0.0
    %2504 = vmatpush1.msra.mxu0 0.0
    %2505 = vmatprep.subr.mxu0 0.0
    %2506 = vmatpush1.msra.mxu0 0.0
    %2507 = vmatprep.subr.mxu0 0.0
    %2508 = vmatpush1.msra.mxu0 0.0
    %2509 = vmatprep.subr.mxu0 0.0
    %2510 = vmatpush1.msra.mxu0 0.0
    %2511 = vmatprep.subr.mxu0 0.0
    %2512 = vmatpush1.msra.mxu0 0.0
    %2513 = vmatprep.subr.mxu0 0.0
    %2514 = vmatpush1.msra.mxu0 0.0
    %2515 = vmatprep.subr.mxu0 0.0
    %2516 = vmatpush1.msra.mxu0 0.0
    %2517 = vmatprep.subr.mxu0 0.0
    %2518 = vmatpush1.msra.mxu0 0.0
    %2519 = vmatprep.subr.mxu0 0.0
    %2520 = vmatpush1.msra.mxu0 0.0
    %2521 = vmatprep.subr.mxu0 0.0
    %2522 = vmatpush1.msra.mxu0 0.0
    %2523 = vmatprep.subr.mxu0 0.0
    %2524 = vmatpush1.msra.mxu0 0.0
    %2525 = vmatprep.subr.mxu0 0.0
    %2526 = vmatpush1.msra.mxu0 0.0
    %2527 = vmatprep.subr.mxu0 0.0
    %2528 = vmatpush1.msra.mxu0 0.0
    %2529 = vmatprep.subr.mxu0 0.0
    %2530 = vmatpush1.msra.mxu0 0.0
    %2531 = vmatprep.subr.mxu0 0.0
    %2532 = vmatpush1.msra.mxu0 0.0
    %2533 = vmatprep.subr.mxu0 0.0
    %2534 = vmatpush1.msra.mxu0 0.0
    %2535 = vmatprep.subr.mxu0 0.0
    %2536 = vmatpush1.msra.mxu0 0.0
    %2537 = vmatprep.subr.mxu0 0.0
    %2538 = vmatpush1.msra.mxu0 0.0
    %2539 = vmatprep.subr.mxu0 0.0
    %2540 = vmatpush1.msra.mxu0 0.0
    %2541 = vmatprep.subr.mxu0 0.0
    %2542 = vmatpush1.msra.mxu0 0.0
    %2543 = vmatprep.subr.mxu0 0.0
    %2544 = vmatpush1.msra.mxu0 0.0
    %2545 = vmatprep.subr.mxu0 0.0
    %2546 = vmatpush1.msra.mxu0 0.0
    %2547 = vmatprep.mubr.f32.mxu0 0.0
    %v2548 = vand.u32 %v2142, 4294901760
    %2549 = vmatmul.mubr.f32.gmra.mrb[0].mxu0 %v2548
    %v2550 = vpop.f32.mrb[0].mxu0
    %v2551 = vadd.f32 %v2468, %v2550
    %v2552 = vpop.f32.mrb[0].mxu0
    %2553 = vdwg.mxu0
    %2554 = vmatprep.subr.mxu0 0.0
    %v2555 = vand.u32 %v584, 4294901760
    %2556 = vmatpush1.msra.mxu0 %v2555
    %2557 = vmatprep.subr.mxu0 0.0
    %v2558 = vand.u32 %v585, 4294901760
    %2559 = vmatpush1.msra.mxu0 %v2558
    %2560 = vmatprep.subr.mxu0 0.0
    %v2561 = vand.u32 %v586, 4294901760
    %2562 = vmatpush1.msra.mxu0 %v2561
    %2563 = vmatprep.subr.mxu0 0.0
    %v2564 = vand.u32 %v587, 4294901760
    %2565 = vmatpush1.msra.mxu0 %v2564
    %2566 = vmatprep.subr.mxu0 0.0
    %2567 = vmatpush1.msra.mxu0 0.0
    %2568 = vmatprep.subr.mxu0 0.0
    %2569 = vmatpush1.msra.mxu0 0.0
    %2570 = vmatprep.subr.mxu0 0.0
    %2571 = vmatpush1.msra.mxu0 0.0
    %2572 = vmatprep.subr.mxu0 0.0
    %2573 = vmatpush1.msra.mxu0 0.0
    %2574 = vmatprep.subr.mxu0 0.0
    %2575 = vmatpush1.msra.mxu0 0.0
    %2576 = vmatprep.subr.mxu0 0.0
    %2577 = vmatpush1.msra.mxu0 0.0
    %2578 = vmatprep.subr.mxu0 0.0
    %2579 = vmatpush1.msra.mxu0 0.0
    %2580 = vmatprep.subr.mxu0 0.0
    %2581 = vmatpush1.msra.mxu0 0.0
    %2582 = vmatprep.subr.mxu0 0.0
    %2583 = vmatpush1.msra.mxu0 0.0
    %2584 = vmatprep.subr.mxu0 0.0
    %2585 = vmatpush1.msra.mxu0 0.0
    %2586 = vmatprep.subr.mxu0 0.0
    %2587 = vmatpush1.msra.mxu0 0.0
    %2588 = vmatprep.subr.mxu0 0.0
    %2589 = vmatpush1.msra.mxu0 0.0
    %2590 = vmatprep.subr.mxu0 0.0
    %2591 = vmatpush1.msra.mxu0 0.0
    %2592 = vmatprep.subr.mxu0 0.0
    %2593 = vmatpush1.msra.mxu0 0.0
    %2594 = vmatprep.subr.mxu0 0.0
    %2595 = vmatpush1.msra.mxu0 0.0
    %2596 = vmatprep.subr.mxu0 0.0
    %2597 = vmatpush1.msra.mxu0 0.0
    %2598 = vmatprep.subr.mxu0 0.0
    %2599 = vmatpush1.msra.mxu0 0.0
    %2600 = vmatprep.subr.mxu0 0.0
    %2601 = vmatpush1.msra.mxu0 0.0
    %2602 = vmatprep.subr.mxu0 0.0
    %2603 = vmatpush1.msra.mxu0 0.0
    %2604 = vmatprep.subr.mxu0 0.0
    %2605 = vmatpush1.msra.mxu0 0.0
    %2606 = vmatprep.subr.mxu0 0.0
    %2607 = vmatpush1.msra.mxu0 0.0
    %2608 = vmatprep.subr.mxu0 0.0
    %2609 = vmatpush1.msra.mxu0 0.0
    %2610 = vmatprep.subr.mxu0 0.0
    %2611 = vmatpush1.msra.mxu0 0.0
    %2612 = vmatprep.subr.mxu0 0.0
    %2613 = vmatpush1.msra.mxu0 0.0
    %2614 = vmatprep.subr.mxu0 0.0
    %2615 = vmatpush1.msra.mxu0 0.0
    %2616 = vmatprep.subr.mxu0 0.0
    %2617 = vmatpush1.msra.mxu0 0.0
    %2618 = vmatprep.subr.mxu0 0.0
    %2619 = vmatpush1.msra.mxu0 0.0
    %2620 = vmatprep.subr.mxu0 0.0
    %2621 = vmatpush1.msra.mxu0 0.0
    %2622 = vmatprep.mubr.f32.mxu0 0.0
    %v2623 = vand.u32 %v2142, 4294901760
    %2624 = vmatmul.mubr.f32.gmra.mrb[0].mxu0 %v2623
    %v2625 = vpop.f32.mrb[0].mxu0
    %v2626 = vadd.f32 %v2551, %v2625
    %v2627 = vpop.f32.mrb[0].mxu0
    %2628 = vdwg.mxu0
    %v2630 = vrot.slane %v2626, 2
    %v2632 = vadd.f32 %v575, %v2630
    %v2633 = vmul.f32 %v2632, 0.5
    %v2634 = vtanh.pop %v2633
    %v2635 = vadd.f32 %v2634, 1.0
    %v2636 = vmul.f32 %v2635, 0.5
    %v2637 = vtanh.pop %v2632
    %v2639 = vrot.slane %v2131, 6
    %v2641 = vmul.f32 %v2636, %v2639
    %2643 = vrot.lane.b32.xlu0 %v2637, 64
    %v2644 = vpop.permute.xlu0 %2643
    %v2646 = vmul.f32 %v2636, %v2644
    %2648 = vrot.lane.b32.xlu0 %v2646, 32
    %v2649 = vpop.permute.xlu0 %2648
    %v2651 = vadd.f32 %v2641, %v2649
    %v2652 = vtanh.pop %v2651
    %2654 = vrot.lane.b32.xlu0 %v2652, 64
    %v2655 = vpop.permute.xlu0 %2654
    %v2657 = vmul.f32 %v2636, %v2655
    %v2659 = vrot.slane %v2657, 6
    %2660 = vrot.lane.b32.xlu0 %v2659, 32
    %v2661 = vpop.permute.xlu0 %2660
    %v2662 = vsel %vm49, %v2661, 0
    %2664 = vmatprep.subr.mxu0 0.0
    %v2665 = vand.u32 %v584, 4294901760
    %2666 = vmatpush1.msra.mxu0 %v2665
    %2667 = vmatprep.subr.mxu0 0.0
    %v2668 = vand.u32 %v585, 4294901760
    %2669 = vmatpush1.msra.mxu0 %v2668
    %2670 = vmatprep.subr.mxu0 0.0
    %v2671 = vand.u32 %v586, 4294901760
    %2672 = vmatpush1.msra.mxu0 %v2671
    %2673 = vmatprep.subr.mxu0 0.0
    %v2674 = vand.u32 %v587, 4294901760
    %2675 = vmatpush1.msra.mxu0 %v2674
    %2676 = vmatprep.subr.mxu0 0.0
    %2677 = vmatpush1.msra.mxu0 0.0
    %2678 = vmatprep.subr.mxu0 0.0
    %2679 = vmatpush1.msra.mxu0 0.0
    %2680 = vmatprep.subr.mxu0 0.0
    %2681 = vmatpush1.msra.mxu0 0.0
    %2682 = vmatprep.subr.mxu0 0.0
    %2683 = vmatpush1.msra.mxu0 0.0
    %2684 = vmatprep.subr.mxu0 0.0
    %2685 = vmatpush1.msra.mxu0 0.0
    %2686 = vmatprep.subr.mxu0 0.0
    %2687 = vmatpush1.msra.mxu0 0.0
    %2688 = vmatprep.subr.mxu0 0.0
    %2689 = vmatpush1.msra.mxu0 0.0
    %2690 = vmatprep.subr.mxu0 0.0
    %2691 = vmatpush1.msra.mxu0 0.0
    %2692 = vmatprep.subr.mxu0 0.0
    %2693 = vmatpush1.msra.mxu0 0.0
    %2694 = vmatprep.subr.mxu0 0.0
    %2695 = vmatpush1.msra.mxu0 0.0
    %2696 = vmatprep.subr.mxu0 0.0
    %2697 = vmatpush1.msra.mxu0 0.0
    %2698 = vmatprep.subr.mxu0 0.0
    %2699 = vmatpush1.msra.mxu0 0.0
    %2700 = vmatprep.subr.mxu0 0.0
    %2701 = vmatpush1.msra.mxu0 0.0
    %2702 = vmatprep.subr.mxu0 0.0
    %2703 = vmatpush1.msra.mxu0 0.0
    %2704 = vmatprep.subr.mxu0 0.0
    %2705 = vmatpush1.msra.mxu0 0.0
    %2706 = vmatprep.subr.mxu0 0.0
    %2707 = vmatpush1.msra.mxu0 0.0
    %2708 = vmatprep.subr.mxu0 0.0
    %2709 = vmatpush1.msra.mxu0 0.0
    %2710 = vmatprep.subr.mxu0 0.0
    %2711 = vmatpush1.msra.mxu0 0.0
    %2712 = vmatprep.subr.mxu0 0.0
    %2713 = vmatpush1.msra.mxu0 0.0
    %2714 = vmatprep.subr.mxu0 0.0
    %2715 = vmatpush1.msra.mxu0 0.0
    %2716 = vmatprep.subr.mxu0 0.0
    %2717 = vmatpush1.msra.mxu0 0.0
    %2718 = vmatprep.subr.mxu0 0.0
    %2719 = vmatpush1.msra.mxu0 0.0
    %2720 = vmatprep.subr.mxu0 0.0
    %2721 = vmatpush1.msra.mxu0 0.0
    %2722 = vmatprep.subr.mxu0 0.0
    %2723 = vmatpush1.msra.mxu0 0.0
    %2724 = vmatprep.subr.mxu0 0.0
    %2725 = vmatpush1.msra.mxu0 0.0
    %2726 = vmatprep.subr.mxu0 0.0
    %2727 = vmatpush1.msra.mxu0 0.0
    %2728 = vmatprep.subr.mxu0 0.0
    %2729 = vmatpush1.msra.mxu0 0.0
    %2730 = vmatprep.subr.mxu0 0.0
    %2731 = vmatpush1.msra.mxu0 0.0
    %2732 = vmatprep.mubr.f32.mxu0 0.0
    %v2733 = vand.u32 %v2662, 4294901760
    %v2734 = vsub.f32 %v2662, %v2733
    %v2735 = vand.u32 %v2734, 4294901760
    %v2736 = vsub.f32 %v2734, %v2735
    %v2737 = vand.u32 %v2736, 4294901760
    %2738 = vmatmul.mubr.f32.gmra.mrb[0].mxu0 %v2737
    %v2739 = vpop.f32.mrb[0].mxu0
    %v2740 = vadd.f32 0.0, %v2739
    %v2741 = vpop.f32.mrb[0].mxu0
    %2742 = vdwg.mxu0
    %2743 = vmatprep.subr.mxu0 0.0
    %v2744 = vand.u32 %v584, 4294901760
    %v2745 = vsub.f32 %v584, %v2744
    %v2746 = vand.u32 %v2745, 4294901760
    %v2747 = vsub.f32 %v2745, %v2746
    %v2748 = vand.u32 %v2747, 4294901760
    %2749 = vmatpush1.msra.mxu0 %v2748
    %2750 = vmatprep.subr.mxu0 0.0
    %v2751 = vand.u32 %v585, 4294901760
    %v2752 = vsub.f32 %v585, %v2751
    %v2753 = vand.u32 %v2752, 4294901760
    %v2754 = vsub.f32 %v2752, %v2753
    %v2755 = vand.u32 %v2754, 4294901760
    %2756 = vmatpush1.msra.mxu0 %v2755
    %2757 = vmatprep.subr.mxu0 0.0
    %v2758 = vand.u32 %v586, 4294901760
    %v2759 = vsub.f32 %v586, %v2758
    %v2760 = vand.u32 %v2759, 4294901760
    %v2761 = vsub.f32 %v2759, %v2760
    %v2762 = vand.u32 %v2761, 4294901760
    %2763 = vmatpush1.msra.mxu0 %v2762
    %2764 = vmatprep.subr.mxu0 0.0
    %v2765 = vand.u32 %v587, 4294901760
    %v2766 = vsub.f32 %v587, %v2765
    %v2767 = vand.u32 %v2766, 4294901760
    %v2768 = vsub.f32 %v2766, %v2767
    %v2769 = vand.u32 %v2768, 4294901760
    %2770 = vmatpush1.msra.mxu0 %v2769
    %2771 = vmatprep.subr.mxu0 0.0
    %2772 = vmatpush1.msra.mxu0 0.0
    %2773 = vmatprep.subr.mxu0 0.0
    %2774 = vmatpush1.msra.mxu0 0.0
    %2775 = vmatprep.subr.mxu0 0.0
    %2776 = vmatpush1.msra.mxu0 0.0
    %2777 = vmatprep.subr.mxu0 0.0
    %2778 = vmatpush1.msra.mxu0 0.0
    %2779 = vmatprep.subr.mxu0 0.0
    %2780 = vmatpush1.msra.mxu0 0.0
    %2781 = vmatprep.subr.mxu0 0.0
    %2782 = vmatpush1.msra.mxu0 0.0
    %2783 = vmatprep.subr.mxu0 0.0
    %2784 = vmatpush1.msra.mxu0 0.0
    %2785 = vmatprep.subr.mxu0 0.0
    %2786 = vmatpush1.msra.mxu0 0.0
    %2787 = vmatprep.subr.mxu0 0.0
    %2788 = vmatpush1.msra.mxu0 0.0
    %2789 = vmatprep.subr.mxu0 0.0
    %2790 = vmatpush1.msra.mxu0 0.0
    %2791 = vmatprep.subr.mxu0 0.0
    %2792 = vmatpush1.msra.mxu0 0.0
    %2793 = vmatprep.subr.mxu0 0.0
    %2794 = vmatpush1.msra.mxu0 0.0
    %2795 = vmatprep.subr.mxu0 0.0
    %2796 = vmatpush1.msra.mxu0 0.0
    %2797 = vmatprep.subr.mxu0 0.0
    %2798 = vmatpush1.msra.mxu0 0.0
    %2799 = vmatprep.subr.mxu0 0.0
    %2800 = vmatpush1.msra.mxu0 0.0
    %2801 = vmatprep.subr.mxu0 0.0
    %2802 = vmatpush1.msra.mxu0 0.0
    %2803 = vmatprep.subr.mxu0 0.0
    %2804 = vmatpush1.msra.mxu0 0.0
    %2805 = vmatprep.subr.mxu0 0.0
    %2806 = vmatpush1.msra.mxu0 0.0
    %2807 = vmatprep.subr.mxu0 0.0
    %2808 = vmatpush1.msra.mxu0 0.0
    %2809 = vmatprep.subr.mxu0 0.0
    %2810 = vmatpush1.msra.mxu0 0.0
    %2811 = vmatprep.subr.mxu0 0.0
    %2812 = vmatpush1.msra.mxu0 0.0
    %2813 = vmatprep.subr.mxu0 0.0
    %2814 = vmatpush1.msra.mxu0 0.0
    %2815 = vmatprep.subr.mxu0 0.0
    %2816 = vmatpush1.msra.mxu0 0.0
    %2817 = vmatprep.subr.mxu0 0.0
    %2818 = vmatpush1.msra.mxu0 0.0
    %2819 = vmatprep.subr.mxu0 0.0
    %2820 = vmatpush1.msra.mxu0 0.0
    %2821 = vmatprep.subr.mxu0 0.0
    %2822 = vmatpush1.msra.mxu0 0.0
    %2823 = vmatprep.subr.mxu0 0.0
    %2824 = vmatpush1.msra.mxu0 0.0
    %2825 = vmatprep.subr.mxu0 0.0
    %2826 = vmatpush1.msra.mxu0 0.0
    %2827 = vmatprep.mubr.f32.mxu0 0.0
    %v2828 = vand.u32 %v2662, 4294901760
    %2829 = vmatmul.mubr.f32.gmra.mrb[0].mxu0 %v2828
    %v2830 = vpop.f32.mrb[0].mxu0
    %v2831 = vadd.f32 %v2740, %v2830
    %v2832 = vpop.f32.mrb[0].mxu0
    %2833 = vdwg.mxu0
    %2834 = vmatprep.subr.mxu0 0.0
    %v2835 = vand.u32 %v584, 4294901760
    %v2836 = vsub.f32 %v584, %v2835
    %2837 = vmatpush1.msra.mxu0 %v2836
    %2838 = vmatprep.subr.mxu0 0.0
    %v2839 = vand.u32 %v585, 4294901760
    %v2840 = vsub.f32 %v585, %v2839
    %2841 = vmatpush1.msra.mxu0 %v2840
    %2842 = vmatprep.subr.mxu0 0.0
    %v2843 = vand.u32 %v586, 4294901760
    %v2844 = vsub.f32 %v586, %v2843
    %2845 = vmatpush1.msra.mxu0 %v2844
    %2846 = vmatprep.subr.mxu0 0.0
    %v2847 = vand.u32 %v587, 4294901760
    %v2848 = vsub.f32 %v587, %v2847
    %2849 = vmatpush1.msra.mxu0 %v2848
    %2850 = vmatprep.subr.mxu0 0.0
    %2851 = vmatpush1.msra.mxu0 0.0
    %2852 = vmatprep.subr.mxu0 0.0
    %2853 = vmatpush1.msra.mxu0 0.0
    %2854 = vmatprep.subr.mxu0 0.0
    %2855 = vmatpush1.msra.mxu0 0.0
    %2856 = vmatprep.subr.mxu0 0.0
    %2857 = vmatpush1.msra.mxu0 0.0
    %2858 = vmatprep.subr.mxu0 0.0
    %2859 = vmatpush1.msra.mxu0 0.0
    %2860 = vmatprep.subr.mxu0 0.0
    %2861 = vmatpush1.msra.mxu0 0.0
    %2862 = vmatprep.subr.mxu0 0.0
    %2863 = vmatpush1.msra.mxu0 0.0
    %2864 = vmatprep.subr.mxu0 0.0
    %2865 = vmatpush1.msra.mxu0 0.0
    %2866 = vmatprep.subr.mxu0 0.0
    %2867 = vmatpush1.msra.mxu0 0.0
    %2868 = vmatprep.subr.mxu0 0.0
    %2869 = vmatpush1.msra.mxu0 0.0
    %2870 = vmatprep.subr.mxu0 0.0
    %2871 = vmatpush1.msra.mxu0 0.0
    %2872 = vmatprep.subr.mxu0 0.0
    %2873 = vmatpush1.msra.mxu0 0.0
    %2874 = vmatprep.subr.mxu0 0.0
    %2875 = vmatpush1.msra.mxu0 0.0
    %2876 = vmatprep.subr.mxu0 0.0
    %2877 = vmatpush1.msra.mxu0 0.0
    %2878 = vmatprep.subr.mxu0 0.0
    %2879 = vmatpush1.msra.mxu0 0.0
    %2880 = vmatprep.subr.mxu0 0.0
    %2881 = vmatpush1.msra.mxu0 0.0
    %2882 = vmatprep.subr.mxu0 0.0
    %2883 = vmatpush1.msra.mxu0 0.0
    %2884 = vmatprep.subr.mxu0 0.0
    %2885 = vmatpush1.msra.mxu0 0.0
    %2886 = vmatprep.subr.mxu0 0.0
    %2887 = vmatpush1.msra.mxu0 0.0
    %2888 = vmatprep.subr.mxu0 0.0
    %2889 = vmatpush1.msra.mxu0 0.0
    %2890 = vmatprep.subr.mxu0 0.0
    %2891 = vmatpush1.msra.mxu0 0.0
    %2892 = vmatprep.subr.mxu0 0.0
    %2893 = vmatpush1.msra.mxu0 0.0
    %2894 = vmatprep.subr.mxu0 0.0
    %2895 = vmatpush1.msra.mxu0 0.0
    %2896 = vmatprep.subr.mxu0 0.0
    %2897 = vmatpush1.msra.mxu0 0.0
    %2898 = vmatprep.subr.mxu0 0.0
    %2899 = vmatpush1.msra.mxu0 0.0
    %2900 = vmatprep.subr.mxu0 0.0
    %2901 = vmatpush1.msra.mxu0 0.0
    %2902 = vmatprep.subr.mxu0 0.0
    %2903 = vmatpush1.msra.mxu0 0.0
    %2904 = vmatprep.subr.mxu0 0.0
    %2905 = vmatpush1.msra.mxu0 0.0
    %2906 = vmatprep.mubr.f32.mxu0 0.0
    %v2907 = vand.u32 %v2662, 4294901760
    %v2908 = vsub.f32 %v2662, %v2907
    %2909 = vmatmul.mubr.f32.gmra.mrb[0].mxu0 %v2908
    %v2910 = vpop.f32.mrb[0].mxu0
    %v2911 = vadd.f32 %v2831, %v2910
    %v2912 = vpop.f32.mrb[0].mxu0
    %2913 = vdwg.mxu0
    %2914 = vmatprep.subr.mxu0 0.0
    %v2915 = vand.u32 %v584, 4294901760
    %2916 = vmatpush1.msra.mxu0 %v2915
    %2917 = vmatprep.subr.mxu0 0.0
    %v2918 = vand.u32 %v585, 4294901760
    %2919 = vmatpush1.msra.mxu0 %v2918
    %2920 = vmatprep.subr.mxu0 0.0
    %v2921 = vand.u32 %v586, 4294901760
    %2922 = vmatpush1.msra.mxu0 %v2921
    %2923 = vmatprep.subr.mxu0 0.0
    %v2924 = vand.u32 %v587, 4294901760
    %2925 = vmatpush1.msra.mxu0 %v2924
    %2926 = vmatprep.subr.mxu0 0.0
    %2927 = vmatpush1.msra.mxu0 0.0
    %2928 = vmatprep.subr.mxu0 0.0
    %2929 = vmatpush1.msra.mxu0 0.0
    %2930 = vmatprep.subr.mxu0 0.0
    %2931 = vmatpush1.msra.mxu0 0.0
    %2932 = vmatprep.subr.mxu0 0.0
    %2933 = vmatpush1.msra.mxu0 0.0
    %2934 = vmatprep.subr.mxu0 0.0
    %2935 = vmatpush1.msra.mxu0 0.0
    %2936 = vmatprep.subr.mxu0 0.0
    %2937 = vmatpush1.msra.mxu0 0.0
    %2938 = vmatprep.subr.mxu0 0.0
    %2939 = vmatpush1.msra.mxu0 0.0
    %2940 = vmatprep.subr.mxu0 0.0
    %2941 = vmatpush1.msra.mxu0 0.0
    %2942 = vmatprep.subr.mxu0 0.0
    %2943 = vmatpush1.msra.mxu0 0.0
    %2944 = vmatprep.subr.mxu0 0.0
    %2945 = vmatpush1.msra.mxu0 0.0
    %2946 = vmatprep.subr.mxu0 0.0
    %2947 = vmatpush1.msra.mxu0 0.0
    %2948 = vmatprep.subr.mxu0 0.0
    %2949 = vmatpush1.msra.mxu0 0.0
    %2950 = vmatprep.subr.mxu0 0.0
    %2951 = vmatpush1.msra.mxu0 0.0
    %2952 = vmatprep.subr.mxu0 0.0
    %2953 = vmatpush1.msra.mxu0 0.0
    %2954 = vmatprep.subr.mxu0 0.0
    %2955 = vmatpush1.msra.mxu0 0.0
    %2956 = vmatprep.subr.mxu0 0.0
    %2957 = vmatpush1.msra.mxu0 0.0
    %2958 = vmatprep.subr.mxu0 0.0
    %2959 = vmatpush1.msra.mxu0 0.0
    %2960 = vmatprep.subr.mxu0 0.0
    %2961 = vmatpush1.msra.mxu0 0.0
    %2962 = vmatprep.subr.mxu0 0.0
    %2963 = vmatpush1.msra.mxu0 0.0
    %2964 = vmatprep.subr.mxu0 0.0
    %2965 = vmatpush1.msra.mxu0 0.0
    %2966 = vmatprep.subr.mxu0 0.0
    %2967 = vmatpush1.msra.mxu0 0.0
    %2968 = vmatprep.subr.mxu0 0.0
    %2969 = vmatpush1.msra.mxu0 0.0
    %2970 = vmatprep.subr.mxu0 0.0
    %2971 = vmatpush1.msra.mxu0 0.0
    %2972 = vmatprep.subr.mxu0 0.0
    %2973 = vmatpush1.msra.mxu0 0.0
    %2974 = vmatprep.subr.mxu0 0.0
    %2975 = vmatpush1.msra.mxu0 0.0
    %2976 = vmatprep.subr.mxu0 0.0
    %2977 = vmatpush1.msra.mxu0 0.0
    %2978 = vmatprep.subr.mxu0 0.0
    %2979 = vmatpush1.msra.mxu0 0.0
    %2980 = vmatprep.subr.mxu0 0.0
    %2981 = vmatpush1.msra.mxu0 0.0
    %2982 = vmatprep.mubr.f32.mxu0 0.0
    %v2983 = vand.u32 %v2662, 4294901760
    %v2984 = vsub.f32 %v2662, %v2983
    %v2985 = vand.u32 %v2984, 4294901760
    %2986 = vmatmul.mubr.f32.gmra.mrb[0].mxu0 %v2985
    %v2987 = vpop.f32.mrb[0].mxu0
    %v2988 = vadd.f32 %v2911, %v2987
    %v2989 = vpop.f32.mrb[0].mxu0
    %2990 = vdwg.mxu0
    %2991 = vmatprep.subr.mxu0 0.0
    %v2992 = vand.u32 %v584, 4294901760
    %v2993 = vsub.f32 %v584, %v2992
    %v2994 = vand.u32 %v2993, 4294901760
    %2995 = vmatpush1.msra.mxu0 %v2994
    %2996 = vmatprep.subr.mxu0 0.0
    %v2997 = vand.u32 %v585, 4294901760
    %v2998 = vsub.f32 %v585, %v2997
    %v2999 = vand.u32 %v2998, 4294901760
    %3000 = vmatpush1.msra.mxu0 %v2999
    %3001 = vmatprep.subr.mxu0 0.0
    %v3002 = vand.u32 %v586, 4294901760
    %v3003 = vsub.f32 %v586, %v3002
    %v3004 = vand.u32 %v3003, 4294901760
    %3005 = vmatpush1.msra.mxu0 %v3004
    %3006 = vmatprep.subr.mxu0 0.0
    %v3007 = vand.u32 %v587, 4294901760
    %v3008 = vsub.f32 %v587, %v3007
    %v3009 = vand.u32 %v3008, 4294901760
    %3010 = vmatpush1.msra.mxu0 %v3009
    %3011 = vmatprep.subr.mxu0 0.0
    %3012 = vmatpush1.msra.mxu0 0.0
    %3013 = vmatprep.subr.mxu0 0.0
    %3014 = vmatpush1.msra.mxu0 0.0
    %3015 = vmatprep.subr.mxu0 0.0
    %3016 = vmatpush1.msra.mxu0 0.0
    %3017 = vmatprep.subr.mxu0 0.0
    %3018 = vmatpush1.msra.mxu0 0.0
    %3019 = vmatprep.subr.mxu0 0.0
    %3020 = vmatpush1.msra.mxu0 0.0
    %3021 = vmatprep.subr.mxu0 0.0
    %3022 = vmatpush1.msra.mxu0 0.0
    %3023 = vmatprep.subr.mxu0 0.0
    %3024 = vmatpush1.msra.mxu0 0.0
    %3025 = vmatprep.subr.mxu0 0.0
    %3026 = vmatpush1.msra.mxu0 0.0
    %3027 = vmatprep.subr.mxu0 0.0
    %3028 = vmatpush1.msra.mxu0 0.0
    %3029 = vmatprep.subr.mxu0 0.0
    %3030 = vmatpush1.msra.mxu0 0.0
    %3031 = vmatprep.subr.mxu0 0.0
    %3032 = vmatpush1.msra.mxu0 0.0
    %3033 = vmatprep.subr.mxu0 0.0
    %3034 = vmatpush1.msra.mxu0 0.0
    %3035 = vmatprep.subr.mxu0 0.0
    %3036 = vmatpush1.msra.mxu0 0.0
    %3037 = vmatprep.subr.mxu0 0.0
    %3038 = vmatpush1.msra.mxu0 0.0
    %3039 = vmatprep.subr.mxu0 0.0
    %3040 = vmatpush1.msra.mxu0 0.0
    %3041 = vmatprep.subr.mxu0 0.0
    %3042 = vmatpush1.msra.mxu0 0.0
    %3043 = vmatprep.subr.mxu0 0.0
    %3044 = vmatpush1.msra.mxu0 0.0
    %3045 = vmatprep.subr.mxu0 0.0
    %3046 = vmatpush1.msra.mxu0 0.0
    %3047 = vmatprep.subr.mxu0 0.0
    %3048 = vmatpush1.msra.mxu0 0.0
    %3049 = vmatprep.subr.mxu0 0.0
    %3050 = vmatpush1.msra.mxu0 0.0
    %3051 = vmatprep.subr.mxu0 0.0
    %3052 = vmatpush1.msra.mxu0 0.0
    %3053 = vmatprep.subr.mxu0 0.0
    %3054 = vmatpush1.msra.mxu0 0.0
    %3055 = vmatprep.subr.mxu0 0.0
    %3056 = vmatpush1.msra.mxu0 0.0
    %3057 = vmatprep.subr.mxu0 0.0
    %3058 = vmatpush1.msra.mxu0 0.0
    %3059 = vmatprep.subr.mxu0 0.0
    %3060 = vmatpush1.msra.mxu0 0.0
    %3061 = vmatprep.subr.mxu0 0.0
    %3062 = vmatpush1.msra.mxu0 0.0
    %3063 = vmatprep.subr.mxu0 0.0
    %3064 = vmatpush1.msra.mxu0 0.0
    %3065 = vmatprep.subr.mxu0 0.0
    %3066 = vmatpush1.msra.mxu0 0.0
    %3067 = vmatprep.mubr.f32.mxu0 0.0
    %v3068 = vand.u32 %v2662, 4294901760
    %3069 = vmatmul.mubr.f32.gmra.mrb[0].mxu0 %v3068
    %v3070 = vpop.f32.mrb[0].mxu0
    %v3071 = vadd.f32 %v2988, %v3070
    %v3072 = vpop.f32.mrb[0].mxu0
    %3073 = vdwg.mxu0
    %3074 = vmatprep.subr.mxu0 0.0
    %v3075 = vand.u32 %v584, 4294901760
    %3076 = vmatpush1.msra.mxu0 %v3075
    %3077 = vmatprep.subr.mxu0 0.0
    %v3078 = vand.u32 %v585, 4294901760
    %3079 = vmatpush1.msra.mxu0 %v3078
    %3080 = vmatprep.subr.mxu0 0.0
    %v3081 = vand.u32 %v586, 4294901760
    %3082 = vmatpush1.msra.mxu0 %v3081
    %3083 = vmatprep.subr.mxu0 0.0
    %v3084 = vand.u32 %v587, 4294901760
    %3085 = vmatpush1.msra.mxu0 %v3084
    %3086 = vmatprep.subr.mxu0 0.0
    %3087 = vmatpush1.msra.mxu0 0.0
    %3088 = vmatprep.subr.mxu0 0.0
    %3089 = vmatpush1.msra.mxu0 0.0
    %3090 = vmatprep.subr.mxu0 0.0
    %3091 = vmatpush1.msra.mxu0 0.0
    %3092 = vmatprep.subr.mxu0 0.0
    %3093 = vmatpush1.msra.mxu0 0.0
    %3094 = vmatprep.subr.mxu0 0.0
    %3095 = vmatpush1.msra.mxu0 0.0
    %3096 = vmatprep.subr.mxu0 0.0
    %3097 = vmatpush1.msra.mxu0 0.0
    %3098 = vmatprep.subr.mxu0 0.0
    %3099 = vmatpush1.msra.mxu0 0.0
    %3100 = vmatprep.subr.mxu0 0.0
    %3101 = vmatpush1.msra.mxu0 0.0
    %3102 = vmatprep.subr.mxu0 0.0
    %3103 = vmatpush1.msra.mxu0 0.0
    %3104 = vmatprep.subr.mxu0 0.0
    %3105 = vmatpush1.msra.mxu0 0.0
    %3106 = vmatprep.subr.mxu0 0.0
    %3107 = vmatpush1.msra.mxu0 0.0
    %3108 = vmatprep.subr.mxu0 0.0
    %3109 = vmatpush1.msra.mxu0 0.0
    %3110 = vmatprep.subr.mxu0 0.0
    %3111 = vmatpush1.msra.mxu0 0.0
    %3112 = vmatprep.subr.mxu0 0.0
    %3113 = vmatpush1.msra.mxu0 0.0
    %3114 = vmatprep.subr.mxu0 0.0
    %3115 = vmatpush1.msra.mxu0 0.0
    %3116 = vmatprep.subr.mxu0 0.0
    %3117 = vmatpush1.msra.mxu0 0.0
    %3118 = vmatprep.subr.mxu0 0.0
    %3119 = vmatpush1.msra.mxu0 0.0
    %3120 = vmatprep.subr.mxu0 0.0
    %3121 = vmatpush1.msra.mxu0 0.0
    %3122 = vmatprep.subr.mxu0 0.0
    %3123 = vmatpush1.msra.mxu0 0.0
    %3124 = vmatprep.subr.mxu0 0.0
    %3125 = vmatpush1.msra.mxu0 0.0
    %3126 = vmatprep.subr.mxu0 0.0
    %3127 = vmatpush1.msra.mxu0 0.0
    %3128 = vmatprep.subr.mxu0 0.0
    %3129 = vmatpush1.msra.mxu0 0.0
    %3130 = vmatprep.subr.mxu0 0.0
    %3131 = vmatpush1.msra.mxu0 0.0
    %3132 = vmatprep.subr.mxu0 0.0
    %3133 = vmatpush1.msra.mxu0 0.0
    %3134 = vmatprep.subr.mxu0 0.0
    %3135 = vmatpush1.msra.mxu0 0.0
    %3136 = vmatprep.subr.mxu0 0.0
    %3137 = vmatpush1.msra.mxu0 0.0
    %3138 = vmatprep.subr.mxu0 0.0
    %3139 = vmatpush1.msra.mxu0 0.0
    %3140 = vmatprep.subr.mxu0 0.0
    %3141 = vmatpush1.msra.mxu0 0.0
    %3142 = vmatprep.mubr.f32.mxu0 0.0
    %v3143 = vand.u32 %v2662, 4294901760
    %3144 = vmatmul.mubr.f32.gmra.mrb[0].mxu0 %v3143
    %v3145 = vpop.f32.mrb[0].mxu0
    %v3146 = vadd.f32 %v3071, %v3145
    %v3147 = vpop.f32.mrb[0].mxu0
    %3148 = vdwg.mxu0
    %v3149 = vadd.f32 %v581, %v3146
    %v3150 = vmul.f32 %v3149, 0.5
    %v3151 = vtanh.pop %v3150
    %v3152 = vadd.f32 %v3151, 1.0
    %v3153 = vmul.f32 %v3152, 0.5
    %v3154 = vtanh.pop %v3149
    %v3156 = vrot.slane %v2651, 6
    %v3158 = vmul.f32 %v3153, %v3156
    %3160 = vrot.lane.b32.xlu0 %v3154, 64
    %v3161 = vpop.permute.xlu0 %3160
    %v3163 = vmul.f32 %v3153, %v3161
    %3165 = vrot.lane.b32.xlu0 %v3163, 32
    %v3166 = vpop.permute.xlu0 %3165
    %v3168 = vadd.f32 %v3158, %v3166
    %v3169 = vtanh.pop %v3168
    %3171 = vrot.lane.b32.xlu0 %v3169, 64
    %v3172 = vpop.permute.xlu0 %3171
    %v3174 = vmul.f32 %v3153, %v3172
    %3176 = vrot.lane.b32.xlu0 %v3174, 32
    %v3177 = vpop.permute.xlu0 %3176
    %v3178 = vsel %vm49, %v3177, 0
    %3180 = vmatprep.subr.mxu0 0.0
    %v3181 = vand.u32 %v584, 4294901760
    %3182 = vmatpush1.msra.mxu0 %v3181
    %3183 = vmatprep.subr.mxu0 0.0
    %v3184 = vand.u32 %v585, 4294901760
    %3185 = vmatpush1.msra.mxu0 %v3184
    %3186 = vmatprep.subr.mxu0 0.0
    %v3187 = vand.u32 %v586, 4294901760
    %3188 = vmatpush1.msra.mxu0 %v3187
    %3189 = vmatprep.subr.mxu0 0.0
    %v3190 = vand.u32 %v587, 4294901760
    %3191 = vmatpush1.msra.mxu0 %v3190
    %3192 = vmatprep.subr.mxu0 0.0
    %3193 = vmatpush1.msra.mxu0 0.0
    %3194 = vmatprep.subr.mxu0 0.0
    %3195 = vmatpush1.msra.mxu0 0.0
    %3196 = vmatprep.subr.mxu0 0.0
    %3197 = vmatpush1.msra.mxu0 0.0
    %3198 = vmatprep.subr.mxu0 0.0
    %3199 = vmatpush1.msra.mxu0 0.0
    %3200 = vmatprep.subr.mxu0 0.0
    %3201 = vmatpush1.msra.mxu0 0.0
    %3202 = vmatprep.subr.mxu0 0.0
    %3203 = vmatpush1.msra.mxu0 0.0
    %3204 = vmatprep.subr.mxu0 0.0
    %3205 = vmatpush1.msra.mxu0 0.0
    %3206 = vmatprep.subr.mxu0 0.0
    %3207 = vmatpush1.msra.mxu0 0.0
    %3208 = vmatprep.subr.mxu0 0.0
    %3209 = vmatpush1.msra.mxu0 0.0
    %3210 = vmatprep.subr.mxu0 0.0
    %3211 = vmatpush1.msra.mxu0 0.0
    %3212 = vmatprep.subr.mxu0 0.0
    %3213 = vmatpush1.msra.mxu0 0.0
    %3214 = vmatprep.subr.mxu0 0.0
    %3215 = vmatpush1.msra.mxu0 0.0
    %3216 = vmatprep.subr.mxu0 0.0
    %3217 = vmatpush1.msra.mxu0 0.0
    %3218 = vmatprep.subr.mxu0 0.0
    %3219 = vmatpush1.msra.mxu0 0.0
    %3220 = vmatprep.subr.mxu0 0.0
    %3221 = vmatpush1.msra.mxu0 0.0
    %3222 = vmatprep.subr.mxu0 0.0
    %3223 = vmatpush1.msra.mxu0 0.0
    %3224 = vmatprep.subr.mxu0 0.0
    %3225 = vmatpush1.msra.mxu0 0.0
    %3226 = vmatprep.subr.mxu0 0.0
    %3227 = vmatpush1.msra.mxu0 0.0
    %3228 = vmatprep.subr.mxu0 0.0
    %3229 = vmatpush1.msra.mxu0 0.0
    %3230 = vmatprep.subr.mxu0 0.0
    %3231 = vmatpush1.msra.mxu0 0.0
    %3232 = vmatprep.subr.mxu0 0.0
    %3233 = vmatpush1.msra.mxu0 0.0
    %3234 = vmatprep.subr.mxu0 0.0
    %3235 = vmatpush1.msra.mxu0 0.0
    %3236 = vmatprep.subr.mxu0 0.0
    %3237 = vmatpush1.msra.mxu0 0.0
    %3238 = vmatprep.subr.mxu0 0.0
    %3239 = vmatpush1.msra.mxu0 0.0
    %3240 = vmatprep.subr.mxu0 0.0
    %3241 = vmatpush1.msra.mxu0 0.0
    %3242 = vmatprep.subr.mxu0 0.0
    %3243 = vmatpush1.msra.mxu0 0.0
    %3244 = vmatprep.subr.mxu0 0.0
    %3245 = vmatpush1.msra.mxu0 0.0
    %3246 = vmatprep.subr.mxu0 0.0
    %3247 = vmatpush1.msra.mxu0 0.0
    %3248 = vmatprep.mubr.f32.mxu0 0.0
    %v3249 = vand.u32 %v3178, 4294901760
    %v3250 = vsub.f32 %v3178, %v3249
    %v3251 = vand.u32 %v3250, 4294901760
    %v3252 = vsub.f32 %v3250, %v3251
    %v3253 = vand.u32 %v3252, 4294901760
    %3254 = vmatmul.mubr.f32.gmra.mrb[0].mxu0 %v3253
    %v3255 = vpop.f32.mrb[0].mxu0
    %v3256 = vadd.f32 0.0, %v3255
    %v3257 = vpop.f32.mrb[0].mxu0
    %3258 = vdwg.mxu0
    %3259 = vmatprep.subr.mxu0 0.0
    %v3260 = vand.u32 %v584, 4294901760
    %v3261 = vsub.f32 %v584, %v3260
    %v3262 = vand.u32 %v3261, 4294901760
    %v3263 = vsub.f32 %v3261, %v3262
    %v3264 = vand.u32 %v3263, 4294901760
    %3265 = vmatpush1.msra.mxu0 %v3264
    %3266 = vmatprep.subr.mxu0 0.0
    %v3267 = vand.u32 %v585, 4294901760
    %v3268 = vsub.f32 %v585, %v3267
    %v3269 = vand.u32 %v3268, 4294901760
    %v3270 = vsub.f32 %v3268, %v3269
    %v3271 = vand.u32 %v3270, 4294901760
    %3272 = vmatpush1.msra.mxu0 %v3271
    %3273 = vmatprep.subr.mxu0 0.0
    %v3274 = vand.u32 %v586, 4294901760
    %v3275 = vsub.f32 %v586, %v3274
    %v3276 = vand.u32 %v3275, 4294901760
    %v3277 = vsub.f32 %v3275, %v3276
    %v3278 = vand.u32 %v3277, 4294901760
    %3279 = vmatpush1.msra.mxu0 %v3278
    %3280 = vmatprep.subr.mxu0 0.0
    %v3281 = vand.u32 %v587, 4294901760
    %v3282 = vsub.f32 %v587, %v3281
    %v3283 = vand.u32 %v3282, 4294901760
    %v3284 = vsub.f32 %v3282, %v3283
    %v3285 = vand.u32 %v3284, 4294901760
    %3286 = vmatpush1.msra.mxu0 %v3285
    %3287 = vmatprep.subr.mxu0 0.0
    %3288 = vmatpush1.msra.mxu0 0.0
    %3289 = vmatprep.subr.mxu0 0.0
    %3290 = vmatpush1.msra.mxu0 0.0
    %3291 = vmatprep.subr.mxu0 0.0
    %3292 = vmatpush1.msra.mxu0 0.0
    %3293 = vmatprep.subr.mxu0 0.0
    %3294 = vmatpush1.msra.mxu0 0.0
    %3295 = vmatprep.subr.mxu0 0.0
    %3296 = vmatpush1.msra.mxu0 0.0
    %3297 = vmatprep.subr.mxu0 0.0
    %3298 = vmatpush1.msra.mxu0 0.0
    %3299 = vmatprep.subr.mxu0 0.0
    %3300 = vmatpush1.msra.mxu0 0.0
    %3301 = vmatprep.subr.mxu0 0.0
    %3302 = vmatpush1.msra.mxu0 0.0
    %3303 = vmatprep.subr.mxu0 0.0
    %3304 = vmatpush1.msra.mxu0 0.0
    %3305 = vmatprep.subr.mxu0 0.0
    %3306 = vmatpush1.msra.mxu0 0.0
    %3307 = vmatprep.subr.mxu0 0.0
    %3308 = vmatpush1.msra.mxu0 0.0
    %3309 = vmatprep.subr.mxu0 0.0
    %3310 = vmatpush1.msra.mxu0 0.0
    %3311 = vmatprep.subr.mxu0 0.0
    %3312 = vmatpush1.msra.mxu0 0.0
    %3313 = vmatprep.subr.mxu0 0.0
    %3314 = vmatpush1.msra.mxu0 0.0
    %3315 = vmatprep.subr.mxu0 0.0
    %3316 = vmatpush1.msra.mxu0 0.0
    %3317 = vmatprep.subr.mxu0 0.0
    %3318 = vmatpush1.msra.mxu0 0.0
    %3319 = vmatprep.subr.mxu0 0.0
    %3320 = vmatpush1.msra.mxu0 0.0
    %3321 = vmatprep.subr.mxu0 0.0
    %3322 = vmatpush1.msra.mxu0 0.0
    %3323 = vmatprep.subr.mxu0 0.0
    %3324 = vmatpush1.msra.mxu0 0.0
    %3325 = vmatprep.subr.mxu0 0.0
    %3326 = vmatpush1.msra.mxu0 0.0
    %3327 = vmatprep.subr.mxu0 0.0
    %3328 = vmatpush1.msra.mxu0 0.0
    %3329 = vmatprep.subr.mxu0 0.0
    %3330 = vmatpush1.msra.mxu0 0.0
    %3331 = vmatprep.subr.mxu0 0.0
    %3332 = vmatpush1.msra.mxu0 0.0
    %3333 = vmatprep.subr.mxu0 0.0
    %3334 = vmatpush1.msra.mxu0 0.0
    %3335 = vmatprep.subr.mxu0 0.0
    %3336 = vmatpush1.msra.mxu0 0.0
    %3337 = vmatprep.subr.mxu0 0.0
    %3338 = vmatpush1.msra.mxu0 0.0
    %3339 = vmatprep.subr.mxu0 0.0
    %3340 = vmatpush1.msra.mxu0 0.0
    %3341 = vmatprep.subr.mxu0 0.0
    %3342 = vmatpush1.msra.mxu0 0.0
    %3343 = vmatprep.mubr.f32.mxu0 0.0
    %v3344 = vand.u32 %v3178, 4294901760
    %3345 = vmatmul.mubr.f32.gmra.mrb[0].mxu0 %v3344
    %v3346 = vpop.f32.mrb[0].mxu0
    %v3347 = vadd.f32 %v3256, %v3346
    %v3348 = vpop.f32.mrb[0].mxu0
    %3349 = vdwg.mxu0
    %3350 = vmatprep.subr.mxu0 0.0
    %v3351 = vand.u32 %v584, 4294901760
    %v3352 = vsub.f32 %v584, %v3351
    %3353 = vmatpush1.msra.mxu0 %v3352
    %3354 = vmatprep.subr.mxu0 0.0
    %v3355 = vand.u32 %v585, 4294901760
    %v3356 = vsub.f32 %v585, %v3355
    %3357 = vmatpush1.msra.mxu0 %v3356
    %3358 = vmatprep.subr.mxu0 0.0
    %v3359 = vand.u32 %v586, 4294901760
    %v3360 = vsub.f32 %v586, %v3359
    %3361 = vmatpush1.msra.mxu0 %v3360
    %3362 = vmatprep.subr.mxu0 0.0
    %v3363 = vand.u32 %v587, 4294901760
    %v3364 = vsub.f32 %v587, %v3363
    %3365 = vmatpush1.msra.mxu0 %v3364
    %3366 = vmatprep.subr.mxu0 0.0
    %3367 = vmatpush1.msra.mxu0 0.0
    %3368 = vmatprep.subr.mxu0 0.0
    %3369 = vmatpush1.msra.mxu0 0.0
    %3370 = vmatprep.subr.mxu0 0.0
    %3371 = vmatpush1.msra.mxu0 0.0
    %3372 = vmatprep.subr.mxu0 0.0
    %3373 = vmatpush1.msra.mxu0 0.0
    %3374 = vmatprep.subr.mxu0 0.0
    %3375 = vmatpush1.msra.mxu0 0.0
    %3376 = vmatprep.subr.mxu0 0.0
    %3377 = vmatpush1.msra.mxu0 0.0
    %3378 = vmatprep.subr.mxu0 0.0
    %3379 = vmatpush1.msra.mxu0 0.0
    %3380 = vmatprep.subr.mxu0 0.0
    %3381 = vmatpush1.msra.mxu0 0.0
    %3382 = vmatprep.subr.mxu0 0.0
    %3383 = vmatpush1.msra.mxu0 0.0
    %3384 = vmatprep.subr.mxu0 0.0
    %3385 = vmatpush1.msra.mxu0 0.0
    %3386 = vmatprep.subr.mxu0 0.0
    %3387 = vmatpush1.msra.mxu0 0.0
    %3388 = vmatprep.subr.mxu0 0.0
    %3389 = vmatpush1.msra.mxu0 0.0
    %3390 = vmatprep.subr.mxu0 0.0
    %3391 = vmatpush1.msra.mxu0 0.0
    %3392 = vmatprep.subr.mxu0 0.0
    %3393 = vmatpush1.msra.mxu0 0.0
    %3394 = vmatprep.subr.mxu0 0.0
    %3395 = vmatpush1.msra.mxu0 0.0
    %3396 = vmatprep.subr.mxu0 0.0
    %3397 = vmatpush1.msra.mxu0 0.0
    %3398 = vmatprep.subr.mxu0 0.0
    %3399 = vmatpush1.msra.mxu0 0.0
    %3400 = vmatprep.subr.mxu0 0.0
    %3401 = vmatpush1.msra.mxu0 0.0
    %3402 = vmatprep.subr.mxu0 0.0
    %3403 = vmatpush1.msra.mxu0 0.0
    %3404 = vmatprep.subr.mxu0 0.0
    %3405 = vmatpush1.msra.mxu0 0.0
    %3406 = vmatprep.subr.mxu0 0.0
    %3407 = vmatpush1.msra.mxu0 0.0
    %3408 = vmatprep.subr.mxu0 0.0
    %3409 = vmatpush1.msra.mxu0 0.0
    %3410 = vmatprep.subr.mxu0 0.0
    %3411 = vmatpush1.msra.mxu0 0.0
    %3412 = vmatprep.subr.mxu0 0.0
    %3413 = vmatpush1.msra.mxu0 0.0
    %3414 = vmatprep.subr.mxu0 0.0
    %3415 = vmatpush1.msra.mxu0 0.0
    %3416 = vmatprep.subr.mxu0 0.0
    %3417 = vmatpush1.msra.mxu0 0.0
    %3418 = vmatprep.subr.mxu0 0.0
    %3419 = vmatpush1.msra.mxu0 0.0
    %3420 = vmatprep.subr.mxu0 0.0
    %3421 = vmatpush1.msra.mxu0 0.0
    %3422 = vmatprep.mubr.f32.mxu0 0.0
    %v3423 = vand.u32 %v3178, 4294901760
    %v3424 = vsub.f32 %v3178, %v3423
    %3425 = vmatmul.mubr.f32.gmra.mrb[0].mxu0 %v3424
    %v3426 = vpop.f32.mrb[0].mxu0
    %v3427 = vadd.f32 %v3347, %v3426
    %v3428 = vpop.f32.mrb[0].mxu0
    %3429 = vdwg.mxu0
    %3430 = vmatprep.subr.mxu0 0.0
    %v3431 = vand.u32 %v584, 4294901760
    %3432 = vmatpush1.msra.mxu0 %v3431
    %3433 = vmatprep.subr.mxu0 0.0
    %v3434 = vand.u32 %v585, 4294901760
    %3435 = vmatpush1.msra.mxu0 %v3434
    %3436 = vmatprep.subr.mxu0 0.0
    %v3437 = vand.u32 %v586, 4294901760
    %3438 = vmatpush1.msra.mxu0 %v3437
    %3439 = vmatprep.subr.mxu0 0.0
    %v3440 = vand.u32 %v587, 4294901760
    %3441 = vmatpush1.msra.mxu0 %v3440
    %3442 = vmatprep.subr.mxu0 0.0
    %3443 = vmatpush1.msra.mxu0 0.0
    %3444 = vmatprep.subr.mxu0 0.0
    %3445 = vmatpush1.msra.mxu0 0.0
    %3446 = vmatprep.subr.mxu0 0.0
    %3447 = vmatpush1.msra.mxu0 0.0
    %3448 = vmatprep.subr.mxu0 0.0
    %3449 = vmatpush1.msra.mxu0 0.0
    %3450 = vmatprep.subr.mxu0 0.0
    %3451 = vmatpush1.msra.mxu0 0.0
    %3452 = vmatprep.subr.mxu0 0.0
    %3453 = vmatpush1.msra.mxu0 0.0
    %3454 = vmatprep.subr.mxu0 0.0
    %3455 = vmatpush1.msra.mxu0 0.0
    %3456 = vmatprep.subr.mxu0 0.0
    %3457 = vmatpush1.msra.mxu0 0.0
    %3458 = vmatprep.subr.mxu0 0.0
    %3459 = vmatpush1.msra.mxu0 0.0
    %3460 = vmatprep.subr.mxu0 0.0
    %3461 = vmatpush1.msra.mxu0 0.0
    %3462 = vmatprep.subr.mxu0 0.0
    %3463 = vmatpush1.msra.mxu0 0.0
    %3464 = vmatprep.subr.mxu0 0.0
    %3465 = vmatpush1.msra.mxu0 0.0
    %3466 = vmatprep.subr.mxu0 0.0
    %3467 = vmatpush1.msra.mxu0 0.0
    %3468 = vmatprep.subr.mxu0 0.0
    %3469 = vmatpush1.msra.mxu0 0.0
    %3470 = vmatprep.subr.mxu0 0.0
    %3471 = vmatpush1.msra.mxu0 0.0
    %3472 = vmatprep.subr.mxu0 0.0
    %3473 = vmatpush1.msra.mxu0 0.0
    %3474 = vmatprep.subr.mxu0 0.0
    %3475 = vmatpush1.msra.mxu0 0.0
    %3476 = vmatprep.subr.mxu0 0.0
    %3477 = vmatpush1.msra.mxu0 0.0
    %3478 = vmatprep.subr.mxu0 0.0
    %3479 = vmatpush1.msra.mxu0 0.0
    %3480 = vmatprep.subr.mxu0 0.0
    %3481 = vmatpush1.msra.mxu0 0.0
    %3482 = vmatprep.subr.mxu0 0.0
    %3483 = vmatpush1.msra.mxu0 0.0
    %3484 = vmatprep.subr.mxu0 0.0
    %3485 = vmatpush1.msra.mxu0 0.0
    %3486 = vmatprep.subr.mxu0 0.0
    %3487 = vmatpush1.msra.mxu0 0.0
    %3488 = vmatprep.subr.mxu0 0.0
    %3489 = vmatpush1.msra.mxu0 0.0
    %3490 = vmatprep.subr.mxu0 0.0
    %3491 = vmatpush1.msra.mxu0 0.0
    %3492 = vmatprep.subr.mxu0 0.0
    %3493 = vmatpush1.msra.mxu0 0.0
    %3494 = vmatprep.subr.mxu0 0.0
    %3495 = vmatpush1.msra.mxu0 0.0
    %3496 = vmatprep.subr.mxu0 0.0
    %3497 = vmatpush1.msra.mxu0 0.0
    %3498 = vmatprep.mubr.f32.mxu0 0.0
    %v3499 = vand.u32 %v3178, 4294901760
    %v3500 = vsub.f32 %v3178, %v3499
    %v3501 = vand.u32 %v3500, 4294901760
    %3502 = vmatmul.mubr.f32.gmra.mrb[0].mxu0 %v3501
    %v3503 = vpop.f32.mrb[0].mxu0
    %v3504 = vadd.f32 %v3427, %v3503
    %v3505 = vpop.f32.mrb[0].mxu0
    %3506 = vdwg.mxu0
    %3507 = vmatprep.subr.mxu0 0.0
    %v3508 = vand.u32 %v584, 4294901760
    %v3509 = vsub.f32 %v584, %v3508
    %v3510 = vand.u32 %v3509, 4294901760
    %3511 = vmatpush1.msra.mxu0 %v3510
    %3512 = vmatprep.subr.mxu0 0.0
    %v3513 = vand.u32 %v585, 4294901760
    %v3514 = vsub.f32 %v585, %v3513
    %v3515 = vand.u32 %v3514, 4294901760
    %3516 = vmatpush1.msra.mxu0 %v3515
    %3517 = vmatprep.subr.mxu0 0.0
    %v3518 = vand.u32 %v586, 4294901760
    %v3519 = vsub.f32 %v586, %v3518
    %v3520 = vand.u32 %v3519, 4294901760
    %3521 = vmatpush1.msra.mxu0 %v3520
    %3522 = vmatprep.subr.mxu0 0.0
    %v3523 = vand.u32 %v587, 4294901760
    %v3524 = vsub.f32 %v587, %v3523
    %v3525 = vand.u32 %v3524, 4294901760
    %3526 = vmatpush1.msra.mxu0 %v3525
    %3527 = vmatprep.subr.mxu0 0.0
    %3528 = vmatpush1.msra.mxu0 0.0
    %3529 = vmatprep.subr.mxu0 0.0
    %3530 = vmatpush1.msra.mxu0 0.0
    %3531 = vmatprep.subr.mxu0 0.0
    %3532 = vmatpush1.msra.mxu0 0.0
    %3533 = vmatprep.subr.mxu0 0.0
    %3534 = vmatpush1.msra.mxu0 0.0
    %3535 = vmatprep.subr.mxu0 0.0
    %3536 = vmatpush1.msra.mxu0 0.0
    %3537 = vmatprep.subr.mxu0 0.0
    %3538 = vmatpush1.msra.mxu0 0.0
    %3539 = vmatprep.subr.mxu0 0.0
    %3540 = vmatpush1.msra.mxu0 0.0
    %3541 = vmatprep.subr.mxu0 0.0
    %3542 = vmatpush1.msra.mxu0 0.0
    %3543 = vmatprep.subr.mxu0 0.0
    %3544 = vmatpush1.msra.mxu0 0.0
    %3545 = vmatprep.subr.mxu0 0.0
    %3546 = vmatpush1.msra.mxu0 0.0
    %3547 = vmatprep.subr.mxu0 0.0
    %3548 = vmatpush1.msra.mxu0 0.0
    %3549 = vmatprep.subr.mxu0 0.0
    %3550 = vmatpush1.msra.mxu0 0.0
    %3551 = vmatprep.subr.mxu0 0.0
    %3552 = vmatpush1.msra.mxu0 0.0
    %3553 = vmatprep.subr.mxu0 0.0
    %3554 = vmatpush1.msra.mxu0 0.0
    %3555 = vmatprep.subr.mxu0 0.0
    %3556 = vmatpush1.msra.mxu0 0.0
    %3557 = vmatprep.subr.mxu0 0.0
    %3558 = vmatpush1.msra.mxu0 0.0
    %3559 = vmatprep.subr.mxu0 0.0
    %3560 = vmatpush1.msra.mxu0 0.0
    %3561 = vmatprep.subr.mxu0 0.0
    %3562 = vmatpush1.msra.mxu0 0.0
    %3563 = vmatprep.subr.mxu0 0.0
    %3564 = vmatpush1.msra.mxu0 0.0
    %3565 = vmatprep.subr.mxu0 0.0
    %3566 = vmatpush1.msra.mxu0 0.0
    %3567 = vmatprep.subr.mxu0 0.0
    %3568 = vmatpush1.msra.mxu0 0.0
    %3569 = vmatprep.subr.mxu0 0.0
    %3570 = vmatpush1.msra.mxu0 0.0
    %3571 = vmatprep.subr.mxu0 0.0
    %3572 = vmatpush1.msra.mxu0 0.0
    %3573 = vmatprep.subr.mxu0 0.0
    %3574 = vmatpush1.msra.mxu0 0.0
    %3575 = vmatprep.subr.mxu0 0.0
    %3576 = vmatpush1.msra.mxu0 0.0
    %3577 = vmatprep.subr.mxu0 0.0
    %3578 = vmatpush1.msra.mxu0 0.0
    %3579 = vmatprep.subr.mxu0 0.0
    %3580 = vmatpush1.msra.mxu0 0.0
    %3581 = vmatprep.subr.mxu0 0.0
    %3582 = vmatpush1.msra.mxu0 0.0
    %3583 = vmatprep.mubr.f32.mxu0 0.0
    %v3584 = vand.u32 %v3178, 4294901760
    %3585 = vmatmul.mubr.f32.gmra.mrb[0].mxu0 %v3584
    %v3586 = vpop.f32.mrb[0].mxu0
    %v3587 = vadd.f32 %v3504, %v3586
    %v3588 = vpop.f32.mrb[0].mxu0
    %3589 = vdwg.mxu0
    %3590 = vmatprep.subr.mxu0 0.0
    %v3591 = vand.u32 %v584, 4294901760
    %3592 = vmatpush1.msra.mxu0 %v3591
    %3593 = vmatprep.subr.mxu0 0.0
    %v3594 = vand.u32 %v585, 4294901760
    %3595 = vmatpush1.msra.mxu0 %v3594
    %3596 = vmatprep.subr.mxu0 0.0
    %v3597 = vand.u32 %v586, 4294901760
    %3598 = vmatpush1.msra.mxu0 %v3597
    %3599 = vmatprep.subr.mxu0 0.0
    %v3600 = vand.u32 %v587, 4294901760
    %3601 = vmatpush1.msra.mxu0 %v3600
    %3602 = vmatprep.subr.mxu0 0.0
    %3603 = vmatpush1.msra.mxu0 0.0
    %3604 = vmatprep.subr.mxu0 0.0
    %3605 = vmatpush1.msra.mxu0 0.0
    %3606 = vmatprep.subr.mxu0 0.0
    %3607 = vmatpush1.msra.mxu0 0.0
    %3608 = vmatprep.subr.mxu0 0.0
    %3609 = vmatpush1.msra.mxu0 0.0
    %3610 = vmatprep.subr.mxu0 0.0
    %3611 = vmatpush1.msra.mxu0 0.0
    %3612 = vmatprep.subr.mxu0 0.0
    %3613 = vmatpush1.msra.mxu0 0.0
    %3614 = vmatprep.subr.mxu0 0.0
    %3615 = vmatpush1.msra.mxu0 0.0
    %3616 = vmatprep.subr.mxu0 0.0
    %3617 = vmatpush1.msra.mxu0 0.0
    %3618 = vmatprep.subr.mxu0 0.0
    %3619 = vmatpush1.msra.mxu0 0.0
    %3620 = vmatprep.subr.mxu0 0.0
    %3621 = vmatpush1.msra.mxu0 0.0
    %3622 = vmatprep.subr.mxu0 0.0
    %3623 = vmatpush1.msra.mxu0 0.0
    %3624 = vmatprep.subr.mxu0 0.0
    %3625 = vmatpush1.msra.mxu0 0.0
    %3626 = vmatprep.subr.mxu0 0.0
    %3627 = vmatpush1.msra.mxu0 0.0
    %3628 = vmatprep.subr.mxu0 0.0
    %3629 = vmatpush1.msra.mxu0 0.0
    %3630 = vmatprep.subr.mxu0 0.0
    %3631 = vmatpush1.msra.mxu0 0.0
    %3632 = vmatprep.subr.mxu0 0.0
    %3633 = vmatpush1.msra.mxu0 0.0
    %3634 = vmatprep.subr.mxu0 0.0
    %3635 = vmatpush1.msra.mxu0 0.0
    %3636 = vmatprep.subr.mxu0 0.0
    %3637 = vmatpush1.msra.mxu0 0.0
    %3638 = vmatprep.subr.mxu0 0.0
    %3639 = vmatpush1.msra.mxu0 0.0
    %3640 = vmatprep.subr.mxu0 0.0
    %3641 = vmatpush1.msra.mxu0 0.0
    %3642 = vmatprep.subr.mxu0 0.0
    %3643 = vmatpush1.msra.mxu0 0.0
    %3644 = vmatprep.subr.mxu0 0.0
    %3645 = vmatpush1.msra.mxu0 0.0
    %3646 = vmatprep.subr.mxu0 0.0
    %3647 = vmatpush1.msra.mxu0 0.0
    %3648 = vmatprep.subr.mxu0 0.0
    %3649 = vmatpush1.msra.mxu0 0.0
    %3650 = vmatprep.subr.mxu0 0.0
    %3651 = vmatpush1.msra.mxu0 0.0
    %3652 = vmatprep.subr.mxu0 0.0
    %3653 = vmatpush1.msra.mxu0 0.0
    %3654 = vmatprep.subr.mxu0 0.0
    %3655 = vmatpush1.msra.mxu0 0.0
    %3656 = vmatprep.subr.mxu0 0.0
    %3657 = vmatpush1.msra.mxu0 0.0
    %3658 = vmatprep.mubr.f32.mxu0 0.0
    %v3659 = vand.u32 %v3178, 4294901760
    %3660 = vmatmul.mubr.f32.gmra.mrb[0].mxu0 %v3659
    %v3661 = vpop.f32.mrb[0].mxu0
    %v3662 = vadd.f32 %v3587, %v3661
    %v3663 = vpop.f32.mrb[0].mxu0
    %3664 = vdwg.mxu0
    %v3666 = vrot.slane %v3662, 6
    %v3668 = vadd.f32 %v581, %v3666
    %v3669 = vmul.f32 %v3668, 0.5
    %v3670 = vtanh.pop %v3669
    %v3671 = vadd.f32 %v3670, 1.0
    %v3672 = vmul.f32 %v3671, 0.5
    %v3673 = vtanh.pop %v3668
    %v3675 = vrot.slane %v3168, 6
    %v3677 = vmul.f32 %v3672, %v3675
    %3679 = vrot.lane.b32.xlu0 %v3673, 64
    %v3680 = vpop.permute.xlu0 %3679
    %v3682 = vmul.f32 %v3672, %v3680
    %3684 = vrot.lane.b32.xlu0 %v3682, 32
    %v3685 = vpop.permute.xlu0 %3684
    %v3687 = vadd.f32 %v3677, %v3685
    %v3688 = vtanh.pop %v3687
    %3690 = vrot.lane.b32.xlu0 %v3688, 64
    %v3691 = vpop.permute.xlu0 %3690
    %v3693 = vmul.f32 %v3672, %v3691
    %v3695 = vrot.slane %v3693, 2
    %3696 = vrot.lane.b32.xlu0 %v3695, 32
    %v3697 = vpop.permute.xlu0 %3696
    %v3698 = vsel %vm49, %v3697, 0
    %3700 = vmatprep.subr.mxu0 0.0
    %v3701 = vand.u32 %v584, 4294901760
    %3702 = vmatpush1.msra.mxu0 %v3701
    %3703 = vmatprep.subr.mxu0 0.0
    %v3704 = vand.u32 %v585, 4294901760
    %3705 = vmatpush1.msra.mxu0 %v3704
    %3706 = vmatprep.subr.mxu0 0.0
    %v3707 = vand.u32 %v586, 4294901760
    %3708 = vmatpush1.msra.mxu0 %v3707
    %3709 = vmatprep.subr.mxu0 0.0
    %v3710 = vand.u32 %v587, 4294901760
    %3711 = vmatpush1.msra.mxu0 %v3710
    %3712 = vmatprep.subr.mxu0 0.0
    %3713 = vmatpush1.msra.mxu0 0.0
    %3714 = vmatprep.subr.mxu0 0.0
    %3715 = vmatpush1.msra.mxu0 0.0
    %3716 = vmatprep.subr.mxu0 0.0
    %3717 = vmatpush1.msra.mxu0 0.0
    %3718 = vmatprep.subr.mxu0 0.0
    %3719 = vmatpush1.msra.mxu0 0.0
    %3720 = vmatprep.subr.mxu0 0.0
    %3721 = vmatpush1.msra.mxu0 0.0
    %3722 = vmatprep.subr.mxu0 0.0
    %3723 = vmatpush1.msra.mxu0 0.0
    %3724 = vmatprep.subr.mxu0 0.0
    %3725 = vmatpush1.msra.mxu0 0.0
    %3726 = vmatprep.subr.mxu0 0.0
    %3727 = vmatpush1.msra.mxu0 0.0
    %3728 = vmatprep.subr.mxu0 0.0
    %3729 = vmatpush1.msra.mxu0 0.0
    %3730 = vmatprep.subr.mxu0 0.0
    %3731 = vmatpush1.msra.mxu0 0.0
    %3732 = vmatprep.subr.mxu0 0.0
    %3733 = vmatpush1.msra.mxu0 0.0
    %3734 = vmatprep.subr.mxu0 0.0
    %3735 = vmatpush1.msra.mxu0 0.0
    %3736 = vmatprep.subr.mxu0 0.0
    %3737 = vmatpush1.msra.mxu0 0.0
    %3738 = vmatprep.subr.mxu0 0.0
    %3739 = vmatpush1.msra.mxu0 0.0
    %3740 = vmatprep.subr.mxu0 0.0
    %3741 = vmatpush1.msra.mxu0 0.0
    %3742 = vmatprep.subr.mxu0 0.0
    %3743 = vmatpush1.msra.mxu0 0.0
    %3744 = vmatprep.subr.mxu0 0.0
    %3745 = vmatpush1.msra.mxu0 0.0
    %3746 = vmatprep.subr.mxu0 0.0
    %3747 = vmatpush1.msra.mxu0 0.0
    %3748 = vmatprep.subr.mxu0 0.0
    %3749 = vmatpush1.msra.mxu0 0.0
    %3750 = vmatprep.subr.mxu0 0.0
    %3751 = vmatpush1.msra.mxu0 0.0
    %3752 = vmatprep.subr.mxu0 0.0
    %3753 = vmatpush1.msra.mxu0 0.0
    %3754 = vmatprep.subr.mxu0 0.0
    %3755 = vmatpush1.msra.mxu0 0.0
    %3756 = vmatprep.subr.mxu0 0.0
    %3757 = vmatpush1.msra.mxu0 0.0
    %3758 = vmatprep.subr.mxu0 0.0
    %3759 = vmatpush1.msra.mxu0 0.0
    %3760 = vmatprep.subr.mxu0 0.0
    %3761 = vmatpush1.msra.mxu0 0.0
    %3762 = vmatprep.subr.mxu0 0.0
    %3763 = vmatpush1.msra.mxu0 0.0
    %3764 = vmatprep.subr.mxu0 0.0
    %3765 = vmatpush1.msra.mxu0 0.0
    %3766 = vmatprep.subr.mxu0 0.0
    %3767 = vmatpush1.msra.mxu0 0.0
    %3768 = vmatprep.mubr.f32.mxu0 0.0
    %v3769 = vand.u32 %v3698, 4294901760
    %v3770 = vsub.f32 %v3698, %v3769
    %v3771 = vand.u32 %v3770, 4294901760
    %v3772 = vsub.f32 %v3770, %v3771
    %v3773 = vand.u32 %v3772, 4294901760
    %3774 = vmatmul.mubr.f32.gmra.mrb[0].mxu0 %v3773
    %v3775 = vpop.f32.mrb[0].mxu0
    %v3776 = vadd.f32 0.0, %v3775
    %v3777 = vpop.f32.mrb[0].mxu0
    %3778 = vdwg.mxu0
    %3779 = vmatprep.subr.mxu0 0.0
    %v3780 = vand.u32 %v584, 4294901760
    %v3781 = vsub.f32 %v584, %v3780
    %v3782 = vand.u32 %v3781, 4294901760
    %v3783 = vsub.f32 %v3781, %v3782
    %v3784 = vand.u32 %v3783, 4294901760
    %3785 = vmatpush1.msra.mxu0 %v3784
    %3786 = vmatprep.subr.mxu0 0.0
    %v3787 = vand.u32 %v585, 4294901760
    %v3788 = vsub.f32 %v585, %v3787
    %v3789 = vand.u32 %v3788, 4294901760
    %v3790 = vsub.f32 %v3788, %v3789
    %v3791 = vand.u32 %v3790, 4294901760
    %3792 = vmatpush1.msra.mxu0 %v3791
    %3793 = vmatprep.subr.mxu0 0.0
    %v3794 = vand.u32 %v586, 4294901760
    %v3795 = vsub.f32 %v586, %v3794
    %v3796 = vand.u32 %v3795, 4294901760
    %v3797 = vsub.f32 %v3795, %v3796
    %v3798 = vand.u32 %v3797, 4294901760
    %3799 = vmatpush1.msra.mxu0 %v3798
    %3800 = vmatprep.subr.mxu0 0.0
    %v3801 = vand.u32 %v587, 4294901760
    %v3802 = vsub.f32 %v587, %v3801
    %v3803 = vand.u32 %v3802, 4294901760
    %v3804 = vsub.f32 %v3802, %v3803
    %v3805 = vand.u32 %v3804, 4294901760
    %3806 = vmatpush1.msra.mxu0 %v3805
    %3807 = vmatprep.subr.mxu0 0.0
    %3808 = vmatpush1.msra.mxu0 0.0
    %3809 = vmatprep.subr.mxu0 0.0
    %3810 = vmatpush1.msra.mxu0 0.0
    %3811 = vmatprep.subr.mxu0 0.0
    %3812 = vmatpush1.msra.mxu0 0.0
    %3813 = vmatprep.subr.mxu0 0.0
    %3814 = vmatpush1.msra.mxu0 0.0
    %3815 = vmatprep.subr.mxu0 0.0
    %3816 = vmatpush1.msra.mxu0 0.0
    %3817 = vmatprep.subr.mxu0 0.0
    %3818 = vmatpush1.msra.mxu0 0.0
    %3819 = vmatprep.subr.mxu0 0.0
    %3820 = vmatpush1.msra.mxu0 0.0
    %3821 = vmatprep.subr.mxu0 0.0
    %3822 = vmatpush1.msra.mxu0 0.0
    %3823 = vmatprep.subr.mxu0 0.0
    %3824 = vmatpush1.msra.mxu0 0.0
    %3825 = vmatprep.subr.mxu0 0.0
    %3826 = vmatpush1.msra.mxu0 0.0
    %3827 = vmatprep.subr.mxu0 0.0
    %3828 = vmatpush1.msra.mxu0 0.0
    %3829 = vmatprep.subr.mxu0 0.0
    %3830 = vmatpush1.msra.mxu0 0.0
    %3831 = vmatprep.subr.mxu0 0.0
    %3832 = vmatpush1.msra.mxu0 0.0
    %3833 = vmatprep.subr.mxu0 0.0
    %3834 = vmatpush1.msra.mxu0 0.0
    %3835 = vmatprep.subr.mxu0 0.0
    %3836 = vmatpush1.msra.mxu0 0.0
    %3837 = vmatprep.subr.mxu0 0.0
    %3838 = vmatpush1.msra.mxu0 0.0
    %3839 = vmatprep.subr.mxu0 0.0
    %3840 = vmatpush1.msra.mxu0 0.0
    %3841 = vmatprep.subr.mxu0 0.0
    %3842 = vmatpush1.msra.mxu0 0.0
    %3843 = vmatprep.subr.mxu0 0.0
    %3844 = vmatpush1.msra.mxu0 0.0
    %3845 = vmatprep.subr.mxu0 0.0
    %3846 = vmatpush1.msra.mxu0 0.0
    %3847 = vmatprep.subr.mxu0 0.0
    %3848 = vmatpush1.msra.mxu0 0.0
    %3849 = vmatprep.subr.mxu0 0.0
    %3850 = vmatpush1.msra.mxu0 0.0
    %3851 = vmatprep.subr.mxu0 0.0
    %3852 = vmatpush1.msra.mxu0 0.0
    %3853 = vmatprep.subr.mxu0 0.0
    %3854 = vmatpush1.msra.mxu0 0.0
    %3855 = vmatprep.subr.mxu0 0.0
    %3856 = vmatpush1.msra.mxu0 0.0
    %3857 = vmatprep.subr.mxu0 0.0
    %3858 = vmatpush1.msra.mxu0 0.0
    %3859 = vmatprep.subr.mxu0 0.0
    %3860 = vmatpush1.msra.mxu0 0.0
    %3861 = vmatprep.subr.mxu0 0.0
    %3862 = vmatpush1.msra.mxu0 0.0
    %3863 = vmatprep.mubr.f32.mxu0 0.0
    %v3864 = vand.u32 %v3698, 4294901760
    %3865 = vmatmul.mubr.f32.gmra.mrb[0].mxu0 %v3864
    %v3866 = vpop.f32.mrb[0].mxu0
    %v3867 = vadd.f32 %v3776, %v3866
    %v3868 = vpop.f32.mrb[0].mxu0
    %3869 = vdwg.mxu0
    %3870 = vmatprep.subr.mxu0 0.0
    %v3871 = vand.u32 %v584, 4294901760
    %v3872 = vsub.f32 %v584, %v3871
    %3873 = vmatpush1.msra.mxu0 %v3872
    %3874 = vmatprep.subr.mxu0 0.0
    %v3875 = vand.u32 %v585, 4294901760
    %v3876 = vsub.f32 %v585, %v3875
    %3877 = vmatpush1.msra.mxu0 %v3876
    %3878 = vmatprep.subr.mxu0 0.0
    %v3879 = vand.u32 %v586, 4294901760
    %v3880 = vsub.f32 %v586, %v3879
    %3881 = vmatpush1.msra.mxu0 %v3880
    %3882 = vmatprep.subr.mxu0 0.0
    %v3883 = vand.u32 %v587, 4294901760
    %v3884 = vsub.f32 %v587, %v3883
    %3885 = vmatpush1.msra.mxu0 %v3884
    %3886 = vmatprep.subr.mxu0 0.0
    %3887 = vmatpush1.msra.mxu0 0.0
    %3888 = vmatprep.subr.mxu0 0.0
    %3889 = vmatpush1.msra.mxu0 0.0
    %3890 = vmatprep.subr.mxu0 0.0
    %3891 = vmatpush1.msra.mxu0 0.0
    %3892 = vmatprep.subr.mxu0 0.0
    %3893 = vmatpush1.msra.mxu0 0.0
    %3894 = vmatprep.subr.mxu0 0.0
    %3895 = vmatpush1.msra.mxu0 0.0
    %3896 = vmatprep.subr.mxu0 0.0
    %3897 = vmatpush1.msra.mxu0 0.0
    %3898 = vmatprep.subr.mxu0 0.0
    %3899 = vmatpush1.msra.mxu0 0.0
    %3900 = vmatprep.subr.mxu0 0.0
    %3901 = vmatpush1.msra.mxu0 0.0
    %3902 = vmatprep.subr.mxu0 0.0
    %3903 = vmatpush1.msra.mxu0 0.0
    %3904 = vmatprep.subr.mxu0 0.0
    %3905 = vmatpush1.msra.mxu0 0.0
    %3906 = vmatprep.subr.mxu0 0.0
    %3907 = vmatpush1.msra.mxu0 0.0
    %3908 = vmatprep.subr.mxu0 0.0
    %3909 = vmatpush1.msra.mxu0 0.0
    %3910 = vmatprep.subr.mxu0 0.0
    %3911 = vmatpush1.msra.mxu0 0.0
    %3912 = vmatprep.subr.mxu0 0.0
    %3913 = vmatpush1.msra.mxu0 0.0
    %3914 = vmatprep.subr.mxu0 0.0
    %3915 = vmatpush1.msra.mxu0 0.0
    %3916 = vmatprep.subr.mxu0 0.0
    %3917 = vmatpush1.msra.mxu0 0.0
    %3918 = vmatprep.subr.mxu0 0.0
    %3919 = vmatpush1.msra.mxu0 0.0
    %3920 = vmatprep.subr.mxu0 0.0
    %3921 = vmatpush1.msra.mxu0 0.0
    %3922 = vmatprep.subr.mxu0 0.0
    %3923 = vmatpush1.msra.mxu0 0.0
    %3924 = vmatprep.subr.mxu0 0.0
    %3925 = vmatpush1.msra.mxu0 0.0
    %3926 = vmatprep.subr.mxu0 0.0
    %3927 = vmatpush1.msra.mxu0 0.0
    %3928 = vmatprep.subr.mxu0 0.0
    %3929 = vmatpush1.msra.mxu0 0.0
    %3930 = vmatprep.subr.mxu0 0.0
    %3931 = vmatpush1.msra.mxu0 0.0
    %3932 = vmatprep.subr.mxu0 0.0
    %3933 = vmatpush1.msra.mxu0 0.0
    %3934 = vmatprep.subr.mxu0 0.0
    %3935 = vmatpush1.msra.mxu0 0.0
    %3936 = vmatprep.subr.mxu0 0.0
    %3937 = vmatpush1.msra.mxu0 0.0
    %3938 = vmatprep.subr.mxu0 0.0
    %3939 = vmatpush1.msra.mxu0 0.0
    %3940 = vmatprep.subr.mxu0 0.0
    %3941 = vmatpush1.msra.mxu0 0.0
    %3942 = vmatprep.mubr.f32.mxu0 0.0
    %v3943 = vand.u32 %v3698, 4294901760
    %v3944 = vsub.f32 %v3698, %v3943
    %3945 = vmatmul.mubr.f32.gmra.mrb[0].mxu0 %v3944
    %v3946 = vpop.f32.mrb[0].mxu0
    %v3947 = vadd.f32 %v3867, %v3946
    %v3948 = vpop.f32.mrb[0].mxu0
    %3949 = vdwg.mxu0
    %3950 = vmatprep.subr.mxu0 0.0
    %v3951 = vand.u32 %v584, 4294901760
    %3952 = vmatpush1.msra.mxu0 %v3951
    %3953 = vmatprep.subr.mxu0 0.0
    %v3954 = vand.u32 %v585, 4294901760
    %3955 = vmatpush1.msra.mxu0 %v3954
    %3956 = vmatprep.subr.mxu0 0.0
    %v3957 = vand.u32 %v586, 4294901760
    %3958 = vmatpush1.msra.mxu0 %v3957
    %3959 = vmatprep.subr.mxu0 0.0
    %v3960 = vand.u32 %v587, 4294901760
    %3961 = vmatpush1.msra.mxu0 %v3960
    %3962 = vmatprep.subr.mxu0 0.0
    %3963 = vmatpush1.msra.mxu0 0.0
    %3964 = vmatprep.subr.mxu0 0.0
    %3965 = vmatpush1.msra.mxu0 0.0
    %3966 = vmatprep.subr.mxu0 0.0
    %3967 = vmatpush1.msra.mxu0 0.0
    %3968 = vmatprep.subr.mxu0 0.0
    %3969 = vmatpush1.msra.mxu0 0.0
    %3970 = vmatprep.subr.mxu0 0.0
    %3971 = vmatpush1.msra.mxu0 0.0
    %3972 = vmatprep.subr.mxu0 0.0
    %3973 = vmatpush1.msra.mxu0 0.0
    %3974 = vmatprep.subr.mxu0 0.0
    %3975 = vmatpush1.msra.mxu0 0.0
    %3976 = vmatprep.subr.mxu0 0.0
    %3977 = vmatpush1.msra.mxu0 0.0
    %3978 = vmatprep.subr.mxu0 0.0
    %3979 = vmatpush1.msra.mxu0 0.0
    %3980 = vmatprep.subr.mxu0 0.0
    %3981 = vmatpush1.msra.mxu0 0.0
    %3982 = vmatprep.subr.mxu0 0.0
    %3983 = vmatpush1.msra.mxu0 0.0
    %3984 = vmatprep.subr.mxu0 0.0
    %3985 = vmatpush1.msra.mxu0 0.0
    %3986 = vmatprep.subr.mxu0 0.0
    %3987 = vmatpush1.msra.mxu0 0.0
    %3988 = vmatprep.subr.mxu0 0.0
    %3989 = vmatpush1.msra.mxu0 0.0
    %3990 = vmatprep.subr.mxu0 0.0
    %3991 = vmatpush1.msra.mxu0 0.0
    %3992 = vmatprep.subr.mxu0 0.0
    %3993 = vmatpush1.msra.mxu0 0.0
    %3994 = vmatprep.subr.mxu0 0.0
    %3995 = vmatpush1.msra.mxu0 0.0
    %3996 = vmatprep.subr.mxu0 0.0
    %3997 = vmatpush1.msra.mxu0 0.0
    %3998 = vmatprep.subr.mxu0 0.0
    %3999 = vmatpush1.msra.mxu0 0.0
    %4000 = vmatprep.subr.mxu0 0.0
    %4001 = vmatpush1.msra.mxu0 0.0
    %4002 = vmatprep.subr.mxu0 0.0
    %4003 = vmatpush1.msra.mxu0 0.0
    %4004 = vmatprep.subr.mxu0 0.0
    %4005 = vmatpush1.msra.mxu0 0.0
    %4006 = vmatprep.subr.mxu0 0.0
    %4007 = vmatpush1.msra.mxu0 0.0
    %4008 = vmatprep.subr.mxu0 0.0
    %4009 = vmatpush1.msra.mxu0 0.0
    %4010 = vmatprep.subr.mxu0 0.0
    %4011 = vmatpush1.msra.mxu0 0.0
    %4012 = vmatprep.subr.mxu0 0.0
    %4013 = vmatpush1.msra.mxu0 0.0
    %4014 = vmatprep.subr.mxu0 0.0
    %4015 = vmatpush1.msra.mxu0 0.0
    %4016 = vmatprep.subr.mxu0 0.0
    %4017 = vmatpush1.msra.mxu0 0.0
    %4018 = vmatprep.mubr.f32.mxu0 0.0
    %v4019 = vand.u32 %v3698, 4294901760
    %v4020 = vsub.f32 %v3698, %v4019
    %v4021 = vand.u32 %v4020, 4294901760
    %4022 = vmatmul.mubr.f32.gmra.mrb[0].mxu0 %v4021
    %v4023 = vpop.f32.mrb[0].mxu0
    %v4024 = vadd.f32 %v3947, %v4023
    %v4025 = vpop.f32.mrb[0].mxu0
    %4026 = vdwg.mxu0
    %4027 = vmatprep.subr.mxu0 0.0
    %v4028 = vand.u32 %v584, 4294901760
    %v4029 = vsub.f32 %v584, %v4028
    %v4030 = vand.u32 %v4029, 4294901760
    %4031 = vmatpush1.msra.mxu0 %v4030
    %4032 = vmatprep.subr.mxu0 0.0
    %v4033 = vand.u32 %v585, 4294901760
    %v4034 = vsub.f32 %v585, %v4033
    %v4035 = vand.u32 %v4034, 4294901760
    %4036 = vmatpush1.msra.mxu0 %v4035
    %4037 = vmatprep.subr.mxu0 0.0
    %v4038 = vand.u32 %v586, 4294901760
    %v4039 = vsub.f32 %v586, %v4038
    %v4040 = vand.u32 %v4039, 4294901760
    %4041 = vmatpush1.msra.mxu0 %v4040
    %4042 = vmatprep.subr.mxu0 0.0
    %v4043 = vand.u32 %v587, 4294901760
    %v4044 = vsub.f32 %v587, %v4043
    %v4045 = vand.u32 %v4044, 4294901760
    %4046 = vmatpush1.msra.mxu0 %v4045
    %4047 = vmatprep.subr.mxu0 0.0
    %4048 = vmatpush1.msra.mxu0 0.0
    %4049 = vmatprep.subr.mxu0 0.0
    %4050 = vmatpush1.msra.mxu0 0.0
    %4051 = vmatprep.subr.mxu0 0.0
    %4052 = vmatpush1.msra.mxu0 0.0
    %4053 = vmatprep.subr.mxu0 0.0
    %4054 = vmatpush1.msra.mxu0 0.0
    %4055 = vmatprep.subr.mxu0 0.0
    %4056 = vmatpush1.msra.mxu0 0.0
    %4057 = vmatprep.subr.mxu0 0.0
    %4058 = vmatpush1.msra.mxu0 0.0
    %4059 = vmatprep.subr.mxu0 0.0
    %4060 = vmatpush1.msra.mxu0 0.0
    %4061 = vmatprep.subr.mxu0 0.0
    %4062 = vmatpush1.msra.mxu0 0.0
    %4063 = vmatprep.subr.mxu0 0.0
    %4064 = vmatpush1.msra.mxu0 0.0
    %4065 = vmatprep.subr.mxu0 0.0
    %4066 = vmatpush1.msra.mxu0 0.0
    %4067 = vmatprep.subr.mxu0 0.0
    %4068 = vmatpush1.msra.mxu0 0.0
    %4069 = vmatprep.subr.mxu0 0.0
    %4070 = vmatpush1.msra.mxu0 0.0
    %4071 = vmatprep.subr.mxu0 0.0
    %4072 = vmatpush1.msra.mxu0 0.0
    %4073 = vmatprep.subr.mxu0 0.0
    %4074 = vmatpush1.msra.mxu0 0.0
    %4075 = vmatprep.subr.mxu0 0.0
    %4076 = vmatpush1.msra.mxu0 0.0
    %4077 = vmatprep.subr.mxu0 0.0
    %4078 = vmatpush1.msra.mxu0 0.0
    %4079 = vmatprep.subr.mxu0 0.0
    %4080 = vmatpush1.msra.mxu0 0.0
    %4081 = vmatprep.subr.mxu0 0.0
    %4082 = vmatpush1.msra.mxu0 0.0
    %4083 = vmatprep.subr.mxu0 0.0
    %4084 = vmatpush1.msra.mxu0 0.0
    %4085 = vmatprep.subr.mxu0 0.0
    %4086 = vmatpush1.msra.mxu0 0.0
    %4087 = vmatprep.subr.mxu0 0.0
    %4088 = vmatpush1.msra.mxu0 0.0
    %4089 = vmatprep.subr.mxu0 0.0
    %4090 = vmatpush1.msra.mxu0 0.0
    %4091 = vmatprep.subr.mxu0 0.0
    %4092 = vmatpush1.msra.mxu0 0.0
    %4093 = vmatprep.subr.mxu0 0.0
    %4094 = vmatpush1.msra.mxu0 0.0
    %4095 = vmatprep.subr.mxu0 0.0
    %4096 = vmatpush1.msra.mxu0 0.0
    %4097 = vmatprep.subr.mxu0 0.0
    %4098 = vmatpush1.msra.mxu0 0.0
    %4099 = vmatprep.subr.mxu0 0.0
    %4100 = vmatpush1.msra.mxu0 0.0
    %4101 = vmatprep.subr.mxu0 0.0
    %4102 = vmatpush1.msra.mxu0 0.0
    %4103 = vmatprep.mubr.f32.mxu0 0.0
    %v4104 = vand.u32 %v3698, 4294901760
    %4105 = vmatmul.mubr.f32.gmra.mrb[0].mxu0 %v4104
    %v4106 = vpop.f32.mrb[0].mxu0
    %v4107 = vadd.f32 %v4024, %v4106
    %v4108 = vpop.f32.mrb[0].mxu0
    %4109 = vdwg.mxu0
    %4110 = vmatprep.subr.mxu0 0.0
    %v4111 = vand.u32 %v584, 4294901760
    %4112 = vmatpush1.msra.mxu0 %v4111
    %4113 = vmatprep.subr.mxu0 0.0
    %v4114 = vand.u32 %v585, 4294901760
    %4115 = vmatpush1.msra.mxu0 %v4114
    %4116 = vmatprep.subr.mxu0 0.0
    %v4117 = vand.u32 %v586, 4294901760
    %4118 = vmatpush1.msra.mxu0 %v4117
    %4119 = vmatprep.subr.mxu0 0.0
    %v4120 = vand.u32 %v587, 4294901760
    %4121 = vmatpush1.msra.mxu0 %v4120
    %4122 = vmatprep.subr.mxu0 0.0
    %4123 = vmatpush1.msra.mxu0 0.0
    %4124 = vmatprep.subr.mxu0 0.0
    %4125 = vmatpush1.msra.mxu0 0.0
    %4126 = vmatprep.subr.mxu0 0.0
    %4127 = vmatpush1.msra.mxu0 0.0
    %4128 = vmatprep.subr.mxu0 0.0
    %4129 = vmatpush1.msra.mxu0 0.0
    %4130 = vmatprep.subr.mxu0 0.0
    %4131 = vmatpush1.msra.mxu0 0.0
    %4132 = vmatprep.subr.mxu0 0.0
    %4133 = vmatpush1.msra.mxu0 0.0
    %4134 = vmatprep.subr.mxu0 0.0
    %4135 = vmatpush1.msra.mxu0 0.0
    %4136 = vmatprep.subr.mxu0 0.0
    %4137 = vmatpush1.msra.mxu0 0.0
    %4138 = vmatprep.subr.mxu0 0.0
    %4139 = vmatpush1.msra.mxu0 0.0
    %4140 = vmatprep.subr.mxu0 0.0
    %4141 = vmatpush1.msra.mxu0 0.0
    %4142 = vmatprep.subr.mxu0 0.0
    %4143 = vmatpush1.msra.mxu0 0.0
    %4144 = vmatprep.subr.mxu0 0.0
    %4145 = vmatpush1.msra.mxu0 0.0
    %4146 = vmatprep.subr.mxu0 0.0
    %4147 = vmatpush1.msra.mxu0 0.0
    %4148 = vmatprep.subr.mxu0 0.0
    %4149 = vmatpush1.msra.mxu0 0.0
    %4150 = vmatprep.subr.mxu0 0.0
    %4151 = vmatpush1.msra.mxu0 0.0
    %4152 = vmatprep.subr.mxu0 0.0
    %4153 = vmatpush1.msra.mxu0 0.0
    %4154 = vmatprep.subr.mxu0 0.0
    %4155 = vmatpush1.msra.mxu0 0.0
    %4156 = vmatprep.subr.mxu0 0.0
    %4157 = vmatpush1.msra.mxu0 0.0
    %4158 = vmatprep.subr.mxu0 0.0
    %4159 = vmatpush1.msra.mxu0 0.0
    %4160 = vmatprep.subr.mxu0 0.0
    %4161 = vmatpush1.msra.mxu0 0.0
    %4162 = vmatprep.subr.mxu0 0.0
    %4163 = vmatpush1.msra.mxu0 0.0
    %4164 = vmatprep.subr.mxu0 0.0
    %4165 = vmatpush1.msra.mxu0 0.0
    %4166 = vmatprep.subr.mxu0 0.0
    %4167 = vmatpush1.msra.mxu0 0.0
    %4168 = vmatprep.subr.mxu0 0.0
    %4169 = vmatpush1.msra.mxu0 0.0
    %4170 = vmatprep.subr.mxu0 0.0
    %4171 = vmatpush1.msra.mxu0 0.0
    %4172 = vmatprep.subr.mxu0 0.0
    %4173 = vmatpush1.msra.mxu0 0.0
    %4174 = vmatprep.subr.mxu0 0.0
    %4175 = vmatpush1.msra.mxu0 0.0
    %4176 = vmatprep.subr.mxu0 0.0
    %4177 = vmatpush1.msra.mxu0 0.0
    %4178 = vmatprep.mubr.f32.mxu0 0.0
    %v4179 = vand.u32 %v3698, 4294901760
    %4180 = vmatmul.mubr.f32.gmra.mrb[0].mxu0 %v4179
    %v4181 = vpop.f32.mrb[0].mxu0
    %v4182 = vadd.f32 %v4107, %v4181
    %v4183 = vpop.f32.mrb[0].mxu0
    %4184 = vdwg.mxu0
    %v4186 = vrot.slane %v4182, 4
    %v4188 = vadd.f32 %v581, %v4186
    %v4189 = vmul.f32 %v4188, 0.5
    %v4190 = vtanh.pop %v4189
    %v4191 = vadd.f32 %v4190, 1.0
    %v4192 = vmul.f32 %v4191, 0.5
    %v4193 = vtanh.pop %v4188
    %v4195 = vrot.slane %v3687, 6
    %v4197 = vmul.f32 %v4192, %v4195
    %4199 = vrot.lane.b32.xlu0 %v4193, 64
    %v4200 = vpop.permute.xlu0 %4199
    %v4202 = vmul.f32 %v4192, %v4200
    %4204 = vrot.lane.b32.xlu0 %v4202, 32
    %v4205 = vpop.permute.xlu0 %4204
    %v4207 = vadd.f32 %v4197, %v4205
    %v4208 = vtanh.pop %v4207
    %4210 = vrot.lane.b32.xlu0 %v4208, 64
    %v4211 = vpop.permute.xlu0 %4210
    %v4213 = vmul.f32 %v4192, %v4211
    %v4215 = vrot.slane %v4213, 4
    %4216 = vrot.lane.b32.xlu0 %v4215, 32
    %v4217 = vpop.permute.xlu0 %4216
    %v4218 = vsel %vm49, %v4217, 0
    %4220 = vmatprep.subr.mxu0 0.0
    %v4221 = vand.u32 %v584, 4294901760
    %4222 = vmatpush1.msra.mxu0 %v4221
    %4223 = vmatprep.subr.mxu0 0.0
    %v4224 = vand.u32 %v585, 4294901760
    %4225 = vmatpush1.msra.mxu0 %v4224
    %4226 = vmatprep.subr.mxu0 0.0
    %v4227 = vand.u32 %v586, 4294901760
    %4228 = vmatpush1.msra.mxu0 %v4227
    %4229 = vmatprep.subr.mxu0 0.0
    %v4230 = vand.u32 %v587, 4294901760
    %4231 = vmatpush1.msra.mxu0 %v4230
    %4232 = vmatprep.subr.mxu0 0.0
    %4233 = vmatpush1.msra.mxu0 0.0
    %4234 = vmatprep.subr.mxu0 0.0
    %4235 = vmatpush1.msra.mxu0 0.0
    %4236 = vmatprep.subr.mxu0 0.0
    %4237 = vmatpush1.msra.mxu0 0.0
    %4238 = vmatprep.subr.mxu0 0.0
    %4239 = vmatpush1.msra.mxu0 0.0
    %4240 = vmatprep.subr.mxu0 0.0
    %4241 = vmatpush1.msra.mxu0 0.0
    %4242 = vmatprep.subr.mxu0 0.0
    %4243 = vmatpush1.msra.mxu0 0.0
    %4244 = vmatprep.subr.mxu0 0.0
    %4245 = vmatpush1.msra.mxu0 0.0
    %4246 = vmatprep.subr.mxu0 0.0
    %4247 = vmatpush1.msra.mxu0 0.0
    %4248 = vmatprep.subr.mxu0 0.0
    %4249 = vmatpush1.msra.mxu0 0.0
    %4250 = vmatprep.subr.mxu0 0.0
    %4251 = vmatpush1.msra.mxu0 0.0
    %4252 = vmatprep.subr.mxu0 0.0
    %4253 = vmatpush1.msra.mxu0 0.0
    %4254 = vmatprep.subr.mxu0 0.0
    %4255 = vmatpush1.msra.mxu0 0.0
    %4256 = vmatprep.subr.mxu0 0.0
    %4257 = vmatpush1.msra.mxu0 0.0
    %4258 = vmatprep.subr.mxu0 0.0
    %4259 = vmatpush1.msra.mxu0 0.0
    %4260 = vmatprep.subr.mxu0 0.0
    %4261 = vmatpush1.msra.mxu0 0.0
    %4262 = vmatprep.subr.mxu0 0.0
    %4263 = vmatpush1.msra.mxu0 0.0
    %4264 = vmatprep.subr.mxu0 0.0
    %4265 = vmatpush1.msra.mxu0 0.0
    %4266 = vmatprep.subr.mxu0 0.0
    %4267 = vmatpush1.msra.mxu0 0.0
    %4268 = vmatprep.subr.mxu0 0.0
    %4269 = vmatpush1.msra.mxu0 0.0
    %4270 = vmatprep.subr.mxu0 0.0
    %4271 = vmatpush1.msra.mxu0 0.0
    %4272 = vmatprep.subr.mxu0 0.0
    %4273 = vmatpush1.msra.mxu0 0.0
    %4274 = vmatprep.subr.mxu0 0.0
    %4275 = vmatpush1.msra.mxu0 0.0
    %4276 = vmatprep.subr.mxu0 0.0
    %4277 = vmatpush1.msra.mxu0 0.0
    %4278 = vmatprep.subr.mxu0 0.0
    %4279 = vmatpush1.msra.mxu0 0.0
    %4280 = vmatprep.subr.mxu0 0.0
    %4281 = vmatpush1.msra.mxu0 0.0
    %4282 = vmatprep.subr.mxu0 0.0
    %4283 = vmatpush1.msra.mxu0 0.0
    %4284 = vmatprep.subr.mxu0 0.0
    %4285 = vmatpush1.msra.mxu0 0.0
    %4286 = vmatprep.subr.mxu0 0.0
    %4287 = vmatpush1.msra.mxu0 0.0
    %4288 = vmatprep.mubr.f32.mxu0 0.0
    %v4289 = vand.u32 %v4218, 4294901760
    %v4290 = vsub.f32 %v4218, %v4289
    %v4291 = vand.u32 %v4290, 4294901760
    %v4292 = vsub.f32 %v4290, %v4291
    %v4293 = vand.u32 %v4292, 4294901760
    %4294 = vmatmul.mubr.f32.gmra.mrb[0].mxu0 %v4293
    %v4295 = vpop.f32.mrb[0].mxu0
    %v4296 = vadd.f32 0.0, %v4295
    %v4297 = vpop.f32.mrb[0].mxu0
    %4298 = vdwg.mxu0
    %4299 = vmatprep.subr.mxu0 0.0
    %v4300 = vand.u32 %v584, 4294901760
    %v4301 = vsub.f32 %v584, %v4300
    %v4302 = vand.u32 %v4301, 4294901760
    %v4303 = vsub.f32 %v4301, %v4302
    %v4304 = vand.u32 %v4303, 4294901760
    %4305 = vmatpush1.msra.mxu0 %v4304
    %4306 = vmatprep.subr.mxu0 0.0
    %v4307 = vand.u32 %v585, 4294901760
    %v4308 = vsub.f32 %v585, %v4307
    %v4309 = vand.u32 %v4308, 4294901760
    %v4310 = vsub.f32 %v4308, %v4309
    %v4311 = vand.u32 %v4310, 4294901760
    %4312 = vmatpush1.msra.mxu0 %v4311
    %4313 = vmatprep.subr.mxu0 0.0
    %v4314 = vand.u32 %v586, 4294901760
    %v4315 = vsub.f32 %v586, %v4314
    %v4316 = vand.u32 %v4315, 4294901760
    %v4317 = vsub.f32 %v4315, %v4316
    %v4318 = vand.u32 %v4317, 4294901760
    %4319 = vmatpush1.msra.mxu0 %v4318
    %4320 = vmatprep.subr.mxu0 0.0
    %v4321 = vand.u32 %v587, 4294901760
    %v4322 = vsub.f32 %v587, %v4321
    %v4323 = vand.u32 %v4322, 4294901760
    %v4324 = vsub.f32 %v4322, %v4323
    %v4325 = vand.u32 %v4324, 4294901760
    %4326 = vmatpush1.msra.mxu0 %v4325
    %4327 = vmatprep.subr.mxu0 0.0
    %4328 = vmatpush1.msra.mxu0 0.0
    %4329 = vmatprep.subr.mxu0 0.0
    %4330 = vmatpush1.msra.mxu0 0.0
    %4331 = vmatprep.subr.mxu0 0.0
    %4332 = vmatpush1.msra.mxu0 0.0
    %4333 = vmatprep.subr.mxu0 0.0
    %4334 = vmatpush1.msra.mxu0 0.0
    %4335 = vmatprep.subr.mxu0 0.0
    %4336 = vmatpush1.msra.mxu0 0.0
    %4337 = vmatprep.subr.mxu0 0.0
    %4338 = vmatpush1.msra.mxu0 0.0
    %4339 = vmatprep.subr.mxu0 0.0
    %4340 = vmatpush1.msra.mxu0 0.0
    %4341 = vmatprep.subr.mxu0 0.0
    %4342 = vmatpush1.msra.mxu0 0.0
    %4343 = vmatprep.subr.mxu0 0.0
    %4344 = vmatpush1.msra.mxu0 0.0
    %4345 = vmatprep.subr.mxu0 0.0
    %4346 = vmatpush1.msra.mxu0 0.0
    %4347 = vmatprep.subr.mxu0 0.0
    %4348 = vmatpush1.msra.mxu0 0.0
    %4349 = vmatprep.subr.mxu0 0.0
    %4350 = vmatpush1.msra.mxu0 0.0
    %4351 = vmatprep.subr.mxu0 0.0
    %4352 = vmatpush1.msra.mxu0 0.0
    %4353 = vmatprep.subr.mxu0 0.0
    %4354 = vmatpush1.msra.mxu0 0.0
    %4355 = vmatprep.subr.mxu0 0.0
    %4356 = vmatpush1.msra.mxu0 0.0
    %4357 = vmatprep.subr.mxu0 0.0
    %4358 = vmatpush1.msra.mxu0 0.0
    %4359 = vmatprep.subr.mxu0 0.0
    %4360 = vmatpush1.msra.mxu0 0.0
    %4361 = vmatprep.subr.mxu0 0.0
    %4362 = vmatpush1.msra.mxu0 0.0
    %4363 = vmatprep.subr.mxu0 0.0
    %4364 = vmatpush1.msra.mxu0 0.0
    %4365 = vmatprep.subr.mxu0 0.0
    %4366 = vmatpush1.msra.mxu0 0.0
    %4367 = vmatprep.subr.mxu0 0.0
    %4368 = vmatpush1.msra.mxu0 0.0
    %4369 = vmatprep.subr.mxu0 0.0
    %4370 = vmatpush1.msra.mxu0 0.0
    %4371 = vmatprep.subr.mxu0 0.0
    %4372 = vmatpush1.msra.mxu0 0.0
    %4373 = vmatprep.subr.mxu0 0.0
    %4374 = vmatpush1.msra.mxu0 0.0
    %4375 = vmatprep.subr.mxu0 0.0
    %4376 = vmatpush1.msra.mxu0 0.0
    %4377 = vmatprep.subr.mxu0 0.0
    %4378 = vmatpush1.msra.mxu0 0.0
    %4379 = vmatprep.subr.mxu0 0.0
    %4380 = vmatpush1.msra.mxu0 0.0
    %4381 = vmatprep.subr.mxu0 0.0
    %4382 = vmatpush1.msra.mxu0 0.0
    %4383 = vmatprep.mubr.f32.mxu0 0.0
    %v4384 = vand.u32 %v4218, 4294901760
    %4385 = vmatmul.mubr.f32.gmra.mrb[0].mxu0 %v4384
    %v4386 = vpop.f32.mrb[0].mxu0
    %v4387 = vadd.f32 %v4296, %v4386
    %v4388 = vpop.f32.mrb[0].mxu0
    %4389 = vdwg.mxu0
    %4390 = vmatprep.subr.mxu0 0.0
    %v4391 = vand.u32 %v584, 4294901760
    %v4392 = vsub.f32 %v584, %v4391
    %4393 = vmatpush1.msra.mxu0 %v4392
    %4394 = vmatprep.subr.mxu0 0.0
    %v4395 = vand.u32 %v585, 4294901760
    %v4396 = vsub.f32 %v585, %v4395
    %4397 = vmatpush1.msra.mxu0 %v4396
    %4398 = vmatprep.subr.mxu0 0.0
    %v4399 = vand.u32 %v586, 4294901760
    %v4400 = vsub.f32 %v586, %v4399
    %4401 = vmatpush1.msra.mxu0 %v4400
    %4402 = vmatprep.subr.mxu0 0.0
    %v4403 = vand.u32 %v587, 4294901760
    %v4404 = vsub.f32 %v587, %v4403
    %4405 = vmatpush1.msra.mxu0 %v4404
    %4406 = vmatprep.subr.mxu0 0.0
    %4407 = vmatpush1.msra.mxu0 0.0
    %4408 = vmatprep.subr.mxu0 0.0
    %4409 = vmatpush1.msra.mxu0 0.0
    %4410 = vmatprep.subr.mxu0 0.0
    %4411 = vmatpush1.msra.mxu0 0.0
    %4412 = vmatprep.subr.mxu0 0.0
    %4413 = vmatpush1.msra.mxu0 0.0
    %4414 = vmatprep.subr.mxu0 0.0
    %4415 = vmatpush1.msra.mxu0 0.0
    %4416 = vmatprep.subr.mxu0 0.0
    %4417 = vmatpush1.msra.mxu0 0.0
    %4418 = vmatprep.subr.mxu0 0.0
    %4419 = vmatpush1.msra.mxu0 0.0
    %4420 = vmatprep.subr.mxu0 0.0
    %4421 = vmatpush1.msra.mxu0 0.0
    %4422 = vmatprep.subr.mxu0 0.0
    %4423 = vmatpush1.msra.mxu0 0.0
    %4424 = vmatprep.subr.mxu0 0.0
    %4425 = vmatpush1.msra.mxu0 0.0
    %4426 = vmatprep.subr.mxu0 0.0
    %4427 = vmatpush1.msra.mxu0 0.0
    %4428 = vmatprep.subr.mxu0 0.0
    %4429 = vmatpush1.msra.mxu0 0.0
    %4430 = vmatprep.subr.mxu0 0.0
    %4431 = vmatpush1.msra.mxu0 0.0
    %4432 = vmatprep.subr.mxu0 0.0
    %4433 = vmatpush1.msra.mxu0 0.0
    %4434 = vmatprep.subr.mxu0 0.0
    %4435 = vmatpush1.msra.mxu0 0.0
    %4436 = vmatprep.subr.mxu0 0.0
    %4437 = vmatpush1.msra.mxu0 0.0
    %4438 = vmatprep.subr.mxu0 0.0
    %4439 = vmatpush1.msra.mxu0 0.0
    %4440 = vmatprep.subr.mxu0 0.0
    %4441 = vmatpush1.msra.mxu0 0.0
    %4442 = vmatprep.subr.mxu0 0.0
    %4443 = vmatpush1.msra.mxu0 0.0
    %4444 = vmatprep.subr.mxu0 0.0
    %4445 = vmatpush1.msra.mxu0 0.0
    %4446 = vmatprep.subr.mxu0 0.0
    %4447 = vmatpush1.msra.mxu0 0.0
    %4448 = vmatprep.subr.mxu0 0.0
    %4449 = vmatpush1.msra.mxu0 0.0
    %4450 = vmatprep.subr.mxu0 0.0
    %4451 = vmatpush1.msra.mxu0 0.0
    %4452 = vmatprep.subr.mxu0 0.0
    %4453 = vmatpush1.msra.mxu0 0.0
    %4454 = vmatprep.subr.mxu0 0.0
    %4455 = vmatpush1.msra.mxu0 0.0
    %4456 = vmatprep.subr.mxu0 0.0
    %4457 = vmatpush1.msra.mxu0 0.0
    %4458 = vmatprep.subr.mxu0 0.0
    %4459 = vmatpush1.msra.mxu0 0.0
    %4460 = vmatprep.subr.mxu0 0.0
    %4461 = vmatpush1.msra.mxu0 0.0
    %4462 = vmatprep.mubr.f32.mxu0 0.0
    %v4463 = vand.u32 %v4218, 4294901760
    %v4464 = vsub.f32 %v4218, %v4463
    %4465 = vmatmul.mubr.f32.gmra.mrb[0].mxu0 %v4464
    %v4466 = vpop.f32.mrb[0].mxu0
    %v4467 = vadd.f32 %v4387, %v4466
    %v4468 = vpop.f32.mrb[0].mxu0
    %4469 = vdwg.mxu0
    %4470 = vmatprep.subr.mxu0 0.0
    %v4471 = vand.u32 %v584, 4294901760
    %4472 = vmatpush1.msra.mxu0 %v4471
    %4473 = vmatprep.subr.mxu0 0.0
    %v4474 = vand.u32 %v585, 4294901760
    %4475 = vmatpush1.msra.mxu0 %v4474
    %4476 = vmatprep.subr.mxu0 0.0
    %v4477 = vand.u32 %v586, 4294901760
    %4478 = vmatpush1.msra.mxu0 %v4477
    %4479 = vmatprep.subr.mxu0 0.0
    %v4480 = vand.u32 %v587, 4294901760
    %4481 = vmatpush1.msra.mxu0 %v4480
    %4482 = vmatprep.subr.mxu0 0.0
    %4483 = vmatpush1.msra.mxu0 0.0
    %4484 = vmatprep.subr.mxu0 0.0
    %4485 = vmatpush1.msra.mxu0 0.0
    %4486 = vmatprep.subr.mxu0 0.0
    %4487 = vmatpush1.msra.mxu0 0.0
    %4488 = vmatprep.subr.mxu0 0.0
    %4489 = vmatpush1.msra.mxu0 0.0
    %4490 = vmatprep.subr.mxu0 0.0
    %4491 = vmatpush1.msra.mxu0 0.0
    %4492 = vmatprep.subr.mxu0 0.0
    %4493 = vmatpush1.msra.mxu0 0.0
    %4494 = vmatprep.subr.mxu0 0.0
    %4495 = vmatpush1.msra.mxu0 0.0
    %4496 = vmatprep.subr.mxu0 0.0
    %4497 = vmatpush1.msra.mxu0 0.0
    %4498 = vmatprep.subr.mxu0 0.0
    %4499 = vmatpush1.msra.mxu0 0.0
    %4500 = vmatprep.subr.mxu0 0.0
    %4501 = vmatpush1.msra.mxu0 0.0
    %4502 = vmatprep.subr.mxu0 0.0
    %4503 = vmatpush1.msra.mxu0 0.0
    %4504 = vmatprep.subr.mxu0 0.0
    %4505 = vmatpush1.msra.mxu0 0.0
    %4506 = vmatprep.subr.mxu0 0.0
    %4507 = vmatpush1.msra.mxu0 0.0
    %4508 = vmatprep.subr.mxu0 0.0
    %4509 = vmatpush1.msra.mxu0 0.0
    %4510 = vmatprep.subr.mxu0 0.0
    %4511 = vmatpush1.msra.mxu0 0.0
    %4512 = vmatprep.subr.mxu0 0.0
    %4513 = vmatpush1.msra.mxu0 0.0
    %4514 = vmatprep.subr.mxu0 0.0
    %4515 = vmatpush1.msra.mxu0 0.0
    %4516 = vmatprep.subr.mxu0 0.0
    %4517 = vmatpush1.msra.mxu0 0.0
    %4518 = vmatprep.subr.mxu0 0.0
    %4519 = vmatpush1.msra.mxu0 0.0
    %4520 = vmatprep.subr.mxu0 0.0
    %4521 = vmatpush1.msra.mxu0 0.0
    %4522 = vmatprep.subr.mxu0 0.0
    %4523 = vmatpush1.msra.mxu0 0.0
    %4524 = vmatprep.subr.mxu0 0.0
    %4525 = vmatpush1.msra.mxu0 0.0
    %4526 = vmatprep.subr.mxu0 0.0
    %4527 = vmatpush1.msra.mxu0 0.0
    %4528 = vmatprep.subr.mxu0 0.0
    %4529 = vmatpush1.msra.mxu0 0.0
    %4530 = vmatprep.subr.mxu0 0.0
    %4531 = vmatpush1.msra.mxu0 0.0
    %4532 = vmatprep.subr.mxu0 0.0
    %4533 = vmatpush1.msra.mxu0 0.0
    %4534 = vmatprep.subr.mxu0 0.0
    %4535 = vmatpush1.msra.mxu0 0.0
    %4536 = vmatprep.subr.mxu0 0.0
    %4537 = vmatpush1.msra.mxu0 0.0
    %4538 = vmatprep.mubr.f32.mxu0 0.0
    %v4539 = vand.u32 %v4218, 4294901760
    %v4540 = vsub.f32 %v4218, %v4539
    %v4541 = vand.u32 %v4540, 4294901760
    %4542 = vmatmul.mubr.f32.gmra.mrb[0].mxu0 %v4541
    %v4543 = vpop.f32.mrb[0].mxu0
    %v4544 = vadd.f32 %v4467, %v4543
    %v4545 = vpop.f32.mrb[0].mxu0
    %4546 = vdwg.mxu0
    %4547 = vmatprep.subr.mxu0 0.0
    %v4548 = vand.u32 %v584, 4294901760
    %v4549 = vsub.f32 %v584, %v4548
    %v4550 = vand.u32 %v4549, 4294901760
    %4551 = vmatpush1.msra.mxu0 %v4550
    %4552 = vmatprep.subr.mxu0 0.0
    %v4553 = vand.u32 %v585, 4294901760
    %v4554 = vsub.f32 %v585, %v4553
    %v4555 = vand.u32 %v4554, 4294901760
    %4556 = vmatpush1.msra.mxu0 %v4555
    %4557 = vmatprep.subr.mxu0 0.0
    %v4558 = vand.u32 %v586, 4294901760
    %v4559 = vsub.f32 %v586, %v4558
    %v4560 = vand.u32 %v4559, 4294901760
    %4561 = vmatpush1.msra.mxu0 %v4560
    %4562 = vmatprep.subr.mxu0 0.0
    %v4563 = vand.u32 %v587, 4294901760
    %v4564 = vsub.f32 %v587, %v4563
    %v4565 = vand.u32 %v4564, 4294901760
    %4566 = vmatpush1.msra.mxu0 %v4565
    %4567 = vmatprep.subr.mxu0 0.0
    %4568 = vmatpush1.msra.mxu0 0.0
    %4569 = vmatprep.subr.mxu0 0.0
    %4570 = vmatpush1.msra.mxu0 0.0
    %4571 = vmatprep.subr.mxu0 0.0
    %4572 = vmatpush1.msra.mxu0 0.0
    %4573 = vmatprep.subr.mxu0 0.0
    %4574 = vmatpush1.msra.mxu0 0.0
    %4575 = vmatprep.subr.mxu0 0.0
    %4576 = vmatpush1.msra.mxu0 0.0
    %4577 = vmatprep.subr.mxu0 0.0
    %4578 = vmatpush1.msra.mxu0 0.0
    %4579 = vmatprep.subr.mxu0 0.0
    %4580 = vmatpush1.msra.mxu0 0.0
    %4581 = vmatprep.subr.mxu0 0.0
    %4582 = vmatpush1.msra.mxu0 0.0
    %4583 = vmatprep.subr.mxu0 0.0
    %4584 = vmatpush1.msra.mxu0 0.0
    %4585 = vmatprep.subr.mxu0 0.0
    %4586 = vmatpush1.msra.mxu0 0.0
    %4587 = vmatprep.subr.mxu0 0.0
    %4588 = vmatpush1.msra.mxu0 0.0
    %4589 = vmatprep.subr.mxu0 0.0
    %4590 = vmatpush1.msra.mxu0 0.0
    %4591 = vmatprep.subr.mxu0 0.0
    %4592 = vmatpush1.msra.mxu0 0.0
    %4593 = vmatprep.subr.mxu0 0.0
    %4594 = vmatpush1.msra.mxu0 0.0
    %4595 = vmatprep.subr.mxu0 0.0
    %4596 = vmatpush1.msra.mxu0 0.0
    %4597 = vmatprep.subr.mxu0 0.0
    %4598 = vmatpush1.msra.mxu0 0.0
    %4599 = vmatprep.subr.mxu0 0.0
    %4600 = vmatpush1.msra.mxu0 0.0
    %4601 = vmatprep.subr.mxu0 0.0
    %4602 = vmatpush1.msra.mxu0 0.0
    %4603 = vmatprep.subr.mxu0 0.0
    %4604 = vmatpush1.msra.mxu0 0.0
    %4605 = vmatprep.subr.mxu0 0.0
    %4606 = vmatpush1.msra.mxu0 0.0
    %4607 = vmatprep.subr.mxu0 0.0
    %4608 = vmatpush1.msra.mxu0 0.0
    %4609 = vmatprep.subr.mxu0 0.0
    %4610 = vmatpush1.msra.mxu0 0.0
    %4611 = vmatprep.subr.mxu0 0.0
    %4612 = vmatpush1.msra.mxu0 0.0
    %4613 = vmatprep.subr.mxu0 0.0
    %4614 = vmatpush1.msra.mxu0 0.0
    %4615 = vmatprep.subr.mxu0 0.0
    %4616 = vmatpush1.msra.mxu0 0.0
    %4617 = vmatprep.subr.mxu0 0.0
    %4618 = vmatpush1.msra.mxu0 0.0
    %4619 = vmatprep.subr.mxu0 0.0
    %4620 = vmatpush1.msra.mxu0 0.0
    %4621 = vmatprep.subr.mxu0 0.0
    %4622 = vmatpush1.msra.mxu0 0.0
    %4623 = vmatprep.mubr.f32.mxu0 0.0
    %v4624 = vand.u32 %v4218, 4294901760
    %4625 = vmatmul.mubr.f32.gmra.mrb[0].mxu0 %v4624
    %v4626 = vpop.f32.mrb[0].mxu0
    %v4627 = vadd.f32 %v4544, %v4626
    %v4628 = vpop.f32.mrb[0].mxu0
    %4629 = vdwg.mxu0
    %4630 = vmatprep.subr.mxu0 0.0
    %v4631 = vand.u32 %v584, 4294901760
    %4632 = vmatpush1.msra.mxu0 %v4631
    %4633 = vmatprep.subr.mxu0 0.0
    %v4634 = vand.u32 %v585, 4294901760
    %4635 = vmatpush1.msra.mxu0 %v4634
    %4636 = vmatprep.subr.mxu0 0.0
    %v4637 = vand.u32 %v586, 4294901760
    %4638 = vmatpush1.msra.mxu0 %v4637
    %4639 = vmatprep.subr.mxu0 0.0
    %v4640 = vand.u32 %v587, 4294901760
    %4641 = vmatpush1.msra.mxu0 %v4640
    %4642 = vmatprep.subr.mxu0 0.0
    %4643 = vmatpush1.msra.mxu0 0.0
    %4644 = vmatprep.subr.mxu0 0.0
    %4645 = vmatpush1.msra.mxu0 0.0
    %4646 = vmatprep.subr.mxu0 0.0
    %4647 = vmatpush1.msra.mxu0 0.0
    %4648 = vmatprep.subr.mxu0 0.0
    %4649 = vmatpush1.msra.mxu0 0.0
    %4650 = vmatprep.subr.mxu0 0.0
    %4651 = vmatpush1.msra.mxu0 0.0
    %4652 = vmatprep.subr.mxu0 0.0
    %4653 = vmatpush1.msra.mxu0 0.0
    %4654 = vmatprep.subr.mxu0 0.0
    %4655 = vmatpush1.msra.mxu0 0.0
    %4656 = vmatprep.subr.mxu0 0.0
    %4657 = vmatpush1.msra.mxu0 0.0
    %4658 = vmatprep.subr.mxu0 0.0
    %4659 = vmatpush1.msra.mxu0 0.0
    %4660 = vmatprep.subr.mxu0 0.0
    %4661 = vmatpush1.msra.mxu0 0.0
    %4662 = vmatprep.subr.mxu0 0.0
    %4663 = vmatpush1.msra.mxu0 0.0
    %4664 = vmatprep.subr.mxu0 0.0
    %4665 = vmatpush1.msra.mxu0 0.0
    %4666 = vmatprep.subr.mxu0 0.0
    %4667 = vmatpush1.msra.mxu0 0.0
    %4668 = vmatprep.subr.mxu0 0.0
    %4669 = vmatpush1.msra.mxu0 0.0
    %4670 = vmatprep.subr.mxu0 0.0
    %4671 = vmatpush1.msra.mxu0 0.0
    %4672 = vmatprep.subr.mxu0 0.0
    %4673 = vmatpush1.msra.mxu0 0.0
    %4674 = vmatprep.subr.mxu0 0.0
    %4675 = vmatpush1.msra.mxu0 0.0
    %4676 = vmatprep.subr.mxu0 0.0
    %4677 = vmatpush1.msra.mxu0 0.0
    %4678 = vmatprep.subr.mxu0 0.0
    %4679 = vmatpush1.msra.mxu0 0.0
    %4680 = vmatprep.subr.mxu0 0.0
    %4681 = vmatpush1.msra.mxu0 0.0
    %4682 = vmatprep.subr.mxu0 0.0
    %4683 = vmatpush1.msra.mxu0 0.0
    %4684 = vmatprep.subr.mxu0 0.0
    %4685 = vmatpush1.msra.mxu0 0.0
    %4686 = vmatprep.subr.mxu0 0.0
    %4687 = vmatpush1.msra.mxu0 0.0
    %4688 = vmatprep.subr.mxu0 0.0
    %4689 = vmatpush1.msra.mxu0 0.0
    %4690 = vmatprep.subr.mxu0 0.0
    %4691 = vmatpush1.msra.mxu0 0.0
    %4692 = vmatprep.subr.mxu0 0.0
    %4693 = vmatpush1.msra.mxu0 0.0
    %4694 = vmatprep.subr.mxu0 0.0
    %4695 = vmatpush1.msra.mxu0 0.0
    %4696 = vmatprep.subr.mxu0 0.0
    %4697 = vmatpush1.msra.mxu0 0.0
    %4698 = vmatprep.mubr.f32.mxu0 0.0
    %v4699 = vand.u32 %v4218, 4294901760
    %4700 = vmatmul.mubr.f32.gmra.mrb[0].mxu0 %v4699
    %v4701 = vpop.f32.mrb[0].mxu0
    %v4702 = vadd.f32 %v4627, %v4701
    %v4703 = vpop.f32.mrb[0].mxu0
    %4704 = vdwg.mxu0
    %v4706 = vrot.slane %v4702, 2
    %v4708 = vadd.f32 %v581, %v4706
    %v4709 = vmul.f32 %v4708, 0.5
    %v4710 = vtanh.pop %v4709
    %v4711 = vadd.f32 %v4710, 1.0
    %v4712 = vmul.f32 %v4711, 0.5
    %v4713 = vtanh.pop %v4708
    %v4715 = vrot.slane %v4207, 6
    %v4717 = vmul.f32 %v4712, %v4715
    %4719 = vrot.lane.b32.xlu0 %v4713, 64
    %v4720 = vpop.permute.xlu0 %4719
    %v4722 = vmul.f32 %v4712, %v4720
    %4724 = vrot.lane.b32.xlu0 %v4722, 32
    %v4725 = vpop.permute.xlu0 %4724
    %v4727 = vadd.f32 %v4717, %v4725
    %v4728 = vtanh.pop %v4727
    %4730 = vrot.lane.b32.xlu0 %v4728, 64
    %v4731 = vpop.permute.xlu0 %4730
    %v4733 = vmul.f32 %v4712, %v4731
    %v4736 = vrot.slane %v4733, 6
    %4737 = vrot.lane.b32.xlu0 %v4736, 32
    %v4738 = vpop.permute.xlu0 %4737
    %vm4740 = vcmask 130048
    %v4741 = vsel %vm4740, %v1101, %v4738
    %4742 = vrot.lane.b32.xlu0 %v1617, 32
    %v4743 = vpop.permute.xlu0 %4742
    %v4745 = vrot.slane %v4213, 2
    %4746 = vrot.lane.b32.xlu0 %v4745, 32
    %v4747 = vpop.permute.xlu0 %4746
    %v4749 = vsel %vm4740, %v4743, %v4747
    %4750 = vrot.lane.b32.xlu0 %v2137, 32
    %v4751 = vpop.permute.xlu0 %4750
    %v4753 = vrot.slane %v3693, 6
    %4754 = vrot.lane.b32.xlu0 %v4753, 32
    %v4755 = vpop.permute.xlu0 %4754
    %v4757 = vsel %vm4740, %v4751, %v4755
    %4758 = vrot.lane.b32.xlu0 %v2657, 32
    %v4759 = vpop.permute.xlu0 %4758
    %v4761 = vrot.slane %v3174, 2
    %4762 = vrot.lane.b32.xlu0 %v4761, 32
    %v4763 = vpop.permute.xlu0 %4762
    %v4765 = vsel %vm4740, %v4759, %v4763
    %v4768 = vsel %vm4740, %v3177, %v2661
    %4769 = vrot.lane.b32.xlu0 %v3693, 32
    %v4770 = vpop.permute.xlu0 %4769
    %v4772 = vrot.slane %v2137, 2
    %4773 = vrot.lane.b32.xlu0 %v4772, 32
    %v4774 = vpop.permute.xlu0 %4773
    %v4776 = vsel %vm4740, %v4770, %v4774
    %4777 = vrot.lane.b32.xlu0 %v4213, 32
    %v4778 = vpop.permute.xlu0 %4777
    %v4780 = vrot.slane %v1617, 6
    %4781 = vrot.lane.b32.xlu0 %v4780, 32
    %v4782 = vpop.permute.xlu0 %4781
    %v4784 = vsel %vm4740, %v4778, %v4782
    %4785 = vrot.lane.b32.xlu0 %v4733, 32
    %v4786 = vpop.permute.xlu0 %4785
    %v4788 = vrot.slane %v1098, 2
    %4789 = vrot.lane.b32.xlu0 %v4788, 32
    %v4790 = vpop.permute.xlu0 %4789
    %v4792 = vsel %vm4740, %v4786, %v4790
    %vm4793 = vcmask 1041408
    %v4794 = vsel %vm4793, %v4741, %v4749
    %vm4795 = vcmask 1043456
    %v4796 = vsel %vm4795, %v4794, %v4757
    %vm4797 = vcmask 1045504
    %v4798 = vsel %vm4797, %v4796, %v4765
    %v4799 = vsel %vm4793, %v4768, %v4776
    %v4800 = vsel %vm4795, %v4799, %v4784
    %v4801 = vsel %vm4797, %v4800, %v4792
    %v4802 = vld [vmem:[%s4] sm:$0xff]
    %v4803 = vld [vmem:[%s4 + $0x8] sm:$0xff]
    %v4804 = vld [vmem:[%s4 + $0x10] sm:$0xff]
    %v4805 = vld [vmem:[%s4 + $0x18] sm:$0xff]
    %v4806 = vld [vmem:[%s5] sm:$0x1]
    %v4808 = vlaneseq
    %v4809 = vshrl.u32 %v4808, 7
    %v4810 = vsub.s32 0, %v4809
    %v4811 = vrot.slane %v4806, %v4810
    %v4814 = vsel %vm49, %v4798, 0
    %v4817 = vsel %vm49, %v4801, 0
    %4819 = vmatprep.subr.mxu0 0.0
    %v4820 = vand.u32 %v4802, 4294901760
    %4821 = vmatpush1.msra.mxu0 %v4820
    %4822 = vmatprep.subr.mxu0 0.0
    %v4823 = vand.u32 %v4803, 4294901760
    %4824 = vmatpush1.msra.mxu0 %v4823
    %4825 = vmatprep.subr.mxu0 0.0
    %v4826 = vand.u32 %v4804, 4294901760
    %4827 = vmatpush1.msra.mxu0 %v4826
    %4828 = vmatprep.subr.mxu0 0.0
    %v4829 = vand.u32 %v4805, 4294901760
    %4830 = vmatpush1.msra.mxu0 %v4829
    %4831 = vmatprep.subr.mxu0 0.0
    %4832 = vmatpush1.msra.mxu0 0.0
    %4833 = vmatprep.subr.mxu0 0.0
    %4834 = vmatpush1.msra.mxu0 0.0
    %4835 = vmatprep.subr.mxu0 0.0
    %4836 = vmatpush1.msra.mxu0 0.0
    %4837 = vmatprep.subr.mxu0 0.0
    %4838 = vmatpush1.msra.mxu0 0.0
    %4839 = vmatprep.subr.mxu0 0.0
    %4840 = vmatpush1.msra.mxu0 0.0
    %4841 = vmatprep.subr.mxu0 0.0
    %4842 = vmatpush1.msra.mxu0 0.0
    %4843 = vmatprep.subr.mxu0 0.0
    %4844 = vmatpush1.msra.mxu0 0.0
    %4845 = vmatprep.subr.mxu0 0.0
    %4846 = vmatpush1.msra.mxu0 0.0
    %4847 = vmatprep.subr.mxu0 0.0
    %4848 = vmatpush1.msra.mxu0 0.0
    %4849 = vmatprep.subr.mxu0 0.0
    %4850 = vmatpush1.msra.mxu0 0.0
    %4851 = vmatprep.subr.mxu0 0.0
    %4852 = vmatpush1.msra.mxu0 0.0
    %4853 = vmatprep.subr.mxu0 0.0
    %4854 = vmatpush1.msra.mxu0 0.0
    %4855 = vmatprep.subr.mxu0 0.0
    %4856 = vmatpush1.msra.mxu0 0.0
    %4857 = vmatprep.subr.mxu0 0.0
    %4858 = vmatpush1.msra.mxu0 0.0
    %4859 = vmatprep.subr.mxu0 0.0
    %4860 = vmatpush1.msra.mxu0 0.0
    %4861 = vmatprep.subr.mxu0 0.0
    %4862 = vmatpush1.msra.mxu0 0.0
    %4863 = vmatprep.subr.mxu0 0.0
    %4864 = vmatpush1.msra.mxu0 0.0
    %4865 = vmatprep.subr.mxu0 0.0
    %4866 = vmatpush1.msra.mxu0 0.0
    %4867 = vmatprep.subr.mxu0 0.0
    %4868 = vmatpush1.msra.mxu0 0.0
    %4869 = vmatprep.subr.mxu0 0.0
    %4870 = vmatpush1.msra.mxu0 0.0
    %4871 = vmatprep.subr.mxu0 0.0
    %4872 = vmatpush1.msra.mxu0 0.0
    %4873 = vmatprep.subr.mxu0 0.0
    %4874 = vmatpush1.msra.mxu0 0.0
    %4875 = vmatprep.subr.mxu0 0.0
    %4876 = vmatpush1.msra.mxu0 0.0
    %4877 = vmatprep.subr.mxu0 0.0
    %4878 = vmatpush1.msra.mxu0 0.0
    %4879 = vmatprep.subr.mxu0 0.0
    %4880 = vmatpush1.msra.mxu0 0.0
    %4881 = vmatprep.subr.mxu0 0.0
    %4882 = vmatpush1.msra.mxu0 0.0
    %4883 = vmatprep.subr.mxu0 0.0
    %4884 = vmatpush1.msra.mxu0 0.0
    %4885 = vmatprep.subr.mxu0 0.0
    %4886 = vmatpush1.msra.mxu0 0.0
    %4887 = vmatprep.mubr.f32.mxu0 0.0
    %v4888 = vand.u32 %v4814, 4294901760
    %v4889 = vsub.f32 %v4814, %v4888
    %v4890 = vand.u32 %v4889, 4294901760
    %v4891 = vsub.f32 %v4889, %v4890
    %v4892 = vand.u32 %v4891, 4294901760
    %4893 = vmatmul.mubr.f32.gmra.mrb[0].mxu0 %v4892
    %v4894 = vpop.f32.mrb[0].mxu0
    %v4895 = vadd.f32 %v4811, %v4894
    %v4896 = vpop.f32.mrb[0].mxu0
    %4897 = vmatprep.mubr.f32.mxu0 0.0
    %v4898 = vand.u32 %v4817, 4294901760
    %v4899 = vsub.f32 %v4817, %v4898
    %v4900 = vand.u32 %v4899, 4294901760
    %v4901 = vsub.f32 %v4899, %v4900
    %v4902 = vand.u32 %v4901, 4294901760
    %4903 = vmatmul.mubr.f32.gmra.mrb[0].mxu0 %v4902
    %v4904 = vpop.f32.mrb[0].mxu0
    %v4905 = vadd.f32 %v4811, %v4904
    %v4906 = vpop.f32.mrb[0].mxu0
    %4907 = vdwg.mxu0
    %4908 = vmatprep.subr.mxu0 0.0
    %v4909 = vand.u32 %v4802, 4294901760
    %v4910 = vsub.f32 %v4802, %v4909
    %v4911 = vand.u32 %v4910, 4294901760
    %v4912 = vsub.f32 %v4910, %v4911
    %v4913 = vand.u32 %v4912, 4294901760
    %4914 = vmatpush1.msra.mxu0 %v4913
    %4915 = vmatprep.subr.mxu0 0.0
    %v4916 = vand.u32 %v4803, 4294901760
    %v4917 = vsub.f32 %v4803, %v4916
    %v4918 = vand.u32 %v4917, 4294901760
    %v4919 = vsub.f32 %v4917, %v4918
    %v4920 = vand.u32 %v4919, 4294901760
    %4921 = vmatpush1.msra.mxu0 %v4920
    %4922 = vmatprep.subr.mxu0 0.0
    %v4923 = vand.u32 %v4804, 4294901760
    %v4924 = vsub.f32 %v4804, %v4923
    %v4925 = vand.u32 %v4924, 4294901760
    %v4926 = vsub.f32 %v4924, %v4925
    %v4927 = vand.u32 %v4926, 4294901760
    %4928 = vmatpush1.msra.mxu0 %v4927
    %4929 = vmatprep.subr.mxu0 0.0
    %v4930 = vand.u32 %v4805, 4294901760
    %v4931 = vsub.f32 %v4805, %v4930
    %v4932 = vand.u32 %v4931, 4294901760
    %v4933 = vsub.f32 %v4931, %v4932
    %v4934 = vand.u32 %v4933, 4294901760
    %4935 = vmatpush1.msra.mxu0 %v4934
    %4936 = vmatprep.subr.mxu0 0.0
    %4937 = vmatpush1.msra.mxu0 0.0
    %4938 = vmatprep.subr.mxu0 0.0
    %4939 = vmatpush1.msra.mxu0 0.0
    %4940 = vmatprep.subr.mxu0 0.0
    %4941 = vmatpush1.msra.mxu0 0.0
    %4942 = vmatprep.subr.mxu0 0.0
    %4943 = vmatpush1.msra.mxu0 0.0
    %4944 = vmatprep.subr.mxu0 0.0
    %4945 = vmatpush1.msra.mxu0 0.0
    %4946 = vmatprep.subr.mxu0 0.0
    %4947 = vmatpush1.msra.mxu0 0.0
    %4948 = vmatprep.subr.mxu0 0.0
    %4949 = vmatpush1.msra.mxu0 0.0
    %4950 = vmatprep.subr.mxu0 0.0
    %4951 = vmatpush1.msra.mxu0 0.0
    %4952 = vmatprep.subr.mxu0 0.0
    %4953 = vmatpush1.msra.mxu0 0.0
    %4954 = vmatprep.subr.mxu0 0.0
    %4955 = vmatpush1.msra.mxu0 0.0
    %4956 = vmatprep.subr.mxu0 0.0
    %4957 = vmatpush1.msra.mxu0 0.0
    %4958 = vmatprep.subr.mxu0 0.0
    %4959 = vmatpush1.msra.mxu0 0.0
    %4960 = vmatprep.subr.mxu0 0.0
    %4961 = vmatpush1.msra.mxu0 0.0
    %4962 = vmatprep.subr.mxu0 0.0
    %4963 = vmatpush1.msra.mxu0 0.0
    %4964 = vmatprep.subr.mxu0 0.0
    %4965 = vmatpush1.msra.mxu0 0.0
    %4966 = vmatprep.subr.mxu0 0.0
    %4967 = vmatpush1.msra.mxu0 0.0
    %4968 = vmatprep.subr.mxu0 0.0
    %4969 = vmatpush1.msra.mxu0 0.0
    %4970 = vmatprep.subr.mxu0 0.0
    %4971 = vmatpush1.msra.mxu0 0.0
    %4972 = vmatprep.subr.mxu0 0.0
    %4973 = vmatpush1.msra.mxu0 0.0
    %4974 = vmatprep.subr.mxu0 0.0
    %4975 = vmatpush1.msra.mxu0 0.0
    %4976 = vmatprep.subr.mxu0 0.0
    %4977 = vmatpush1.msra.mxu0 0.0
    %4978 = vmatprep.subr.mxu0 0.0
    %4979 = vmatpush1.msra.mxu0 0.0
    %4980 = vmatprep.subr.mxu0 0.0
    %4981 = vmatpush1.msra.mxu0 0.0
    %4982 = vmatprep.subr.mxu0 0.0
    %4983 = vmatpush1.msra.mxu0 0.0
    %4984 = vmatprep.subr.mxu0 0.0
    %4985 = vmatpush1.msra.mxu0 0.0
    %4986 = vmatprep.subr.mxu0 0.0
    %4987 = vmatpush1.msra.mxu0 0.0
    %4988 = vmatprep.subr.mxu0 0.0
    %4989 = vmatpush1.msra.mxu0 0.0
    %4990 = vmatprep.subr.mxu0 0.0
    %4991 = vmatpush1.msra.mxu0 0.0
    %4992 = vmatprep.mubr.f32.mxu0 0.0
    %v4993 = vand.u32 %v4814, 4294901760
    %4994 = vmatmul.mubr.f32.gmra.mrb[0].mxu0 %v4993
    %v4995 = vpop.f32.mrb[0].mxu0
    %v4996 = vadd.f32 %v4895, %v4995
    %v4997 = vpop.f32.mrb[0].mxu0
    %4998 = vmatprep.mubr.f32.mxu0 0.0
    %v4999 = vand.u32 %v4817, 4294901760
    %5000 = vmatmul.mubr.f32.gmra.mrb[0].mxu0 %v4999
    %v5001 = vpop.f32.mrb[0].mxu0
    %v5002 = vadd.f32 %v4905, %v5001
    %v5003 = vpop.f32.mrb[0].mxu0
    %5004 = vdwg.mxu0
    %5005 = vmatprep.subr.mxu0 0.0
    %v5006 = vand.u32 %v4802, 4294901760
    %v5007 = vsub.f32 %v4802, %v5006
    %5008 = vmatpush1.msra.mxu0 %v5007
    %5009 = vmatprep.subr.mxu0 0.0
    %v5010 = vand.u32 %v4803, 4294901760
    %v5011 = vsub.f32 %v4803, %v5010
    %5012 = vmatpush1.msra.mxu0 %v5011
    %5013 = vmatprep.subr.mxu0 0.0
    %v5014 = vand.u32 %v4804, 4294901760
    %v5015 = vsub.f32 %v4804, %v5014
    %5016 = vmatpush1.msra.mxu0 %v5015
    %5017 = vmatprep.subr.mxu0 0.0
    %v5018 = vand.u32 %v4805, 4294901760
    %v5019 = vsub.f32 %v4805, %v5018
    %5020 = vmatpush1.msra.mxu0 %v5019
    %5021 = vmatprep.subr.mxu0 0.0
    %5022 = vmatpush1.msra.mxu0 0.0
    %5023 = vmatprep.subr.mxu0 0.0
    %5024 = vmatpush1.msra.mxu0 0.0
    %5025 = vmatprep.subr.mxu0 0.0
    %5026 = vmatpush1.msra.mxu0 0.0
    %5027 = vmatprep.subr.mxu0 0.0
    %5028 = vmatpush1.msra.mxu0 0.0
    %5029 = vmatprep.subr.mxu0 0.0
    %5030 = vmatpush1.msra.mxu0 0.0
    %5031 = vmatprep.subr.mxu0 0.0
    %5032 = vmatpush1.msra.mxu0 0.0
    %5033 = vmatprep.subr.mxu0 0.0
    %5034 = vmatpush1.msra.mxu0 0.0
    %5035 = vmatprep.subr.mxu0 0.0
    %5036 = vmatpush1.msra.mxu0 0.0
    %5037 = vmatprep.subr.mxu0 0.0
    %5038 = vmatpush1.msra.mxu0 0.0
    %5039 = vmatprep.subr.mxu0 0.0
    %5040 = vmatpush1.msra.mxu0 0.0
    %5041 = vmatprep.subr.mxu0 0.0
    %5042 = vmatpush1.msra.mxu0 0.0
    %5043 = vmatprep.subr.mxu0 0.0
    %5044 = vmatpush1.msra.mxu0 0.0
    %5045 = vmatprep.subr.mxu0 0.0
    %5046 = vmatpush1.msra.mxu0 0.0
    %5047 = vmatprep.subr.mxu0 0.0
    %5048 = vmatpush1.msra.mxu0 0.0
    %5049 = vmatprep.subr.mxu0 0.0
    %5050 = vmatpush1.msra.mxu0 0.0
    %5051 = vmatprep.subr.mxu0 0.0
    %5052 = vmatpush1.msra.mxu0 0.0
    %5053 = vmatprep.subr.mxu0 0.0
    %5054 = vmatpush1.msra.mxu0 0.0
    %5055 = vmatprep.subr.mxu0 0.0
    %5056 = vmatpush1.msra.mxu0 0.0
    %5057 = vmatprep.subr.mxu0 0.0
    %5058 = vmatpush1.msra.mxu0 0.0
    %5059 = vmatprep.subr.mxu0 0.0
    %5060 = vmatpush1.msra.mxu0 0.0
    %5061 = vmatprep.subr.mxu0 0.0
    %5062 = vmatpush1.msra.mxu0 0.0
    %5063 = vmatprep.subr.mxu0 0.0
    %5064 = vmatpush1.msra.mxu0 0.0
    %5065 = vmatprep.subr.mxu0 0.0
    %5066 = vmatpush1.msra.mxu0 0.0
    %5067 = vmatprep.subr.mxu0 0.0
    %5068 = vmatpush1.msra.mxu0 0.0
    %5069 = vmatprep.subr.mxu0 0.0
    %5070 = vmatpush1.msra.mxu0 0.0
    %5071 = vmatprep.subr.mxu0 0.0
    %5072 = vmatpush1.msra.mxu0 0.0
    %5073 = vmatprep.subr.mxu0 0.0
    %5074 = vmatpush1.msra.mxu0 0.0
    %5075 = vmatprep.subr.mxu0 0.0
    %5076 = vmatpush1.msra.mxu0 0.0
    %5077 = vmatprep.mubr.f32.mxu0 0.0
    %v5078 = vand.u32 %v4814, 4294901760
    %v5079 = vsub.f32 %v4814, %v5078
    %5080 = vmatmul.mubr.f32.gmra.mrb[0].mxu0 %v5079
    %v5081 = vpop.f32.mrb[0].mxu0
    %v5082 = vadd.f32 %v4996, %v5081
    %v5083 = vpop.f32.mrb[0].mxu0
    %5084 = vmatprep.mubr.f32.mxu0 0.0
    %v5085 = vand.u32 %v4817, 4294901760
    %v5086 = vsub.f32 %v4817, %v5085
    %5087 = vmatmul.mubr.f32.gmra.mrb[0].mxu0 %v5086
    %v5088 = vpop.f32.mrb[0].mxu0
    %v5089 = vadd.f32 %v5002, %v5088
    %v5090 = vpop.f32.mrb[0].mxu0
    %5091 = vdwg.mxu0
    %5092 = vmatprep.subr.mxu0 0.0
    %v5093 = vand.u32 %v4802, 4294901760
    %5094 = vmatpush1.msra.mxu0 %v5093
    %5095 = vmatprep.subr.mxu0 0.0
    %v5096 = vand.u32 %v4803, 4294901760
    %5097 = vmatpush1.msra.mxu0 %v5096
    %5098 = vmatprep.subr.mxu0 0.0
    %v5099 = vand.u32 %v4804, 4294901760
    %5100 = vmatpush1.msra.mxu0 %v5099
    %5101 = vmatprep.subr.mxu0 0.0
    %v5102 = vand.u32 %v4805, 4294901760
    %5103 = vmatpush1.msra.mxu0 %v5102
    %5104 = vmatprep.subr.mxu0 0.0
    %5105 = vmatpush1.msra.mxu0 0.0
    %5106 = vmatprep.subr.mxu0 0.0
    %5107 = vmatpush1.msra.mxu0 0.0
    %5108 = vmatprep.subr.mxu0 0.0
    %5109 = vmatpush1.msra.mxu0 0.0
    %5110 = vmatprep.subr.mxu0 0.0
    %5111 = vmatpush1.msra.mxu0 0.0
    %5112 = vmatprep.subr.mxu0 0.0
    %5113 = vmatpush1.msra.mxu0 0.0
    %5114 = vmatprep.subr.mxu0 0.0
    %5115 = vmatpush1.msra.mxu0 0.0
    %5116 = vmatprep.subr.mxu0 0.0
    %5117 = vmatpush1.msra.mxu0 0.0
    %5118 = vmatprep.subr.mxu0 0.0
    %5119 = vmatpush1.msra.mxu0 0.0
    %5120 = vmatprep.subr.mxu0 0.0
    %5121 = vmatpush1.msra.mxu0 0.0
    %5122 = vmatprep.subr.mxu0 0.0
    %5123 = vmatpush1.msra.mxu0 0.0
    %5124 = vmatprep.subr.mxu0 0.0
    %5125 = vmatpush1.msra.mxu0 0.0
    %5126 = vmatprep.subr.mxu0 0.0
    %5127 = vmatpush1.msra.mxu0 0.0
    %5128 = vmatprep.subr.mxu0 0.0
    %5129 = vmatpush1.msra.mxu0 0.0
    %5130 = vmatprep.subr.mxu0 0.0
    %5131 = vmatpush1.msra.mxu0 0.0
    %5132 = vmatprep.subr.mxu0 0.0
    %5133 = vmatpush1.msra.mxu0 0.0
    %5134 = vmatprep.subr.mxu0 0.0
    %5135 = vmatpush1.msra.mxu0 0.0
    %5136 = vmatprep.subr.mxu0 0.0
    %5137 = vmatpush1.msra.mxu0 0.0
    %5138 = vmatprep.subr.mxu0 0.0
    %5139 = vmatpush1.msra.mxu0 0.0
    %5140 = vmatprep.subr.mxu0 0.0
    %5141 = vmatpush1.msra.mxu0 0.0
    %5142 = vmatprep.subr.mxu0 0.0
    %5143 = vmatpush1.msra.mxu0 0.0
    %5144 = vmatprep.subr.mxu0 0.0
    %5145 = vmatpush1.msra.mxu0 0.0
    %5146 = vmatprep.subr.mxu0 0.0
    %5147 = vmatpush1.msra.mxu0 0.0
    %5148 = vmatprep.subr.mxu0 0.0
    %5149 = vmatpush1.msra.mxu0 0.0
    %5150 = vmatprep.subr.mxu0 0.0
    %5151 = vmatpush1.msra.mxu0 0.0
    %5152 = vmatprep.subr.mxu0 0.0
    %5153 = vmatpush1.msra.mxu0 0.0
    %5154 = vmatprep.subr.mxu0 0.0
    %5155 = vmatpush1.msra.mxu0 0.0
    %5156 = vmatprep.subr.mxu0 0.0
    %5157 = vmatpush1.msra.mxu0 0.0
    %5158 = vmatprep.subr.mxu0 0.0
    %5159 = vmatpush1.msra.mxu0 0.0
    %5160 = vmatprep.mubr.f32.mxu0 0.0
    %v5161 = vand.u32 %v4814, 4294901760
    %v5162 = vsub.f32 %v4814, %v5161
    %v5163 = vand.u32 %v5162, 4294901760
    %5164 = vmatmul.mubr.f32.gmra.mrb[0].mxu0 %v5163
    %v5165 = vpop.f32.mrb[0].mxu0
    %v5166 = vadd.f32 %v5082, %v5165
    %v5167 = vpop.f32.mrb[0].mxu0
    %5168 = vmatprep.mubr.f32.mxu0 0.0
    %v5169 = vand.u32 %v4817, 4294901760
    %v5170 = vsub.f32 %v4817, %v5169
    %v5171 = vand.u32 %v5170, 4294901760
    %5172 = vmatmul.mubr.f32.gmra.mrb[0].mxu0 %v5171
    %v5173 = vpop.f32.mrb[0].mxu0
    %v5174 = vadd.f32 %v5089, %v5173
    %v5175 = vpop.f32.mrb[0].mxu0
    %5176 = vdwg.mxu0
    %5177 = vmatprep.subr.mxu0 0.0
    %v5178 = vand.u32 %v4802, 4294901760
    %v5179 = vsub.f32 %v4802, %v5178
    %v5180 = vand.u32 %v5179, 4294901760
    %5181 = vmatpush1.msra.mxu0 %v5180
    %5182 = vmatprep.subr.mxu0 0.0
    %v5183 = vand.u32 %v4803, 4294901760
    %v5184 = vsub.f32 %v4803, %v5183
    %v5185 = vand.u32 %v5184, 4294901760
    %5186 = vmatpush1.msra.mxu0 %v5185
    %5187 = vmatprep.subr.mxu0 0.0
    %v5188 = vand.u32 %v4804, 4294901760
    %v5189 = vsub.f32 %v4804, %v5188
    %v5190 = vand.u32 %v5189, 4294901760
    %5191 = vmatpush1.msra.mxu0 %v5190
    %5192 = vmatprep.subr.mxu0 0.0
    %v5193 = vand.u32 %v4805, 4294901760
    %v5194 = vsub.f32 %v4805, %v5193
    %v5195 = vand.u32 %v5194, 4294901760
    %5196 = vmatpush1.msra.mxu0 %v5195
    %5197 = vmatprep.subr.mxu0 0.0
    %5198 = vmatpush1.msra.mxu0 0.0
    %5199 = vmatprep.subr.mxu0 0.0
    %5200 = vmatpush1.msra.mxu0 0.0
    %5201 = vmatprep.subr.mxu0 0.0
    %5202 = vmatpush1.msra.mxu0 0.0
    %5203 = vmatprep.subr.mxu0 0.0
    %5204 = vmatpush1.msra.mxu0 0.0
    %5205 = vmatprep.subr.mxu0 0.0
    %5206 = vmatpush1.msra.mxu0 0.0
    %5207 = vmatprep.subr.mxu0 0.0
    %5208 = vmatpush1.msra.mxu0 0.0
    %5209 = vmatprep.subr.mxu0 0.0
    %5210 = vmatpush1.msra.mxu0 0.0
    %5211 = vmatprep.subr.mxu0 0.0
    %5212 = vmatpush1.msra.mxu0 0.0
    %5213 = vmatprep.subr.mxu0 0.0
    %5214 = vmatpush1.msra.mxu0 0.0
    %5215 = vmatprep.subr.mxu0 0.0
    %5216 = vmatpush1.msra.mxu0 0.0
    %5217 = vmatprep.subr.mxu0 0.0
    %5218 = vmatpush1.msra.mxu0 0.0
    %5219 = vmatprep.subr.mxu0 0.0
    %5220 = vmatpush1.msra.mxu0 0.0
    %5221 = vmatprep.subr.mxu0 0.0
    %5222 = vmatpush1.msra.mxu0 0.0
    %5223 = vmatprep.subr.mxu0 0.0
    %5224 = vmatpush1.msra.mxu0 0.0
    %5225 = vmatprep.subr.mxu0 0.0
    %5226 = vmatpush1.msra.mxu0 0.0
    %5227 = vmatprep.subr.mxu0 0.0
    %5228 = vmatpush1.msra.mxu0 0.0
    %5229 = vmatprep.subr.mxu0 0.0
    %5230 = vmatpush1.msra.mxu0 0.0
    %5231 = vmatprep.subr.mxu0 0.0
    %5232 = vmatpush1.msra.mxu0 0.0
    %5233 = vmatprep.subr.mxu0 0.0
    %5234 = vmatpush1.msra.mxu0 0.0
    %5235 = vmatprep.subr.mxu0 0.0
    %5236 = vmatpush1.msra.mxu0 0.0
    %5237 = vmatprep.subr.mxu0 0.0
    %5238 = vmatpush1.msra.mxu0 0.0
    %5239 = vmatprep.subr.mxu0 0.0
    %5240 = vmatpush1.msra.mxu0 0.0
    %5241 = vmatprep.subr.mxu0 0.0
    %5242 = vmatpush1.msra.mxu0 0.0
    %5243 = vmatprep.subr.mxu0 0.0
    %5244 = vmatpush1.msra.mxu0 0.0
    %5245 = vmatprep.subr.mxu0 0.0
    %5246 = vmatpush1.msra.mxu0 0.0
    %5247 = vmatprep.subr.mxu0 0.0
    %5248 = vmatpush1.msra.mxu0 0.0
    %5249 = vmatprep.subr.mxu0 0.0
    %5250 = vmatpush1.msra.mxu0 0.0
    %5251 = vmatprep.subr.mxu0 0.0
    %5252 = vmatpush1.msra.mxu0 0.0
    %5253 = vmatprep.mubr.f32.mxu0 0.0
    %v5254 = vand.u32 %v4814, 4294901760
    %5255 = vmatmul.mubr.f32.gmra.mrb[0].mxu0 %v5254
    %v5256 = vpop.f32.mrb[0].mxu0
    %v5257 = vadd.f32 %v5166, %v5256
    %v5258 = vpop.f32.mrb[0].mxu0
    %5259 = vmatprep.mubr.f32.mxu0 0.0
    %v5260 = vand.u32 %v4817, 4294901760
    %5261 = vmatmul.mubr.f32.gmra.mrb[0].mxu0 %v5260
    %v5262 = vpop.f32.mrb[0].mxu0
    %v5263 = vadd.f32 %v5174, %v5262
    %v5264 = vpop.f32.mrb[0].mxu0
    %5265 = vdwg.mxu0
    %5266 = vmatprep.subr.mxu0 0.0
    %v5267 = vand.u32 %v4802, 4294901760
    %5268 = vmatpush1.msra.mxu0 %v5267
    %5269 = vmatprep.subr.mxu0 0.0
    %v5270 = vand.u32 %v4803, 4294901760
    %5271 = vmatpush1.msra.mxu0 %v5270
    %5272 = vmatprep.subr.mxu0 0.0
    %v5273 = vand.u32 %v4804, 4294901760
    %5274 = vmatpush1.msra.mxu0 %v5273
    %5275 = vmatprep.subr.mxu0 0.0
    %v5276 = vand.u32 %v4805, 4294901760
    %5277 = vmatpush1.msra.mxu0 %v5276
    %5278 = vmatprep.subr.mxu0 0.0
    %5279 = vmatpush1.msra.mxu0 0.0
    %5280 = vmatprep.subr.mxu0 0.0
    %5281 = vmatpush1.msra.mxu0 0.0
    %5282 = vmatprep.subr.mxu0 0.0
    %5283 = vmatpush1.msra.mxu0 0.0
    %5284 = vmatprep.subr.mxu0 0.0
    %5285 = vmatpush1.msra.mxu0 0.0
    %5286 = vmatprep.subr.mxu0 0.0
    %5287 = vmatpush1.msra.mxu0 0.0
    %5288 = vmatprep.subr.mxu0 0.0
    %5289 = vmatpush1.msra.mxu0 0.0
    %5290 = vmatprep.subr.mxu0 0.0
    %5291 = vmatpush1.msra.mxu0 0.0
    %5292 = vmatprep.subr.mxu0 0.0
    %5293 = vmatpush1.msra.mxu0 0.0
    %5294 = vmatprep.subr.mxu0 0.0
    %5295 = vmatpush1.msra.mxu0 0.0
    %5296 = vmatprep.subr.mxu0 0.0
    %5297 = vmatpush1.msra.mxu0 0.0
    %5298 = vmatprep.subr.mxu0 0.0
    %5299 = vmatpush1.msra.mxu0 0.0
    %5300 = vmatprep.subr.mxu0 0.0
    %5301 = vmatpush1.msra.mxu0 0.0
    %5302 = vmatprep.subr.mxu0 0.0
    %5303 = vmatpush1.msra.mxu0 0.0
    %5304 = vmatprep.subr.mxu0 0.0
    %5305 = vmatpush1.msra.mxu0 0.0
    %5306 = vmatprep.subr.mxu0 0.0
    %5307 = vmatpush1.msra.mxu0 0.0
    %5308 = vmatprep.subr.mxu0 0.0
    %5309 = vmatpush1.msra.mxu0 0.0
    %5310 = vmatprep.subr.mxu0 0.0
    %5311 = vmatpush1.msra.mxu0 0.0
    %5312 = vmatprep.subr.mxu0 0.0
    %5313 = vmatpush1.msra.mxu0 0.0
    %5314 = vmatprep.subr.mxu0 0.0
    %5315 = vmatpush1.msra.mxu0 0.0
    %5316 = vmatprep.subr.mxu0 0.0
    %5317 = vmatpush1.msra.mxu0 0.0
    %5318 = vmatprep.subr.mxu0 0.0
    %5319 = vmatpush1.msra.mxu0 0.0
    %5320 = vmatprep.subr.mxu0 0.0
    %5321 = vmatpush1.msra.mxu0 0.0
    %5322 = vmatprep.subr.mxu0 0.0
    %5323 = vmatpush1.msra.mxu0 0.0
    %5324 = vmatprep.subr.mxu0 0.0
    %5325 = vmatpush1.msra.mxu0 0.0
    %5326 = vmatprep.subr.mxu0 0.0
    %5327 = vmatpush1.msra.mxu0 0.0
    %5328 = vmatprep.subr.mxu0 0.0
    %5329 = vmatpush1.msra.mxu0 0.0
    %5330 = vmatprep.subr.mxu0 0.0
    %5331 = vmatpush1.msra.mxu0 0.0
    %5332 = vmatprep.subr.mxu0 0.0
    %5333 = vmatpush1.msra.mxu0 0.0
    %5334 = vmatprep.mubr.f32.mxu0 0.0
    %v5335 = vand.u32 %v4814, 4294901760
    %5336 = vmatmul.mubr.f32.gmra.mrb[0].mxu0 %v5335
    %v5337 = vpop.f32.mrb[0].mxu0
    %v5338 = vadd.f32 %v5257, %v5337
    %v5339 = vpop.f32.mrb[0].mxu0
    %5340 = vmatprep.mubr.f32.mxu0 0.0
    %v5341 = vand.u32 %v4817, 4294901760
    %5342 = vmatmul.mubr.f32.gmra.mrb[0].mxu0 %v5341
    %v5343 = vpop.f32.mrb[0].mxu0
    %v5344 = vadd.f32 %v5263, %v5343
    %v5345 = vpop.f32.mrb[0].mxu0
    %5346 = vdwg.mxu0
    %v5347 = vld [vmem:[%s6] sm:$0xff]
    %v5348 = vld [vmem:[%s6 + $0x8] sm:$0xff]
    %v5349 = vld [vmem:[%s6 + $0x10] sm:$0xff]
    %v5350 = vld [vmem:[%s6 + $0x18] sm:$0xff]
    %5351 = vmatprep.subr.mxu0 0.0
    %v5352 = vand.u32 %v5347, 4294901760
    %5353 = vmatpush1.msra.mxu0 %v5352
    %5354 = vmatprep.subr.mxu0 0.0
    %v5355 = vand.u32 %v5348, 4294901760
    %5356 = vmatpush1.msra.mxu0 %v5355
    %5357 = vmatprep.subr.mxu0 0.0
    %v5358 = vand.u32 %v5349, 4294901760
    %5359 = vmatpush1.msra.mxu0 %v5358
    %5360 = vmatprep.subr.mxu0 0.0
    %v5361 = vand.u32 %v5350, 4294901760
    %5362 = vmatpush1.msra.mxu0 %v5361
    %5363 = vmatprep.subr.mxu0 0.0
    %5364 = vmatpush1.msra.mxu0 0.0
    %5365 = vmatprep.subr.mxu0 0.0
    %5366 = vmatpush1.msra.mxu0 0.0
    %5367 = vmatprep.subr.mxu0 0.0
    %5368 = vmatpush1.msra.mxu0 0.0
    %5369 = vmatprep.subr.mxu0 0.0
    %5370 = vmatpush1.msra.mxu0 0.0
    %5371 = vmatprep.subr.mxu0 0.0
    %5372 = vmatpush1.msra.mxu0 0.0
    %5373 = vmatprep.subr.mxu0 0.0
    %5374 = vmatpush1.msra.mxu0 0.0
    %5375 = vmatprep.subr.mxu0 0.0
    %5376 = vmatpush1.msra.mxu0 0.0
    %5377 = vmatprep.subr.mxu0 0.0
    %5378 = vmatpush1.msra.mxu0 0.0
    %5379 = vmatprep.subr.mxu0 0.0
    %5380 = vmatpush1.msra.mxu0 0.0
    %5381 = vmatprep.subr.mxu0 0.0
    %5382 = vmatpush1.msra.mxu0 0.0
    %5383 = vmatprep.subr.mxu0 0.0
    %5384 = vmatpush1.msra.mxu0 0.0
    %5385 = vmatprep.subr.mxu0 0.0
    %5386 = vmatpush1.msra.mxu0 0.0
    %5387 = vmatprep.subr.mxu0 0.0
    %5388 = vmatpush1.msra.mxu0 0.0
    %5389 = vmatprep.subr.mxu0 0.0
    %5390 = vmatpush1.msra.mxu0 0.0
    %5391 = vmatprep.subr.mxu0 0.0
    %5392 = vmatpush1.msra.mxu0 0.0
    %5393 = vmatprep.subr.mxu0 0.0
    %5394 = vmatpush1.msra.mxu0 0.0
    %5395 = vmatprep.subr.mxu0 0.0
    %5396 = vmatpush1.msra.mxu0 0.0
    %5397 = vmatprep.subr.mxu0 0.0
    %5398 = vmatpush1.msra.mxu0 0.0
    %5399 = vmatprep.subr.mxu0 0.0
    %5400 = vmatpush1.msra.mxu0 0.0
    %5401 = vmatprep.subr.mxu0 0.0
    %5402 = vmatpush1.msra.mxu0 0.0
    %5403 = vmatprep.subr.mxu0 0.0
    %5404 = vmatpush1.msra.mxu0 0.0
    %5405 = vmatprep.subr.mxu0 0.0
    %5406 = vmatpush1.msra.mxu0 0.0
    %5407 = vmatprep.subr.mxu0 0.0
    %5408 = vmatpush1.msra.mxu0 0.0
    %5409 = vmatprep.subr.mxu0 0.0
    %5410 = vmatpush1.msra.mxu0 0.0
    %5411 = vmatprep.subr.mxu0 0.0
    %5412 = vmatpush1.msra.mxu0 0.0
    %5413 = vmatprep.subr.mxu0 0.0
    %5414 = vmatpush1.msra.mxu0 0.0
    %5415 = vmatprep.subr.mxu0 0.0
    %5416 = vmatpush1.msra.mxu0 0.0
    %5417 = vmatprep.subr.mxu0 0.0
    %5418 = vmatpush1.msra.mxu0 0.0
    %5419 = vmatprep.mubr.f32.mxu0 0.0
    %v5420 = vand.u32 %v589, 4294901760
    %v5421 = vsub.f32 %v589, %v5420
    %v5422 = vand.u32 %v5421, 4294901760
    %v5423 = vsub.f32 %v5421, %v5422
    %v5424 = vand.u32 %v5423, 4294901760
    %5425 = vmatmul.mubr.f32.gmra.mrb[0].mxu0 %v5424
    %v5426 = vpop.f32.mrb[0].mxu0
    %v5427 = vadd.f32 0.0, %v5426
    %v5428 = vpop.f32.mrb[0].mxu0
    %5429 = vdwg.mxu0
    %5430 = vmatprep.subr.mxu0 0.0
    %v5431 = vand.u32 %v5347, 4294901760
    %v5432 = vsub.f32 %v5347, %v5431
    %v5433 = vand.u32 %v5432, 4294901760
    %v5434 = vsub.f32 %v5432, %v5433
    %v5435 = vand.u32 %v5434, 4294901760
    %5436 = vmatpush1.msra.mxu0 %v5435
    %5437 = vmatprep.subr.mxu0 0.0
    %v5438 = vand.u32 %v5348, 4294901760
    %v5439 = vsub.f32 %v5348, %v5438
    %v5440 = vand.u32 %v5439, 4294901760
    %v5441 = vsub.f32 %v5439, %v5440
    %v5442 = vand.u32 %v5441, 4294901760
    %5443 = vmatpush1.msra.mxu0 %v5442
    %5444 = vmatprep.subr.mxu0 0.0
    %v5445 = vand.u32 %v5349, 4294901760
    %v5446 = vsub.f32 %v5349, %v5445
    %v5447 = vand.u32 %v5446, 4294901760
    %v5448 = vsub.f32 %v5446, %v5447
    %v5449 = vand.u32 %v5448, 4294901760
    %5450 = vmatpush1.msra.mxu0 %v5449
    %5451 = vmatprep.subr.mxu0 0.0
    %v5452 = vand.u32 %v5350, 4294901760
    %v5453 = vsub.f32 %v5350, %v5452
    %v5454 = vand.u32 %v5453, 4294901760
    %v5455 = vsub.f32 %v5453, %v5454
    %v5456 = vand.u32 %v5455, 4294901760
    %5457 = vmatpush1.msra.mxu0 %v5456
    %5458 = vmatprep.subr.mxu0 0.0
    %5459 = vmatpush1.msra.mxu0 0.0
    %5460 = vmatprep.subr.mxu0 0.0
    %5461 = vmatpush1.msra.mxu0 0.0
    %5462 = vmatprep.subr.mxu0 0.0
    %5463 = vmatpush1.msra.mxu0 0.0
    %5464 = vmatprep.subr.mxu0 0.0
    %5465 = vmatpush1.msra.mxu0 0.0
    %5466 = vmatprep.subr.mxu0 0.0
    %5467 = vmatpush1.msra.mxu0 0.0
    %5468 = vmatprep.subr.mxu0 0.0
    %5469 = vmatpush1.msra.mxu0 0.0
    %5470 = vmatprep.subr.mxu0 0.0
    %5471 = vmatpush1.msra.mxu0 0.0
    %5472 = vmatprep.subr.mxu0 0.0
    %5473 = vmatpush1.msra.mxu0 0.0
    %5474 = vmatprep.subr.mxu0 0.0
    %5475 = vmatpush1.msra.mxu0 0.0
    %5476 = vmatprep.subr.mxu0 0.0
    %5477 = vmatpush1.msra.mxu0 0.0
    %5478 = vmatprep.subr.mxu0 0.0
    %5479 = vmatpush1.msra.mxu0 0.0
    %5480 = vmatprep.subr.mxu0 0.0
    %5481 = vmatpush1.msra.mxu0 0.0
    %5482 = vmatprep.subr.mxu0 0.0
    %5483 = vmatpush1.msra.mxu0 0.0
    %5484 = vmatprep.subr.mxu0 0.0
    %5485 = vmatpush1.msra.mxu0 0.0
    %5486 = vmatprep.subr.mxu0 0.0
    %5487 = vmatpush1.msra.mxu0 0.0
    %5488 = vmatprep.subr.mxu0 0.0
    %5489 = vmatpush1.msra.mxu0 0.0
    %5490 = vmatprep.subr.mxu0 0.0
    %5491 = vmatpush1.msra.mxu0 0.0
    %5492 = vmatprep.subr.mxu0 0.0
    %5493 = vmatpush1.msra.mxu0 0.0
    %5494 = vmatprep.subr.mxu0 0.0
    %5495 = vmatpush1.msra.mxu0 0.0
    %5496 = vmatprep.subr.mxu0 0.0
    %5497 = vmatpush1.msra.mxu0 0.0
    %5498 = vmatprep.subr.mxu0 0.0
    %5499 = vmatpush1.msra.mxu0 0.0
    %5500 = vmatprep.subr.mxu0 0.0
    %5501 = vmatpush1.msra.mxu0 0.0
    %5502 = vmatprep.subr.mxu0 0.0
    %5503 = vmatpush1.msra.mxu0 0.0
    %5504 = vmatprep.subr.mxu0 0.0
    %5505 = vmatpush1.msra.mxu0 0.0
    %5506 = vmatprep.subr.mxu0 0.0
    %5507 = vmatpush1.msra.mxu0 0.0
    %5508 = vmatprep.subr.mxu0 0.0
    %5509 = vmatpush1.msra.mxu0 0.0
    %5510 = vmatprep.subr.mxu0 0.0
    %5511 = vmatpush1.msra.mxu0 0.0
    %5512 = vmatprep.subr.mxu0 0.0
    %5513 = vmatpush1.msra.mxu0 0.0
    %5514 = vmatprep.mubr.f32.mxu0 0.0
    %v5515 = vand.u32 %v589, 4294901760
    %5516 = vmatmul.mubr.f32.gmra.mrb[0].mxu0 %v5515
    %v5517 = vpop.f32.mrb[0].mxu0
    %v5518 = vadd.f32 %v5427, %v5517
    %v5519 = vpop.f32.mrb[0].mxu0
    %5520 = vdwg.mxu0
    %5521 = vmatprep.subr.mxu0 0.0
    %v5522 = vand.u32 %v5347, 4294901760
    %v5523 = vsub.f32 %v5347, %v5522
    %5524 = vmatpush1.msra.mxu0 %v5523
    %5525 = vmatprep.subr.mxu0 0.0
    %v5526 = vand.u32 %v5348, 4294901760
    %v5527 = vsub.f32 %v5348, %v5526
    %5528 = vmatpush1.msra.mxu0 %v5527
    %5529 = vmatprep.subr.mxu0 0.0
    %v5530 = vand.u32 %v5349, 4294901760
    %v5531 = vsub.f32 %v5349, %v5530
    %5532 = vmatpush1.msra.mxu0 %v5531
    %5533 = vmatprep.subr.mxu0 0.0
    %v5534 = vand.u32 %v5350, 4294901760
    %v5535 = vsub.f32 %v5350, %v5534
    %5536 = vmatpush1.msra.mxu0 %v5535
    %5537 = vmatprep.subr.mxu0 0.0
    %5538 = vmatpush1.msra.mxu0 0.0
    %5539 = vmatprep.subr.mxu0 0.0
    %5540 = vmatpush1.msra.mxu0 0.0
    %5541 = vmatprep.subr.mxu0 0.0
    %5542 = vmatpush1.msra.mxu0 0.0
    %5543 = vmatprep.subr.mxu0 0.0
    %5544 = vmatpush1.msra.mxu0 0.0
    %5545 = vmatprep.subr.mxu0 0.0
    %5546 = vmatpush1.msra.mxu0 0.0
    %5547 = vmatprep.subr.mxu0 0.0
    %5548 = vmatpush1.msra.mxu0 0.0
    %5549 = vmatprep.subr.mxu0 0.0
    %5550 = vmatpush1.msra.mxu0 0.0
    %5551 = vmatprep.subr.mxu0 0.0
    %5552 = vmatpush1.msra.mxu0 0.0
    %5553 = vmatprep.subr.mxu0 0.0
    %5554 = vmatpush1.msra.mxu0 0.0
    %5555 = vmatprep.subr.mxu0 0.0
    %5556 = vmatpush1.msra.mxu0 0.0
    %5557 = vmatprep.subr.mxu0 0.0
    %5558 = vmatpush1.msra.mxu0 0.0
    %5559 = vmatprep.subr.mxu0 0.0
    %5560 = vmatpush1.msra.mxu0 0.0
    %5561 = vmatprep.subr.mxu0 0.0
    %5562 = vmatpush1.msra.mxu0 0.0
    %5563 = vmatprep.subr.mxu0 0.0
    %5564 = vmatpush1.msra.mxu0 0.0
    %5565 = vmatprep.subr.mxu0 0.0
    %5566 = vmatpush1.msra.mxu0 0.0
    %5567 = vmatprep.subr.mxu0 0.0
    %5568 = vmatpush1.msra.mxu0 0.0
    %5569 = vmatprep.subr.mxu0 0.0
    %5570 = vmatpush1.msra.mxu0 0.0
    %5571 = vmatprep.subr.mxu0 0.0
    %5572 = vmatpush1.msra.mxu0 0.0
    %5573 = vmatprep.subr.mxu0 0.0
    %5574 = vmatpush1.msra.mxu0 0.0
    %5575 = vmatprep.subr.mxu0 0.0
    %5576 = vmatpush1.msra.mxu0 0.0
    %5577 = vmatprep.subr.mxu0 0.0
    %5578 = vmatpush1.msra.mxu0 0.0
    %5579 = vmatprep.subr.mxu0 0.0
    %5580 = vmatpush1.msra.mxu0 0.0
    %5581 = vmatprep.subr.mxu0 0.0
    %5582 = vmatpush1.msra.mxu0 0.0
    %5583 = vmatprep.subr.mxu0 0.0
    %5584 = vmatpush1.msra.mxu0 0.0
    %5585 = vmatprep.subr.mxu0 0.0
    %5586 = vmatpush1.msra.mxu0 0.0
    %5587 = vmatprep.subr.mxu0 0.0
    %5588 = vmatpush1.msra.mxu0 0.0
    %5589 = vmatprep.subr.mxu0 0.0
    %5590 = vmatpush1.msra.mxu0 0.0
    %5591 = vmatprep.subr.mxu0 0.0
    %5592 = vmatpush1.msra.mxu0 0.0
    %5593 = vmatprep.mubr.f32.mxu0 0.0
    %v5594 = vand.u32 %v589, 4294901760
    %v5595 = vsub.f32 %v589, %v5594
    %5596 = vmatmul.mubr.f32.gmra.mrb[0].mxu0 %v5595
    %v5597 = vpop.f32.mrb[0].mxu0
    %v5598 = vadd.f32 %v5518, %v5597
    %v5599 = vpop.f32.mrb[0].mxu0
    %5600 = vdwg.mxu0
    %5601 = vmatprep.subr.mxu0 0.0
    %v5602 = vand.u32 %v5347, 4294901760
    %5603 = vmatpush1.msra.mxu0 %v5602
    %5604 = vmatprep.subr.mxu0 0.0
    %v5605 = vand.u32 %v5348, 4294901760
    %5606 = vmatpush1.msra.mxu0 %v5605
    %5607 = vmatprep.subr.mxu0 0.0
    %v5608 = vand.u32 %v5349, 4294901760
    %5609 = vmatpush1.msra.mxu0 %v5608
    %5610 = vmatprep.subr.mxu0 0.0
    %v5611 = vand.u32 %v5350, 4294901760
    %5612 = vmatpush1.msra.mxu0 %v5611
    %5613 = vmatprep.subr.mxu0 0.0
    %5614 = vmatpush1.msra.mxu0 0.0
    %5615 = vmatprep.subr.mxu0 0.0
    %5616 = vmatpush1.msra.mxu0 0.0
    %5617 = vmatprep.subr.mxu0 0.0
    %5618 = vmatpush1.msra.mxu0 0.0
    %5619 = vmatprep.subr.mxu0 0.0
    %5620 = vmatpush1.msra.mxu0 0.0
    %5621 = vmatprep.subr.mxu0 0.0
    %5622 = vmatpush1.msra.mxu0 0.0
    %5623 = vmatprep.subr.mxu0 0.0
    %5624 = vmatpush1.msra.mxu0 0.0
    %5625 = vmatprep.subr.mxu0 0.0
    %5626 = vmatpush1.msra.mxu0 0.0
    %5627 = vmatprep.subr.mxu0 0.0
    %5628 = vmatpush1.msra.mxu0 0.0
    %5629 = vmatprep.subr.mxu0 0.0
    %5630 = vmatpush1.msra.mxu0 0.0
    %5631 = vmatprep.subr.mxu0 0.0
    %5632 = vmatpush1.msra.mxu0 0.0
    %5633 = vmatprep.subr.mxu0 0.0
    %5634 = vmatpush1.msra.mxu0 0.0
    %5635 = vmatprep.subr.mxu0 0.0
    %5636 = vmatpush1.msra.mxu0 0.0
    %5637 = vmatprep.subr.mxu0 0.0
    %5638 = vmatpush1.msra.mxu0 0.0
    %5639 = vmatprep.subr.mxu0 0.0
    %5640 = vmatpush1.msra.mxu0 0.0
    %5641 = vmatprep.subr.mxu0 0.0
    %5642 = vmatpush1.msra.mxu0 0.0
    %5643 = vmatprep.subr.mxu0 0.0
    %5644 = vmatpush1.msra.mxu0 0.0
    %5645 = vmatprep.subr.mxu0 0.0
    %5646 = vmatpush1.msra.mxu0 0.0
    %5647 = vmatprep.subr.mxu0 0.0
    %5648 = vmatpush1.msra.mxu0 0.0
    %5649 = vmatprep.subr.mxu0 0.0
    %5650 = vmatpush1.msra.mxu0 0.0
    %5651 = vmatprep.subr.mxu0 0.0
    %5652 = vmatpush1.msra.mxu0 0.0
    %5653 = vmatprep.subr.mxu0 0.0
    %5654 = vmatpush1.msra.mxu0 0.0
    %5655 = vmatprep.subr.mxu0 0.0
    %5656 = vmatpush1.msra.mxu0 0.0
    %5657 = vmatprep.subr.mxu0 0.0
    %5658 = vmatpush1.msra.mxu0 0.0
    %5659 = vmatprep.subr.mxu0 0.0
    %5660 = vmatpush1.msra.mxu0 0.0
    %5661 = vmatprep.subr.mxu0 0.0
    %5662 = vmatpush1.msra.mxu0 0.0
    %5663 = vmatprep.subr.mxu0 0.0
    %5664 = vmatpush1.msra.mxu0 0.0
    %5665 = vmatprep.subr.mxu0 0.0
    %5666 = vmatpush1.msra.mxu0 0.0
    %5667 = vmatprep.subr.mxu0 0.0
    %5668 = vmatpush1.msra.mxu0 0.0
    %5669 = vmatprep.mubr.f32.mxu0 0.0
    %v5670 = vand.u32 %v589, 4294901760
    %v5671 = vsub.f32 %v589, %v5670
    %v5672 = vand.u32 %v5671, 4294901760
    %5673 = vmatmul.mubr.f32.gmra.mrb[0].mxu0 %v5672
    %v5674 = vpop.f32.mrb[0].mxu0
    %v5675 = vadd.f32 %v5598, %v5674
    %v5676 = vpop.f32.mrb[0].mxu0
    %5677 = vdwg.mxu0
    %5678 = vmatprep.subr.mxu0 0.0
    %v5679 = vand.u32 %v5347, 4294901760
    %v5680 = vsub.f32 %v5347, %v5679
    %v5681 = vand.u32 %v5680, 4294901760
    %5682 = vmatpush1.msra.mxu0 %v5681
    %5683 = vmatprep.subr.mxu0 0.0
    %v5684 = vand.u32 %v5348, 4294901760
    %v5685 = vsub.f32 %v5348, %v5684
    %v5686 = vand.u32 %v5685, 4294901760
    %5687 = vmatpush1.msra.mxu0 %v5686
    %5688 = vmatprep.subr.mxu0 0.0
    %v5689 = vand.u32 %v5349, 4294901760
    %v5690 = vsub.f32 %v5349, %v5689
    %v5691 = vand.u32 %v5690, 4294901760
    %5692 = vmatpush1.msra.mxu0 %v5691
    %5693 = vmatprep.subr.mxu0 0.0
    %v5694 = vand.u32 %v5350, 4294901760
    %v5695 = vsub.f32 %v5350, %v5694
    %v5696 = vand.u32 %v5695, 4294901760
    %5697 = vmatpush1.msra.mxu0 %v5696
    %5698 = vmatprep.subr.mxu0 0.0
    %5699 = vmatpush1.msra.mxu0 0.0
    %5700 = vmatprep.subr.mxu0 0.0
    %5701 = vmatpush1.msra.mxu0 0.0
    %5702 = vmatprep.subr.mxu0 0.0
    %5703 = vmatpush1.msra.mxu0 0.0
    %5704 = vmatprep.subr.mxu0 0.0
    %5705 = vmatpush1.msra.mxu0 0.0
    %5706 = vmatprep.subr.mxu0 0.0
    %5707 = vmatpush1.msra.mxu0 0.0
    %5708 = vmatprep.subr.mxu0 0.0
    %5709 = vmatpush1.msra.mxu0 0.0
    %5710 = vmatprep.subr.mxu0 0.0
    %5711 = vmatpush1.msra.mxu0 0.0
    %5712 = vmatprep.subr.mxu0 0.0
    %5713 = vmatpush1.msra.mxu0 0.0
    %5714 = vmatprep.subr.mxu0 0.0
    %5715 = vmatpush1.msra.mxu0 0.0
    %5716 = vmatprep.subr.mxu0 0.0
    %5717 = vmatpush1.msra.mxu0 0.0
    %5718 = vmatprep.subr.mxu0 0.0
    %5719 = vmatpush1.msra.mxu0 0.0
    %5720 = vmatprep.subr.mxu0 0.0
    %5721 = vmatpush1.msra.mxu0 0.0
    %5722 = vmatprep.subr.mxu0 0.0
    %5723 = vmatpush1.msra.mxu0 0.0
    %5724 = vmatprep.subr.mxu0 0.0
    %5725 = vmatpush1.msra.mxu0 0.0
    %5726 = vmatprep.subr.mxu0 0.0
    %5727 = vmatpush1.msra.mxu0 0.0
    %5728 = vmatprep.subr.mxu0 0.0
    %5729 = vmatpush1.msra.mxu0 0.0
    %5730 = vmatprep.subr.mxu0 0.0
    %5731 = vmatpush1.msra.mxu0 0.0
    %5732 = vmatprep.subr.mxu0 0.0
    %5733 = vmatpush1.msra.mxu0 0.0
    %5734 = vmatprep.subr.mxu0 0.0
    %5735 = vmatpush1.msra.mxu0 0.0
    %5736 = vmatprep.subr.mxu0 0.0
    %5737 = vmatpush1.msra.mxu0 0.0
    %5738 = vmatprep.subr.mxu0 0.0
    %5739 = vmatpush1.msra.mxu0 0.0
    %5740 = vmatprep.subr.mxu0 0.0
    %5741 = vmatpush1.msra.mxu0 0.0
    %5742 = vmatprep.subr.mxu0 0.0
    %5743 = vmatpush1.msra.mxu0 0.0
    %5744 = vmatprep.subr.mxu0 0.0
    %5745 = vmatpush1.msra.mxu0 0.0
    %5746 = vmatprep.subr.mxu0 0.0
    %5747 = vmatpush1.msra.mxu0 0.0
    %5748 = vmatprep.subr.mxu0 0.0
    %5749 = vmatpush1.msra.mxu0 0.0
    %5750 = vmatprep.subr.mxu0 0.0
    %5751 = vmatpush1.msra.mxu0 0.0
    %5752 = vmatprep.subr.mxu0 0.0
    %5753 = vmatpush1.msra.mxu0 0.0
    %5754 = vmatprep.mubr.f32.mxu0 0.0
    %v5755 = vand.u32 %v589, 4294901760
    %5756 = vmatmul.mubr.f32.gmra.mrb[0].mxu0 %v5755
    %v5757 = vpop.f32.mrb[0].mxu0
    %v5758 = vadd.f32 %v5675, %v5757
    %v5759 = vpop.f32.mrb[0].mxu0
    %5760 = vdwg.mxu0
    %5761 = vmatprep.subr.mxu0 0.0
    %v5762 = vand.u32 %v5347, 4294901760
    %5763 = vmatpush1.msra.mxu0 %v5762
    %5764 = vmatprep.subr.mxu0 0.0
    %v5765 = vand.u32 %v5348, 4294901760
    %5766 = vmatpush1.msra.mxu0 %v5765
    %5767 = vmatprep.subr.mxu0 0.0
    %v5768 = vand.u32 %v5349, 4294901760
    %5769 = vmatpush1.msra.mxu0 %v5768
    %5770 = vmatprep.subr.mxu0 0.0
    %v5771 = vand.u32 %v5350, 4294901760
    %5772 = vmatpush1.msra.mxu0 %v5771
    %5773 = vmatprep.subr.mxu0 0.0
    %5774 = vmatpush1.msra.mxu0 0.0
    %5775 = vmatprep.subr.mxu0 0.0
    %5776 = vmatpush1.msra.mxu0 0.0
    %5777 = vmatprep.subr.mxu0 0.0
    %5778 = vmatpush1.msra.mxu0 0.0
    %5779 = vmatprep.subr.mxu0 0.0
    %5780 = vmatpush1.msra.mxu0 0.0
    %5781 = vmatprep.subr.mxu0 0.0
    %5782 = vmatpush1.msra.mxu0 0.0
    %5783 = vmatprep.subr.mxu0 0.0
    %5784 = vmatpush1.msra.mxu0 0.0
    %5785 = vmatprep.subr.mxu0 0.0
    %5786 = vmatpush1.msra.mxu0 0.0
    %5787 = vmatprep.subr.mxu0 0.0
    %5788 = vmatpush1.msra.mxu0 0.0
    %5789 = vmatprep.subr.mxu0 0.0
    %5790 = vmatpush1.msra.mxu0 0.0
    %5791 = vmatprep.subr.mxu0 0.0
    %5792 = vmatpush1.msra.mxu0 0.0
    %5793 = vmatprep.subr.mxu0 0.0
    %5794 = vmatpush1.msra.mxu0 0.0
    %5795 = vmatprep.subr.mxu0 0.0
    %5796 = vmatpush1.msra.mxu0 0.0
    %5797 = vmatprep.subr.mxu0 0.0
    %5798 = vmatpush1.msra.mxu0 0.0
    %5799 = vmatprep.subr.mxu0 0.0
    %5800 = vmatpush1.msra.mxu0 0.0
    %5801 = vmatprep.subr.mxu0 0.0
    %5802 = vmatpush1.msra.mxu0 0.0
    %5803 = vmatprep.subr.mxu0 0.0
    %5804 = vmatpush1.msra.mxu0 0.0
    %5805 = vmatprep.subr.mxu0 0.0
    %5806 = vmatpush1.msra.mxu0 0.0
    %5807 = vmatprep.subr.mxu0 0.0
    %5808 = vmatpush1.msra.mxu0 0.0
    %5809 = vmatprep.subr.mxu0 0.0
    %5810 = vmatpush1.msra.mxu0 0.0
    %5811 = vmatprep.subr.mxu0 0.0
    %5812 = vmatpush1.msra.mxu0 0.0
    %5813 = vmatprep.subr.mxu0 0.0
    %5814 = vmatpush1.msra.mxu0 0.0
    %5815 = vmatprep.subr.mxu0 0.0
    %5816 = vmatpush1.msra.mxu0 0.0
    %5817 = vmatprep.subr.mxu0 0.0
    %5818 = vmatpush1.msra.mxu0 0.0
    %5819 = vmatprep.subr.mxu0 0.0
    %5820 = vmatpush1.msra.mxu0 0.0
    %5821 = vmatprep.subr.mxu0 0.0
    %5822 = vmatpush1.msra.mxu0 0.0
    %5823 = vmatprep.subr.mxu0 0.0
    %5824 = vmatpush1.msra.mxu0 0.0
    %5825 = vmatprep.subr.mxu0 0.0
    %5826 = vmatpush1.msra.mxu0 0.0
    %5827 = vmatprep.subr.mxu0 0.0
    %5828 = vmatpush1.msra.mxu0 0.0
    %5829 = vmatprep.mubr.f32.mxu0 0.0
    %v5830 = vand.u32 %v589, 4294901760
    %5831 = vmatmul.mubr.f32.gmra.mrb[0].mxu0 %v5830
    %v5832 = vpop.f32.mrb[0].mxu0
    %v5833 = vadd.f32 %v5758, %v5832
    %v5834 = vpop.f32.mrb[0].mxu0
    %5835 = vdwg.mxu0
    %v5836 = vadd.f32 %v5338, %v5833
    %v5837 = vmul.f32 %v5836, 0.5
    %v5838 = vtanh.pop %v5837
    %v5839 = vadd.f32 %v5838, 1.0
    %v5840 = vmul.f32 %v5839, 0.5
    %v5841 = vtanh.pop %v5836
    %v5842 = vmul.f32 %v5840, 0.0
    %5844 = vrot.lane.b32.xlu0 %v5841, 64
    %v5845 = vpop.permute.xlu0 %5844
    %v5847 = vmul.f32 %v5840, %v5845
    %5849 = vrot.lane.b32.xlu0 %v5847, 32
    %v5850 = vpop.permute.xlu0 %5849
    %v5852 = vadd.f32 %v5842, %v5850
    %v5853 = vtanh.pop %v5852
    %5855 = vrot.lane.b32.xlu0 %v5853, 64
    %v5856 = vpop.permute.xlu0 %5855
    %v5858 = vmul.f32 %v5840, %v5856
    %5860 = vrot.lane.b32.xlu0 %v5858, 32
    %v5861 = vpop.permute.xlu0 %5860
    %v5862 = vsel %vm49, %v5861, 0
    %5864 = vmatprep.subr.mxu0 0.0
    %v5865 = vand.u32 %v5347, 4294901760
    %5866 = vmatpush1.msra.mxu0 %v5865
    %5867 = vmatprep.subr.mxu0 0.0
    %v5868 = vand.u32 %v5348, 4294901760
    %5869 = vmatpush1.msra.mxu0 %v5868
    %5870 = vmatprep.subr.mxu0 0.0
    %v5871 = vand.u32 %v5349, 4294901760
    %5872 = vmatpush1.msra.mxu0 %v5871
    %5873 = vmatprep.subr.mxu0 0.0
    %v5874 = vand.u32 %v5350, 4294901760
    %5875 = vmatpush1.msra.mxu0 %v5874
    %5876 = vmatprep.subr.mxu0 0.0
    %5877 = vmatpush1.msra.mxu0 0.0
    %5878 = vmatprep.subr.mxu0 0.0
    %5879 = vmatpush1.msra.mxu0 0.0
    %5880 = vmatprep.subr.mxu0 0.0
    %5881 = vmatpush1.msra.mxu0 0.0
    %5882 = vmatprep.subr.mxu0 0.0
    %5883 = vmatpush1.msra.mxu0 0.0
    %5884 = vmatprep.subr.mxu0 0.0
    %5885 = vmatpush1.msra.mxu0 0.0
    %5886 = vmatprep.subr.mxu0 0.0
    %5887 = vmatpush1.msra.mxu0 0.0
    %5888 = vmatprep.subr.mxu0 0.0
    %5889 = vmatpush1.msra.mxu0 0.0
    %5890 = vmatprep.subr.mxu0 0.0
    %5891 = vmatpush1.msra.mxu0 0.0
    %5892 = vmatprep.subr.mxu0 0.0
    %5893 = vmatpush1.msra.mxu0 0.0
    %5894 = vmatprep.subr.mxu0 0.0
    %5895 = vmatpush1.msra.mxu0 0.0
    %5896 = vmatprep.subr.mxu0 0.0
    %5897 = vmatpush1.msra.mxu0 0.0
    %5898 = vmatprep.subr.mxu0 0.0
    %5899 = vmatpush1.msra.mxu0 0.0
    %5900 = vmatprep.subr.mxu0 0.0
    %5901 = vmatpush1.msra.mxu0 0.0
    %5902 = vmatprep.subr.mxu0 0.0
    %5903 = vmatpush1.msra.mxu0 0.0
    %5904 = vmatprep.subr.mxu0 0.0
    %5905 = vmatpush1.msra.mxu0 0.0
    %5906 = vmatprep.subr.mxu0 0.0
    %5907 = vmatpush1.msra.mxu0 0.0
    %5908 = vmatprep.subr.mxu0 0.0
    %5909 = vmatpush1.msra.mxu0 0.0
    %5910 = vmatprep.subr.mxu0 0.0
    %5911 = vmatpush1.msra.mxu0 0.0
    %5912 = vmatprep.subr.mxu0 0.0
    %5913 = vmatpush1.msra.mxu0 0.0
    %5914 = vmatprep.subr.mxu0 0.0
    %5915 = vmatpush1.msra.mxu0 0.0
    %5916 = vmatprep.subr.mxu0 0.0
    %5917 = vmatpush1.msra.mxu0 0.0
    %5918 = vmatprep.subr.mxu0 0.0
    %5919 = vmatpush1.msra.mxu0 0.0
    %5920 = vmatprep.subr.mxu0 0.0
    %5921 = vmatpush1.msra.mxu0 0.0
    %5922 = vmatprep.subr.mxu0 0.0
    %5923 = vmatpush1.msra.mxu0 0.0
    %5924 = vmatprep.subr.mxu0 0.0
    %5925 = vmatpush1.msra.mxu0 0.0
    %5926 = vmatprep.subr.mxu0 0.0
    %5927 = vmatpush1.msra.mxu0 0.0
    %5928 = vmatprep.subr.mxu0 0.0
    %5929 = vmatpush1.msra.mxu0 0.0
    %5930 = vmatprep.subr.mxu0 0.0
    %5931 = vmatpush1.msra.mxu0 0.0
    %5932 = vmatprep.mubr.f32.mxu0 0.0
    %v5933 = vand.u32 %v5862, 4294901760
    %v5934 = vsub.f32 %v5862, %v5933
    %v5935 = vand.u32 %v5934, 4294901760
    %v5936 = vsub.f32 %v5934, %v5935
    %v5937 = vand.u32 %v5936, 4294901760
    %5938 = vmatmul.mubr.f32.gmra.mrb[0].mxu0 %v5937
    %v5939 = vpop.f32.mrb[0].mxu0
    %v5940 = vadd.f32 0.0, %v5939
    %v5941 = vpop.f32.mrb[0].mxu0
    %5942 = vdwg.mxu0
    %5943 = vmatprep.subr.mxu0 0.0
    %v5944 = vand.u32 %v5347, 4294901760
    %v5945 = vsub.f32 %v5347, %v5944
    %v5946 = vand.u32 %v5945, 4294901760
    %v5947 = vsub.f32 %v5945, %v5946
    %v5948 = vand.u32 %v5947, 4294901760
    %5949 = vmatpush1.msra.mxu0 %v5948
    %5950 = vmatprep.subr.mxu0 0.0
    %v5951 = vand.u32 %v5348, 4294901760
    %v5952 = vsub.f32 %v5348, %v5951
    %v5953 = vand.u32 %v5952, 4294901760
    %v5954 = vsub.f32 %v5952, %v5953
    %v5955 = vand.u32 %v5954, 4294901760
    %5956 = vmatpush1.msra.mxu0 %v5955
    %5957 = vmatprep.subr.mxu0 0.0
    %v5958 = vand.u32 %v5349, 4294901760
    %v5959 = vsub.f32 %v5349, %v5958
    %v5960 = vand.u32 %v5959, 4294901760
    %v5961 = vsub.f32 %v5959, %v5960
    %v5962 = vand.u32 %v5961, 4294901760
    %5963 = vmatpush1.msra.mxu0 %v5962
    %5964 = vmatprep.subr.mxu0 0.0
    %v5965 = vand.u32 %v5350, 4294901760
    %v5966 = vsub.f32 %v5350, %v5965
    %v5967 = vand.u32 %v5966, 4294901760
    %v5968 = vsub.f32 %v5966, %v5967
    %v5969 = vand.u32 %v5968, 4294901760
    %5970 = vmatpush1.msra.mxu0 %v5969
    %5971 = vmatprep.subr.mxu0 0.0
    %5972 = vmatpush1.msra.mxu0 0.0
    %5973 = vmatprep.subr.mxu0 0.0
    %5974 = vmatpush1.msra.mxu0 0.0
    %5975 = vmatprep.subr.mxu0 0.0
    %5976 = vmatpush1.msra.mxu0 0.0
    %5977 = vmatprep.subr.mxu0 0.0
    %5978 = vmatpush1.msra.mxu0 0.0
    %5979 = vmatprep.subr.mxu0 0.0
    %5980 = vmatpush1.msra.mxu0 0.0
    %5981 = vmatprep.subr.mxu0 0.0
    %5982 = vmatpush1.msra.mxu0 0.0
    %5983 = vmatprep.subr.mxu0 0.0
    %5984 = vmatpush1.msra.mxu0 0.0
    %5985 = vmatprep.subr.mxu0 0.0
    %5986 = vmatpush1.msra.mxu0 0.0
    %5987 = vmatprep.subr.mxu0 0.0
    %5988 = vmatpush1.msra.mxu0 0.0
    %5989 = vmatprep.subr.mxu0 0.0
    %5990 = vmatpush1.msra.mxu0 0.0
    %5991 = vmatprep.subr.mxu0 0.0
    %5992 = vmatpush1.msra.mxu0 0.0
    %5993 = vmatprep.subr.mxu0 0.0
    %5994 = vmatpush1.msra.mxu0 0.0
    %5995 = vmatprep.subr.mxu0 0.0
    %5996 = vmatpush1.msra.mxu0 0.0
    %5997 = vmatprep.subr.mxu0 0.0
    %5998 = vmatpush1.msra.mxu0 0.0
    %5999 = vmatprep.subr.mxu0 0.0
    %6000 = vmatpush1.msra.mxu0 0.0
    %6001 = vmatprep.subr.mxu0 0.0
    %6002 = vmatpush1.msra.mxu0 0.0
    %6003 = vmatprep.subr.mxu0 0.0
    %6004 = vmatpush1.msra.mxu0 0.0
    %6005 = vmatprep.subr.mxu0 0.0
    %6006 = vmatpush1.msra.mxu0 0.0
    %6007 = vmatprep.subr.mxu0 0.0
    %6008 = vmatpush1.msra.mxu0 0.0
    %6009 = vmatprep.subr.mxu0 0.0
    %6010 = vmatpush1.msra.mxu0 0.0
    %6011 = vmatprep.subr.mxu0 0.0
    %6012 = vmatpush1.msra.mxu0 0.0
    %6013 = vmatprep.subr.mxu0 0.0
    %6014 = vmatpush1.msra.mxu0 0.0
    %6015 = vmatprep.subr.mxu0 0.0
    %6016 = vmatpush1.msra.mxu0 0.0
    %6017 = vmatprep.subr.mxu0 0.0
    %6018 = vmatpush1.msra.mxu0 0.0
    %6019 = vmatprep.subr.mxu0 0.0
    %6020 = vmatpush1.msra.mxu0 0.0
    %6021 = vmatprep.subr.mxu0 0.0
    %6022 = vmatpush1.msra.mxu0 0.0
    %6023 = vmatprep.subr.mxu0 0.0
    %6024 = vmatpush1.msra.mxu0 0.0
    %6025 = vmatprep.subr.mxu0 0.0
    %6026 = vmatpush1.msra.mxu0 0.0
    %6027 = vmatprep.mubr.f32.mxu0 0.0
    %v6028 = vand.u32 %v5862, 4294901760
    %6029 = vmatmul.mubr.f32.gmra.mrb[0].mxu0 %v6028
    %v6030 = vpop.f32.mrb[0].mxu0
    %v6031 = vadd.f32 %v5940, %v6030
    %v6032 = vpop.f32.mrb[0].mxu0
    %6033 = vdwg.mxu0
    %6034 = vmatprep.subr.mxu0 0.0
    %v6035 = vand.u32 %v5347, 4294901760
    %v6036 = vsub.f32 %v5347, %v6035
    %6037 = vmatpush1.msra.mxu0 %v6036
    %6038 = vmatprep.subr.mxu0 0.0
    %v6039 = vand.u32 %v5348, 4294901760
    %v6040 = vsub.f32 %v5348, %v6039
    %6041 = vmatpush1.msra.mxu0 %v6040
    %6042 = vmatprep.subr.mxu0 0.0
    %v6043 = vand.u32 %v5349, 4294901760
    %v6044 = vsub.f32 %v5349, %v6043
    %6045 = vmatpush1.msra.mxu0 %v6044
    %6046 = vmatprep.subr.mxu0 0.0
    %v6047 = vand.u32 %v5350, 4294901760
    %v6048 = vsub.f32 %v5350, %v6047
    %6049 = vmatpush1.msra.mxu0 %v6048
    %6050 = vmatprep.subr.mxu0 0.0
    %6051 = vmatpush1.msra.mxu0 0.0
    %6052 = vmatprep.subr.mxu0 0.0
    %6053 = vmatpush1.msra.mxu0 0.0
    %6054 = vmatprep.subr.mxu0 0.0
    %6055 = vmatpush1.msra.mxu0 0.0
    %6056 = vmatprep.subr.mxu0 0.0
    %6057 = vmatpush1.msra.mxu0 0.0
    %6058 = vmatprep.subr.mxu0 0.0
    %6059 = vmatpush1.msra.mxu0 0.0
    %6060 = vmatprep.subr.mxu0 0.0
    %6061 = vmatpush1.msra.mxu0 0.0
    %6062 = vmatprep.subr.mxu0 0.0
    %6063 = vmatpush1.msra.mxu0 0.0
    %6064 = vmatprep.subr.mxu0 0.0
    %6065 = vmatpush1.msra.mxu0 0.0
    %6066 = vmatprep.subr.mxu0 0.0
    %6067 = vmatpush1.msra.mxu0 0.0
    %6068 = vmatprep.subr.mxu0 0.0
    %6069 = vmatpush1.msra.mxu0 0.0
    %6070 = vmatprep.subr.mxu0 0.0
    %6071 = vmatpush1.msra.mxu0 0.0
    %6072 = vmatprep.subr.mxu0 0.0
    %6073 = vmatpush1.msra.mxu0 0.0
    %6074 = vmatprep.subr.mxu0 0.0
    %6075 = vmatpush1.msra.mxu0 0.0
    %6076 = vmatprep.subr.mxu0 0.0
    %6077 = vmatpush1.msra.mxu0 0.0
    %6078 = vmatprep.subr.mxu0 0.0
    %6079 = vmatpush1.msra.mxu0 0.0
    %6080 = vmatprep.subr.mxu0 0.0
    %6081 = vmatpush1.msra.mxu0 0.0
    %6082 = vmatprep.subr.mxu0 0.0
    %6083 = vmatpush1.msra.mxu0 0.0
    %6084 = vmatprep.subr.mxu0 0.0
    %6085 = vmatpush1.msra.mxu0 0.0
    %6086 = vmatprep.subr.mxu0 0.0
    %6087 = vmatpush1.msra.mxu0 0.0
    %6088 = vmatprep.subr.mxu0 0.0
    %6089 = vmatpush1.msra.mxu0 0.0
    %6090 = vmatprep.subr.mxu0 0.0
    %6091 = vmatpush1.msra.mxu0 0.0
    %6092 = vmatprep.subr.mxu0 0.0
    %6093 = vmatpush1.msra.mxu0 0.0
    %6094 = vmatprep.subr.mxu0 0.0
    %6095 = vmatpush1.msra.mxu0 0.0
    %6096 = vmatprep.subr.mxu0 0.0
    %6097 = vmatpush1.msra.mxu0 0.0
    %6098 = vmatprep.subr.mxu0 0.0
    %6099 = vmatpush1.msra.mxu0 0.0
    %6100 = vmatprep.subr.mxu0 0.0
    %6101 = vmatpush1.msra.mxu0 0.0
    %6102 = vmatprep.subr.mxu0 0.0
    %6103 = vmatpush1.msra.mxu0 0.0
    %6104 = vmatprep.subr.mxu0 0.0
    %6105 = vmatpush1.msra.mxu0 0.0
    %6106 = vmatprep.mubr.f32.mxu0 0.0
    %v6107 = vand.u32 %v5862, 4294901760
    %v6108 = vsub.f32 %v5862, %v6107
    %6109 = vmatmul.mubr.f32.gmra.mrb[0].mxu0 %v6108
    %v6110 = vpop.f32.mrb[0].mxu0
    %v6111 = vadd.f32 %v6031, %v6110
    %v6112 = vpop.f32.mrb[0].mxu0
    %6113 = vdwg.mxu0
    %6114 = vmatprep.subr.mxu0 0.0
    %v6115 = vand.u32 %v5347, 4294901760
    %6116 = vmatpush1.msra.mxu0 %v6115
    %6117 = vmatprep.subr.mxu0 0.0
    %v6118 = vand.u32 %v5348, 4294901760
    %6119 = vmatpush1.msra.mxu0 %v6118
    %6120 = vmatprep.subr.mxu0 0.0
    %v6121 = vand.u32 %v5349, 4294901760
    %6122 = vmatpush1.msra.mxu0 %v6121
    %6123 = vmatprep.subr.mxu0 0.0
    %v6124 = vand.u32 %v5350, 4294901760
    %6125 = vmatpush1.msra.mxu0 %v6124
    %6126 = vmatprep.subr.mxu0 0.0
    %6127 = vmatpush1.msra.mxu0 0.0
    %6128 = vmatprep.subr.mxu0 0.0
    %6129 = vmatpush1.msra.mxu0 0.0
    %6130 = vmatprep.subr.mxu0 0.0
    %6131 = vmatpush1.msra.mxu0 0.0
    %6132 = vmatprep.subr.mxu0 0.0
    %6133 = vmatpush1.msra.mxu0 0.0
    %6134 = vmatprep.subr.mxu0 0.0
    %6135 = vmatpush1.msra.mxu0 0.0
    %6136 = vmatprep.subr.mxu0 0.0
    %6137 = vmatpush1.msra.mxu0 0.0
    %6138 = vmatprep.subr.mxu0 0.0
    %6139 = vmatpush1.msra.mxu0 0.0
    %6140 = vmatprep.subr.mxu0 0.0
    %6141 = vmatpush1.msra.mxu0 0.0
    %6142 = vmatprep.subr.mxu0 0.0
    %6143 = vmatpush1.msra.mxu0 0.0
    %6144 = vmatprep.subr.mxu0 0.0
    %6145 = vmatpush1.msra.mxu0 0.0
    %6146 = vmatprep.subr.mxu0 0.0
    %6147 = vmatpush1.msra.mxu0 0.0
    %6148 = vmatprep.subr.mxu0 0.0
    %6149 = vmatpush1.msra.mxu0 0.0
    %6150 = vmatprep.subr.mxu0 0.0
    %6151 = vmatpush1.msra.mxu0 0.0
    %6152 = vmatprep.subr.mxu0 0.0
    %6153 = vmatpush1.msra.mxu0 0.0
    %6154 = vmatprep.subr.mxu0 0.0
    %6155 = vmatpush1.msra.mxu0 0.0
    %6156 = vmatprep.subr.mxu0 0.0
    %6157 = vmatpush1.msra.mxu0 0.0
    %6158 = vmatprep.subr.mxu0 0.0
    %6159 = vmatpush1.msra.mxu0 0.0
    %6160 = vmatprep.subr.mxu0 0.0
    %6161 = vmatpush1.msra.mxu0 0.0
    %6162 = vmatprep.subr.mxu0 0.0
    %6163 = vmatpush1.msra.mxu0 0.0
    %6164 = vmatprep.subr.mxu0 0.0
    %6165 = vmatpush1.msra.mxu0 0.0
    %6166 = vmatprep.subr.mxu0 0.0
    %6167 = vmatpush1.msra.mxu0 0.0
    %6168 = vmatprep.subr.mxu0 0.0
    %6169 = vmatpush1.msra.mxu0 0.0
    %6170 = vmatprep.subr.mxu0 0.0
    %6171 = vmatpush1.msra.mxu0 0.0
    %6172 = vmatprep.subr.mxu0 0.0
    %6173 = vmatpush1.msra.mxu0 0.0
    %6174 = vmatprep.subr.mxu0 0.0
    %6175 = vmatpush1.msra.mxu0 0.0
    %6176 = vmatprep.subr.mxu0 0.0
    %6177 = vmatpush1.msra.mxu0 0.0
    %6178 = vmatprep.subr.mxu0 0.0
    %6179 = vmatpush1.msra.mxu0 0.0
    %6180 = vmatprep.subr.mxu0 0.0
    %6181 = vmatpush1.msra.mxu0 0.0
    %6182 = vmatprep.mubr.f32.mxu0 0.0
    %v6183 = vand.u32 %v5862, 4294901760
    %v6184 = vsub.f32 %v5862, %v6183
    %v6185 = vand.u32 %v6184, 4294901760
    %6186 = vmatmul.mubr.f32.gmra.mrb[0].mxu0 %v6185
    %v6187 = vpop.f32.mrb[0].mxu0
    %v6188 = vadd.f32 %v6111, %v6187
    %v6189 = vpop.f32.mrb[0].mxu0
    %6190 = vdwg.mxu0
    %6191 = vmatprep.subr.mxu0 0.0
    %v6192 = vand.u32 %v5347, 4294901760
    %v6193 = vsub.f32 %v5347, %v6192
    %v6194 = vand.u32 %v6193, 4294901760
    %6195 = vmatpush1.msra.mxu0 %v6194
    %6196 = vmatprep.subr.mxu0 0.0
    %v6197 = vand.u32 %v5348, 4294901760
    %v6198 = vsub.f32 %v5348, %v6197
    %v6199 = vand.u32 %v6198, 4294901760
    %6200 = vmatpush1.msra.mxu0 %v6199
    %6201 = vmatprep.subr.mxu0 0.0
    %v6202 = vand.u32 %v5349, 4294901760
    %v6203 = vsub.f32 %v5349, %v6202
    %v6204 = vand.u32 %v6203, 4294901760
    %6205 = vmatpush1.msra.mxu0 %v6204
    %6206 = vmatprep.subr.mxu0 0.0
    %v6207 = vand.u32 %v5350, 4294901760
    %v6208 = vsub.f32 %v5350, %v6207
    %v6209 = vand.u32 %v6208, 4294901760
    %6210 = vmatpush1.msra.mxu0 %v6209
    %6211 = vmatprep.subr.mxu0 0.0
    %6212 = vmatpush1.msra.mxu0 0.0
    %6213 = vmatprep.subr.mxu0 0.0
    %6214 = vmatpush1.msra.mxu0 0.0
    %6215 = vmatprep.subr.mxu0 0.0
    %6216 = vmatpush1.msra.mxu0 0.0
    %6217 = vmatprep.subr.mxu0 0.0
    %6218 = vmatpush1.msra.mxu0 0.0
    %6219 = vmatprep.subr.mxu0 0.0
    %6220 = vmatpush1.msra.mxu0 0.0
    %6221 = vmatprep.subr.mxu0 0.0
    %6222 = vmatpush1.msra.mxu0 0.0
    %6223 = vmatprep.subr.mxu0 0.0
    %6224 = vmatpush1.msra.mxu0 0.0
    %6225 = vmatprep.subr.mxu0 0.0
    %6226 = vmatpush1.msra.mxu0 0.0
    %6227 = vmatprep.subr.mxu0 0.0
    %6228 = vmatpush1.msra.mxu0 0.0
    %6229 = vmatprep.subr.mxu0 0.0
    %6230 = vmatpush1.msra.mxu0 0.0
    %6231 = vmatprep.subr.mxu0 0.0
    %6232 = vmatpush1.msra.mxu0 0.0
    %6233 = vmatprep.subr.mxu0 0.0
    %6234 = vmatpush1.msra.mxu0 0.0
    %6235 = vmatprep.subr.mxu0 0.0
    %6236 = vmatpush1.msra.mxu0 0.0
    %6237 = vmatprep.subr.mxu0 0.0
    %6238 = vmatpush1.msra.mxu0 0.0
    %6239 = vmatprep.subr.mxu0 0.0
    %6240 = vmatpush1.msra.mxu0 0.0
    %6241 = vmatprep.subr.mxu0 0.0
    %6242 = vmatpush1.msra.mxu0 0.0
    %6243 = vmatprep.subr.mxu0 0.0
    %6244 = vmatpush1.msra.mxu0 0.0
    %6245 = vmatprep.subr.mxu0 0.0
    %6246 = vmatpush1.msra.mxu0 0.0
    %6247 = vmatprep.subr.mxu0 0.0
    %6248 = vmatpush1.msra.mxu0 0.0
    %6249 = vmatprep.subr.mxu0 0.0
    %6250 = vmatpush1.msra.mxu0 0.0
    %6251 = vmatprep.subr.mxu0 0.0
    %6252 = vmatpush1.msra.mxu0 0.0
    %6253 = vmatprep.subr.mxu0 0.0
    %6254 = vmatpush1.msra.mxu0 0.0
    %6255 = vmatprep.subr.mxu0 0.0
    %6256 = vmatpush1.msra.mxu0 0.0
    %6257 = vmatprep.subr.mxu0 0.0
    %6258 = vmatpush1.msra.mxu0 0.0
    %6259 = vmatprep.subr.mxu0 0.0
    %6260 = vmatpush1.msra.mxu0 0.0
    %6261 = vmatprep.subr.mxu0 0.0
    %6262 = vmatpush1.msra.mxu0 0.0
    %6263 = vmatprep.subr.mxu0 0.0
    %6264 = vmatpush1.msra.mxu0 0.0
    %6265 = vmatprep.subr.mxu0 0.0
    %6266 = vmatpush1.msra.mxu0 0.0
    %6267 = vmatprep.mubr.f32.mxu0 0.0
    %v6268 = vand.u32 %v5862, 4294901760
    %6269 = vmatmul.mubr.f32.gmra.mrb[0].mxu0 %v6268
    %v6270 = vpop.f32.mrb[0].mxu0
    %v6271 = vadd.f32 %v6188, %v6270
    %v6272 = vpop.f32.mrb[0].mxu0
    %6273 = vdwg.mxu0
    %6274 = vmatprep.subr.mxu0 0.0
    %v6275 = vand.u32 %v5347, 4294901760
    %6276 = vmatpush1.msra.mxu0 %v6275
    %6277 = vmatprep.subr.mxu0 0.0
    %v6278 = vand.u32 %v5348, 4294901760
    %6279 = vmatpush1.msra.mxu0 %v6278
    %6280 = vmatprep.subr.mxu0 0.0
    %v6281 = vand.u32 %v5349, 4294901760
    %6282 = vmatpush1.msra.mxu0 %v6281
    %6283 = vmatprep.subr.mxu0 0.0
    %v6284 = vand.u32 %v5350, 4294901760
    %6285 = vmatpush1.msra.mxu0 %v6284
    %6286 = vmatprep.subr.mxu0 0.0
    %6287 = vmatpush1.msra.mxu0 0.0
    %6288 = vmatprep.subr.mxu0 0.0
    %6289 = vmatpush1.msra.mxu0 0.0
    %6290 = vmatprep.subr.mxu0 0.0
    %6291 = vmatpush1.msra.mxu0 0.0
    %6292 = vmatprep.subr.mxu0 0.0
    %6293 = vmatpush1.msra.mxu0 0.0
    %6294 = vmatprep.subr.mxu0 0.0
    %6295 = vmatpush1.msra.mxu0 0.0
    %6296 = vmatprep.subr.mxu0 0.0
    %6297 = vmatpush1.msra.mxu0 0.0
    %6298 = vmatprep.subr.mxu0 0.0
    %6299 = vmatpush1.msra.mxu0 0.0
    %6300 = vmatprep.subr.mxu0 0.0
    %6301 = vmatpush1.msra.mxu0 0.0
    %6302 = vmatprep.subr.mxu0 0.0
    %6303 = vmatpush1.msra.mxu0 0.0
    %6304 = vmatprep.subr.mxu0 0.0
    %6305 = vmatpush1.msra.mxu0 0.0
    %6306 = vmatprep.subr.mxu0 0.0
    %6307 = vmatpush1.msra.mxu0 0.0
    %6308 = vmatprep.subr.mxu0 0.0
    %6309 = vmatpush1.msra.mxu0 0.0
    %6310 = vmatprep.subr.mxu0 0.0
    %6311 = vmatpush1.msra.mxu0 0.0
    %6312 = vmatprep.subr.mxu0 0.0
    %6313 = vmatpush1.msra.mxu0 0.0
    %6314 = vmatprep.subr.mxu0 0.0
    %6315 = vmatpush1.msra.mxu0 0.0
    %6316 = vmatprep.subr.mxu0 0.0
    %6317 = vmatpush1.msra.mxu0 0.0
    %6318 = vmatprep.subr.mxu0 0.0
    %6319 = vmatpush1.msra.mxu0 0.0
    %6320 = vmatprep.subr.mxu0 0.0
    %6321 = vmatpush1.msra.mxu0 0.0
    %6322 = vmatprep.subr.mxu0 0.0
    %6323 = vmatpush1.msra.mxu0 0.0
    %6324 = vmatprep.subr.mxu0 0.0
    %6325 = vmatpush1.msra.mxu0 0.0
    %6326 = vmatprep.subr.mxu0 0.0
    %6327 = vmatpush1.msra.mxu0 0.0
    %6328 = vmatprep.subr.mxu0 0.0
    %6329 = vmatpush1.msra.mxu0 0.0
    %6330 = vmatprep.subr.mxu0 0.0
    %6331 = vmatpush1.msra.mxu0 0.0
    %6332 = vmatprep.subr.mxu0 0.0
    %6333 = vmatpush1.msra.mxu0 0.0
    %6334 = vmatprep.subr.mxu0 0.0
    %6335 = vmatpush1.msra.mxu0 0.0
    %6336 = vmatprep.subr.mxu0 0.0
    %6337 = vmatpush1.msra.mxu0 0.0
    %6338 = vmatprep.subr.mxu0 0.0
    %6339 = vmatpush1.msra.mxu0 0.0
    %6340 = vmatprep.subr.mxu0 0.0
    %6341 = vmatpush1.msra.mxu0 0.0
    %6342 = vmatprep.mubr.f32.mxu0 0.0
    %v6343 = vand.u32 %v5862, 4294901760
    %6344 = vmatmul.mubr.f32.gmra.mrb[0].mxu0 %v6343
    %v6345 = vpop.f32.mrb[0].mxu0
    %v6346 = vadd.f32 %v6271, %v6345
    %v6347 = vpop.f32.mrb[0].mxu0
    %6348 = vdwg.mxu0
    %v6350 = vrot.slane %v6346, 6
    %v6352 = vadd.f32 %v5338, %v6350
    %v6353 = vmul.f32 %v6352, 0.5
    %v6354 = vtanh.pop %v6353
    %v6355 = vadd.f32 %v6354, 1.0
    %v6356 = vmul.f32 %v6355, 0.5
    %v6357 = vtanh.pop %v6352
    %v6359 = vrot.slane %v5852, 6
    %v6361 = vmul.f32 %v6356, %v6359
    %6363 = vrot.lane.b32.xlu0 %v6357, 64
    %v6364 = vpop.permute.xlu0 %6363
    %v6366 = vmul.f32 %v6356, %v6364
    %6368 = vrot.lane.b32.xlu0 %v6366, 32
    %v6369 = vpop.permute.xlu0 %6368
    %v6371 = vadd.f32 %v6361, %v6369
    %v6372 = vtanh.pop %v6371
    %6374 = vrot.lane.b32.xlu0 %v6372, 64
    %v6375 = vpop.permute.xlu0 %6374
    %v6377 = vmul.f32 %v6356, %v6375
    %v6379 = vrot.slane %v6377, 2
    %6380 = vrot.lane.b32.xlu0 %v6379, 32
    %v6381 = vpop.permute.xlu0 %6380
    %v6382 = vsel %vm49, %v6381, 0
    %6384 = vmatprep.subr.mxu0 0.0
    %v6385 = vand.u32 %v5347, 4294901760
    %6386 = vmatpush1.msra.mxu0 %v6385
    %6387 = vmatprep.subr.mxu0 0.0
    %v6388 = vand.u32 %v5348, 4294901760
    %6389 = vmatpush1.msra.mxu0 %v6388
    %6390 = vmatprep.subr.mxu0 0.0
    %v6391 = vand.u32 %v5349, 4294901760
    %6392 = vmatpush1.msra.mxu0 %v6391
    %6393 = vmatprep.subr.mxu0 0.0
    %v6394 = vand.u32 %v5350, 4294901760
    %6395 = vmatpush1.msra.mxu0 %v6394
    %6396 = vmatprep.subr.mxu0 0.0
    %6397 = vmatpush1.msra.mxu0 0.0
    %6398 = vmatprep.subr.mxu0 0.0
    %6399 = vmatpush1.msra.mxu0 0.0
    %6400 = vmatprep.subr.mxu0 0.0
    %6401 = vmatpush1.msra.mxu0 0.0
    %6402 = vmatprep.subr.mxu0 0.0
    %6403 = vmatpush1.msra.mxu0 0.0
    %6404 = vmatprep.subr.mxu0 0.0
    %6405 = vmatpush1.msra.mxu0 0.0
    %6406 = vmatprep.subr.mxu0 0.0
    %6407 = vmatpush1.msra.mxu0 0.0
    %6408 = vmatprep.subr.mxu0 0.0
    %6409 = vmatpush1.msra.mxu0 0.0
    %6410 = vmatprep.subr.mxu0 0.0
    %6411 = vmatpush1.msra.mxu0 0.0
    %6412 = vmatprep.subr.mxu0 0.0
    %6413 = vmatpush1.msra.mxu0 0.0
    %6414 = vmatprep.subr.mxu0 0.0
    %6415 = vmatpush1.msra.mxu0 0.0
    %6416 = vmatprep.subr.mxu0 0.0
    %6417 = vmatpush1.msra.mxu0 0.0
    %6418 = vmatprep.subr.mxu0 0.0
    %6419 = vmatpush1.msra.mxu0 0.0
    %6420 = vmatprep.subr.mxu0 0.0
    %6421 = vmatpush1.msra.mxu0 0.0
    %6422 = vmatprep.subr.mxu0 0.0
    %6423 = vmatpush1.msra.mxu0 0.0
    %6424 = vmatprep.subr.mxu0 0.0
    %6425 = vmatpush1.msra.mxu0 0.0
    %6426 = vmatprep.subr.mxu0 0.0
    %6427 = vmatpush1.msra.mxu0 0.0
    %6428 = vmatprep.subr.mxu0 0.0
    %6429 = vmatpush1.msra.mxu0 0.0
    %6430 = vmatprep.subr.mxu0 0.0
    %6431 = vmatpush1.msra.mxu0 0.0
    %6432 = vmatprep.subr.mxu0 0.0
    %6433 = vmatpush1.msra.mxu0 0.0
    %6434 = vmatprep.subr.mxu0 0.0
    %6435 = vmatpush1.msra.mxu0 0.0
    %6436 = vmatprep.subr.mxu0 0.0
    %6437 = vmatpush1.msra.mxu0 0.0
    %6438 = vmatprep.subr.mxu0 0.0
    %6439 = vmatpush1.msra.mxu0 0.0
    %6440 = vmatprep.subr.mxu0 0.0
    %6441 = vmatpush1.msra.mxu0 0.0
    %6442 = vmatprep.subr.mxu0 0.0
    %6443 = vmatpush1.msra.mxu0 0.0
    %6444 = vmatprep.subr.mxu0 0.0
    %6445 = vmatpush1.msra.mxu0 0.0
    %6446 = vmatprep.subr.mxu0 0.0
    %6447 = vmatpush1.msra.mxu0 0.0
    %6448 = vmatprep.subr.mxu0 0.0
    %6449 = vmatpush1.msra.mxu0 0.0
    %6450 = vmatprep.subr.mxu0 0.0
    %6451 = vmatpush1.msra.mxu0 0.0
    %6452 = vmatprep.mubr.f32.mxu0 0.0
    %v6453 = vand.u32 %v6382, 4294901760
    %v6454 = vsub.f32 %v6382, %v6453
    %v6455 = vand.u32 %v6454, 4294901760
    %v6456 = vsub.f32 %v6454, %v6455
    %v6457 = vand.u32 %v6456, 4294901760
    %6458 = vmatmul.mubr.f32.gmra.mrb[0].mxu0 %v6457
    %v6459 = vpop.f32.mrb[0].mxu0
    %v6460 = vadd.f32 0.0, %v6459
    %v6461 = vpop.f32.mrb[0].mxu0
    %6462 = vdwg.mxu0
    %6463 = vmatprep.subr.mxu0 0.0
    %v6464 = vand.u32 %v5347, 4294901760
    %v6465 = vsub.f32 %v5347, %v6464
    %v6466 = vand.u32 %v6465, 4294901760
    %v6467 = vsub.f32 %v6465, %v6466
    %v6468 = vand.u32 %v6467, 4294901760
    %6469 = vmatpush1.msra.mxu0 %v6468
    %6470 = vmatprep.subr.mxu0 0.0
    %v6471 = vand.u32 %v5348, 4294901760
    %v6472 = vsub.f32 %v5348, %v6471
    %v6473 = vand.u32 %v6472, 4294901760
    %v6474 = vsub.f32 %v6472, %v6473
    %v6475 = vand.u32 %v6474, 4294901760
    %6476 = vmatpush1.msra.mxu0 %v6475
    %6477 = vmatprep.subr.mxu0 0.0
    %v6478 = vand.u32 %v5349, 4294901760
    %v6479 = vsub.f32 %v5349, %v6478
    %v6480 = vand.u32 %v6479, 4294901760
    %v6481 = vsub.f32 %v6479, %v6480
    %v6482 = vand.u32 %v6481, 4294901760
    %6483 = vmatpush1.msra.mxu0 %v6482
    %6484 = vmatprep.subr.mxu0 0.0
    %v6485 = vand.u32 %v5350, 4294901760
    %v6486 = vsub.f32 %v5350, %v6485
    %v6487 = vand.u32 %v6486, 4294901760
    %v6488 = vsub.f32 %v6486, %v6487
    %v6489 = vand.u32 %v6488, 4294901760
    %6490 = vmatpush1.msra.mxu0 %v6489
    %6491 = vmatprep.subr.mxu0 0.0
    %6492 = vmatpush1.msra.mxu0 0.0
    %6493 = vmatprep.subr.mxu0 0.0
    %6494 = vmatpush1.msra.mxu0 0.0
    %6495 = vmatprep.subr.mxu0 0.0
    %6496 = vmatpush1.msra.mxu0 0.0
    %6497 = vmatprep.subr.mxu0 0.0
    %6498 = vmatpush1.msra.mxu0 0.0
    %6499 = vmatprep.subr.mxu0 0.0
    %6500 = vmatpush1.msra.mxu0 0.0
    %6501 = vmatprep.subr.mxu0 0.0
    %6502 = vmatpush1.msra.mxu0 0.0
    %6503 = vmatprep.subr.mxu0 0.0
    %6504 = vmatpush1.msra.mxu0 0.0
    %6505 = vmatprep.subr.mxu0 0.0
    %6506 = vmatpush1.msra.mxu0 0.0
    %6507 = vmatprep.subr.mxu0 0.0
    %6508 = vmatpush1.msra.mxu0 0.0
    %6509 = vmatprep.subr.mxu0 0.0
    %6510 = vmatpush1.msra.mxu0 0.0
    %6511 = vmatprep.subr.mxu0 0.0
    %6512 = vmatpush1.msra.mxu0 0.0
    %6513 = vmatprep.subr.mxu0 0.0
    %6514 = vmatpush1.msra.mxu0 0.0
    %6515 = vmatprep.subr.mxu0 0.0
    %6516 = vmatpush1.msra.mxu0 0.0
    %6517 = vmatprep.subr.mxu0 0.0
    %6518 = vmatpush1.msra.mxu0 0.0
    %6519 = vmatprep.subr.mxu0 0.0
    %6520 = vmatpush1.msra.mxu0 0.0
    %6521 = vmatprep.subr.mxu0 0.0
    %6522 = vmatpush1.msra.mxu0 0.0
    %6523 = vmatprep.subr.mxu0 0.0
    %6524 = vmatpush1.msra.mxu0 0.0
    %6525 = vmatprep.subr.mxu0 0.0
    %6526 = vmatpush1.msra.mxu0 0.0
    %6527 = vmatprep.subr.mxu0 0.0
    %6528 = vmatpush1.msra.mxu0 0.0
    %6529 = vmatprep.subr.mxu0 0.0
    %6530 = vmatpush1.msra.mxu0 0.0
    %6531 = vmatprep.subr.mxu0 0.0
    %6532 = vmatpush1.msra.mxu0 0.0
    %6533 = vmatprep.subr.mxu0 0.0
    %6534 = vmatpush1.msra.mxu0 0.0
    %6535 = vmatprep.subr.mxu0 0.0
    %6536 = vmatpush1.msra.mxu0 0.0
    %6537 = vmatprep.subr.mxu0 0.0
    %6538 = vmatpush1.msra.mxu0 0.0
    %6539 = vmatprep.subr.mxu0 0.0
    %6540 = vmatpush1.msra.mxu0 0.0
    %6541 = vmatprep.subr.mxu0 0.0
    %6542 = vmatpush1.msra.mxu0 0.0
    %6543 = vmatprep.subr.mxu0 0.0
    %6544 = vmatpush1.msra.mxu0 0.0
    %6545 = vmatprep.subr.mxu0 0.0
    %6546 = vmatpush1.msra.mxu0 0.0
    %6547 = vmatprep.mubr.f32.mxu0 0.0
    %v6548 = vand.u32 %v6382, 4294901760
    %6549 = vmatmul.mubr.f32.gmra.mrb[0].mxu0 %v6548
    %v6550 = vpop.f32.mrb[0].mxu0
    %v6551 = vadd.f32 %v6460, %v6550
    %v6552 = vpop.f32.mrb[0].mxu0
    %6553 = vdwg.mxu0
    %6554 = vmatprep.subr.mxu0 0.0
    %v6555 = vand.u32 %v5347, 4294901760
    %v6556 = vsub.f32 %v5347, %v6555
    %6557 = vmatpush1.msra.mxu0 %v6556
    %6558 = vmatprep.subr.mxu0 0.0
    %v6559 = vand.u32 %v5348, 4294901760
    %v6560 = vsub.f32 %v5348, %v6559
    %6561 = vmatpush1.msra.mxu0 %v6560
    %6562 = vmatprep.subr.mxu0 0.0
    %v6563 = vand.u32 %v5349, 4294901760
    %v6564 = vsub.f32 %v5349, %v6563
    %6565 = vmatpush1.msra.mxu0 %v6564
    %6566 = vmatprep.subr.mxu0 0.0
    %v6567 = vand.u32 %v5350, 4294901760
    %v6568 = vsub.f32 %v5350, %v6567
    %6569 = vmatpush1.msra.mxu0 %v6568
    %6570 = vmatprep.subr.mxu0 0.0
    %6571 = vmatpush1.msra.mxu0 0.0
    %6572 = vmatprep.subr.mxu0 0.0
    %6573 = vmatpush1.msra.mxu0 0.0
    %6574 = vmatprep.subr.mxu0 0.0
    %6575 = vmatpush1.msra.mxu0 0.0
    %6576 = vmatprep.subr.mxu0 0.0
    %6577 = vmatpush1.msra.mxu0 0.0
    %6578 = vmatprep.subr.mxu0 0.0
    %6579 = vmatpush1.msra.mxu0 0.0
    %6580 = vmatprep.subr.mxu0 0.0
    %6581 = vmatpush1.msra.mxu0 0.0
    %6582 = vmatprep.subr.mxu0 0.0
    %6583 = vmatpush1.msra.mxu0 0.0
    %6584 = vmatprep.subr.mxu0 0.0
    %6585 = vmatpush1.msra.mxu0 0.0
    %6586 = vmatprep.subr.mxu0 0.0
    %6587 = vmatpush1.msra.mxu0 0.0
    %6588 = vmatprep.subr.mxu0 0.0
    %6589 = vmatpush1.msra.mxu0 0.0
    %6590 = vmatprep.subr.mxu0 0.0
    %6591 = vmatpush1.msra.mxu0 0.0
    %6592 = vmatprep.subr.mxu0 0.0
    %6593 = vmatpush1.msra.mxu0 0.0
    %6594 = vmatprep.subr.mxu0 0.0
    %6595 = vmatpush1.msra.mxu0 0.0
    %6596 = vmatprep.subr.mxu0 0.0
    %6597 = vmatpush1.msra.mxu0 0.0
    %6598 = vmatprep.subr.mxu0 0.0
    %6599 = vmatpush1.msra.mxu0 0.0
    %6600 = vmatprep.subr.mxu0 0.0
    %6601 = vmatpush1.msra.mxu0 0.0
    %6602 = vmatprep.subr.mxu0 0.0
    %6603 = vmatpush1.msra.mxu0 0.0
    %6604 = vmatprep.subr.mxu0 0.0
    %6605 = vmatpush1.msra.mxu0 0.0
    %6606 = vmatprep.subr.mxu0 0.0
    %6607 = vmatpush1.msra.mxu0 0.0
    %6608 = vmatprep.subr.mxu0 0.0
    %6609 = vmatpush1.msra.mxu0 0.0
    %6610 = vmatprep.subr.mxu0 0.0
    %6611 = vmatpush1.msra.mxu0 0.0
    %6612 = vmatprep.subr.mxu0 0.0
    %6613 = vmatpush1.msra.mxu0 0.0
    %6614 = vmatprep.subr.mxu0 0.0
    %6615 = vmatpush1.msra.mxu0 0.0
    %6616 = vmatprep.subr.mxu0 0.0
    %6617 = vmatpush1.msra.mxu0 0.0
    %6618 = vmatprep.subr.mxu0 0.0
    %6619 = vmatpush1.msra.mxu0 0.0
    %6620 = vmatprep.subr.mxu0 0.0
    %6621 = vmatpush1.msra.mxu0 0.0
    %6622 = vmatprep.subr.mxu0 0.0
    %6623 = vmatpush1.msra.mxu0 0.0
    %6624 = vmatprep.subr.mxu0 0.0
    %6625 = vmatpush1.msra.mxu0 0.0
    %6626 = vmatprep.mubr.f32.mxu0 0.0
    %v6627 = vand.u32 %v6382, 4294901760
    %v6628 = vsub.f32 %v6382, %v6627
    %6629 = vmatmul.mubr.f32.gmra.mrb[0].mxu0 %v6628
    %v6630 = vpop.f32.mrb[0].mxu0
    %v6631 = vadd.f32 %v6551, %v6630
    %v6632 = vpop.f32.mrb[0].mxu0
    %6633 = vdwg.mxu0
    %6634 = vmatprep.subr.mxu0 0.0
    %v6635 = vand.u32 %v5347, 4294901760
    %6636 = vmatpush1.msra.mxu0 %v6635
    %6637 = vmatprep.subr.mxu0 0.0
    %v6638 = vand.u32 %v5348, 4294901760
    %6639 = vmatpush1.msra.mxu0 %v6638
    %6640 = vmatprep.subr.mxu0 0.0
    %v6641 = vand.u32 %v5349, 4294901760
    %6642 = vmatpush1.msra.mxu0 %v6641
    %6643 = vmatprep.subr.mxu0 0.0
    %v6644 = vand.u32 %v5350, 4294901760
    %6645 = vmatpush1.msra.mxu0 %v6644
    %6646 = vmatprep.subr.mxu0 0.0
    %6647 = vmatpush1.msra.mxu0 0.0
    %6648 = vmatprep.subr.mxu0 0.0
    %6649 = vmatpush1.msra.mxu0 0.0
    %6650 = vmatprep.subr.mxu0 0.0
    %6651 = vmatpush1.msra.mxu0 0.0
    %6652 = vmatprep.subr.mxu0 0.0
    %6653 = vmatpush1.msra.mxu0 0.0
    %6654 = vmatprep.subr.mxu0 0.0
    %6655 = vmatpush1.msra.mxu0 0.0
    %6656 = vmatprep.subr.mxu0 0.0
    %6657 = vmatpush1.msra.mxu0 0.0
    %6658 = vmatprep.subr.mxu0 0.0
    %6659 = vmatpush1.msra.mxu0 0.0
    %6660 = vmatprep.subr.mxu0 0.0
    %6661 = vmatpush1.msra.mxu0 0.0
    %6662 = vmatprep.subr.mxu0 0.0
    %6663 = vmatpush1.msra.mxu0 0.0
    %6664 = vmatprep.subr.mxu0 0.0
    %6665 = vmatpush1.msra.mxu0 0.0
    %6666 = vmatprep.subr.mxu0 0.0
    %6667 = vmatpush1.msra.mxu0 0.0
    %6668 = vmatprep.subr.mxu0 0.0
    %6669 = vmatpush1.msra.mxu0 0.0
    %6670 = vmatprep.subr.mxu0 0.0
    %6671 = vmatpush1.msra.mxu0 0.0
    %6672 = vmatprep.subr.mxu0 0.0
    %6673 = vmatpush1.msra.mxu0 0.0
    %6674 = vmatprep.subr.mxu0 0.0
    %6675 = vmatpush1.msra.mxu0 0.0
    %6676 = vmatprep.subr.mxu0 0.0
    %6677 = vmatpush1.msra.mxu0 0.0
    %6678 = vmatprep.subr.mxu0 0.0
    %6679 = vmatpush1.msra.mxu0 0.0
    %6680 = vmatprep.subr.mxu0 0.0
    %6681 = vmatpush1.msra.mxu0 0.0
    %6682 = vmatprep.subr.mxu0 0.0
    %6683 = vmatpush1.msra.mxu0 0.0
    %6684 = vmatprep.subr.mxu0 0.0
    %6685 = vmatpush1.msra.mxu0 0.0
    %6686 = vmatprep.subr.mxu0 0.0
    %6687 = vmatpush1.msra.mxu0 0.0
    %6688 = vmatprep.subr.mxu0 0.0
    %6689 = vmatpush1.msra.mxu0 0.0
    %6690 = vmatprep.subr.mxu0 0.0
    %6691 = vmatpush1.msra.mxu0 0.0
    %6692 = vmatprep.subr.mxu0 0.0
    %6693 = vmatpush1.msra.mxu0 0.0
    %6694 = vmatprep.subr.mxu0 0.0
    %6695 = vmatpush1.msra.mxu0 0.0
    %6696 = vmatprep.subr.mxu0 0.0
    %6697 = vmatpush1.msra.mxu0 0.0
    %6698 = vmatprep.subr.mxu0 0.0
    %6699 = vmatpush1.msra.mxu0 0.0
    %6700 = vmatprep.subr.mxu0 0.0
    %6701 = vmatpush1.msra.mxu0 0.0
    %6702 = vmatprep.mubr.f32.mxu0 0.0
    %v6703 = vand.u32 %v6382, 4294901760
    %v6704 = vsub.f32 %v6382, %v6703
    %v6705 = vand.u32 %v6704, 4294901760
    %6706 = vmatmul.mubr.f32.gmra.mrb[0].mxu0 %v6705
    %v6707 = vpop.f32.mrb[0].mxu0
    %v6708 = vadd.f32 %v6631, %v6707
    %v6709 = vpop.f32.mrb[0].mxu0
    %6710 = vdwg.mxu0
    %6711 = vmatprep.subr.mxu0 0.0
    %v6712 = vand.u32 %v5347, 4294901760
    %v6713 = vsub.f32 %v5347, %v6712
    %v6714 = vand.u32 %v6713, 4294901760
    %6715 = vmatpush1.msra.mxu0 %v6714
    %6716 = vmatprep.subr.mxu0 0.0
    %v6717 = vand.u32 %v5348, 4294901760
    %v6718 = vsub.f32 %v5348, %v6717
    %v6719 = vand.u32 %v6718, 4294901760
    %6720 = vmatpush1.msra.mxu0 %v6719
    %6721 = vmatprep.subr.mxu0 0.0
    %v6722 = vand.u32 %v5349, 4294901760
    %v6723 = vsub.f32 %v5349, %v6722
    %v6724 = vand.u32 %v6723, 4294901760
    %6725 = vmatpush1.msra.mxu0 %v6724
    %6726 = vmatprep.subr.mxu0 0.0
    %v6727 = vand.u32 %v5350, 4294901760
    %v6728 = vsub.f32 %v5350, %v6727
    %v6729 = vand.u32 %v6728, 4294901760
    %6730 = vmatpush1.msra.mxu0 %v6729
    %6731 = vmatprep.subr.mxu0 0.0
    %6732 = vmatpush1.msra.mxu0 0.0
    %6733 = vmatprep.subr.mxu0 0.0
    %6734 = vmatpush1.msra.mxu0 0.0
    %6735 = vmatprep.subr.mxu0 0.0
    %6736 = vmatpush1.msra.mxu0 0.0
    %6737 = vmatprep.subr.mxu0 0.0
    %6738 = vmatpush1.msra.mxu0 0.0
    %6739 = vmatprep.subr.mxu0 0.0
    %6740 = vmatpush1.msra.mxu0 0.0
    %6741 = vmatprep.subr.mxu0 0.0
    %6742 = vmatpush1.msra.mxu0 0.0
    %6743 = vmatprep.subr.mxu0 0.0
    %6744 = vmatpush1.msra.mxu0 0.0
    %6745 = vmatprep.subr.mxu0 0.0
    %6746 = vmatpush1.msra.mxu0 0.0
    %6747 = vmatprep.subr.mxu0 0.0
    %6748 = vmatpush1.msra.mxu0 0.0
    %6749 = vmatprep.subr.mxu0 0.0
    %6750 = vmatpush1.msra.mxu0 0.0
    %6751 = vmatprep.subr.mxu0 0.0
    %6752 = vmatpush1.msra.mxu0 0.0
    %6753 = vmatprep.subr.mxu0 0.0
    %6754 = vmatpush1.msra.mxu0 0.0
    %6755 = vmatprep.subr.mxu0 0.0
    %6756 = vmatpush1.msra.mxu0 0.0
    %6757 = vmatprep.subr.mxu0 0.0
    %6758 = vmatpush1.msra.mxu0 0.0
    %6759 = vmatprep.subr.mxu0 0.0
    %6760 = vmatpush1.msra.mxu0 0.0
    %6761 = vmatprep.subr.mxu0 0.0
    %6762 = vmatpush1.msra.mxu0 0.0
    %6763 = vmatprep.subr.mxu0 0.0
    %6764 = vmatpush1.msra.mxu0 0.0
    %6765 = vmatprep.subr.mxu0 0.0
    %6766 = vmatpush1.msra.mxu0 0.0
    %6767 = vmatprep.subr.mxu0 0.0
    %6768 = vmatpush1.msra.mxu0 0.0
    %6769 = vmatprep.subr.mxu0 0.0
    %6770 = vmatpush1.msra.mxu0 0.0
    %6771 = vmatprep.subr.mxu0 0.0
    %6772 = vmatpush1.msra.mxu0 0.0
    %6773 = vmatprep.subr.mxu0 0.0
    %6774 = vmatpush1.msra.mxu0 0.0
    %6775 = vmatprep.subr.mxu0 0.0
    %6776 = vmatpush1.msra.mxu0 0.0
    %6777 = vmatprep.subr.mxu0 0.0
    %6778 = vmatpush1.msra.mxu0 0.0
    %6779 = vmatprep.subr.mxu0 0.0
    %6780 = vmatpush1.msra.mxu0 0.0
    %6781 = vmatprep.subr.mxu0 0.0
    %6782 = vmatpush1.msra.mxu0 0.0
    %6783 = vmatprep.subr.mxu0 0.0
    %6784 = vmatpush1.msra.mxu0 0.0
    %6785 = vmatprep.subr.mxu0 0.0
    %6786 = vmatpush1.msra.mxu0 0.0
    %6787 = vmatprep.mubr.f32.mxu0 0.0
    %v6788 = vand.u32 %v6382, 4294901760
    %6789 = vmatmul.mubr.f32.gmra.mrb[0].mxu0 %v6788
    %v6790 = vpop.f32.mrb[0].mxu0
    %v6791 = vadd.f32 %v6708, %v6790
    %v6792 = vpop.f32.mrb[0].mxu0
    %6793 = vdwg.mxu0
    %6794 = vmatprep.subr.mxu0 0.0
    %v6795 = vand.u32 %v5347, 4294901760
    %6796 = vmatpush1.msra.mxu0 %v6795
    %6797 = vmatprep.subr.mxu0 0.0
    %v6798 = vand.u32 %v5348, 4294901760
    %6799 = vmatpush1.msra.mxu0 %v6798
    %6800 = vmatprep.subr.mxu0 0.0
    %v6801 = vand.u32 %v5349, 4294901760
    %6802 = vmatpush1.msra.mxu0 %v6801
    %6803 = vmatprep.subr.mxu0 0.0
    %v6804 = vand.u32 %v5350, 4294901760
    %6805 = vmatpush1.msra.mxu0 %v6804
    %6806 = vmatprep.subr.mxu0 0.0
    %6807 = vmatpush1.msra.mxu0 0.0
    %6808 = vmatprep.subr.mxu0 0.0
    %6809 = vmatpush1.msra.mxu0 0.0
    %6810 = vmatprep.subr.mxu0 0.0
    %6811 = vmatpush1.msra.mxu0 0.0
    %6812 = vmatprep.subr.mxu0 0.0
    %6813 = vmatpush1.msra.mxu0 0.0
    %6814 = vmatprep.subr.mxu0 0.0
    %6815 = vmatpush1.msra.mxu0 0.0
    %6816 = vmatprep.subr.mxu0 0.0
    %6817 = vmatpush1.msra.mxu0 0.0
    %6818 = vmatprep.subr.mxu0 0.0
    %6819 = vmatpush1.msra.mxu0 0.0
    %6820 = vmatprep.subr.mxu0 0.0
    %6821 = vmatpush1.msra.mxu0 0.0
    %6822 = vmatprep.subr.mxu0 0.0
    %6823 = vmatpush1.msra.mxu0 0.0
    %6824 = vmatprep.subr.mxu0 0.0
    %6825 = vmatpush1.msra.mxu0 0.0
    %6826 = vmatprep.subr.mxu0 0.0
    %6827 = vmatpush1.msra.mxu0 0.0
    %6828 = vmatprep.subr.mxu0 0.0
    %6829 = vmatpush1.msra.mxu0 0.0
    %6830 = vmatprep.subr.mxu0 0.0
    %6831 = vmatpush1.msra.mxu0 0.0
    %6832 = vmatprep.subr.mxu0 0.0
    %6833 = vmatpush1.msra.mxu0 0.0
    %6834 = vmatprep.subr.mxu0 0.0
    %6835 = vmatpush1.msra.mxu0 0.0
    %6836 = vmatprep.subr.mxu0 0.0
    %6837 = vmatpush1.msra.mxu0 0.0
    %6838 = vmatprep.subr.mxu0 0.0
    %6839 = vmatpush1.msra.mxu0 0.0
    %6840 = vmatprep.subr.mxu0 0.0
    %6841 = vmatpush1.msra.mxu0 0.0
    %6842 = vmatprep.subr.mxu0 0.0
    %6843 = vmatpush1.msra.mxu0 0.0
    %6844 = vmatprep.subr.mxu0 0.0
    %6845 = vmatpush1.msra.mxu0 0.0
    %6846 = vmatprep.subr.mxu0 0.0
    %6847 = vmatpush1.msra.mxu0 0.0
    %6848 = vmatprep.subr.mxu0 0.0
    %6849 = vmatpush1.msra.mxu0 0.0
    %6850 = vmatprep.subr.mxu0 0.0
    %6851 = vmatpush1.msra.mxu0 0.0
    %6852 = vmatprep.subr.mxu0 0.0
    %6853 = vmatpush1.msra.mxu0 0.0
    %6854 = vmatprep.subr.mxu0 0.0
    %6855 = vmatpush1.msra.mxu0 0.0
    %6856 = vmatprep.subr.mxu0 0.0
    %6857 = vmatpush1.msra.mxu0 0.0
    %6858 = vmatprep.subr.mxu0 0.0
    %6859 = vmatpush1.msra.mxu0 0.0
    %6860 = vmatprep.subr.mxu0 0.0
    %6861 = vmatpush1.msra.mxu0 0.0
    %6862 = vmatprep.mubr.f32.mxu0 0.0
    %v6863 = vand.u32 %v6382, 4294901760
    %6864 = vmatmul.mubr.f32.gmra.mrb[0].mxu0 %v6863
    %v6865 = vpop.f32.mrb[0].mxu0
    %v6866 = vadd.f32 %v6791, %v6865
    %v6867 = vpop.f32.mrb[0].mxu0
    %6868 = vdwg.mxu0
    %v6870 = vrot.slane %v6866, 4
    %v6872 = vadd.f32 %v5338, %v6870
    %v6873 = vmul.f32 %v6872, 0.5
    %v6874 = vtanh.pop %v6873
    %v6875 = vadd.f32 %v6874, 1.0
    %v6876 = vmul.f32 %v6875, 0.5
    %v6877 = vtanh.pop %v6872
    %v6879 = vrot.slane %v6371, 6
    %v6881 = vmul.f32 %v6876, %v6879
    %6883 = vrot.lane.b32.xlu0 %v6877, 64
    %v6884 = vpop.permute.xlu0 %6883
    %v6886 = vmul.f32 %v6876, %v6884
    %6888 = vrot.lane.b32.xlu0 %v6886, 32
    %v6889 = vpop.permute.xlu0 %6888
    %v6891 = vadd.f32 %v6881, %v6889
    %v6892 = vtanh.pop %v6891
    %6894 = vrot.lane.b32.xlu0 %v6892, 64
    %v6895 = vpop.permute.xlu0 %6894
    %v6897 = vmul.f32 %v6876, %v6895
    %v6899 = vrot.slane %v6897, 4
    %6900 = vrot.lane.b32.xlu0 %v6899, 32
    %v6901 = vpop.permute.xlu0 %6900
    %v6902 = vsel %vm49, %v6901, 0
    %6904 = vmatprep.subr.mxu0 0.0
    %v6905 = vand.u32 %v5347, 4294901760
    %6906 = vmatpush1.msra.mxu0 %v6905
    %6907 = vmatprep.subr.mxu0 0.0
    %v6908 = vand.u32 %v5348, 4294901760
    %6909 = vmatpush1.msra.mxu0 %v6908
    %6910 = vmatprep.subr.mxu0 0.0
    %v6911 = vand.u32 %v5349, 4294901760
    %6912 = vmatpush1.msra.mxu0 %v6911
    %6913 = vmatprep.subr.mxu0 0.0
    %v6914 = vand.u32 %v5350, 4294901760
    %6915 = vmatpush1.msra.mxu0 %v6914
    %6916 = vmatprep.subr.mxu0 0.0
    %6917 = vmatpush1.msra.mxu0 0.0
    %6918 = vmatprep.subr.mxu0 0.0
    %6919 = vmatpush1.msra.mxu0 0.0
    %6920 = vmatprep.subr.mxu0 0.0
    %6921 = vmatpush1.msra.mxu0 0.0
    %6922 = vmatprep.subr.mxu0 0.0
    %6923 = vmatpush1.msra.mxu0 0.0
    %6924 = vmatprep.subr.mxu0 0.0
    %6925 = vmatpush1.msra.mxu0 0.0
    %6926 = vmatprep.subr.mxu0 0.0
    %6927 = vmatpush1.msra.mxu0 0.0
    %6928 = vmatprep.subr.mxu0 0.0
    %6929 = vmatpush1.msra.mxu0 0.0
    %6930 = vmatprep.subr.mxu0 0.0
    %6931 = vmatpush1.msra.mxu0 0.0
    %6932 = vmatprep.subr.mxu0 0.0
    %6933 = vmatpush1.msra.mxu0 0.0
    %6934 = vmatprep.subr.mxu0 0.0
    %6935 = vmatpush1.msra.mxu0 0.0
    %6936 = vmatprep.subr.mxu0 0.0
    %6937 = vmatpush1.msra.mxu0 0.0
    %6938 = vmatprep.subr.mxu0 0.0
    %6939 = vmatpush1.msra.mxu0 0.0
    %6940 = vmatprep.subr.mxu0 0.0
    %6941 = vmatpush1.msra.mxu0 0.0
    %6942 = vmatprep.subr.mxu0 0.0
    %6943 = vmatpush1.msra.mxu0 0.0
    %6944 = vmatprep.subr.mxu0 0.0
    %6945 = vmatpush1.msra.mxu0 0.0
    %6946 = vmatprep.subr.mxu0 0.0
    %6947 = vmatpush1.msra.mxu0 0.0
    %6948 = vmatprep.subr.mxu0 0.0
    %6949 = vmatpush1.msra.mxu0 0.0
    %6950 = vmatprep.subr.mxu0 0.0
    %6951 = vmatpush1.msra.mxu0 0.0
    %6952 = vmatprep.subr.mxu0 0.0
    %6953 = vmatpush1.msra.mxu0 0.0
    %6954 = vmatprep.subr.mxu0 0.0
    %6955 = vmatpush1.msra.mxu0 0.0
    %6956 = vmatprep.subr.mxu0 0.0
    %6957 = vmatpush1.msra.mxu0 0.0
    %6958 = vmatprep.subr.mxu0 0.0
    %6959 = vmatpush1.msra.mxu0 0.0
    %6960 = vmatprep.subr.mxu0 0.0
    %6961 = vmatpush1.msra.mxu0 0.0
    %6962 = vmatprep.subr.mxu0 0.0
    %6963 = vmatpush1.msra.mxu0 0.0
    %6964 = vmatprep.subr.mxu0 0.0
    %6965 = vmatpush1.msra.mxu0 0.0
    %6966 = vmatprep.subr.mxu0 0.0
    %6967 = vmatpush1.msra.mxu0 0.0
    %6968 = vmatprep.subr.mxu0 0.0
    %6969 = vmatpush1.msra.mxu0 0.0
    %6970 = vmatprep.subr.mxu0 0.0
    %6971 = vmatpush1.msra.mxu0 0.0
    %6972 = vmatprep.mubr.f32.mxu0 0.0
    %v6973 = vand.u32 %v6902, 4294901760
    %v6974 = vsub.f32 %v6902, %v6973
    %v6975 = vand.u32 %v6974, 4294901760
    %v6976 = vsub.f32 %v6974, %v6975
    %v6977 = vand.u32 %v6976, 4294901760
    %6978 = vmatmul.mubr.f32.gmra.mrb[0].mxu0 %v6977
    %v6979 = vpop.f32.mrb[0].mxu0
    %v6980 = vadd.f32 0.0, %v6979
    %v6981 = vpop.f32.mrb[0].mxu0
    %6982 = vdwg.mxu0
    %6983 = vmatprep.subr.mxu0 0.0
    %v6984 = vand.u32 %v5347, 4294901760
    %v6985 = vsub.f32 %v5347, %v6984
    %v6986 = vand.u32 %v6985, 4294901760
    %v6987 = vsub.f32 %v6985, %v6986
    %v6988 = vand.u32 %v6987, 4294901760
    %6989 = vmatpush1.msra.mxu0 %v6988
    %6990 = vmatprep.subr.mxu0 0.0
    %v6991 = vand.u32 %v5348, 4294901760
    %v6992 = vsub.f32 %v5348, %v6991
    %v6993 = vand.u32 %v6992, 4294901760
    %v6994 = vsub.f32 %v6992, %v6993
    %v6995 = vand.u32 %v6994, 4294901760
    %6996 = vmatpush1.msra.mxu0 %v6995
    %6997 = vmatprep.subr.mxu0 0.0
    %v6998 = vand.u32 %v5349, 4294901760
    %v6999 = vsub.f32 %v5349, %v6998
    %v7000 = vand.u32 %v6999, 4294901760
    %v7001 = vsub.f32 %v6999, %v7000
    %v7002 = vand.u32 %v7001, 4294901760
    %7003 = vmatpush1.msra.mxu0 %v7002
    %7004 = vmatprep.subr.mxu0 0.0
    %v7005 = vand.u32 %v5350, 4294901760
    %v7006 = vsub.f32 %v5350, %v7005
    %v7007 = vand.u32 %v7006, 4294901760
    %v7008 = vsub.f32 %v7006, %v7007
    %v7009 = vand.u32 %v7008, 4294901760
    %7010 = vmatpush1.msra.mxu0 %v7009
    %7011 = vmatprep.subr.mxu0 0.0
    %7012 = vmatpush1.msra.mxu0 0.0
    %7013 = vmatprep.subr.mxu0 0.0
    %7014 = vmatpush1.msra.mxu0 0.0
    %7015 = vmatprep.subr.mxu0 0.0
    %7016 = vmatpush1.msra.mxu0 0.0
    %7017 = vmatprep.subr.mxu0 0.0
    %7018 = vmatpush1.msra.mxu0 0.0
    %7019 = vmatprep.subr.mxu0 0.0
    %7020 = vmatpush1.msra.mxu0 0.0
    %7021 = vmatprep.subr.mxu0 0.0
    %7022 = vmatpush1.msra.mxu0 0.0
    %7023 = vmatprep.subr.mxu0 0.0
    %7024 = vmatpush1.msra.mxu0 0.0
    %7025 = vmatprep.subr.mxu0 0.0
    %7026 = vmatpush1.msra.mxu0 0.0
    %7027 = vmatprep.subr.mxu0 0.0
    %7028 = vmatpush1.msra.mxu0 0.0
    %7029 = vmatprep.subr.mxu0 0.0
    %7030 = vmatpush1.msra.mxu0 0.0
    %7031 = vmatprep.subr.mxu0 0.0
    %7032 = vmatpush1.msra.mxu0 0.0
    %7033 = vmatprep.subr.mxu0 0.0
    %7034 = vmatpush1.msra.mxu0 0.0
    %7035 = vmatprep.subr.mxu0 0.0
    %7036 = vmatpush1.msra.mxu0 0.0
    %7037 = vmatprep.subr.mxu0 0.0
    %7038 = vmatpush1.msra.mxu0 0.0
    %7039 = vmatprep.subr.mxu0 0.0
    %7040 = vmatpush1.msra.mxu0 0.0
    %7041 = vmatprep.subr.mxu0 0.0
    %7042 = vmatpush1.msra.mxu0 0.0
    %7043 = vmatprep.subr.mxu0 0.0
    %7044 = vmatpush1.msra.mxu0 0.0
    %7045 = vmatprep.subr.mxu0 0.0
    %7046 = vmatpush1.msra.mxu0 0.0
    %7047 = vmatprep.subr.mxu0 0.0
    %7048 = vmatpush1.msra.mxu0 0.0
    %7049 = vmatprep.subr.mxu0 0.0
    %7050 = vmatpush1.msra.mxu0 0.0
    %7051 = vmatprep.subr.mxu0 0.0
    %7052 = vmatpush1.msra.mxu0 0.0
    %7053 = vmatprep.subr.mxu0 0.0
    %7054 = vmatpush1.msra.mxu0 0.0
    %7055 = vmatprep.subr.mxu0 0.0
    %7056 = vmatpush1.msra.mxu0 0.0
    %7057 = vmatprep.subr.mxu0 0.0
    %7058 = vmatpush1.msra.mxu0 0.0
    %7059 = vmatprep.subr.mxu0 0.0
    %7060 = vmatpush1.msra.mxu0 0.0
    %7061 = vmatprep.subr.mxu0 0.0
    %7062 = vmatpush1.msra.mxu0 0.0
    %7063 = vmatprep.subr.mxu0 0.0
    %7064 = vmatpush1.msra.mxu0 0.0
    %7065 = vmatprep.subr.mxu0 0.0
    %7066 = vmatpush1.msra.mxu0 0.0
    %7067 = vmatprep.mubr.f32.mxu0 0.0
    %v7068 = vand.u32 %v6902, 4294901760
    %7069 = vmatmul.mubr.f32.gmra.mrb[0].mxu0 %v7068
    %v7070 = vpop.f32.mrb[0].mxu0
    %v7071 = vadd.f32 %v6980, %v7070
    %v7072 = vpop.f32.mrb[0].mxu0
    %7073 = vdwg.mxu0
    %7074 = vmatprep.subr.mxu0 0.0
    %v7075 = vand.u32 %v5347, 4294901760
    %v7076 = vsub.f32 %v5347, %v7075
    %7077 = vmatpush1.msra.mxu0 %v7076
    %7078 = vmatprep.subr.mxu0 0.0
    %v7079 = vand.u32 %v5348, 4294901760
    %v7080 = vsub.f32 %v5348, %v7079
    %7081 = vmatpush1.msra.mxu0 %v7080
    %7082 = vmatprep.subr.mxu0 0.0
    %v7083 = vand.u32 %v5349, 4294901760
    %v7084 = vsub.f32 %v5349, %v7083
    %7085 = vmatpush1.msra.mxu0 %v7084
    %7086 = vmatprep.subr.mxu0 0.0
    %v7087 = vand.u32 %v5350, 4294901760
    %v7088 = vsub.f32 %v5350, %v7087
    %7089 = vmatpush1.msra.mxu0 %v7088
    %7090 = vmatprep.subr.mxu0 0.0
    %7091 = vmatpush1.msra.mxu0 0.0
    %7092 = vmatprep.subr.mxu0 0.0
    %7093 = vmatpush1.msra.mxu0 0.0
    %7094 = vmatprep.subr.mxu0 0.0
    %7095 = vmatpush1.msra.mxu0 0.0
    %7096 = vmatprep.subr.mxu0 0.0
    %7097 = vmatpush1.msra.mxu0 0.0
    %7098 = vmatprep.subr.mxu0 0.0
    %7099 = vmatpush1.msra.mxu0 0.0
    %7100 = vmatprep.subr.mxu0 0.0
    %7101 = vmatpush1.msra.mxu0 0.0
    %7102 = vmatprep.subr.mxu0 0.0
    %7103 = vmatpush1.msra.mxu0 0.0
    %7104 = vmatprep.subr.mxu0 0.0
    %7105 = vmatpush1.msra.mxu0 0.0
    %7106 = vmatprep.subr.mxu0 0.0
    %7107 = vmatpush1.msra.mxu0 0.0
    %7108 = vmatprep.subr.mxu0 0.0
    %7109 = vmatpush1.msra.mxu0 0.0
    %7110 = vmatprep.subr.mxu0 0.0
    %7111 = vmatpush1.msra.mxu0 0.0
    %7112 = vmatprep.subr.mxu0 0.0
    %7113 = vmatpush1.msra.mxu0 0.0
    %7114 = vmatprep.subr.mxu0 0.0
    %7115 = vmatpush1.msra.mxu0 0.0
    %7116 = vmatprep.subr.mxu0 0.0
    %7117 = vmatpush1.msra.mxu0 0.0
    %7118 = vmatprep.subr.mxu0 0.0
    %7119 = vmatpush1.msra.mxu0 0.0
    %7120 = vmatprep.subr.mxu0 0.0
    %7121 = vmatpush1.msra.mxu0 0.0
    %7122 = vmatprep.subr.mxu0 0.0
    %7123 = vmatpush1.msra.mxu0 0.0
    %7124 = vmatprep.subr.mxu0 0.0
    %7125 = vmatpush1.msra.mxu0 0.0
    %7126 = vmatprep.subr.mxu0 0.0
    %7127 = vmatpush1.msra.mxu0 0.0
    %7128 = vmatprep.subr.mxu0 0.0
    %7129 = vmatpush1.msra.mxu0 0.0
    %7130 = vmatprep.subr.mxu0 0.0
    %7131 = vmatpush1.msra.mxu0 0.0
    %7132 = vmatprep.subr.mxu0 0.0
    %7133 = vmatpush1.msra.mxu0 0.0
    %7134 = vmatprep.subr.mxu0 0.0
    %7135 = vmatpush1.msra.mxu0 0.0
    %7136 = vmatprep.subr.mxu0 0.0
    %7137 = vmatpush1.msra.mxu0 0.0
    %7138 = vmatprep.subr.mxu0 0.0
    %7139 = vmatpush1.msra.mxu0 0.0
    %7140 = vmatprep.subr.mxu0 0.0
    %7141 = vmatpush1.msra.mxu0 0.0
    %7142 = vmatprep.subr.mxu0 0.0
    %7143 = vmatpush1.msra.mxu0 0.0
    %7144 = vmatprep.subr.mxu0 0.0
    %7145 = vmatpush1.msra.mxu0 0.0
    %7146 = vmatprep.mubr.f32.mxu0 0.0
    %v7147 = vand.u32 %v6902, 4294901760
    %v7148 = vsub.f32 %v6902, %v7147
    %7149 = vmatmul.mubr.f32.gmra.mrb[0].mxu0 %v7148
    %v7150 = vpop.f32.mrb[0].mxu0
    %v7151 = vadd.f32 %v7071, %v7150
    %v7152 = vpop.f32.mrb[0].mxu0
    %7153 = vdwg.mxu0
    %7154 = vmatprep.subr.mxu0 0.0
    %v7155 = vand.u32 %v5347, 4294901760
    %7156 = vmatpush1.msra.mxu0 %v7155
    %7157 = vmatprep.subr.mxu0 0.0
    %v7158 = vand.u32 %v5348, 4294901760
    %7159 = vmatpush1.msra.mxu0 %v7158
    %7160 = vmatprep.subr.mxu0 0.0
    %v7161 = vand.u32 %v5349, 4294901760
    %7162 = vmatpush1.msra.mxu0 %v7161
    %7163 = vmatprep.subr.mxu0 0.0
    %v7164 = vand.u32 %v5350, 4294901760
    %7165 = vmatpush1.msra.mxu0 %v7164
    %7166 = vmatprep.subr.mxu0 0.0
    %7167 = vmatpush1.msra.mxu0 0.0
    %7168 = vmatprep.subr.mxu0 0.0
    %7169 = vmatpush1.msra.mxu0 0.0
    %7170 = vmatprep.subr.mxu0 0.0
    %7171 = vmatpush1.msra.mxu0 0.0
    %7172 = vmatprep.subr.mxu0 0.0
    %7173 = vmatpush1.msra.mxu0 0.0
    %7174 = vmatprep.subr.mxu0 0.0
    %7175 = vmatpush1.msra.mxu0 0.0
    %7176 = vmatprep.subr.mxu0 0.0
    %7177 = vmatpush1.msra.mxu0 0.0
    %7178 = vmatprep.subr.mxu0 0.0
    %7179 = vmatpush1.msra.mxu0 0.0
    %7180 = vmatprep.subr.mxu0 0.0
    %7181 = vmatpush1.msra.mxu0 0.0
    %7182 = vmatprep.subr.mxu0 0.0
    %7183 = vmatpush1.msra.mxu0 0.0
    %7184 = vmatprep.subr.mxu0 0.0
    %7185 = vmatpush1.msra.mxu0 0.0
    %7186 = vmatprep.subr.mxu0 0.0
    %7187 = vmatpush1.msra.mxu0 0.0
    %7188 = vmatprep.subr.mxu0 0.0
    %7189 = vmatpush1.msra.mxu0 0.0
    %7190 = vmatprep.subr.mxu0 0.0
    %7191 = vmatpush1.msra.mxu0 0.0
    %7192 = vmatprep.subr.mxu0 0.0
    %7193 = vmatpush1.msra.mxu0 0.0
    %7194 = vmatprep.subr.mxu0 0.0
    %7195 = vmatpush1.msra.mxu0 0.0
    %7196 = vmatprep.subr.mxu0 0.0
    %7197 = vmatpush1.msra.mxu0 0.0
    %7198 = vmatprep.subr.mxu0 0.0
    %7199 = vmatpush1.msra.mxu0 0.0
    %7200 = vmatprep.subr.mxu0 0.0
    %7201 = vmatpush1.msra.mxu0 0.0
    %7202 = vmatprep.subr.mxu0 0.0
    %7203 = vmatpush1.msra.mxu0 0.0
    %7204 = vmatprep.subr.mxu0 0.0
    %7205 = vmatpush1.msra.mxu0 0.0
    %7206 = vmatprep.subr.mxu0 0.0
    %7207 = vmatpush1.msra.mxu0 0.0
    %7208 = vmatprep.subr.mxu0 0.0
    %7209 = vmatpush1.msra.mxu0 0.0
    %7210 = vmatprep.subr.mxu0 0.0
    %7211 = vmatpush1.msra.mxu0 0.0
    %7212 = vmatprep.subr.mxu0 0.0
    %7213 = vmatpush1.msra.mxu0 0.0
    %7214 = vmatprep.subr.mxu0 0.0
    %7215 = vmatpush1.msra.mxu0 0.0
    %7216 = vmatprep.subr.mxu0 0.0
    %7217 = vmatpush1.msra.mxu0 0.0
    %7218 = vmatprep.subr.mxu0 0.0
    %7219 = vmatpush1.msra.mxu0 0.0
    %7220 = vmatprep.subr.mxu0 0.0
    %7221 = vmatpush1.msra.mxu0 0.0
    %7222 = vmatprep.mubr.f32.mxu0 0.0
    %v7223 = vand.u32 %v6902, 4294901760
    %v7224 = vsub.f32 %v6902, %v7223
    %v7225 = vand.u32 %v7224, 4294901760
    %7226 = vmatmul.mubr.f32.gmra.mrb[0].mxu0 %v7225
    %v7227 = vpop.f32.mrb[0].mxu0
    %v7228 = vadd.f32 %v7151, %v7227
    %v7229 = vpop.f32.mrb[0].mxu0
    %7230 = vdwg.mxu0
    %7231 = vmatprep.subr.mxu0 0.0
    %v7232 = vand.u32 %v5347, 4294901760
    %v7233 = vsub.f32 %v5347, %v7232
    %v7234 = vand.u32 %v7233, 4294901760
    %7235 = vmatpush1.msra.mxu0 %v7234
    %7236 = vmatprep.subr.mxu0 0.0
    %v7237 = vand.u32 %v5348, 4294901760
    %v7238 = vsub.f32 %v5348, %v7237
    %v7239 = vand.u32 %v7238, 4294901760
    %7240 = vmatpush1.msra.mxu0 %v7239
    %7241 = vmatprep.subr.mxu0 0.0
    %v7242 = vand.u32 %v5349, 4294901760
    %v7243 = vsub.f32 %v5349, %v7242
    %v7244 = vand.u32 %v7243, 4294901760
    %7245 = vmatpush1.msra.mxu0 %v7244
    %7246 = vmatprep.subr.mxu0 0.0
    %v7247 = vand.u32 %v5350, 4294901760
    %v7248 = vsub.f32 %v5350, %v7247
    %v7249 = vand.u32 %v7248, 4294901760
    %7250 = vmatpush1.msra.mxu0 %v7249
    %7251 = vmatprep.subr.mxu0 0.0
    %7252 = vmatpush1.msra.mxu0 0.0
    %7253 = vmatprep.subr.mxu0 0.0
    %7254 = vmatpush1.msra.mxu0 0.0
    %7255 = vmatprep.subr.mxu0 0.0
    %7256 = vmatpush1.msra.mxu0 0.0
    %7257 = vmatprep.subr.mxu0 0.0
    %7258 = vmatpush1.msra.mxu0 0.0
    %7259 = vmatprep.subr.mxu0 0.0
    %7260 = vmatpush1.msra.mxu0 0.0
    %7261 = vmatprep.subr.mxu0 0.0
    %7262 = vmatpush1.msra.mxu0 0.0
    %7263 = vmatprep.subr.mxu0 0.0
    %7264 = vmatpush1.msra.mxu0 0.0
    %7265 = vmatprep.subr.mxu0 0.0
    %7266 = vmatpush1.msra.mxu0 0.0
    %7267 = vmatprep.subr.mxu0 0.0
    %7268 = vmatpush1.msra.mxu0 0.0
    %7269 = vmatprep.subr.mxu0 0.0
    %7270 = vmatpush1.msra.mxu0 0.0
    %7271 = vmatprep.subr.mxu0 0.0
    %7272 = vmatpush1.msra.mxu0 0.0
    %7273 = vmatprep.subr.mxu0 0.0
    %7274 = vmatpush1.msra.mxu0 0.0
    %7275 = vmatprep.subr.mxu0 0.0
    %7276 = vmatpush1.msra.mxu0 0.0
    %7277 = vmatprep.subr.mxu0 0.0
    %7278 = vmatpush1.msra.mxu0 0.0
    %7279 = vmatprep.subr.mxu0 0.0
    %7280 = vmatpush1.msra.mxu0 0.0
    %7281 = vmatprep.subr.mxu0 0.0
    %7282 = vmatpush1.msra.mxu0 0.0
    %7283 = vmatprep.subr.mxu0 0.0
    %7284 = vmatpush1.msra.mxu0 0.0
    %7285 = vmatprep.subr.mxu0 0.0
    %7286 = vmatpush1.msra.mxu0 0.0
    %7287 = vmatprep.subr.mxu0 0.0
    %7288 = vmatpush1.msra.mxu0 0.0
    %7289 = vmatprep.subr.mxu0 0.0
    %7290 = vmatpush1.msra.mxu0 0.0
    %7291 = vmatprep.subr.mxu0 0.0
    %7292 = vmatpush1.msra.mxu0 0.0
    %7293 = vmatprep.subr.mxu0 0.0
    %7294 = vmatpush1.msra.mxu0 0.0
    %7295 = vmatprep.subr.mxu0 0.0
    %7296 = vmatpush1.msra.mxu0 0.0
    %7297 = vmatprep.subr.mxu0 0.0
    %7298 = vmatpush1.msra.mxu0 0.0
    %7299 = vmatprep.subr.mxu0 0.0
    %7300 = vmatpush1.msra.mxu0 0.0
    %7301 = vmatprep.subr.mxu0 0.0
    %7302 = vmatpush1.msra.mxu0 0.0
    %7303 = vmatprep.subr.mxu0 0.0
    %7304 = vmatpush1.msra.mxu0 0.0
    %7305 = vmatprep.subr.mxu0 0.0
    %7306 = vmatpush1.msra.mxu0 0.0
    %7307 = vmatprep.mubr.f32.mxu0 0.0
    %v7308 = vand.u32 %v6902, 4294901760
    %7309 = vmatmul.mubr.f32.gmra.mrb[0].mxu0 %v7308
    %v7310 = vpop.f32.mrb[0].mxu0
    %v7311 = vadd.f32 %v7228, %v7310
    %v7312 = vpop.f32.mrb[0].mxu0
    %7313 = vdwg.mxu0
    %7314 = vmatprep.subr.mxu0 0.0
    %v7315 = vand.u32 %v5347, 4294901760
    %7316 = vmatpush1.msra.mxu0 %v7315
    %7317 = vmatprep.subr.mxu0 0.0
    %v7318 = vand.u32 %v5348, 4294901760
    %7319 = vmatpush1.msra.mxu0 %v7318
    %7320 = vmatprep.subr.mxu0 0.0
    %v7321 = vand.u32 %v5349, 4294901760
    %7322 = vmatpush1.msra.mxu0 %v7321
    %7323 = vmatprep.subr.mxu0 0.0
    %v7324 = vand.u32 %v5350, 4294901760
    %7325 = vmatpush1.msra.mxu0 %v7324
    %7326 = vmatprep.subr.mxu0 0.0
    %7327 = vmatpush1.msra.mxu0 0.0
    %7328 = vmatprep.subr.mxu0 0.0
    %7329 = vmatpush1.msra.mxu0 0.0
    %7330 = vmatprep.subr.mxu0 0.0
    %7331 = vmatpush1.msra.mxu0 0.0
    %7332 = vmatprep.subr.mxu0 0.0
    %7333 = vmatpush1.msra.mxu0 0.0
    %7334 = vmatprep.subr.mxu0 0.0
    %7335 = vmatpush1.msra.mxu0 0.0
    %7336 = vmatprep.subr.mxu0 0.0
    %7337 = vmatpush1.msra.mxu0 0.0
    %7338 = vmatprep.subr.mxu0 0.0
    %7339 = vmatpush1.msra.mxu0 0.0
    %7340 = vmatprep.subr.mxu0 0.0
    %7341 = vmatpush1.msra.mxu0 0.0
    %7342 = vmatprep.subr.mxu0 0.0
    %7343 = vmatpush1.msra.mxu0 0.0
    %7344 = vmatprep.subr.mxu0 0.0
    %7345 = vmatpush1.msra.mxu0 0.0
    %7346 = vmatprep.subr.mxu0 0.0
    %7347 = vmatpush1.msra.mxu0 0.0
    %7348 = vmatprep.subr.mxu0 0.0
    %7349 = vmatpush1.msra.mxu0 0.0
    %7350 = vmatprep.subr.mxu0 0.0
    %7351 = vmatpush1.msra.mxu0 0.0
    %7352 = vmatprep.subr.mxu0 0.0
    %7353 = vmatpush1.msra.mxu0 0.0
    %7354 = vmatprep.subr.mxu0 0.0
    %7355 = vmatpush1.msra.mxu0 0.0
    %7356 = vmatprep.subr.mxu0 0.0
    %7357 = vmatpush1.msra.mxu0 0.0
    %7358 = vmatprep.subr.mxu0 0.0
    %7359 = vmatpush1.msra.mxu0 0.0
    %7360 = vmatprep.subr.mxu0 0.0
    %7361 = vmatpush1.msra.mxu0 0.0
    %7362 = vmatprep.subr.mxu0 0.0
    %7363 = vmatpush1.msra.mxu0 0.0
    %7364 = vmatprep.subr.mxu0 0.0
    %7365 = vmatpush1.msra.mxu0 0.0
    %7366 = vmatprep.subr.mxu0 0.0
    %7367 = vmatpush1.msra.mxu0 0.0
    %7368 = vmatprep.subr.mxu0 0.0
    %7369 = vmatpush1.msra.mxu0 0.0
    %7370 = vmatprep.subr.mxu0 0.0
    %7371 = vmatpush1.msra.mxu0 0.0
    %7372 = vmatprep.subr.mxu0 0.0
    %7373 = vmatpush1.msra.mxu0 0.0
    %7374 = vmatprep.subr.mxu0 0.0
    %7375 = vmatpush1.msra.mxu0 0.0
    %7376 = vmatprep.subr.mxu0 0.0
    %7377 = vmatpush1.msra.mxu0 0.0
    %7378 = vmatprep.subr.mxu0 0.0
    %7379 = vmatpush1.msra.mxu0 0.0
    %7380 = vmatprep.subr.mxu0 0.0
    %7381 = vmatpush1.msra.mxu0 0.0
    %7382 = vmatprep.mubr.f32.mxu0 0.0
    %v7383 = vand.u32 %v6902, 4294901760
    %7384 = vmatmul.mubr.f32.gmra.mrb[0].mxu0 %v7383
    %v7385 = vpop.f32.mrb[0].mxu0
    %v7386 = vadd.f32 %v7311, %v7385
    %v7387 = vpop.f32.mrb[0].mxu0
    %7388 = vdwg.mxu0
    %v7390 = vrot.slane %v7386, 2
    %v7392 = vadd.f32 %v5338, %v7390
    %v7393 = vmul.f32 %v7392, 0.5
    %v7394 = vtanh.pop %v7393
    %v7395 = vadd.f32 %v7394, 1.0
    %v7396 = vmul.f32 %v7395, 0.5
    %v7397 = vtanh.pop %v7392
    %v7399 = vrot.slane %v6891, 6
    %v7401 = vmul.f32 %v7396, %v7399
    %7403 = vrot.lane.b32.xlu0 %v7397, 64
    %v7404 = vpop.permute.xlu0 %7403
    %v7406 = vmul.f32 %v7396, %v7404
    %7408 = vrot.lane.b32.xlu0 %v7406, 32
    %v7409 = vpop.permute.xlu0 %7408
    %v7411 = vadd.f32 %v7401, %v7409
    %v7412 = vtanh.pop %v7411
    %7414 = vrot.lane.b32.xlu0 %v7412, 64
    %v7415 = vpop.permute.xlu0 %7414
    %v7417 = vmul.f32 %v7396, %v7415
    %v7419 = vrot.slane %v7417, 6
    %7420 = vrot.lane.b32.xlu0 %v7419, 32
    %v7421 = vpop.permute.xlu0 %7420
    %v7422 = vsel %vm49, %v7421, 0
    %7424 = vmatprep.subr.mxu0 0.0
    %v7425 = vand.u32 %v5347, 4294901760
    %7426 = vmatpush1.msra.mxu0 %v7425
    %7427 = vmatprep.subr.mxu0 0.0
    %v7428 = vand.u32 %v5348, 4294901760
    %7429 = vmatpush1.msra.mxu0 %v7428
    %7430 = vmatprep.subr.mxu0 0.0
    %v7431 = vand.u32 %v5349, 4294901760
    %7432 = vmatpush1.msra.mxu0 %v7431
    %7433 = vmatprep.subr.mxu0 0.0
    %v7434 = vand.u32 %v5350, 4294901760
    %7435 = vmatpush1.msra.mxu0 %v7434
    %7436 = vmatprep.subr.mxu0 0.0
    %7437 = vmatpush1.msra.mxu0 0.0
    %7438 = vmatprep.subr.mxu0 0.0
    %7439 = vmatpush1.msra.mxu0 0.0
    %7440 = vmatprep.subr.mxu0 0.0
    %7441 = vmatpush1.msra.mxu0 0.0
    %7442 = vmatprep.subr.mxu0 0.0
    %7443 = vmatpush1.msra.mxu0 0.0
    %7444 = vmatprep.subr.mxu0 0.0
    %7445 = vmatpush1.msra.mxu0 0.0
    %7446 = vmatprep.subr.mxu0 0.0
    %7447 = vmatpush1.msra.mxu0 0.0
    %7448 = vmatprep.subr.mxu0 0.0
    %7449 = vmatpush1.msra.mxu0 0.0
    %7450 = vmatprep.subr.mxu0 0.0
    %7451 = vmatpush1.msra.mxu0 0.0
    %7452 = vmatprep.subr.mxu0 0.0
    %7453 = vmatpush1.msra.mxu0 0.0
    %7454 = vmatprep.subr.mxu0 0.0
    %7455 = vmatpush1.msra.mxu0 0.0
    %7456 = vmatprep.subr.mxu0 0.0
    %7457 = vmatpush1.msra.mxu0 0.0
    %7458 = vmatprep.subr.mxu0 0.0
    %7459 = vmatpush1.msra.mxu0 0.0
    %7460 = vmatprep.subr.mxu0 0.0
    %7461 = vmatpush1.msra.mxu0 0.0
    %7462 = vmatprep.subr.mxu0 0.0
    %7463 = vmatpush1.msra.mxu0 0.0
    %7464 = vmatprep.subr.mxu0 0.0
    %7465 = vmatpush1.msra.mxu0 0.0
    %7466 = vmatprep.subr.mxu0 0.0
    %7467 = vmatpush1.msra.mxu0 0.0
    %7468 = vmatprep.subr.mxu0 0.0
    %7469 = vmatpush1.msra.mxu0 0.0
    %7470 = vmatprep.subr.mxu0 0.0
    %7471 = vmatpush1.msra.mxu0 0.0
    %7472 = vmatprep.subr.mxu0 0.0
    %7473 = vmatpush1.msra.mxu0 0.0
    %7474 = vmatprep.subr.mxu0 0.0
    %7475 = vmatpush1.msra.mxu0 0.0
    %7476 = vmatprep.subr.mxu0 0.0
    %7477 = vmatpush1.msra.mxu0 0.0
    %7478 = vmatprep.subr.mxu0 0.0
    %7479 = vmatpush1.msra.mxu0 0.0
    %7480 = vmatprep.subr.mxu0 0.0
    %7481 = vmatpush1.msra.mxu0 0.0
    %7482 = vmatprep.subr.mxu0 0.0
    %7483 = vmatpush1.msra.mxu0 0.0
    %7484 = vmatprep.subr.mxu0 0.0
    %7485 = vmatpush1.msra.mxu0 0.0
    %7486 = vmatprep.subr.mxu0 0.0
    %7487 = vmatpush1.msra.mxu0 0.0
    %7488 = vmatprep.subr.mxu0 0.0
    %7489 = vmatpush1.msra.mxu0 0.0
    %7490 = vmatprep.subr.mxu0 0.0
    %7491 = vmatpush1.msra.mxu0 0.0
    %7492 = vmatprep.mubr.f32.mxu0 0.0
    %v7493 = vand.u32 %v7422, 4294901760
    %v7494 = vsub.f32 %v7422, %v7493
    %v7495 = vand.u32 %v7494, 4294901760
    %v7496 = vsub.f32 %v7494, %v7495
    %v7497 = vand.u32 %v7496, 4294901760
    %7498 = vmatmul.mubr.f32.gmra.mrb[0].mxu0 %v7497
    %v7499 = vpop.f32.mrb[0].mxu0
    %v7500 = vadd.f32 0.0, %v7499
    %v7501 = vpop.f32.mrb[0].mxu0
    %7502 = vdwg.mxu0
    %7503 = vmatprep.subr.mxu0 0.0
    %v7504 = vand.u32 %v5347, 4294901760
    %v7505 = vsub.f32 %v5347, %v7504
    %v7506 = vand.u32 %v7505, 4294901760
    %v7507 = vsub.f32 %v7505, %v7506
    %v7508 = vand.u32 %v7507, 4294901760
    %7509 = vmatpush1.msra.mxu0 %v7508
    %7510 = vmatprep.subr.mxu0 0.0
    %v7511 = vand.u32 %v5348, 4294901760
    %v7512 = vsub.f32 %v5348, %v7511
    %v7513 = vand.u32 %v7512, 4294901760
    %v7514 = vsub.f32 %v7512, %v7513
    %v7515 = vand.u32 %v7514, 4294901760
    %7516 = vmatpush1.msra.mxu0 %v7515
    %7517 = vmatprep.subr.mxu0 0.0
    %v7518 = vand.u32 %v5349, 4294901760
    %v7519 = vsub.f32 %v5349, %v7518
    %v7520 = vand.u32 %v7519, 4294901760
    %v7521 = vsub.f32 %v7519, %v7520
    %v7522 = vand.u32 %v7521, 4294901760
    %7523 = vmatpush1.msra.mxu0 %v7522
    %7524 = vmatprep.subr.mxu0 0.0
    %v7525 = vand.u32 %v5350, 4294901760
    %v7526 = vsub.f32 %v5350, %v7525
    %v7527 = vand.u32 %v7526, 4294901760
    %v7528 = vsub.f32 %v7526, %v7527
    %v7529 = vand.u32 %v7528, 4294901760
    %7530 = vmatpush1.msra.mxu0 %v7529
    %7531 = vmatprep.subr.mxu0 0.0
    %7532 = vmatpush1.msra.mxu0 0.0
    %7533 = vmatprep.subr.mxu0 0.0
    %7534 = vmatpush1.msra.mxu0 0.0
    %7535 = vmatprep.subr.mxu0 0.0
    %7536 = vmatpush1.msra.mxu0 0.0
    %7537 = vmatprep.subr.mxu0 0.0
    %7538 = vmatpush1.msra.mxu0 0.0
    %7539 = vmatprep.subr.mxu0 0.0
    %7540 = vmatpush1.msra.mxu0 0.0
    %7541 = vmatprep.subr.mxu0 0.0
    %7542 = vmatpush1.msra.mxu0 0.0
    %7543 = vmatprep.subr.mxu0 0.0
    %7544 = vmatpush1.msra.mxu0 0.0
    %7545 = vmatprep.subr.mxu0 0.0
    %7546 = vmatpush1.msra.mxu0 0.0
    %7547 = vmatprep.subr.mxu0 0.0
    %7548 = vmatpush1.msra.mxu0 0.0
    %7549 = vmatprep.subr.mxu0 0.0
    %7550 = vmatpush1.msra.mxu0 0.0
    %7551 = vmatprep.subr.mxu0 0.0
    %7552 = vmatpush1.msra.mxu0 0.0
    %7553 = vmatprep.subr.mxu0 0.0
    %7554 = vmatpush1.msra.mxu0 0.0
    %7555 = vmatprep.subr.mxu0 0.0
    %7556 = vmatpush1.msra.mxu0 0.0
    %7557 = vmatprep.subr.mxu0 0.0
    %7558 = vmatpush1.msra.mxu0 0.0
    %7559 = vmatprep.subr.mxu0 0.0
    %7560 = vmatpush1.msra.mxu0 0.0
    %7561 = vmatprep.subr.mxu0 0.0
    %7562 = vmatpush1.msra.mxu0 0.0
    %7563 = vmatprep.subr.mxu0 0.0
    %7564 = vmatpush1.msra.mxu0 0.0
    %7565 = vmatprep.subr.mxu0 0.0
    %7566 = vmatpush1.msra.mxu0 0.0
    %7567 = vmatprep.subr.mxu0 0.0
    %7568 = vmatpush1.msra.mxu0 0.0
    %7569 = vmatprep.subr.mxu0 0.0
    %7570 = vmatpush1.msra.mxu0 0.0
    %7571 = vmatprep.subr.mxu0 0.0
    %7572 = vmatpush1.msra.mxu0 0.0
    %7573 = vmatprep.subr.mxu0 0.0
    %7574 = vmatpush1.msra.mxu0 0.0
    %7575 = vmatprep.subr.mxu0 0.0
    %7576 = vmatpush1.msra.mxu0 0.0
    %7577 = vmatprep.subr.mxu0 0.0
    %7578 = vmatpush1.msra.mxu0 0.0
    %7579 = vmatprep.subr.mxu0 0.0
    %7580 = vmatpush1.msra.mxu0 0.0
    %7581 = vmatprep.subr.mxu0 0.0
    %7582 = vmatpush1.msra.mxu0 0.0
    %7583 = vmatprep.subr.mxu0 0.0
    %7584 = vmatpush1.msra.mxu0 0.0
    %7585 = vmatprep.subr.mxu0 0.0
    %7586 = vmatpush1.msra.mxu0 0.0
    %7587 = vmatprep.mubr.f32.mxu0 0.0
    %v7588 = vand.u32 %v7422, 4294901760
    %7589 = vmatmul.mubr.f32.gmra.mrb[0].mxu0 %v7588
    %v7590 = vpop.f32.mrb[0].mxu0
    %v7591 = vadd.f32 %v7500, %v7590
    %v7592 = vpop.f32.mrb[0].mxu0
    %7593 = vdwg.mxu0
    %7594 = vmatprep.subr.mxu0 0.0
    %v7595 = vand.u32 %v5347, 4294901760
    %v7596 = vsub.f32 %v5347, %v7595
    %7597 = vmatpush1.msra.mxu0 %v7596
    %7598 = vmatprep.subr.mxu0 0.0
    %v7599 = vand.u32 %v5348, 4294901760
    %v7600 = vsub.f32 %v5348, %v7599
    %7601 = vmatpush1.msra.mxu0 %v7600
    %7602 = vmatprep.subr.mxu0 0.0
    %v7603 = vand.u32 %v5349, 4294901760
    %v7604 = vsub.f32 %v5349, %v7603
    %7605 = vmatpush1.msra.mxu0 %v7604
    %7606 = vmatprep.subr.mxu0 0.0
    %v7607 = vand.u32 %v5350, 4294901760
    %v7608 = vsub.f32 %v5350, %v7607
    %7609 = vmatpush1.msra.mxu0 %v7608
    %7610 = vmatprep.subr.mxu0 0.0
    %7611 = vmatpush1.msra.mxu0 0.0
    %7612 = vmatprep.subr.mxu0 0.0
    %7613 = vmatpush1.msra.mxu0 0.0
    %7614 = vmatprep.subr.mxu0 0.0
    %7615 = vmatpush1.msra.mxu0 0.0
    %7616 = vmatprep.subr.mxu0 0.0
    %7617 = vmatpush1.msra.mxu0 0.0
    %7618 = vmatprep.subr.mxu0 0.0
    %7619 = vmatpush1.msra.mxu0 0.0
    %7620 = vmatprep.subr.mxu0 0.0
    %7621 = vmatpush1.msra.mxu0 0.0
    %7622 = vmatprep.subr.mxu0 0.0
    %7623 = vmatpush1.msra.mxu0 0.0
    %7624 = vmatprep.subr.mxu0 0.0
    %7625 = vmatpush1.msra.mxu0 0.0
    %7626 = vmatprep.subr.mxu0 0.0
    %7627 = vmatpush1.msra.mxu0 0.0
    %7628 = vmatprep.subr.mxu0 0.0
    %7629 = vmatpush1.msra.mxu0 0.0
    %7630 = vmatprep.subr.mxu0 0.0
    %7631 = vmatpush1.msra.mxu0 0.0
    %7632 = vmatprep.subr.mxu0 0.0
    %7633 = vmatpush1.msra.mxu0 0.0
    %7634 = vmatprep.subr.mxu0 0.0
    %7635 = vmatpush1.msra.mxu0 0.0
    %7636 = vmatprep.subr.mxu0 0.0
    %7637 = vmatpush1.msra.mxu0 0.0
    %7638 = vmatprep.subr.mxu0 0.0
    %7639 = vmatpush1.msra.mxu0 0.0
    %7640 = vmatprep.subr.mxu0 0.0
    %7641 = vmatpush1.msra.mxu0 0.0
    %7642 = vmatprep.subr.mxu0 0.0
    %7643 = vmatpush1.msra.mxu0 0.0
    %7644 = vmatprep.subr.mxu0 0.0
    %7645 = vmatpush1.msra.mxu0 0.0
    %7646 = vmatprep.subr.mxu0 0.0
    %7647 = vmatpush1.msra.mxu0 0.0
    %7648 = vmatprep.subr.mxu0 0.0
    %7649 = vmatpush1.msra.mxu0 0.0
    %7650 = vmatprep.subr.mxu0 0.0
    %7651 = vmatpush1.msra.mxu0 0.0
    %7652 = vmatprep.subr.mxu0 0.0
    %7653 = vmatpush1.msra.mxu0 0.0
    %7654 = vmatprep.subr.mxu0 0.0
    %7655 = vmatpush1.msra.mxu0 0.0
    %7656 = vmatprep.subr.mxu0 0.0
    %7657 = vmatpush1.msra.mxu0 0.0
    %7658 = vmatprep.subr.mxu0 0.0
    %7659 = vmatpush1.msra.mxu0 0.0
    %7660 = vmatprep.subr.mxu0 0.0
    %7661 = vmatpush1.msra.mxu0 0.0
    %7662 = vmatprep.subr.mxu0 0.0
    %7663 = vmatpush1.msra.mxu0 0.0
    %7664 = vmatprep.subr.mxu0 0.0
    %7665 = vmatpush1.msra.mxu0 0.0
    %7666 = vmatprep.mubr.f32.mxu0 0.0
    %v7667 = vand.u32 %v7422, 4294901760
    %v7668 = vsub.f32 %v7422, %v7667
    %7669 = vmatmul.mubr.f32.gmra.mrb[0].mxu0 %v7668
    %v7670 = vpop.f32.mrb[0].mxu0
    %v7671 = vadd.f32 %v7591, %v7670
    %v7672 = vpop.f32.mrb[0].mxu0
    %7673 = vdwg.mxu0
    %7674 = vmatprep.subr.mxu0 0.0
    %v7675 = vand.u32 %v5347, 4294901760
    %7676 = vmatpush1.msra.mxu0 %v7675
    %7677 = vmatprep.subr.mxu0 0.0
    %v7678 = vand.u32 %v5348, 4294901760
    %7679 = vmatpush1.msra.mxu0 %v7678
    %7680 = vmatprep.subr.mxu0 0.0
    %v7681 = vand.u32 %v5349, 4294901760
    %7682 = vmatpush1.msra.mxu0 %v7681
    %7683 = vmatprep.subr.mxu0 0.0
    %v7684 = vand.u32 %v5350, 4294901760
    %7685 = vmatpush1.msra.mxu0 %v7684
    %7686 = vmatprep.subr.mxu0 0.0
    %7687 = vmatpush1.msra.mxu0 0.0
    %7688 = vmatprep.subr.mxu0 0.0
    %7689 = vmatpush1.msra.mxu0 0.0
    %7690 = vmatprep.subr.mxu0 0.0
    %7691 = vmatpush1.msra.mxu0 0.0
    %7692 = vmatprep.subr.mxu0 0.0
    %7693 = vmatpush1.msra.mxu0 0.0
    %7694 = vmatprep.subr.mxu0 0.0
    %7695 = vmatpush1.msra.mxu0 0.0
    %7696 = vmatprep.subr.mxu0 0.0
    %7697 = vmatpush1.msra.mxu0 0.0
    %7698 = vmatprep.subr.mxu0 0.0
    %7699 = vmatpush1.msra.mxu0 0.0
    %7700 = vmatprep.subr.mxu0 0.0
    %7701 = vmatpush1.msra.mxu0 0.0
    %7702 = vmatprep.subr.mxu0 0.0
    %7703 = vmatpush1.msra.mxu0 0.0
    %7704 = vmatprep.subr.mxu0 0.0
    %7705 = vmatpush1.msra.mxu0 0.0
    %7706 = vmatprep.subr.mxu0 0.0
    %7707 = vmatpush1.msra.mxu0 0.0
    %7708 = vmatprep.subr.mxu0 0.0
    %7709 = vmatpush1.msra.mxu0 0.0
    %7710 = vmatprep.subr.mxu0 0.0
    %7711 = vmatpush1.msra.mxu0 0.0
    %7712 = vmatprep.subr.mxu0 0.0
    %7713 = vmatpush1.msra.mxu0 0.0
    %7714 = vmatprep.subr.mxu0 0.0
    %7715 = vmatpush1.msra.mxu0 0.0
    %7716 = vmatprep.subr.mxu0 0.0
    %7717 = vmatpush1.msra.mxu0 0.0
    %7718 = vmatprep.subr.mxu0 0.0
    %7719 = vmatpush1.msra.mxu0 0.0
    %7720 = vmatprep.subr.mxu0 0.0
    %7721 = vmatpush1.msra.mxu0 0.0
    %7722 = vmatprep.subr.mxu0 0.0
    %7723 = vmatpush1.msra.mxu0 0.0
    %7724 = vmatprep.subr.mxu0 0.0
    %7725 = vmatpush1.msra.mxu0 0.0
    %7726 = vmatprep.subr.mxu0 0.0
    %7727 = vmatpush1.msra.mxu0 0.0
    %7728 = vmatprep.subr.mxu0 0.0
    %7729 = vmatpush1.msra.mxu0 0.0
    %7730 = vmatprep.subr.mxu0 0.0
    %7731 = vmatpush1.msra.mxu0 0.0
    %7732 = vmatprep.subr.mxu0 0.0
    %7733 = vmatpush1.msra.mxu0 0.0
    %7734 = vmatprep.subr.mxu0 0.0
    %7735 = vmatpush1.msra.mxu0 0.0
    %7736 = vmatprep.subr.mxu0 0.0
    %7737 = vmatpush1.msra.mxu0 0.0
    %7738 = vmatprep.subr.mxu0 0.0
    %7739 = vmatpush1.msra.mxu0 0.0
    %7740 = vmatprep.subr.mxu0 0.0
    %7741 = vmatpush1.msra.mxu0 0.0
    %7742 = vmatprep.mubr.f32.mxu0 0.0
    %v7743 = vand.u32 %v7422, 4294901760
    %v7744 = vsub.f32 %v7422, %v7743
    %v7745 = vand.u32 %v7744, 4294901760
    %7746 = vmatmul.mubr.f32.gmra.mrb[0].mxu0 %v7745
    %v7747 = vpop.f32.mrb[0].mxu0
    %v7748 = vadd.f32 %v7671, %v7747
    %v7749 = vpop.f32.mrb[0].mxu0
    %7750 = vdwg.mxu0
    %7751 = vmatprep.subr.mxu0 0.0
    %v7752 = vand.u32 %v5347, 4294901760
    %v7753 = vsub.f32 %v5347, %v7752
    %v7754 = vand.u32 %v7753, 4294901760
    %7755 = vmatpush1.msra.mxu0 %v7754
    %7756 = vmatprep.subr.mxu0 0.0
    %v7757 = vand.u32 %v5348, 4294901760
    %v7758 = vsub.f32 %v5348, %v7757
    %v7759 = vand.u32 %v7758, 4294901760
    %7760 = vmatpush1.msra.mxu0 %v7759
    %7761 = vmatprep.subr.mxu0 0.0
    %v7762 = vand.u32 %v5349, 4294901760
    %v7763 = vsub.f32 %v5349, %v7762
    %v7764 = vand.u32 %v7763, 4294901760
    %7765 = vmatpush1.msra.mxu0 %v7764
    %7766 = vmatprep.subr.mxu0 0.0
    %v7767 = vand.u32 %v5350, 4294901760
    %v7768 = vsub.f32 %v5350, %v7767
    %v7769 = vand.u32 %v7768, 4294901760
    %7770 = vmatpush1.msra.mxu0 %v7769
    %7771 = vmatprep.subr.mxu0 0.0
    %7772 = vmatpush1.msra.mxu0 0.0
    %7773 = vmatprep.subr.mxu0 0.0
    %7774 = vmatpush1.msra.mxu0 0.0
    %7775 = vmatprep.subr.mxu0 0.0
    %7776 = vmatpush1.msra.mxu0 0.0
    %7777 = vmatprep.subr.mxu0 0.0
    %7778 = vmatpush1.msra.mxu0 0.0
    %7779 = vmatprep.subr.mxu0 0.0
    %7780 = vmatpush1.msra.mxu0 0.0
    %7781 = vmatprep.subr.mxu0 0.0
    %7782 = vmatpush1.msra.mxu0 0.0
    %7783 = vmatprep.subr.mxu0 0.0
    %7784 = vmatpush1.msra.mxu0 0.0
    %7785 = vmatprep.subr.mxu0 0.0
    %7786 = vmatpush1.msra.mxu0 0.0
    %7787 = vmatprep.subr.mxu0 0.0
    %7788 = vmatpush1.msra.mxu0 0.0
    %7789 = vmatprep.subr.mxu0 0.0
    %7790 = vmatpush1.msra.mxu0 0.0
    %7791 = vmatprep.subr.mxu0 0.0
    %7792 = vmatpush1.msra.mxu0 0.0
    %7793 = vmatprep.subr.mxu0 0.0
    %7794 = vmatpush1.msra.mxu0 0.0
    %7795 = vmatprep.subr.mxu0 0.0
    %7796 = vmatpush1.msra.mxu0 0.0
    %7797 = vmatprep.subr.mxu0 0.0
    %7798 = vmatpush1.msra.mxu0 0.0
    %7799 = vmatprep.subr.mxu0 0.0
    %7800 = vmatpush1.msra.mxu0 0.0
    %7801 = vmatprep.subr.mxu0 0.0
    %7802 = vmatpush1.msra.mxu0 0.0
    %7803 = vmatprep.subr.mxu0 0.0
    %7804 = vmatpush1.msra.mxu0 0.0
    %7805 = vmatprep.subr.mxu0 0.0
    %7806 = vmatpush1.msra.mxu0 0.0
    %7807 = vmatprep.subr.mxu0 0.0
    %7808 = vmatpush1.msra.mxu0 0.0
    %7809 = vmatprep.subr.mxu0 0.0
    %7810 = vmatpush1.msra.mxu0 0.0
    %7811 = vmatprep.subr.mxu0 0.0
    %7812 = vmatpush1.msra.mxu0 0.0
    %7813 = vmatprep.subr.mxu0 0.0
    %7814 = vmatpush1.msra.mxu0 0.0
    %7815 = vmatprep.subr.mxu0 0.0
    %7816 = vmatpush1.msra.mxu0 0.0
    %7817 = vmatprep.subr.mxu0 0.0
    %7818 = vmatpush1.msra.mxu0 0.0
    %7819 = vmatprep.subr.mxu0 0.0
    %7820 = vmatpush1.msra.mxu0 0.0
    %7821 = vmatprep.subr.mxu0 0.0
    %7822 = vmatpush1.msra.mxu0 0.0
    %7823 = vmatprep.subr.mxu0 0.0
    %7824 = vmatpush1.msra.mxu0 0.0
    %7825 = vmatprep.subr.mxu0 0.0
    %7826 = vmatpush1.msra.mxu0 0.0
    %7827 = vmatprep.mubr.f32.mxu0 0.0
    %v7828 = vand.u32 %v7422, 4294901760
    %7829 = vmatmul.mubr.f32.gmra.mrb[0].mxu0 %v7828
    %v7830 = vpop.f32.mrb[0].mxu0
    %v7831 = vadd.f32 %v7748, %v7830
    %v7832 = vpop.f32.mrb[0].mxu0
    %7833 = vdwg.mxu0
    %7834 = vmatprep.subr.mxu0 0.0
    %v7835 = vand.u32 %v5347, 4294901760
    %7836 = vmatpush1.msra.mxu0 %v7835
    %7837 = vmatprep.subr.mxu0 0.0
    %v7838 = vand.u32 %v5348, 4294901760
    %7839 = vmatpush1.msra.mxu0 %v7838
    %7840 = vmatprep.subr.mxu0 0.0
    %v7841 = vand.u32 %v5349, 4294901760
    %7842 = vmatpush1.msra.mxu0 %v7841
    %7843 = vmatprep.subr.mxu0 0.0
    %v7844 = vand.u32 %v5350, 4294901760
    %7845 = vmatpush1.msra.mxu0 %v7844
    %7846 = vmatprep.subr.mxu0 0.0
    %7847 = vmatpush1.msra.mxu0 0.0
    %7848 = vmatprep.subr.mxu0 0.0
    %7849 = vmatpush1.msra.mxu0 0.0
    %7850 = vmatprep.subr.mxu0 0.0
    %7851 = vmatpush1.msra.mxu0 0.0
    %7852 = vmatprep.subr.mxu0 0.0
    %7853 = vmatpush1.msra.mxu0 0.0
    %7854 = vmatprep.subr.mxu0 0.0
    %7855 = vmatpush1.msra.mxu0 0.0
    %7856 = vmatprep.subr.mxu0 0.0
    %7857 = vmatpush1.msra.mxu0 0.0
    %7858 = vmatprep.subr.mxu0 0.0
    %7859 = vmatpush1.msra.mxu0 0.0
    %7860 = vmatprep.subr.mxu0 0.0
    %7861 = vmatpush1.msra.mxu0 0.0
    %7862 = vmatprep.subr.mxu0 0.0
    %7863 = vmatpush1.msra.mxu0 0.0
    %7864 = vmatprep.subr.mxu0 0.0
    %7865 = vmatpush1.msra.mxu0 0.0
    %7866 = vmatprep.subr.mxu0 0.0
    %7867 = vmatpush1.msra.mxu0 0.0
    %7868 = vmatprep.subr.mxu0 0.0
    %7869 = vmatpush1.msra.mxu0 0.0
    %7870 = vmatprep.subr.mxu0 0.0
    %7871 = vmatpush1.msra.mxu0 0.0
    %7872 = vmatprep.subr.mxu0 0.0
    %7873 = vmatpush1.msra.mxu0 0.0
    %7874 = vmatprep.subr.mxu0 0.0
    %7875 = vmatpush1.msra.mxu0 0.0
    %7876 = vmatprep.subr.mxu0 0.0
    %7877 = vmatpush1.msra.mxu0 0.0
    %7878 = vmatprep.subr.mxu0 0.0
    %7879 = vmatpush1.msra.mxu0 0.0
    %7880 = vmatprep.subr.mxu0 0.0
    %7881 = vmatpush1.msra.mxu0 0.0
    %7882 = vmatprep.subr.mxu0 0.0
    %7883 = vmatpush1.msra.mxu0 0.0
    %7884 = vmatprep.subr.mxu0 0.0
    %7885 = vmatpush1.msra.mxu0 0.0
    %7886 = vmatprep.subr.mxu0 0.0
    %7887 = vmatpush1.msra.mxu0 0.0
    %7888 = vmatprep.subr.mxu0 0.0
    %7889 = vmatpush1.msra.mxu0 0.0
    %7890 = vmatprep.subr.mxu0 0.0
    %7891 = vmatpush1.msra.mxu0 0.0
    %7892 = vmatprep.subr.mxu0 0.0
    %7893 = vmatpush1.msra.mxu0 0.0
    %7894 = vmatprep.subr.mxu0 0.0
    %7895 = vmatpush1.msra.mxu0 0.0
    %7896 = vmatprep.subr.mxu0 0.0
    %7897 = vmatpush1.msra.mxu0 0.0
    %7898 = vmatprep.subr.mxu0 0.0
    %7899 = vmatpush1.msra.mxu0 0.0
    %7900 = vmatprep.subr.mxu0 0.0
    %7901 = vmatpush1.msra.mxu0 0.0
    %7902 = vmatprep.mubr.f32.mxu0 0.0
    %v7903 = vand.u32 %v7422, 4294901760
    %7904 = vmatmul.mubr.f32.gmra.mrb[0].mxu0 %v7903
    %v7905 = vpop.f32.mrb[0].mxu0
    %v7906 = vadd.f32 %v7831, %v7905
    %v7907 = vpop.f32.mrb[0].mxu0
    %7908 = vdwg.mxu0
    %v7909 = vadd.f32 %v5344, %v7906
    %v7910 = vmul.f32 %v7909, 0.5
    %v7911 = vtanh.pop %v7910
    %v7912 = vadd.f32 %v7911, 1.0
    %v7913 = vmul.f32 %v7912, 0.5
    %v7914 = vtanh.pop %v7909
    %v7916 = vrot.slane %v7411, 6
    %v7918 = vmul.f32 %v7913, %v7916
    %7920 = vrot.lane.b32.xlu0 %v7914, 64
    %v7921 = vpop.permute.xlu0 %7920
    %v7923 = vmul.f32 %v7913, %v7921
    %7925 = vrot.lane.b32.xlu0 %v7923, 32
    %v7926 = vpop.permute.xlu0 %7925
    %v7928 = vadd.f32 %v7918, %v7926
    %v7929 = vtanh.pop %v7928
    %7931 = vrot.lane.b32.xlu0 %v7929, 64
    %v7932 = vpop.permute.xlu0 %7931
    %v7934 = vmul.f32 %v7913, %v7932
    %7936 = vrot.lane.b32.xlu0 %v7934, 32
    %v7937 = vpop.permute.xlu0 %7936
    %v7938 = vsel %vm49, %v7937, 0
    %7940 = vmatprep.subr.mxu0 0.0
    %v7941 = vand.u32 %v5347, 4294901760
    %7942 = vmatpush1.msra.mxu0 %v7941
    %7943 = vmatprep.subr.mxu0 0.0
    %v7944 = vand.u32 %v5348, 4294901760
    %7945 = vmatpush1.msra.mxu0 %v7944
    %7946 = vmatprep.subr.mxu0 0.0
    %v7947 = vand.u32 %v5349, 4294901760
    %7948 = vmatpush1.msra.mxu0 %v7947
    %7949 = vmatprep.subr.mxu0 0.0
    %v7950 = vand.u32 %v5350, 4294901760
    %7951 = vmatpush1.msra.mxu0 %v7950
    %7952 = vmatprep.subr.mxu0 0.0
    %7953 = vmatpush1.msra.mxu0 0.0
    %7954 = vmatprep.subr.mxu0 0.0
    %7955 = vmatpush1.msra.mxu0 0.0
    %7956 = vmatprep.subr.mxu0 0.0
    %7957 = vmatpush1.msra.mxu0 0.0
    %7958 = vmatprep.subr.mxu0 0.0
    %7959 = vmatpush1.msra.mxu0 0.0
    %7960 = vmatprep.subr.mxu0 0.0
    %7961 = vmatpush1.msra.mxu0 0.0
    %7962 = vmatprep.subr.mxu0 0.0
    %7963 = vmatpush1.msra.mxu0 0.0
    %7964 = vmatprep.subr.mxu0 0.0
    %7965 = vmatpush1.msra.mxu0 0.0
    %7966 = vmatprep.subr.mxu0 0.0
    %7967 = vmatpush1.msra.mxu0 0.0
    %7968 = vmatprep.subr.mxu0 0.0
    %7969 = vmatpush1.msra.mxu0 0.0
    %7970 = vmatprep.subr.mxu0 0.0
    %7971 = vmatpush1.msra.mxu0 0.0
    %7972 = vmatprep.subr.mxu0 0.0
    %7973 = vmatpush1.msra.mxu0 0.0
    %7974 = vmatprep.subr.mxu0 0.0
    %7975 = vmatpush1.msra.mxu0 0.0
    %7976 = vmatprep.subr.mxu0 0.0
    %7977 = vmatpush1.msra.mxu0 0.0
    %7978 = vmatprep.subr.mxu0 0.0
    %7979 = vmatpush1.msra.mxu0 0.0
    %7980 = vmatprep.subr.mxu0 0.0
    %7981 = vmatpush1.msra.mxu0 0.0
    %7982 = vmatprep.subr.mxu0 0.0
    %7983 = vmatpush1.msra.mxu0 0.0
    %7984 = vmatprep.subr.mxu0 0.0
    %7985 = vmatpush1.msra.mxu0 0.0
    %7986 = vmatprep.subr.mxu0 0.0
    %7987 = vmatpush1.msra.mxu0 0.0
    %7988 = vmatprep.subr.mxu0 0.0
    %7989 = vmatpush1.msra.mxu0 0.0
    %7990 = vmatprep.subr.mxu0 0.0
    %7991 = vmatpush1.msra.mxu0 0.0
    %7992 = vmatprep.subr.mxu0 0.0
    %7993 = vmatpush1.msra.mxu0 0.0
    %7994 = vmatprep.subr.mxu0 0.0
    %7995 = vmatpush1.msra.mxu0 0.0
    %7996 = vmatprep.subr.mxu0 0.0
    %7997 = vmatpush1.msra.mxu0 0.0
    %7998 = vmatprep.subr.mxu0 0.0
    %7999 = vmatpush1.msra.mxu0 0.0
    %8000 = vmatprep.subr.mxu0 0.0
    %8001 = vmatpush1.msra.mxu0 0.0
    %8002 = vmatprep.subr.mxu0 0.0
    %8003 = vmatpush1.msra.mxu0 0.0
    %8004 = vmatprep.subr.mxu0 0.0
    %8005 = vmatpush1.msra.mxu0 0.0
    %8006 = vmatprep.subr.mxu0 0.0
    %8007 = vmatpush1.msra.mxu0 0.0
    %8008 = vmatprep.mubr.f32.mxu0 0.0
    %v8009 = vand.u32 %v7938, 4294901760
    %v8010 = vsub.f32 %v7938, %v8009
    %v8011 = vand.u32 %v8010, 4294901760
    %v8012 = vsub.f32 %v8010, %v8011
    %v8013 = vand.u32 %v8012, 4294901760
    %8014 = vmatmul.mubr.f32.gmra.mrb[0].mxu0 %v8013
    %v8015 = vpop.f32.mrb[0].mxu0
    %v8016 = vadd.f32 0.0, %v8015
    %v8017 = vpop.f32.mrb[0].mxu0
    %8018 = vdwg.mxu0
    %8019 = vmatprep.subr.mxu0 0.0
    %v8020 = vand.u32 %v5347, 4294901760
    %v8021 = vsub.f32 %v5347, %v8020
    %v8022 = vand.u32 %v8021, 4294901760
    %v8023 = vsub.f32 %v8021, %v8022
    %v8024 = vand.u32 %v8023, 4294901760
    %8025 = vmatpush1.msra.mxu0 %v8024
    %8026 = vmatprep.subr.mxu0 0.0
    %v8027 = vand.u32 %v5348, 4294901760
    %v8028 = vsub.f32 %v5348, %v8027
    %v8029 = vand.u32 %v8028, 4294901760
    %v8030 = vsub.f32 %v8028, %v8029
    %v8031 = vand.u32 %v8030, 4294901760
    %8032 = vmatpush1.msra.mxu0 %v8031
    %8033 = vmatprep.subr.mxu0 0.0
    %v8034 = vand.u32 %v5349, 4294901760
    %v8035 = vsub.f32 %v5349, %v8034
    %v8036 = vand.u32 %v8035, 4294901760
    %v8037 = vsub.f32 %v8035, %v8036
    %v8038 = vand.u32 %v8037, 4294901760
    %8039 = vmatpush1.msra.mxu0 %v8038
    %8040 = vmatprep.subr.mxu0 0.0
    %v8041 = vand.u32 %v5350, 4294901760
    %v8042 = vsub.f32 %v5350, %v8041
    %v8043 = vand.u32 %v8042, 4294901760
    %v8044 = vsub.f32 %v8042, %v8043
    %v8045 = vand.u32 %v8044, 4294901760
    %8046 = vmatpush1.msra.mxu0 %v8045
    %8047 = vmatprep.subr.mxu0 0.0
    %8048 = vmatpush1.msra.mxu0 0.0
    %8049 = vmatprep.subr.mxu0 0.0
    %8050 = vmatpush1.msra.mxu0 0.0
    %8051 = vmatprep.subr.mxu0 0.0
    %8052 = vmatpush1.msra.mxu0 0.0
    %8053 = vmatprep.subr.mxu0 0.0
    %8054 = vmatpush1.msra.mxu0 0.0
    %8055 = vmatprep.subr.mxu0 0.0
    %8056 = vmatpush1.msra.mxu0 0.0
    %8057 = vmatprep.subr.mxu0 0.0
    %8058 = vmatpush1.msra.mxu0 0.0
    %8059 = vmatprep.subr.mxu0 0.0
    %8060 = vmatpush1.msra.mxu0 0.0
    %8061 = vmatprep.subr.mxu0 0.0
    %8062 = vmatpush1.msra.mxu0 0.0
    %8063 = vmatprep.subr.mxu0 0.0
    %8064 = vmatpush1.msra.mxu0 0.0
    %8065 = vmatprep.subr.mxu0 0.0
    %8066 = vmatpush1.msra.mxu0 0.0
    %8067 = vmatprep.subr.mxu0 0.0
    %8068 = vmatpush1.msra.mxu0 0.0
    %8069 = vmatprep.subr.mxu0 0.0
    %8070 = vmatpush1.msra.mxu0 0.0
    %8071 = vmatprep.subr.mxu0 0.0
    %8072 = vmatpush1.msra.mxu0 0.0
    %8073 = vmatprep.subr.mxu0 0.0
    %8074 = vmatpush1.msra.mxu0 0.0
    %8075 = vmatprep.subr.mxu0 0.0
    %8076 = vmatpush1.msra.mxu0 0.0
    %8077 = vmatprep.subr.mxu0 0.0
    %8078 = vmatpush1.msra.mxu0 0.0
    %8079 = vmatprep.subr.mxu0 0.0
    %8080 = vmatpush1.msra.mxu0 0.0
    %8081 = vmatprep.subr.mxu0 0.0
    %8082 = vmatpush1.msra.mxu0 0.0
    %8083 = vmatprep.subr.mxu0 0.0
    %8084 = vmatpush1.msra.mxu0 0.0
    %8085 = vmatprep.subr.mxu0 0.0
    %8086 = vmatpush1.msra.mxu0 0.0
    %8087 = vmatprep.subr.mxu0 0.0
    %8088 = vmatpush1.msra.mxu0 0.0
    %8089 = vmatprep.subr.mxu0 0.0
    %8090 = vmatpush1.msra.mxu0 0.0
    %8091 = vmatprep.subr.mxu0 0.0
    %8092 = vmatpush1.msra.mxu0 0.0
    %8093 = vmatprep.subr.mxu0 0.0
    %8094 = vmatpush1.msra.mxu0 0.0
    %8095 = vmatprep.subr.mxu0 0.0
    %8096 = vmatpush1.msra.mxu0 0.0
    %8097 = vmatprep.subr.mxu0 0.0
    %8098 = vmatpush1.msra.mxu0 0.0
    %8099 = vmatprep.subr.mxu0 0.0
    %8100 = vmatpush1.msra.mxu0 0.0
    %8101 = vmatprep.subr.mxu0 0.0
    %8102 = vmatpush1.msra.mxu0 0.0
    %8103 = vmatprep.mubr.f32.mxu0 0.0
    %v8104 = vand.u32 %v7938, 4294901760
    %8105 = vmatmul.mubr.f32.gmra.mrb[0].mxu0 %v8104
    %v8106 = vpop.f32.mrb[0].mxu0
    %v8107 = vadd.f32 %v8016, %v8106
    %v8108 = vpop.f32.mrb[0].mxu0
    %8109 = vdwg.mxu0
    %8110 = vmatprep.subr.mxu0 0.0
    %v8111 = vand.u32 %v5347, 4294901760
    %v8112 = vsub.f32 %v5347, %v8111
    %8113 = vmatpush1.msra.mxu0 %v8112
    %8114 = vmatprep.subr.mxu0 0.0
    %v8115 = vand.u32 %v5348, 4294901760
    %v8116 = vsub.f32 %v5348, %v8115
    %8117 = vmatpush1.msra.mxu0 %v8116
    %8118 = vmatprep.subr.mxu0 0.0
    %v8119 = vand.u32 %v5349, 4294901760
    %v8120 = vsub.f32 %v5349, %v8119
    %8121 = vmatpush1.msra.mxu0 %v8120
    %8122 = vmatprep.subr.mxu0 0.0
    %v8123 = vand.u32 %v5350, 4294901760
    %v8124 = vsub.f32 %v5350, %v8123
    %8125 = vmatpush1.msra.mxu0 %v8124
    %8126 = vmatprep.subr.mxu0 0.0
    %8127 = vmatpush1.msra.mxu0 0.0
    %8128 = vmatprep.subr.mxu0 0.0
    %8129 = vmatpush1.msra.mxu0 0.0
    %8130 = vmatprep.subr.mxu0 0.0
    %8131 = vmatpush1.msra.mxu0 0.0
    %8132 = vmatprep.subr.mxu0 0.0
    %8133 = vmatpush1.msra.mxu0 0.0
    %8134 = vmatprep.subr.mxu0 0.0
    %8135 = vmatpush1.msra.mxu0 0.0
    %8136 = vmatprep.subr.mxu0 0.0
    %8137 = vmatpush1.msra.mxu0 0.0
    %8138 = vmatprep.subr.mxu0 0.0
    %8139 = vmatpush1.msra.mxu0 0.0
    %8140 = vmatprep.subr.mxu0 0.0
    %8141 = vmatpush1.msra.mxu0 0.0
    %8142 = vmatprep.subr.mxu0 0.0
    %8143 = vmatpush1.msra.mxu0 0.0
    %8144 = vmatprep.subr.mxu0 0.0
    %8145 = vmatpush1.msra.mxu0 0.0
    %8146 = vmatprep.subr.mxu0 0.0
    %8147 = vmatpush1.msra.mxu0 0.0
    %8148 = vmatprep.subr.mxu0 0.0
    %8149 = vmatpush1.msra.mxu0 0.0
    %8150 = vmatprep.subr.mxu0 0.0
    %8151 = vmatpush1.msra.mxu0 0.0
    %8152 = vmatprep.subr.mxu0 0.0
    %8153 = vmatpush1.msra.mxu0 0.0
    %8154 = vmatprep.subr.mxu0 0.0
    %8155 = vmatpush1.msra.mxu0 0.0
    %8156 = vmatprep.subr.mxu0 0.0
    %8157 = vmatpush1.msra.mxu0 0.0
    %8158 = vmatprep.subr.mxu0 0.0
    %8159 = vmatpush1.msra.mxu0 0.0
    %8160 = vmatprep.subr.mxu0 0.0
    %8161 = vmatpush1.msra.mxu0 0.0
    %8162 = vmatprep.subr.mxu0 0.0
    %8163 = vmatpush1.msra.mxu0 0.0
    %8164 = vmatprep.subr.mxu0 0.0
    %8165 = vmatpush1.msra.mxu0 0.0
    %8166 = vmatprep.subr.mxu0 0.0
    %8167 = vmatpush1.msra.mxu0 0.0
    %8168 = vmatprep.subr.mxu0 0.0
    %8169 = vmatpush1.msra.mxu0 0.0
    %8170 = vmatprep.subr.mxu0 0.0
    %8171 = vmatpush1.msra.mxu0 0.0
    %8172 = vmatprep.subr.mxu0 0.0
    %8173 = vmatpush1.msra.mxu0 0.0
    %8174 = vmatprep.subr.mxu0 0.0
    %8175 = vmatpush1.msra.mxu0 0.0
    %8176 = vmatprep.subr.mxu0 0.0
    %8177 = vmatpush1.msra.mxu0 0.0
    %8178 = vmatprep.subr.mxu0 0.0
    %8179 = vmatpush1.msra.mxu0 0.0
    %8180 = vmatprep.subr.mxu0 0.0
    %8181 = vmatpush1.msra.mxu0 0.0
    %8182 = vmatprep.mubr.f32.mxu0 0.0
    %v8183 = vand.u32 %v7938, 4294901760
    %v8184 = vsub.f32 %v7938, %v8183
    %8185 = vmatmul.mubr.f32.gmra.mrb[0].mxu0 %v8184
    %v8186 = vpop.f32.mrb[0].mxu0
    %v8187 = vadd.f32 %v8107, %v8186
    %v8188 = vpop.f32.mrb[0].mxu0
    %8189 = vdwg.mxu0
    %8190 = vmatprep.subr.mxu0 0.0
    %v8191 = vand.u32 %v5347, 4294901760
    %8192 = vmatpush1.msra.mxu0 %v8191
    %8193 = vmatprep.subr.mxu0 0.0
    %v8194 = vand.u32 %v5348, 4294901760
    %8195 = vmatpush1.msra.mxu0 %v8194
    %8196 = vmatprep.subr.mxu0 0.0
    %v8197 = vand.u32 %v5349, 4294901760
    %8198 = vmatpush1.msra.mxu0 %v8197
    %8199 = vmatprep.subr.mxu0 0.0
    %v8200 = vand.u32 %v5350, 4294901760
    %8201 = vmatpush1.msra.mxu0 %v8200
    %8202 = vmatprep.subr.mxu0 0.0
    %8203 = vmatpush1.msra.mxu0 0.0
    %8204 = vmatprep.subr.mxu0 0.0
    %8205 = vmatpush1.msra.mxu0 0.0
    %8206 = vmatprep.subr.mxu0 0.0
    %8207 = vmatpush1.msra.mxu0 0.0
    %8208 = vmatprep.subr.mxu0 0.0
    %8209 = vmatpush1.msra.mxu0 0.0
    %8210 = vmatprep.subr.mxu0 0.0
    %8211 = vmatpush1.msra.mxu0 0.0
    %8212 = vmatprep.subr.mxu0 0.0
    %8213 = vmatpush1.msra.mxu0 0.0
    %8214 = vmatprep.subr.mxu0 0.0
    %8215 = vmatpush1.msra.mxu0 0.0
    %8216 = vmatprep.subr.mxu0 0.0
    %8217 = vmatpush1.msra.mxu0 0.0
    %8218 = vmatprep.subr.mxu0 0.0
    %8219 = vmatpush1.msra.mxu0 0.0
    %8220 = vmatprep.subr.mxu0 0.0
    %8221 = vmatpush1.msra.mxu0 0.0
    %8222 = vmatprep.subr.mxu0 0.0
    %8223 = vmatpush1.msra.mxu0 0.0
    %8224 = vmatprep.subr.mxu0 0.0
    %8225 = vmatpush1.msra.mxu0 0.0
    %8226 = vmatprep.subr.mxu0 0.0
    %8227 = vmatpush1.msra.mxu0 0.0
    %8228 = vmatprep.subr.mxu0 0.0
    %8229 = vmatpush1.msra.mxu0 0.0
    %8230 = vmatprep.subr.mxu0 0.0
    %8231 = vmatpush1.msra.mxu0 0.0
    %8232 = vmatprep.subr.mxu0 0.0
    %8233 = vmatpush1.msra.mxu0 0.0
    %8234 = vmatprep.subr.mxu0 0.0
    %8235 = vmatpush1.msra.mxu0 0.0
    %8236 = vmatprep.subr.mxu0 0.0
    %8237 = vmatpush1.msra.mxu0 0.0
    %8238 = vmatprep.subr.mxu0 0.0
    %8239 = vmatpush1.msra.mxu0 0.0
    %8240 = vmatprep.subr.mxu0 0.0
    %8241 = vmatpush1.msra.mxu0 0.0
    %8242 = vmatprep.subr.mxu0 0.0
    %8243 = vmatpush1.msra.mxu0 0.0
    %8244 = vmatprep.subr.mxu0 0.0
    %8245 = vmatpush1.msra.mxu0 0.0
    %8246 = vmatprep.subr.mxu0 0.0
    %8247 = vmatpush1.msra.mxu0 0.0
    %8248 = vmatprep.subr.mxu0 0.0
    %8249 = vmatpush1.msra.mxu0 0.0
    %8250 = vmatprep.subr.mxu0 0.0
    %8251 = vmatpush1.msra.mxu0 0.0
    %8252 = vmatprep.subr.mxu0 0.0
    %8253 = vmatpush1.msra.mxu0 0.0
    %8254 = vmatprep.subr.mxu0 0.0
    %8255 = vmatpush1.msra.mxu0 0.0
    %8256 = vmatprep.subr.mxu0 0.0
    %8257 = vmatpush1.msra.mxu0 0.0
    %8258 = vmatprep.mubr.f32.mxu0 0.0
    %v8259 = vand.u32 %v7938, 4294901760
    %v8260 = vsub.f32 %v7938, %v8259
    %v8261 = vand.u32 %v8260, 4294901760
    %8262 = vmatmul.mubr.f32.gmra.mrb[0].mxu0 %v8261
    %v8263 = vpop.f32.mrb[0].mxu0
    %v8264 = vadd.f32 %v8187, %v8263
    %v8265 = vpop.f32.mrb[0].mxu0
    %8266 = vdwg.mxu0
    %8267 = vmatprep.subr.mxu0 0.0
    %v8268 = vand.u32 %v5347, 4294901760
    %v8269 = vsub.f32 %v5347, %v8268
    %v8270 = vand.u32 %v8269, 4294901760
    %8271 = vmatpush1.msra.mxu0 %v8270
    %8272 = vmatprep.subr.mxu0 0.0
    %v8273 = vand.u32 %v5348, 4294901760
    %v8274 = vsub.f32 %v5348, %v8273
    %v8275 = vand.u32 %v8274, 4294901760
    %8276 = vmatpush1.msra.mxu0 %v8275
    %8277 = vmatprep.subr.mxu0 0.0
    %v8278 = vand.u32 %v5349, 4294901760
    %v8279 = vsub.f32 %v5349, %v8278
    %v8280 = vand.u32 %v8279, 4294901760
    %8281 = vmatpush1.msra.mxu0 %v8280
    %8282 = vmatprep.subr.mxu0 0.0
    %v8283 = vand.u32 %v5350, 4294901760
    %v8284 = vsub.f32 %v5350, %v8283
    %v8285 = vand.u32 %v8284, 4294901760
    %8286 = vmatpush1.msra.mxu0 %v8285
    %8287 = vmatprep.subr.mxu0 0.0
    %8288 = vmatpush1.msra.mxu0 0.0
    %8289 = vmatprep.subr.mxu0 0.0
    %8290 = vmatpush1.msra.mxu0 0.0
    %8291 = vmatprep.subr.mxu0 0.0
    %8292 = vmatpush1.msra.mxu0 0.0
    %8293 = vmatprep.subr.mxu0 0.0
    %8294 = vmatpush1.msra.mxu0 0.0
    %8295 = vmatprep.subr.mxu0 0.0
    %8296 = vmatpush1.msra.mxu0 0.0
    %8297 = vmatprep.subr.mxu0 0.0
    %8298 = vmatpush1.msra.mxu0 0.0
    %8299 = vmatprep.subr.mxu0 0.0
    %8300 = vmatpush1.msra.mxu0 0.0
    %8301 = vmatprep.subr.mxu0 0.0
    %8302 = vmatpush1.msra.mxu0 0.0
    %8303 = vmatprep.subr.mxu0 0.0
    %8304 = vmatpush1.msra.mxu0 0.0
    %8305 = vmatprep.subr.mxu0 0.0
    %8306 = vmatpush1.msra.mxu0 0.0
    %8307 = vmatprep.subr.mxu0 0.0
    %8308 = vmatpush1.msra.mxu0 0.0
    %8309 = vmatprep.subr.mxu0 0.0
    %8310 = vmatpush1.msra.mxu0 0.0
    %8311 = vmatprep.subr.mxu0 0.0
    %8312 = vmatpush1.msra.mxu0 0.0
    %8313 = vmatprep.subr.mxu0 0.0
    %8314 = vmatpush1.msra.mxu0 0.0
    %8315 = vmatprep.subr.mxu0 0.0
    %8316 = vmatpush1.msra.mxu0 0.0
    %8317 = vmatprep.subr.mxu0 0.0
    %8318 = vmatpush1.msra.mxu0 0.0
    %8319 = vmatprep.subr.mxu0 0.0
    %8320 = vmatpush1.msra.mxu0 0.0
    %8321 = vmatprep.subr.mxu0 0.0
    %8322 = vmatpush1.msra.mxu0 0.0
    %8323 = vmatprep.subr.mxu0 0.0
    %8324 = vmatpush1.msra.mxu0 0.0
    %8325 = vmatprep.subr.mxu0 0.0
    %8326 = vmatpush1.msra.mxu0 0.0
    %8327 = vmatprep.subr.mxu0 0.0
    %8328 = vmatpush1.msra.mxu0 0.0
    %8329 = vmatprep.subr.mxu0 0.0
    %8330 = vmatpush1.msra.mxu0 0.0
    %8331 = vmatprep.subr.mxu0 0.0
    %8332 = vmatpush1.msra.mxu0 0.0
    %8333 = vmatprep.subr.mxu0 0.0
    %8334 = vmatpush1.msra.mxu0 0.0
    %8335 = vmatprep.subr.mxu0 0.0
    %8336 = vmatpush1.msra.mxu0 0.0
    %8337 = vmatprep.subr.mxu0 0.0
    %8338 = vmatpush1.msra.mxu0 0.0
    %8339 = vmatprep.subr.mxu0 0.0
    %8340 = vmatpush1.msra.mxu0 0.0
    %8341 = vmatprep.subr.mxu0 0.0
    %8342 = vmatpush1.msra.mxu0 0.0
    %8343 = vmatprep.mubr.f32.mxu0 0.0
    %v8344 = vand.u32 %v7938, 4294901760
    %8345 = vmatmul.mubr.f32.gmra.mrb[0].mxu0 %v8344
    %v8346 = vpop.f32.mrb[0].mxu0
    %v8347 = vadd.f32 %v8264, %v8346
    %v8348 = vpop.f32.mrb[0].mxu0
    %8349 = vdwg.mxu0
    %8350 = vmatprep.subr.mxu0 0.0
    %v8351 = vand.u32 %v5347, 4294901760
    %8352 = vmatpush1.msra.mxu0 %v8351
    %8353 = vmatprep.subr.mxu0 0.0
    %v8354 = vand.u32 %v5348, 4294901760
    %8355 = vmatpush1.msra.mxu0 %v8354
    %8356 = vmatprep.subr.mxu0 0.0
    %v8357 = vand.u32 %v5349, 4294901760
    %8358 = vmatpush1.msra.mxu0 %v8357
    %8359 = vmatprep.subr.mxu0 0.0
    %v8360 = vand.u32 %v5350, 4294901760
    %8361 = vmatpush1.msra.mxu0 %v8360
    %8362 = vmatprep.subr.mxu0 0.0
    %8363 = vmatpush1.msra.mxu0 0.0
    %8364 = vmatprep.subr.mxu0 0.0
    %8365 = vmatpush1.msra.mxu0 0.0
    %8366 = vmatprep.subr.mxu0 0.0
    %8367 = vmatpush1.msra.mxu0 0.0
    %8368 = vmatprep.subr.mxu0 0.0
    %8369 = vmatpush1.msra.mxu0 0.0
    %8370 = vmatprep.subr.mxu0 0.0
    %8371 = vmatpush1.msra.mxu0 0.0
    %8372 = vmatprep.subr.mxu0 0.0
    %8373 = vmatpush1.msra.mxu0 0.0
    %8374 = vmatprep.subr.mxu0 0.0
    %8375 = vmatpush1.msra.mxu0 0.0
    %8376 = vmatprep.subr.mxu0 0.0
    %8377 = vmatpush1.msra.mxu0 0.0
    %8378 = vmatprep.subr.mxu0 0.0
    %8379 = vmatpush1.msra.mxu0 0.0
    %8380 = vmatprep.subr.mxu0 0.0
    %8381 = vmatpush1.msra.mxu0 0.0
    %8382 = vmatprep.subr.mxu0 0.0
    %8383 = vmatpush1.msra.mxu0 0.0
    %8384 = vmatprep.subr.mxu0 0.0
    %8385 = vmatpush1.msra.mxu0 0.0
    %8386 = vmatprep.subr.mxu0 0.0
    %8387 = vmatpush1.msra.mxu0 0.0
    %8388 = vmatprep.subr.mxu0 0.0
    %8389 = vmatpush1.msra.mxu0 0.0
    %8390 = vmatprep.subr.mxu0 0.0
    %8391 = vmatpush1.msra.mxu0 0.0
    %8392 = vmatprep.subr.mxu0 0.0
    %8393 = vmatpush1.msra.mxu0 0.0
    %8394 = vmatprep.subr.mxu0 0.0
    %8395 = vmatpush1.msra.mxu0 0.0
    %8396 = vmatprep.subr.mxu0 0.0
    %8397 = vmatpush1.msra.mxu0 0.0
    %8398 = vmatprep.subr.mxu0 0.0
    %8399 = vmatpush1.msra.mxu0 0.0
    %8400 = vmatprep.subr.mxu0 0.0
    %8401 = vmatpush1.msra.mxu0 0.0
    %8402 = vmatprep.subr.mxu0 0.0
    %8403 = vmatpush1.msra.mxu0 0.0
    %8404 = vmatprep.subr.mxu0 0.0
    %8405 = vmatpush1.msra.mxu0 0.0
    %8406 = vmatprep.subr.mxu0 0.0
    %8407 = vmatpush1.msra.mxu0 0.0
    %8408 = vmatprep.subr.mxu0 0.0
    %8409 = vmatpush1.msra.mxu0 0.0
    %8410 = vmatprep.subr.mxu0 0.0
    %8411 = vmatpush1.msra.mxu0 0.0
    %8412 = vmatprep.subr.mxu0 0.0
    %8413 = vmatpush1.msra.mxu0 0.0
    %8414 = vmatprep.subr.mxu0 0.0
    %8415 = vmatpush1.msra.mxu0 0.0
    %8416 = vmatprep.subr.mxu0 0.0
    %8417 = vmatpush1.msra.mxu0 0.0
    %8418 = vmatprep.mubr.f32.mxu0 0.0
    %v8419 = vand.u32 %v7938, 4294901760
    %8420 = vmatmul.mubr.f32.gmra.mrb[0].mxu0 %v8419
    %v8421 = vpop.f32.mrb[0].mxu0
    %v8422 = vadd.f32 %v8347, %v8421
    %v8423 = vpop.f32.mrb[0].mxu0
    %8424 = vdwg.mxu0
    %v8426 = vrot.slane %v8422, 6
    %v8428 = vadd.f32 %v5344, %v8426
    %v8429 = vmul.f32 %v8428, 0.5
    %v8430 = vtanh.pop %v8429
    %v8431 = vadd.f32 %v8430, 1.0
    %v8432 = vmul.f32 %v8431, 0.5
    %v8433 = vtanh.pop %v8428
    %v8435 = vrot.slane %v7928, 6
    %v8437 = vmul.f32 %v8432, %v8435
    %8439 = vrot.lane.b32.xlu0 %v8433, 64
    %v8440 = vpop.permute.xlu0 %8439
    %v8442 = vmul.f32 %v8432, %v8440
    %8444 = vrot.lane.b32.xlu0 %v8442, 32
    %v8445 = vpop.permute.xlu0 %8444
    %v8447 = vadd.f32 %v8437, %v8445
    %v8448 = vtanh.pop %v8447
    %8450 = vrot.lane.b32.xlu0 %v8448, 64
    %v8451 = vpop.permute.xlu0 %8450
    %v8453 = vmul.f32 %v8432, %v8451
    %v8455 = vrot.slane %v8453, 2
    %8456 = vrot.lane.b32.xlu0 %v8455, 32
    %v8457 = vpop.permute.xlu0 %8456
    %v8458 = vsel %vm49, %v8457, 0
    %8460 = vmatprep.subr.mxu0 0.0
    %v8461 = vand.u32 %v5347, 4294901760
    %8462 = vmatpush1.msra.mxu0 %v8461
    %8463 = vmatprep.subr.mxu0 0.0
    %v8464 = vand.u32 %v5348, 4294901760
    %8465 = vmatpush1.msra.mxu0 %v8464
    %8466 = vmatprep.subr.mxu0 0.0
    %v8467 = vand.u32 %v5349, 4294901760
    %8468 = vmatpush1.msra.mxu0 %v8467
    %8469 = vmatprep.subr.mxu0 0.0
    %v8470 = vand.u32 %v5350, 4294901760
    %8471 = vmatpush1.msra.mxu0 %v8470
    %8472 = vmatprep.subr.mxu0 0.0
    %8473 = vmatpush1.msra.mxu0 0.0
    %8474 = vmatprep.subr.mxu0 0.0
    %8475 = vmatpush1.msra.mxu0 0.0
    %8476 = vmatprep.subr.mxu0 0.0
    %8477 = vmatpush1.msra.mxu0 0.0
    %8478 = vmatprep.subr.mxu0 0.0
    %8479 = vmatpush1.msra.mxu0 0.0
    %8480 = vmatprep.subr.mxu0 0.0
    %8481 = vmatpush1.msra.mxu0 0.0
    %8482 = vmatprep.subr.mxu0 0.0
    %8483 = vmatpush1.msra.mxu0 0.0
    %8484 = vmatprep.subr.mxu0 0.0
    %8485 = vmatpush1.msra.mxu0 0.0
    %8486 = vmatprep.subr.mxu0 0.0
    %8487 = vmatpush1.msra.mxu0 0.0
    %8488 = vmatprep.subr.mxu0 0.0
    %8489 = vmatpush1.msra.mxu0 0.0
    %8490 = vmatprep.subr.mxu0 0.0
    %8491 = vmatpush1.msra.mxu0 0.0
    %8492 = vmatprep.subr.mxu0 0.0
    %8493 = vmatpush1.msra.mxu0 0.0
    %8494 = vmatprep.subr.mxu0 0.0
    %8495 = vmatpush1.msra.mxu0 0.0
    %8496 = vmatprep.subr.mxu0 0.0
    %8497 = vmatpush1.msra.mxu0 0.0
    %8498 = vmatprep.subr.mxu0 0.0
    %8499 = vmatpush1.msra.mxu0 0.0
    %8500 = vmatprep.subr.mxu0 0.0
    %8501 = vmatpush1.msra.mxu0 0.0
    %8502 = vmatprep.subr.mxu0 0.0
    %8503 = vmatpush1.msra.mxu0 0.0
    %8504 = vmatprep.subr.mxu0 0.0
    %8505 = vmatpush1.msra.mxu0 0.0
    %8506 = vmatprep.subr.mxu0 0.0
    %8507 = vmatpush1.msra.mxu0 0.0
    %8508 = vmatprep.subr.mxu0 0.0
    %8509 = vmatpush1.msra.mxu0 0.0
    %8510 = vmatprep.subr.mxu0 0.0
    %8511 = vmatpush1.msra.mxu0 0.0
    %8512 = vmatprep.subr.mxu0 0.0
    %8513 = vmatpush1.msra.mxu0 0.0
    %8514 = vmatprep.subr.mxu0 0.0
    %8515 = vmatpush1.msra.mxu0 0.0
    %8516 = vmatprep.subr.mxu0 0.0
    %8517 = vmatpush1.msra.mxu0 0.0
    %8518 = vmatprep.subr.mxu0 0.0
    %8519 = vmatpush1.msra.mxu0 0.0
    %8520 = vmatprep.subr.mxu0 0.0
    %8521 = vmatpush1.msra.mxu0 0.0
    %8522 = vmatprep.subr.mxu0 0.0
    %8523 = vmatpush1.msra.mxu0 0.0
    %8524 = vmatprep.subr.mxu0 0.0
    %8525 = vmatpush1.msra.mxu0 0.0
    %8526 = vmatprep.subr.mxu0 0.0
    %8527 = vmatpush1.msra.mxu0 0.0
    %8528 = vmatprep.mubr.f32.mxu0 0.0
    %v8529 = vand.u32 %v8458, 4294901760
    %v8530 = vsub.f32 %v8458, %v8529
    %v8531 = vand.u32 %v8530, 4294901760
    %v8532 = vsub.f32 %v8530, %v8531
    %v8533 = vand.u32 %v8532, 4294901760
    %8534 = vmatmul.mubr.f32.gmra.mrb[0].mxu0 %v8533
    %v8535 = vpop.f32.mrb[0].mxu0
    %v8536 = vadd.f32 0.0, %v8535
    %v8537 = vpop.f32.mrb[0].mxu0
    %8538 = vdwg.mxu0
    %8539 = vmatprep.subr.mxu0 0.0
    %v8540 = vand.u32 %v5347, 4294901760
    %v8541 = vsub.f32 %v5347, %v8540
    %v8542 = vand.u32 %v8541, 4294901760
    %v8543 = vsub.f32 %v8541, %v8542
    %v8544 = vand.u32 %v8543, 4294901760
    %8545 = vmatpush1.msra.mxu0 %v8544
    %8546 = vmatprep.subr.mxu0 0.0
    %v8547 = vand.u32 %v5348, 4294901760
    %v8548 = vsub.f32 %v5348, %v8547
    %v8549 = vand.u32 %v8548, 4294901760
    %v8550 = vsub.f32 %v8548, %v8549
    %v8551 = vand.u32 %v8550, 4294901760
    %8552 = vmatpush1.msra.mxu0 %v8551
    %8553 = vmatprep.subr.mxu0 0.0
    %v8554 = vand.u32 %v5349, 4294901760
    %v8555 = vsub.f32 %v5349, %v8554
    %v8556 = vand.u32 %v8555, 4294901760
    %v8557 = vsub.f32 %v8555, %v8556
    %v8558 = vand.u32 %v8557, 4294901760
    %8559 = vmatpush1.msra.mxu0 %v8558
    %8560 = vmatprep.subr.mxu0 0.0
    %v8561 = vand.u32 %v5350, 4294901760
    %v8562 = vsub.f32 %v5350, %v8561
    %v8563 = vand.u32 %v8562, 4294901760
    %v8564 = vsub.f32 %v8562, %v8563
    %v8565 = vand.u32 %v8564, 4294901760
    %8566 = vmatpush1.msra.mxu0 %v8565
    %8567 = vmatprep.subr.mxu0 0.0
    %8568 = vmatpush1.msra.mxu0 0.0
    %8569 = vmatprep.subr.mxu0 0.0
    %8570 = vmatpush1.msra.mxu0 0.0
    %8571 = vmatprep.subr.mxu0 0.0
    %8572 = vmatpush1.msra.mxu0 0.0
    %8573 = vmatprep.subr.mxu0 0.0
    %8574 = vmatpush1.msra.mxu0 0.0
    %8575 = vmatprep.subr.mxu0 0.0
    %8576 = vmatpush1.msra.mxu0 0.0
    %8577 = vmatprep.subr.mxu0 0.0
    %8578 = vmatpush1.msra.mxu0 0.0
    %8579 = vmatprep.subr.mxu0 0.0
    %8580 = vmatpush1.msra.mxu0 0.0
    %8581 = vmatprep.subr.mxu0 0.0
    %8582 = vmatpush1.msra.mxu0 0.0
    %8583 = vmatprep.subr.mxu0 0.0
    %8584 = vmatpush1.msra.mxu0 0.0
    %8585 = vmatprep.subr.mxu0 0.0
    %8586 = vmatpush1.msra.mxu0 0.0
    %8587 = vmatprep.subr.mxu0 0.0
    %8588 = vmatpush1.msra.mxu0 0.0
    %8589 = vmatprep.subr.mxu0 0.0
    %8590 = vmatpush1.msra.mxu0 0.0
    %8591 = vmatprep.subr.mxu0 0.0
    %8592 = vmatpush1.msra.mxu0 0.0
    %8593 = vmatprep.subr.mxu0 0.0
    %8594 = vmatpush1.msra.mxu0 0.0
    %8595 = vmatprep.subr.mxu0 0.0
    %8596 = vmatpush1.msra.mxu0 0.0
    %8597 = vmatprep.subr.mxu0 0.0
    %8598 = vmatpush1.msra.mxu0 0.0
    %8599 = vmatprep.subr.mxu0 0.0
    %8600 = vmatpush1.msra.mxu0 0.0
    %8601 = vmatprep.subr.mxu0 0.0
    %8602 = vmatpush1.msra.mxu0 0.0
    %8603 = vmatprep.subr.mxu0 0.0
    %8604 = vmatpush1.msra.mxu0 0.0
    %8605 = vmatprep.subr.mxu0 0.0
    %8606 = vmatpush1.msra.mxu0 0.0
    %8607 = vmatprep.subr.mxu0 0.0
    %8608 = vmatpush1.msra.mxu0 0.0
    %8609 = vmatprep.subr.mxu0 0.0
    %8610 = vmatpush1.msra.mxu0 0.0
    %8611 = vmatprep.subr.mxu0 0.0
    %8612 = vmatpush1.msra.mxu0 0.0
    %8613 = vmatprep.subr.mxu0 0.0
    %8614 = vmatpush1.msra.mxu0 0.0
    %8615 = vmatprep.subr.mxu0 0.0
    %8616 = vmatpush1.msra.mxu0 0.0
    %8617 = vmatprep.subr.mxu0 0.0
    %8618 = vmatpush1.msra.mxu0 0.0
    %8619 = vmatprep.subr.mxu0 0.0
    %8620 = vmatpush1.msra.mxu0 0.0
    %8621 = vmatprep.subr.mxu0 0.0
    %8622 = vmatpush1.msra.mxu0 0.0
    %8623 = vmatprep.mubr.f32.mxu0 0.0
    %v8624 = vand.u32 %v8458, 4294901760
    %8625 = vmatmul.mubr.f32.gmra.mrb[0].mxu0 %v8624
    %v8626 = vpop.f32.mrb[0].mxu0
    %v8627 = vadd.f32 %v8536, %v8626
    %v8628 = vpop.f32.mrb[0].mxu0
    %8629 = vdwg.mxu0
    %8630 = vmatprep.subr.mxu0 0.0
    %v8631 = vand.u32 %v5347, 4294901760
    %v8632 = vsub.f32 %v5347, %v8631
    %8633 = vmatpush1.msra.mxu0 %v8632
    %8634 = vmatprep.subr.mxu0 0.0
    %v8635 = vand.u32 %v5348, 4294901760
    %v8636 = vsub.f32 %v5348, %v8635
    %8637 = vmatpush1.msra.mxu0 %v8636
    %8638 = vmatprep.subr.mxu0 0.0
    %v8639 = vand.u32 %v5349, 4294901760
    %v8640 = vsub.f32 %v5349, %v8639
    %8641 = vmatpush1.msra.mxu0 %v8640
    %8642 = vmatprep.subr.mxu0 0.0
    %v8643 = vand.u32 %v5350, 4294901760
    %v8644 = vsub.f32 %v5350, %v8643
    %8645 = vmatpush1.msra.mxu0 %v8644
    %8646 = vmatprep.subr.mxu0 0.0
    %8647 = vmatpush1.msra.mxu0 0.0
    %8648 = vmatprep.subr.mxu0 0.0
    %8649 = vmatpush1.msra.mxu0 0.0
    %8650 = vmatprep.subr.mxu0 0.0
    %8651 = vmatpush1.msra.mxu0 0.0
    %8652 = vmatprep.subr.mxu0 0.0
    %8653 = vmatpush1.msra.mxu0 0.0
    %8654 = vmatprep.subr.mxu0 0.0
    %8655 = vmatpush1.msra.mxu0 0.0
    %8656 = vmatprep.subr.mxu0 0.0
    %8657 = vmatpush1.msra.mxu0 0.0
    %8658 = vmatprep.subr.mxu0 0.0
    %8659 = vmatpush1.msra.mxu0 0.0
    %8660 = vmatprep.subr.mxu0 0.0
    %8661 = vmatpush1.msra.mxu0 0.0
    %8662 = vmatprep.subr.mxu0 0.0
    %8663 = vmatpush1.msra.mxu0 0.0
    %8664 = vmatprep.subr.mxu0 0.0
    %8665 = vmatpush1.msra.mxu0 0.0
    %8666 = vmatprep.subr.mxu0 0.0
    %8667 = vmatpush1.msra.mxu0 0.0
    %8668 = vmatprep.subr.mxu0 0.0
    %8669 = vmatpush1.msra.mxu0 0.0
    %8670 = vmatprep.subr.mxu0 0.0
    %8671 = vmatpush1.msra.mxu0 0.0
    %8672 = vmatprep.subr.mxu0 0.0
    %8673 = vmatpush1.msra.mxu0 0.0
    %8674 = vmatprep.subr.mxu0 0.0
    %8675 = vmatpush1.msra.mxu0 0.0
    %8676 = vmatprep.subr.mxu0 0.0
    %8677 = vmatpush1.msra.mxu0 0.0
    %8678 = vmatprep.subr.mxu0 0.0
    %8679 = vmatpush1.msra.mxu0 0.0
    %8680 = vmatprep.subr.mxu0 0.0
    %8681 = vmatpush1.msra.mxu0 0.0
    %8682 = vmatprep.subr.mxu0 0.0
    %8683 = vmatpush1.msra.mxu0 0.0
    %8684 = vmatprep.subr.mxu0 0.0
    %8685 = vmatpush1.msra.mxu0 0.0
    %8686 = vmatprep.subr.mxu0 0.0
    %8687 = vmatpush1.msra.mxu0 0.0
    %8688 = vmatprep.subr.mxu0 0.0
    %8689 = vmatpush1.msra.mxu0 0.0
    %8690 = vmatprep.subr.mxu0 0.0
    %8691 = vmatpush1.msra.mxu0 0.0
    %8692 = vmatprep.subr.mxu0 0.0
    %8693 = vmatpush1.msra.mxu0 0.0
    %8694 = vmatprep.subr.mxu0 0.0
    %8695 = vmatpush1.msra.mxu0 0.0
    %8696 = vmatprep.subr.mxu0 0.0
    %8697 = vmatpush1.msra.mxu0 0.0
    %8698 = vmatprep.subr.mxu0 0.0
    %8699 = vmatpush1.msra.mxu0 0.0
    %8700 = vmatprep.subr.mxu0 0.0
    %8701 = vmatpush1.msra.mxu0 0.0
    %8702 = vmatprep.mubr.f32.mxu0 0.0
    %v8703 = vand.u32 %v8458, 4294901760
    %v8704 = vsub.f32 %v8458, %v8703
    %8705 = vmatmul.mubr.f32.gmra.mrb[0].mxu0 %v8704
    %v8706 = vpop.f32.mrb[0].mxu0
    %v8707 = vadd.f32 %v8627, %v8706
    %v8708 = vpop.f32.mrb[0].mxu0
    %8709 = vdwg.mxu0
    %8710 = vmatprep.subr.mxu0 0.0
    %v8711 = vand.u32 %v5347, 4294901760
    %8712 = vmatpush1.msra.mxu0 %v8711
    %8713 = vmatprep.subr.mxu0 0.0
    %v8714 = vand.u32 %v5348, 4294901760
    %8715 = vmatpush1.msra.mxu0 %v8714
    %8716 = vmatprep.subr.mxu0 0.0
    %v8717 = vand.u32 %v5349, 4294901760
    %8718 = vmatpush1.msra.mxu0 %v8717
    %8719 = vmatprep.subr.mxu0 0.0
    %v8720 = vand.u32 %v5350, 4294901760
    %8721 = vmatpush1.msra.mxu0 %v8720
    %8722 = vmatprep.subr.mxu0 0.0
    %8723 = vmatpush1.msra.mxu0 0.0
    %8724 = vmatprep.subr.mxu0 0.0
    %8725 = vmatpush1.msra.mxu0 0.0
    %8726 = vmatprep.subr.mxu0 0.0
    %8727 = vmatpush1.msra.mxu0 0.0
    %8728 = vmatprep.subr.mxu0 0.0
    %8729 = vmatpush1.msra.mxu0 0.0
    %8730 = vmatprep.subr.mxu0 0.0
    %8731 = vmatpush1.msra.mxu0 0.0
    %8732 = vmatprep.subr.mxu0 0.0
    %8733 = vmatpush1.msra.mxu0 0.0
    %8734 = vmatprep.subr.mxu0 0.0
    %8735 = vmatpush1.msra.mxu0 0.0
    %8736 = vmatprep.subr.mxu0 0.0
    %8737 = vmatpush1.msra.mxu0 0.0
    %8738 = vmatprep.subr.mxu0 0.0
    %8739 = vmatpush1.msra.mxu0 0.0
    %8740 = vmatprep.subr.mxu0 0.0
    %8741 = vmatpush1.msra.mxu0 0.0
    %8742 = vmatprep.subr.mxu0 0.0
    %8743 = vmatpush1.msra.mxu0 0.0
    %8744 = vmatprep.subr.mxu0 0.0
    %8745 = vmatpush1.msra.mxu0 0.0
    %8746 = vmatprep.subr.mxu0 0.0
    %8747 = vmatpush1.msra.mxu0 0.0
    %8748 = vmatprep.subr.mxu0 0.0
    %8749 = vmatpush1.msra.mxu0 0.0
    %8750 = vmatprep.subr.mxu0 0.0
    %8751 = vmatpush1.msra.mxu0 0.0
    %8752 = vmatprep.subr.mxu0 0.0
    %8753 = vmatpush1.msra.mxu0 0.0
    %8754 = vmatprep.subr.mxu0 0.0
    %8755 = vmatpush1.msra.mxu0 0.0
    %8756 = vmatprep.subr.mxu0 0.0
    %8757 = vmatpush1.msra.mxu0 0.0
    %8758 = vmatprep.subr.mxu0 0.0
    %8759 = vmatpush1.msra.mxu0 0.0
    %8760 = vmatprep.subr.mxu0 0.0
    %8761 = vmatpush1.msra.mxu0 0.0
    %8762 = vmatprep.subr.mxu0 0.0
    %8763 = vmatpush1.msra.mxu0 0.0
    %8764 = vmatprep.subr.mxu0 0.0
    %8765 = vmatpush1.msra.mxu0 0.0
    %8766 = vmatprep.subr.mxu0 0.0
    %8767 = vmatpush1.msra.mxu0 0.0
    %8768 = vmatprep.subr.mxu0 0.0
    %8769 = vmatpush1.msra.mxu0 0.0
    %8770 = vmatprep.subr.mxu0 0.0
    %8771 = vmatpush1.msra.mxu0 0.0
    %8772 = vmatprep.subr.mxu0 0.0
    %8773 = vmatpush1.msra.mxu0 0.0
    %8774 = vmatprep.subr.mxu0 0.0
    %8775 = vmatpush1.msra.mxu0 0.0
    %8776 = vmatprep.subr.mxu0 0.0
    %8777 = vmatpush1.msra.mxu0 0.0
    %8778 = vmatprep.mubr.f32.mxu0 0.0
    %v8779 = vand.u32 %v8458, 4294901760
    %v8780 = vsub.f32 %v8458, %v8779
    %v8781 = vand.u32 %v8780, 4294901760
    %8782 = vmatmul.mubr.f32.gmra.mrb[0].mxu0 %v8781
    %v8783 = vpop.f32.mrb[0].mxu0
    %v8784 = vadd.f32 %v8707, %v8783
    %v8785 = vpop.f32.mrb[0].mxu0
    %8786 = vdwg.mxu0
    %8787 = vmatprep.subr.mxu0 0.0
    %v8788 = vand.u32 %v5347, 4294901760
    %v8789 = vsub.f32 %v5347, %v8788
    %v8790 = vand.u32 %v8789, 4294901760
    %8791 = vmatpush1.msra.mxu0 %v8790
    %8792 = vmatprep.subr.mxu0 0.0
    %v8793 = vand.u32 %v5348, 4294901760
    %v8794 = vsub.f32 %v5348, %v8793
    %v8795 = vand.u32 %v8794, 4294901760
    %8796 = vmatpush1.msra.mxu0 %v8795
    %8797 = vmatprep.subr.mxu0 0.0
    %v8798 = vand.u32 %v5349, 4294901760
    %v8799 = vsub.f32 %v5349, %v8798
    %v8800 = vand.u32 %v8799, 4294901760
    %8801 = vmatpush1.msra.mxu0 %v8800
    %8802 = vmatprep.subr.mxu0 0.0
    %v8803 = vand.u32 %v5350, 4294901760
    %v8804 = vsub.f32 %v5350, %v8803
    %v8805 = vand.u32 %v8804, 4294901760
    %8806 = vmatpush1.msra.mxu0 %v8805
    %8807 = vmatprep.subr.mxu0 0.0
    %8808 = vmatpush1.msra.mxu0 0.0
    %8809 = vmatprep.subr.mxu0 0.0
    %8810 = vmatpush1.msra.mxu0 0.0
    %8811 = vmatprep.subr.mxu0 0.0
    %8812 = vmatpush1.msra.mxu0 0.0
    %8813 = vmatprep.subr.mxu0 0.0
    %8814 = vmatpush1.msra.mxu0 0.0
    %8815 = vmatprep.subr.mxu0 0.0
    %8816 = vmatpush1.msra.mxu0 0.0
    %8817 = vmatprep.subr.mxu0 0.0
    %8818 = vmatpush1.msra.mxu0 0.0
    %8819 = vmatprep.subr.mxu0 0.0
    %8820 = vmatpush1.msra.mxu0 0.0
    %8821 = vmatprep.subr.mxu0 0.0
    %8822 = vmatpush1.msra.mxu0 0.0
    %8823 = vmatprep.subr.mxu0 0.0
    %8824 = vmatpush1.msra.mxu0 0.0
    %8825 = vmatprep.subr.mxu0 0.0
    %8826 = vmatpush1.msra.mxu0 0.0
    %8827 = vmatprep.subr.mxu0 0.0
    %8828 = vmatpush1.msra.mxu0 0.0
    %8829 = vmatprep.subr.mxu0 0.0
    %8830 = vmatpush1.msra.mxu0 0.0
    %8831 = vmatprep.subr.mxu0 0.0
    %8832 = vmatpush1.msra.mxu0 0.0
    %8833 = vmatprep.subr.mxu0 0.0
    %8834 = vmatpush1.msra.mxu0 0.0
    %8835 = vmatprep.subr.mxu0 0.0
    %8836 = vmatpush1.msra.mxu0 0.0
    %8837 = vmatprep.subr.mxu0 0.0
    %8838 = vmatpush1.msra.mxu0 0.0
    %8839 = vmatprep.subr.mxu0 0.0
    %8840 = vmatpush1.msra.mxu0 0.0
    %8841 = vmatprep.subr.mxu0 0.0
    %8842 = vmatpush1.msra.mxu0 0.0
    %8843 = vmatprep.subr.mxu0 0.0
    %8844 = vmatpush1.msra.mxu0 0.0
    %8845 = vmatprep.subr.mxu0 0.0
    %8846 = vmatpush1.msra.mxu0 0.0
    %8847 = vmatprep.subr.mxu0 0.0
    %8848 = vmatpush1.msra.mxu0 0.0
    %8849 = vmatprep.subr.mxu0 0.0
    %8850 = vmatpush1.msra.mxu0 0.0
    %8851 = vmatprep.subr.mxu0 0.0
    %8852 = vmatpush1.msra.mxu0 0.0
    %8853 = vmatprep.subr.mxu0 0.0
    %8854 = vmatpush1.msra.mxu0 0.0
    %8855 = vmatprep.subr.mxu0 0.0
    %8856 = vmatpush1.msra.mxu0 0.0
    %8857 = vmatprep.subr.mxu0 0.0
    %8858 = vmatpush1.msra.mxu0 0.0
    %8859 = vmatprep.subr.mxu0 0.0
    %8860 = vmatpush1.msra.mxu0 0.0
    %8861 = vmatprep.subr.mxu0 0.0
    %8862 = vmatpush1.msra.mxu0 0.0
    %8863 = vmatprep.mubr.f32.mxu0 0.0
    %v8864 = vand.u32 %v8458, 4294901760
    %8865 = vmatmul.mubr.f32.gmra.mrb[0].mxu0 %v8864
    %v8866 = vpop.f32.mrb[0].mxu0
    %v8867 = vadd.f32 %v8784, %v8866
    %v8868 = vpop.f32.mrb[0].mxu0
    %8869 = vdwg.mxu0
    %8870 = vmatprep.subr.mxu0 0.0
    %v8871 = vand.u32 %v5347, 4294901760
    %8872 = vmatpush1.msra.mxu0 %v8871
    %8873 = vmatprep.subr.mxu0 0.0
    %v8874 = vand.u32 %v5348, 4294901760
    %8875 = vmatpush1.msra.mxu0 %v8874
    %8876 = vmatprep.subr.mxu0 0.0
    %v8877 = vand.u32 %v5349, 4294901760
    %8878 = vmatpush1.msra.mxu0 %v8877
    %8879 = vmatprep.subr.mxu0 0.0
    %v8880 = vand.u32 %v5350, 4294901760
    %8881 = vmatpush1.msra.mxu0 %v8880
    %8882 = vmatprep.subr.mxu0 0.0
    %8883 = vmatpush1.msra.mxu0 0.0
    %8884 = vmatprep.subr.mxu0 0.0
    %8885 = vmatpush1.msra.mxu0 0.0
    %8886 = vmatprep.subr.mxu0 0.0
    %8887 = vmatpush1.msra.mxu0 0.0
    %8888 = vmatprep.subr.mxu0 0.0
    %8889 = vmatpush1.msra.mxu0 0.0
    %8890 = vmatprep.subr.mxu0 0.0
    %8891 = vmatpush1.msra.mxu0 0.0
    %8892 = vmatprep.subr.mxu0 0.0
    %8893 = vmatpush1.msra.mxu0 0.0
    %8894 = vmatprep.subr.mxu0 0.0
    %8895 = vmatpush1.msra.mxu0 0.0
    %8896 = vmatprep.subr.mxu0 0.0
    %8897 = vmatpush1.msra.mxu0 0.0
    %8898 = vmatprep.subr.mxu0 0.0
    %8899 = vmatpush1.msra.mxu0 0.0
    %8900 = vmatprep.subr.mxu0 0.0
    %8901 = vmatpush1.msra.mxu0 0.0
    %8902 = vmatprep.subr.mxu0 0.0
    %8903 = vmatpush1.msra.mxu0 0.0
    %8904 = vmatprep.subr.mxu0 0.0
    %8905 = vmatpush1.msra.mxu0 0.0
    %8906 = vmatprep.subr.mxu0 0.0
    %8907 = vmatpush1.msra.mxu0 0.0
    %8908 = vmatprep.subr.mxu0 0.0
    %8909 = vmatpush1.msra.mxu0 0.0
    %8910 = vmatprep.subr.mxu0 0.0
    %8911 = vmatpush1.msra.mxu0 0.0
    %8912 = vmatprep.subr.mxu0 0.0
    %8913 = vmatpush1.msra.mxu0 0.0
    %8914 = vmatprep.subr.mxu0 0.0
    %8915 = vmatpush1.msra.mxu0 0.0
    %8916 = vmatprep.subr.mxu0 0.0
    %8917 = vmatpush1.msra.mxu0 0.0
    %8918 = vmatprep.subr.mxu0 0.0
    %8919 = vmatpush1.msra.mxu0 0.0
    %8920 = vmatprep.subr.mxu0 0.0
    %8921 = vmatpush1.msra.mxu0 0.0
    %8922 = vmatprep.subr.mxu0 0.0
    %8923 = vmatpush1.msra.mxu0 0.0
    %8924 = vmatprep.subr.mxu0 0.0
    %8925 = vmatpush1.msra.mxu0 0.0
    %8926 = vmatprep.subr.mxu0 0.0
    %8927 = vmatpush1.msra.mxu0 0.0
    %8928 = vmatprep.subr.mxu0 0.0
    %8929 = vmatpush1.msra.mxu0 0.0
    %8930 = vmatprep.subr.mxu0 0.0
    %8931 = vmatpush1.msra.mxu0 0.0
    %8932 = vmatprep.subr.mxu0 0.0
    %8933 = vmatpush1.msra.mxu0 0.0
    %8934 = vmatprep.subr.mxu0 0.0
    %8935 = vmatpush1.msra.mxu0 0.0
    %8936 = vmatprep.subr.mxu0 0.0
    %8937 = vmatpush1.msra.mxu0 0.0
    %8938 = vmatprep.mubr.f32.mxu0 0.0
    %v8939 = vand.u32 %v8458, 4294901760
    %8940 = vmatmul.mubr.f32.gmra.mrb[0].mxu0 %v8939
    %v8941 = vpop.f32.mrb[0].mxu0
    %v8942 = vadd.f32 %v8867, %v8941
    %v8943 = vpop.f32.mrb[0].mxu0
    %8944 = vdwg.mxu0
    %v8946 = vrot.slane %v8942, 4
    %v8948 = vadd.f32 %v5344, %v8946
    %v8949 = vmul.f32 %v8948, 0.5
    %v8950 = vtanh.pop %v8949
    %v8951 = vadd.f32 %v8950, 1.0
    %v8952 = vmul.f32 %v8951, 0.5
    %v8953 = vtanh.pop %v8948
    %v8955 = vrot.slane %v8447, 6
    %v8957 = vmul.f32 %v8952, %v8955
    %8959 = vrot.lane.b32.xlu0 %v8953, 64
    %v8960 = vpop.permute.xlu0 %8959
    %v8962 = vmul.f32 %v8952, %v8960
    %8964 = vrot.lane.b32.xlu0 %v8962, 32
    %v8965 = vpop.permute.xlu0 %8964
    %v8967 = vadd.f32 %v8957, %v8965
    %v8968 = vtanh.pop %v8967
    %8970 = vrot.lane.b32.xlu0 %v8968, 64
    %v8971 = vpop.permute.xlu0 %8970
    %v8973 = vmul.f32 %v8952, %v8971
    %v8975 = vrot.slane %v8973, 4
    %8976 = vrot.lane.b32.xlu0 %v8975, 32
    %v8977 = vpop.permute.xlu0 %8976
    %v8978 = vsel %vm49, %v8977, 0
    %8980 = vmatprep.subr.mxu0 0.0
    %v8981 = vand.u32 %v5347, 4294901760
    %8982 = vmatpush1.msra.mxu0 %v8981
    %8983 = vmatprep.subr.mxu0 0.0
    %v8984 = vand.u32 %v5348, 4294901760
    %8985 = vmatpush1.msra.mxu0 %v8984
    %8986 = vmatprep.subr.mxu0 0.0
    %v8987 = vand.u32 %v5349, 4294901760
    %8988 = vmatpush1.msra.mxu0 %v8987
    %8989 = vmatprep.subr.mxu0 0.0
    %v8990 = vand.u32 %v5350, 4294901760
    %8991 = vmatpush1.msra.mxu0 %v8990
    %8992 = vmatprep.subr.mxu0 0.0
    %8993 = vmatpush1.msra.mxu0 0.0
    %8994 = vmatprep.subr.mxu0 0.0
    %8995 = vmatpush1.msra.mxu0 0.0
    %8996 = vmatprep.subr.mxu0 0.0
    %8997 = vmatpush1.msra.mxu0 0.0
    %8998 = vmatprep.subr.mxu0 0.0
    %8999 = vmatpush1.msra.mxu0 0.0
    %9000 = vmatprep.subr.mxu0 0.0
    %9001 = vmatpush1.msra.mxu0 0.0
    %9002 = vmatprep.subr.mxu0 0.0
    %9003 = vmatpush1.msra.mxu0 0.0
    %9004 = vmatprep.subr.mxu0 0.0
    %9005 = vmatpush1.msra.mxu0 0.0
    %9006 = vmatprep.subr.mxu0 0.0
    %9007 = vmatpush1.msra.mxu0 0.0
    %9008 = vmatprep.subr.mxu0 0.0
    %9009 = vmatpush1.msra.mxu0 0.0
    %9010 = vmatprep.subr.mxu0 0.0
    %9011 = vmatpush1.msra.mxu0 0.0
    %9012 = vmatprep.subr.mxu0 0.0
    %9013 = vmatpush1.msra.mxu0 0.0
    %9014 = vmatprep.subr.mxu0 0.0
    %9015 = vmatpush1.msra.mxu0 0.0
    %9016 = vmatprep.subr.mxu0 0.0
    %9017 = vmatpush1.msra.mxu0 0.0
    %9018 = vmatprep.subr.mxu0 0.0
    %9019 = vmatpush1.msra.mxu0 0.0
    %9020 = vmatprep.subr.mxu0 0.0
    %9021 = vmatpush1.msra.mxu0 0.0
    %9022 = vmatprep.subr.mxu0 0.0
    %9023 = vmatpush1.msra.mxu0 0.0
    %9024 = vmatprep.subr.mxu0 0.0
    %9025 = vmatpush1.msra.mxu0 0.0
    %9026 = vmatprep.subr.mxu0 0.0
    %9027 = vmatpush1.msra.mxu0 0.0
    %9028 = vmatprep.subr.mxu0 0.0
    %9029 = vmatpush1.msra.mxu0 0.0
    %9030 = vmatprep.subr.mxu0 0.0
    %9031 = vmatpush1.msra.mxu0 0.0
    %9032 = vmatprep.subr.mxu0 0.0
    %9033 = vmatpush1.msra.mxu0 0.0
    %9034 = vmatprep.subr.mxu0 0.0
    %9035 = vmatpush1.msra.mxu0 0.0
    %9036 = vmatprep.subr.mxu0 0.0
    %9037 = vmatpush1.msra.mxu0 0.0
    %9038 = vmatprep.subr.mxu0 0.0
    %9039 = vmatpush1.msra.mxu0 0.0
    %9040 = vmatprep.subr.mxu0 0.0
    %9041 = vmatpush1.msra.mxu0 0.0
    %9042 = vmatprep.subr.mxu0 0.0
    %9043 = vmatpush1.msra.mxu0 0.0
    %9044 = vmatprep.subr.mxu0 0.0
    %9045 = vmatpush1.msra.mxu0 0.0
    %9046 = vmatprep.subr.mxu0 0.0
    %9047 = vmatpush1.msra.mxu0 0.0
    %9048 = vmatprep.mubr.f32.mxu0 0.0
    %v9049 = vand.u32 %v8978, 4294901760
    %v9050 = vsub.f32 %v8978, %v9049
    %v9051 = vand.u32 %v9050, 4294901760
    %v9052 = vsub.f32 %v9050, %v9051
    %v9053 = vand.u32 %v9052, 4294901760
    %9054 = vmatmul.mubr.f32.gmra.mrb[0].mxu0 %v9053
    %v9055 = vpop.f32.mrb[0].mxu0
    %v9056 = vadd.f32 0.0, %v9055
    %v9057 = vpop.f32.mrb[0].mxu0
    %9058 = vdwg.mxu0
    %9059 = vmatprep.subr.mxu0 0.0
    %v9060 = vand.u32 %v5347, 4294901760
    %v9061 = vsub.f32 %v5347, %v9060
    %v9062 = vand.u32 %v9061, 4294901760
    %v9063 = vsub.f32 %v9061, %v9062
    %v9064 = vand.u32 %v9063, 4294901760
    %9065 = vmatpush1.msra.mxu0 %v9064
    %9066 = vmatprep.subr.mxu0 0.0
    %v9067 = vand.u32 %v5348, 4294901760
    %v9068 = vsub.f32 %v5348, %v9067
    %v9069 = vand.u32 %v9068, 4294901760
    %v9070 = vsub.f32 %v9068, %v9069
    %v9071 = vand.u32 %v9070, 4294901760
    %9072 = vmatpush1.msra.mxu0 %v9071
    %9073 = vmatprep.subr.mxu0 0.0
    %v9074 = vand.u32 %v5349, 4294901760
    %v9075 = vsub.f32 %v5349, %v9074
    %v9076 = vand.u32 %v9075, 4294901760
    %v9077 = vsub.f32 %v9075, %v9076
    %v9078 = vand.u32 %v9077, 4294901760
    %9079 = vmatpush1.msra.mxu0 %v9078
    %9080 = vmatprep.subr.mxu0 0.0
    %v9081 = vand.u32 %v5350, 4294901760
    %v9082 = vsub.f32 %v5350, %v9081
    %v9083 = vand.u32 %v9082, 4294901760
    %v9084 = vsub.f32 %v9082, %v9083
    %v9085 = vand.u32 %v9084, 4294901760
    %9086 = vmatpush1.msra.mxu0 %v9085
    %9087 = vmatprep.subr.mxu0 0.0
    %9088 = vmatpush1.msra.mxu0 0.0
    %9089 = vmatprep.subr.mxu0 0.0
    %9090 = vmatpush1.msra.mxu0 0.0
    %9091 = vmatprep.subr.mxu0 0.0
    %9092 = vmatpush1.msra.mxu0 0.0
    %9093 = vmatprep.subr.mxu0 0.0
    %9094 = vmatpush1.msra.mxu0 0.0
    %9095 = vmatprep.subr.mxu0 0.0
    %9096 = vmatpush1.msra.mxu0 0.0
    %9097 = vmatprep.subr.mxu0 0.0
    %9098 = vmatpush1.msra.mxu0 0.0
    %9099 = vmatprep.subr.mxu0 0.0
    %9100 = vmatpush1.msra.mxu0 0.0
    %9101 = vmatprep.subr.mxu0 0.0
    %9102 = vmatpush1.msra.mxu0 0.0
    %9103 = vmatprep.subr.mxu0 0.0
    %9104 = vmatpush1.msra.mxu0 0.0
    %9105 = vmatprep.subr.mxu0 0.0
    %9106 = vmatpush1.msra.mxu0 0.0
    %9107 = vmatprep.subr.mxu0 0.0
    %9108 = vmatpush1.msra.mxu0 0.0
    %9109 = vmatprep.subr.mxu0 0.0
    %9110 = vmatpush1.msra.mxu0 0.0
    %9111 = vmatprep.subr.mxu0 0.0
    %9112 = vmatpush1.msra.mxu0 0.0
    %9113 = vmatprep.subr.mxu0 0.0
    %9114 = vmatpush1.msra.mxu0 0.0
    %9115 = vmatprep.subr.mxu0 0.0
    %9116 = vmatpush1.msra.mxu0 0.0
    %9117 = vmatprep.subr.mxu0 0.0
    %9118 = vmatpush1.msra.mxu0 0.0
    %9119 = vmatprep.subr.mxu0 0.0
    %9120 = vmatpush1.msra.mxu0 0.0
    %9121 = vmatprep.subr.mxu0 0.0
    %9122 = vmatpush1.msra.mxu0 0.0
    %9123 = vmatprep.subr.mxu0 0.0
    %9124 = vmatpush1.msra.mxu0 0.0
    %9125 = vmatprep.subr.mxu0 0.0
    %9126 = vmatpush1.msra.mxu0 0.0
    %9127 = vmatprep.subr.mxu0 0.0
    %9128 = vmatpush1.msra.mxu0 0.0
    %9129 = vmatprep.subr.mxu0 0.0
    %9130 = vmatpush1.msra.mxu0 0.0
    %9131 = vmatprep.subr.mxu0 0.0
    %9132 = vmatpush1.msra.mxu0 0.0
    %9133 = vmatprep.subr.mxu0 0.0
    %9134 = vmatpush1.msra.mxu0 0.0
    %9135 = vmatprep.subr.mxu0 0.0
    %9136 = vmatpush1.msra.mxu0 0.0
    %9137 = vmatprep.subr.mxu0 0.0
    %9138 = vmatpush1.msra.mxu0 0.0
    %9139 = vmatprep.subr.mxu0 0.0
    %9140 = vmatpush1.msra.mxu0 0.0
    %9141 = vmatprep.subr.mxu0 0.0
    %9142 = vmatpush1.msra.mxu0 0.0
    %9143 = vmatprep.mubr.f32.mxu0 0.0
    %v9144 = vand.u32 %v8978, 4294901760
    %9145 = vmatmul.mubr.f32.gmra.mrb[0].mxu0 %v9144
    %v9146 = vpop.f32.mrb[0].mxu0
    %v9147 = vadd.f32 %v9056, %v9146
    %v9148 = vpop.f32.mrb[0].mxu0
    %9149 = vdwg.mxu0
    %9150 = vmatprep.subr.mxu0 0.0
    %v9151 = vand.u32 %v5347, 4294901760
    %v9152 = vsub.f32 %v5347, %v9151
    %9153 = vmatpush1.msra.mxu0 %v9152
    %9154 = vmatprep.subr.mxu0 0.0
    %v9155 = vand.u32 %v5348, 4294901760
    %v9156 = vsub.f32 %v5348, %v9155
    %9157 = vmatpush1.msra.mxu0 %v9156
    %9158 = vmatprep.subr.mxu0 0.0
    %v9159 = vand.u32 %v5349, 4294901760
    %v9160 = vsub.f32 %v5349, %v9159
    %9161 = vmatpush1.msra.mxu0 %v9160
    %9162 = vmatprep.subr.mxu0 0.0
    %v9163 = vand.u32 %v5350, 4294901760
    %v9164 = vsub.f32 %v5350, %v9163
    %9165 = vmatpush1.msra.mxu0 %v9164
    %9166 = vmatprep.subr.mxu0 0.0
    %9167 = vmatpush1.msra.mxu0 0.0
    %9168 = vmatprep.subr.mxu0 0.0
    %9169 = vmatpush1.msra.mxu0 0.0
    %9170 = vmatprep.subr.mxu0 0.0
    %9171 = vmatpush1.msra.mxu0 0.0
    %9172 = vmatprep.subr.mxu0 0.0
    %9173 = vmatpush1.msra.mxu0 0.0
    %9174 = vmatprep.subr.mxu0 0.0
    %9175 = vmatpush1.msra.mxu0 0.0
    %9176 = vmatprep.subr.mxu0 0.0
    %9177 = vmatpush1.msra.mxu0 0.0
    %9178 = vmatprep.subr.mxu0 0.0
    %9179 = vmatpush1.msra.mxu0 0.0
    %9180 = vmatprep.subr.mxu0 0.0
    %9181 = vmatpush1.msra.mxu0 0.0
    %9182 = vmatprep.subr.mxu0 0.0
    %9183 = vmatpush1.msra.mxu0 0.0
    %9184 = vmatprep.subr.mxu0 0.0
    %9185 = vmatpush1.msra.mxu0 0.0
    %9186 = vmatprep.subr.mxu0 0.0
    %9187 = vmatpush1.msra.mxu0 0.0
    %9188 = vmatprep.subr.mxu0 0.0
    %9189 = vmatpush1.msra.mxu0 0.0
    %9190 = vmatprep.subr.mxu0 0.0
    %9191 = vmatpush1.msra.mxu0 0.0
    %9192 = vmatprep.subr.mxu0 0.0
    %9193 = vmatpush1.msra.mxu0 0.0
    %9194 = vmatprep.subr.mxu0 0.0
    %9195 = vmatpush1.msra.mxu0 0.0
    %9196 = vmatprep.subr.mxu0 0.0
    %9197 = vmatpush1.msra.mxu0 0.0
    %9198 = vmatprep.subr.mxu0 0.0
    %9199 = vmatpush1.msra.mxu0 0.0
    %9200 = vmatprep.subr.mxu0 0.0
    %9201 = vmatpush1.msra.mxu0 0.0
    %9202 = vmatprep.subr.mxu0 0.0
    %9203 = vmatpush1.msra.mxu0 0.0
    %9204 = vmatprep.subr.mxu0 0.0
    %9205 = vmatpush1.msra.mxu0 0.0
    %9206 = vmatprep.subr.mxu0 0.0
    %9207 = vmatpush1.msra.mxu0 0.0
    %9208 = vmatprep.subr.mxu0 0.0
    %9209 = vmatpush1.msra.mxu0 0.0
    %9210 = vmatprep.subr.mxu0 0.0
    %9211 = vmatpush1.msra.mxu0 0.0
    %9212 = vmatprep.subr.mxu0 0.0
    %9213 = vmatpush1.msra.mxu0 0.0
    %9214 = vmatprep.subr.mxu0 0.0
    %9215 = vmatpush1.msra.mxu0 0.0
    %9216 = vmatprep.subr.mxu0 0.0
    %9217 = vmatpush1.msra.mxu0 0.0
    %9218 = vmatprep.subr.mxu0 0.0
    %9219 = vmatpush1.msra.mxu0 0.0
    %9220 = vmatprep.subr.mxu0 0.0
    %9221 = vmatpush1.msra.mxu0 0.0
    %9222 = vmatprep.mubr.f32.mxu0 0.0
    %v9223 = vand.u32 %v8978, 4294901760
    %v9224 = vsub.f32 %v8978, %v9223
    %9225 = vmatmul.mubr.f32.gmra.mrb[0].mxu0 %v9224
    %v9226 = vpop.f32.mrb[0].mxu0
    %v9227 = vadd.f32 %v9147, %v9226
    %v9228 = vpop.f32.mrb[0].mxu0
    %9229 = vdwg.mxu0
    %9230 = vmatprep.subr.mxu0 0.0
    %v9231 = vand.u32 %v5347, 4294901760
    %9232 = vmatpush1.msra.mxu0 %v9231
    %9233 = vmatprep.subr.mxu0 0.0
    %v9234 = vand.u32 %v5348, 4294901760
    %9235 = vmatpush1.msra.mxu0 %v9234
    %9236 = vmatprep.subr.mxu0 0.0
    %v9237 = vand.u32 %v5349, 4294901760
    %9238 = vmatpush1.msra.mxu0 %v9237
    %9239 = vmatprep.subr.mxu0 0.0
    %v9240 = vand.u32 %v5350, 4294901760
    %9241 = vmatpush1.msra.mxu0 %v9240
    %9242 = vmatprep.subr.mxu0 0.0
    %9243 = vmatpush1.msra.mxu0 0.0
    %9244 = vmatprep.subr.mxu0 0.0
    %9245 = vmatpush1.msra.mxu0 0.0
    %9246 = vmatprep.subr.mxu0 0.0
    %9247 = vmatpush1.msra.mxu0 0.0
    %9248 = vmatprep.subr.mxu0 0.0
    %9249 = vmatpush1.msra.mxu0 0.0
    %9250 = vmatprep.subr.mxu0 0.0
    %9251 = vmatpush1.msra.mxu0 0.0
    %9252 = vmatprep.subr.mxu0 0.0
    %9253 = vmatpush1.msra.mxu0 0.0
    %9254 = vmatprep.subr.mxu0 0.0
    %9255 = vmatpush1.msra.mxu0 0.0
    %9256 = vmatprep.subr.mxu0 0.0
    %9257 = vmatpush1.msra.mxu0 0.0
    %9258 = vmatprep.subr.mxu0 0.0
    %9259 = vmatpush1.msra.mxu0 0.0
    %9260 = vmatprep.subr.mxu0 0.0
    %9261 = vmatpush1.msra.mxu0 0.0
    %9262 = vmatprep.subr.mxu0 0.0
    %9263 = vmatpush1.msra.mxu0 0.0
    %9264 = vmatprep.subr.mxu0 0.0
    %9265 = vmatpush1.msra.mxu0 0.0
    %9266 = vmatprep.subr.mxu0 0.0
    %9267 = vmatpush1.msra.mxu0 0.0
    %9268 = vmatprep.subr.mxu0 0.0
    %9269 = vmatpush1.msra.mxu0 0.0
    %9270 = vmatprep.subr.mxu0 0.0
    %9271 = vmatpush1.msra.mxu0 0.0
    %9272 = vmatprep.subr.mxu0 0.0
    %9273 = vmatpush1.msra.mxu0 0.0
    %9274 = vmatprep.subr.mxu0 0.0
    %9275 = vmatpush1.msra.mxu0 0.0
    %9276 = vmatprep.subr.mxu0 0.0
    %9277 = vmatpush1.msra.mxu0 0.0
    %9278 = vmatprep.subr.mxu0 0.0
    %9279 = vmatpush1.msra.mxu0 0.0
    %9280 = vmatprep.subr.mxu0 0.0
    %9281 = vmatpush1.msra.mxu0 0.0
    %9282 = vmatprep.subr.mxu0 0.0
    %9283 = vmatpush1.msra.mxu0 0.0
    %9284 = vmatprep.subr.mxu0 0.0
    %9285 = vmatpush1.msra.mxu0 0.0
    %9286 = vmatprep.subr.mxu0 0.0
    %9287 = vmatpush1.msra.mxu0 0.0
    %9288 = vmatprep.subr.mxu0 0.0
    %9289 = vmatpush1.msra.mxu0 0.0
    %9290 = vmatprep.subr.mxu0 0.0
    %9291 = vmatpush1.msra.mxu0 0.0
    %9292 = vmatprep.subr.mxu0 0.0
    %9293 = vmatpush1.msra.mxu0 0.0
    %9294 = vmatprep.subr.mxu0 0.0
    %9295 = vmatpush1.msra.mxu0 0.0
    %9296 = vmatprep.subr.mxu0 0.0
    %9297 = vmatpush1.msra.mxu0 0.0
    %9298 = vmatprep.mubr.f32.mxu0 0.0
    %v9299 = vand.u32 %v8978, 4294901760
    %v9300 = vsub.f32 %v8978, %v9299
    %v9301 = vand.u32 %v9300, 4294901760
    %9302 = vmatmul.mubr.f32.gmra.mrb[0].mxu0 %v9301
    %v9303 = vpop.f32.mrb[0].mxu0
    %v9304 = vadd.f32 %v9227, %v9303
    %v9305 = vpop.f32.mrb[0].mxu0
    %9306 = vdwg.mxu0
    %9307 = vmatprep.subr.mxu0 0.0
    %v9308 = vand.u32 %v5347, 4294901760
    %v9309 = vsub.f32 %v5347, %v9308
    %v9310 = vand.u32 %v9309, 4294901760
    %9311 = vmatpush1.msra.mxu0 %v9310
    %9312 = vmatprep.subr.mxu0 0.0
    %v9313 = vand.u32 %v5348, 4294901760
    %v9314 = vsub.f32 %v5348, %v9313
    %v9315 = vand.u32 %v9314, 4294901760
    %9316 = vmatpush1.msra.mxu0 %v9315
    %9317 = vmatprep.subr.mxu0 0.0
    %v9318 = vand.u32 %v5349, 4294901760
    %v9319 = vsub.f32 %v5349, %v9318
    %v9320 = vand.u32 %v9319, 4294901760
    %9321 = vmatpush1.msra.mxu0 %v9320
    %9322 = vmatprep.subr.mxu0 0.0
    %v9323 = vand.u32 %v5350, 4294901760
    %v9324 = vsub.f32 %v5350, %v9323
    %v9325 = vand.u32 %v9324, 4294901760
    %9326 = vmatpush1.msra.mxu0 %v9325
    %9327 = vmatprep.subr.mxu0 0.0
    %9328 = vmatpush1.msra.mxu0 0.0
    %9329 = vmatprep.subr.mxu0 0.0
    %9330 = vmatpush1.msra.mxu0 0.0
    %9331 = vmatprep.subr.mxu0 0.0
    %9332 = vmatpush1.msra.mxu0 0.0
    %9333 = vmatprep.subr.mxu0 0.0
    %9334 = vmatpush1.msra.mxu0 0.0
    %9335 = vmatprep.subr.mxu0 0.0
    %9336 = vmatpush1.msra.mxu0 0.0
    %9337 = vmatprep.subr.mxu0 0.0
    %9338 = vmatpush1.msra.mxu0 0.0
    %9339 = vmatprep.subr.mxu0 0.0
    %9340 = vmatpush1.msra.mxu0 0.0
    %9341 = vmatprep.subr.mxu0 0.0
    %9342 = vmatpush1.msra.mxu0 0.0
    %9343 = vmatprep.subr.mxu0 0.0
    %9344 = vmatpush1.msra.mxu0 0.0
    %9345 = vmatprep.subr.mxu0 0.0
    %9346 = vmatpush1.msra.mxu0 0.0
    %9347 = vmatprep.subr.mxu0 0.0
    %9348 = vmatpush1.msra.mxu0 0.0
    %9349 = vmatprep.subr.mxu0 0.0
    %9350 = vmatpush1.msra.mxu0 0.0
    %9351 = vmatprep.subr.mxu0 0.0
    %9352 = vmatpush1.msra.mxu0 0.0
    %9353 = vmatprep.subr.mxu0 0.0
    %9354 = vmatpush1.msra.mxu0 0.0
    %9355 = vmatprep.subr.mxu0 0.0
    %9356 = vmatpush1.msra.mxu0 0.0
    %9357 = vmatprep.subr.mxu0 0.0
    %9358 = vmatpush1.msra.mxu0 0.0
    %9359 = vmatprep.subr.mxu0 0.0
    %9360 = vmatpush1.msra.mxu0 0.0
    %9361 = vmatprep.subr.mxu0 0.0
    %9362 = vmatpush1.msra.mxu0 0.0
    %9363 = vmatprep.subr.mxu0 0.0
    %9364 = vmatpush1.msra.mxu0 0.0
    %9365 = vmatprep.subr.mxu0 0.0
    %9366 = vmatpush1.msra.mxu0 0.0
    %9367 = vmatprep.subr.mxu0 0.0
    %9368 = vmatpush1.msra.mxu0 0.0
    %9369 = vmatprep.subr.mxu0 0.0
    %9370 = vmatpush1.msra.mxu0 0.0
    %9371 = vmatprep.subr.mxu0 0.0
    %9372 = vmatpush1.msra.mxu0 0.0
    %9373 = vmatprep.subr.mxu0 0.0
    %9374 = vmatpush1.msra.mxu0 0.0
    %9375 = vmatprep.subr.mxu0 0.0
    %9376 = vmatpush1.msra.mxu0 0.0
    %9377 = vmatprep.subr.mxu0 0.0
    %9378 = vmatpush1.msra.mxu0 0.0
    %9379 = vmatprep.subr.mxu0 0.0
    %9380 = vmatpush1.msra.mxu0 0.0
    %9381 = vmatprep.subr.mxu0 0.0
    %9382 = vmatpush1.msra.mxu0 0.0
    %9383 = vmatprep.mubr.f32.mxu0 0.0
    %v9384 = vand.u32 %v8978, 4294901760
    %9385 = vmatmul.mubr.f32.gmra.mrb[0].mxu0 %v9384
    %v9386 = vpop.f32.mrb[0].mxu0
    %v9387 = vadd.f32 %v9304, %v9386
    %v9388 = vpop.f32.mrb[0].mxu0
    %9389 = vdwg.mxu0
    %9390 = vmatprep.subr.mxu0 0.0
    %v9391 = vand.u32 %v5347, 4294901760
    %9392 = vmatpush1.msra.mxu0 %v9391
    %9393 = vmatprep.subr.mxu0 0.0
    %v9394 = vand.u32 %v5348, 4294901760
    %9395 = vmatpush1.msra.mxu0 %v9394
    %9396 = vmatprep.subr.mxu0 0.0
    %v9397 = vand.u32 %v5349, 4294901760
    %9398 = vmatpush1.msra.mxu0 %v9397
    %9399 = vmatprep.subr.mxu0 0.0
    %v9400 = vand.u32 %v5350, 4294901760
    %9401 = vmatpush1.msra.mxu0 %v9400
    %9402 = vmatprep.subr.mxu0 0.0
    %9403 = vmatpush1.msra.mxu0 0.0
    %9404 = vmatprep.subr.mxu0 0.0
    %9405 = vmatpush1.msra.mxu0 0.0
    %9406 = vmatprep.subr.mxu0 0.0
    %9407 = vmatpush1.msra.mxu0 0.0
    %9408 = vmatprep.subr.mxu0 0.0
    %9409 = vmatpush1.msra.mxu0 0.0
    %9410 = vmatprep.subr.mxu0 0.0
    %9411 = vmatpush1.msra.mxu0 0.0
    %9412 = vmatprep.subr.mxu0 0.0
    %9413 = vmatpush1.msra.mxu0 0.0
    %9414 = vmatprep.subr.mxu0 0.0
    %9415 = vmatpush1.msra.mxu0 0.0
    %9416 = vmatprep.subr.mxu0 0.0
    %9417 = vmatpush1.msra.mxu0 0.0
    %9418 = vmatprep.subr.mxu0 0.0
    %9419 = vmatpush1.msra.mxu0 0.0
    %9420 = vmatprep.subr.mxu0 0.0
    %9421 = vmatpush1.msra.mxu0 0.0
    %9422 = vmatprep.subr.mxu0 0.0
    %9423 = vmatpush1.msra.mxu0 0.0
    %9424 = vmatprep.subr.mxu0 0.0
    %9425 = vmatpush1.msra.mxu0 0.0
    %9426 = vmatprep.subr.mxu0 0.0
    %9427 = vmatpush1.msra.mxu0 0.0
    %9428 = vmatprep.subr.mxu0 0.0
    %9429 = vmatpush1.msra.mxu0 0.0
    %9430 = vmatprep.subr.mxu0 0.0
    %9431 = vmatpush1.msra.mxu0 0.0
    %9432 = vmatprep.subr.mxu0 0.0
    %9433 = vmatpush1.msra.mxu0 0.0
    %9434 = vmatprep.subr.mxu0 0.0
    %9435 = vmatpush1.msra.mxu0 0.0
    %9436 = vmatprep.subr.mxu0 0.0
    %9437 = vmatpush1.msra.mxu0 0.0
    %9438 = vmatprep.subr.mxu0 0.0
    %9439 = vmatpush1.msra.mxu0 0.0
    %9440 = vmatprep.subr.mxu0 0.0
    %9441 = vmatpush1.msra.mxu0 0.0
    %9442 = vmatprep.subr.mxu0 0.0
    %9443 = vmatpush1.msra.mxu0 0.0
    %9444 = vmatprep.subr.mxu0 0.0
    %9445 = vmatpush1.msra.mxu0 0.0
    %9446 = vmatprep.subr.mxu0 0.0
    %9447 = vmatpush1.msra.mxu0 0.0
    %9448 = vmatprep.subr.mxu0 0.0
    %9449 = vmatpush1.msra.mxu0 0.0
    %9450 = vmatprep.subr.mxu0 0.0
    %9451 = vmatpush1.msra.mxu0 0.0
    %9452 = vmatprep.subr.mxu0 0.0
    %9453 = vmatpush1.msra.mxu0 0.0
    %9454 = vmatprep.subr.mxu0 0.0
    %9455 = vmatpush1.msra.mxu0 0.0
    %9456 = vmatprep.subr.mxu0 0.0
    %9457 = vmatpush1.msra.mxu0 0.0
    %9458 = vmatprep.mubr.f32.mxu0 0.0
    %v9459 = vand.u32 %v8978, 4294901760
    %9460 = vmatmul.mubr.f32.gmra.mrb[0].mxu0 %v9459
    %v9461 = vpop.f32.mrb[0].mxu0
    %v9462 = vadd.f32 %v9387, %v9461
    %v9463 = vpop.f32.mrb[0].mxu0
    %9464 = vdwg.mxu0
    %v9466 = vrot.slane %v9462, 2
    %v9468 = vadd.f32 %v5344, %v9466
    %v9469 = vmul.f32 %v9468, 0.5
    %v9470 = vtanh.pop %v9469
    %v9471 = vadd.f32 %v9470, 1.0
    %v9472 = vmul.f32 %v9471, 0.5
    %v9473 = vtanh.pop %v9468
    %v9475 = vrot.slane %v8967, 6
    %v9477 = vmul.f32 %v9472, %v9475
    %9479 = vrot.lane.b32.xlu0 %v9473, 64
    %v9480 = vpop.permute.xlu0 %9479
    %v9482 = vmul.f32 %v9472, %v9480
    %9484 = vrot.lane.b32.xlu0 %v9482, 32
    %v9485 = vpop.permute.xlu0 %9484
    %v9487 = vadd.f32 %v9477, %v9485
    %v9488 = vtanh.pop %v9487
    %9490 = vrot.lane.b32.xlu0 %v9488, 64
    %v9491 = vpop.permute.xlu0 %9490
    %v9493 = vmul.f32 %v9472, %v9491
    %v9494 = vld [vmem:[%s7] sm:$0xff]
    %v9495 = vld [vmem:[%s7 + $0x8] sm:$0xff]
    %v9496 = vld [vmem:[%s7 + $0x10] sm:$0xff]
    %v9497 = vld [vmem:[%s7 + $0x18] sm:$0xff]
    %v9498 = vld [vmem:[%s8] sm:$0x1]
    %v9500 = vlaneseq
    %v9501 = vshrl.u32 %v9500, 7
    %v9502 = vsub.s32 0, %v9501
    %v9503 = vrot.slane %v9498, %v9502
    %v9506 = vrot.slane %v9493, 6
    %9507 = vrot.lane.b32.xlu0 %v9506, 32
    %v9508 = vpop.permute.xlu0 %9507
    %v9509 = vsel %vm49, %v9508, 0
    %9511 = vmatprep.subr.mxu0 0.0
    %v9512 = vand.u32 %v9494, 4294901760
    %9513 = vmatpush1.msra.mxu0 %v9512
    %9514 = vmatprep.subr.mxu0 0.0
    %v9515 = vand.u32 %v9495, 4294901760
    %9516 = vmatpush1.msra.mxu0 %v9515
    %9517 = vmatprep.subr.mxu0 0.0
    %v9518 = vand.u32 %v9496, 4294901760
    %9519 = vmatpush1.msra.mxu0 %v9518
    %9520 = vmatprep.subr.mxu0 0.0
    %v9521 = vand.u32 %v9497, 4294901760
    %9522 = vmatpush1.msra.mxu0 %v9521
    %9523 = vmatprep.subr.mxu0 0.0
    %9524 = vmatpush1.msra.mxu0 0.0
    %9525 = vmatprep.subr.mxu0 0.0
    %9526 = vmatpush1.msra.mxu0 0.0
    %9527 = vmatprep.subr.mxu0 0.0
    %9528 = vmatpush1.msra.mxu0 0.0
    %9529 = vmatprep.subr.mxu0 0.0
    %9530 = vmatpush1.msra.mxu0 0.0
    %9531 = vmatprep.subr.mxu0 0.0
    %9532 = vmatpush1.msra.mxu0 0.0
    %9533 = vmatprep.subr.mxu0 0.0
    %9534 = vmatpush1.msra.mxu0 0.0
    %9535 = vmatprep.subr.mxu0 0.0
    %9536 = vmatpush1.msra.mxu0 0.0
    %9537 = vmatprep.subr.mxu0 0.0
    %9538 = vmatpush1.msra.mxu0 0.0
    %9539 = vmatprep.subr.mxu0 0.0
    %9540 = vmatpush1.msra.mxu0 0.0
    %9541 = vmatprep.subr.mxu0 0.0
    %9542 = vmatpush1.msra.mxu0 0.0
    %9543 = vmatprep.subr.mxu0 0.0
    %9544 = vmatpush1.msra.mxu0 0.0
    %9545 = vmatprep.subr.mxu0 0.0
    %9546 = vmatpush1.msra.mxu0 0.0
    %9547 = vmatprep.subr.mxu0 0.0
    %9548 = vmatpush1.msra.mxu0 0.0
    %9549 = vmatprep.subr.mxu0 0.0
    %9550 = vmatpush1.msra.mxu0 0.0
    %9551 = vmatprep.subr.mxu0 0.0
    %9552 = vmatpush1.msra.mxu0 0.0
    %9553 = vmatprep.subr.mxu0 0.0
    %9554 = vmatpush1.msra.mxu0 0.0
    %9555 = vmatprep.subr.mxu0 0.0
    %9556 = vmatpush1.msra.mxu0 0.0
    %9557 = vmatprep.subr.mxu0 0.0
    %9558 = vmatpush1.msra.mxu0 0.0
    %9559 = vmatprep.subr.mxu0 0.0
    %9560 = vmatpush1.msra.mxu0 0.0
    %9561 = vmatprep.subr.mxu0 0.0
    %9562 = vmatpush1.msra.mxu0 0.0
    %9563 = vmatprep.subr.mxu0 0.0
    %9564 = vmatpush1.msra.mxu0 0.0
    %9565 = vmatprep.subr.mxu0 0.0
    %9566 = vmatpush1.msra.mxu0 0.0
    %9567 = vmatprep.subr.mxu0 0.0
    %9568 = vmatpush1.msra.mxu0 0.0
    %9569 = vmatprep.subr.mxu0 0.0
    %9570 = vmatpush1.msra.mxu0 0.0
    %9571 = vmatprep.subr.mxu0 0.0
    %9572 = vmatpush1.msra.mxu0 0.0
    %9573 = vmatprep.subr.mxu0 0.0
    %9574 = vmatpush1.msra.mxu0 0.0
    %9575 = vmatprep.subr.mxu0 0.0
    %9576 = vmatpush1.msra.mxu0 0.0
    %9577 = vmatprep.subr.mxu0 0.0
    %9578 = vmatpush1.msra.mxu0 0.0
    %9579 = vmatprep.mubr.f32.mxu0 0.0
    %v9580 = vand.u32 %v9509, 4294901760
    %v9581 = vsub.f32 %v9509, %v9580
    %v9582 = vand.u32 %v9581, 4294901760
    %v9583 = vsub.f32 %v9581, %v9582
    %v9584 = vand.u32 %v9583, 4294901760
    %9585 = vmatmul.mubr.f32.gmra.mrb[0].mxu0 %v9584
    %v9586 = vpop.f32.mrb[0].mxu0
    %v9587 = vadd.f32 %v9503, %v9586
    %v9588 = vpop.f32.mrb[0].mxu0
    %9589 = vdwg.mxu0
    %9590 = vmatprep.subr.mxu0 0.0
    %v9591 = vand.u32 %v9494, 4294901760
    %v9592 = vsub.f32 %v9494, %v9591
    %v9593 = vand.u32 %v9592, 4294901760
    %v9594 = vsub.f32 %v9592, %v9593
    %v9595 = vand.u32 %v9594, 4294901760
    %9596 = vmatpush1.msra.mxu0 %v9595
    %9597 = vmatprep.subr.mxu0 0.0
    %v9598 = vand.u32 %v9495, 4294901760
    %v9599 = vsub.f32 %v9495, %v9598
    %v9600 = vand.u32 %v9599, 4294901760
    %v9601 = vsub.f32 %v9599, %v9600
    %v9602 = vand.u32 %v9601, 4294901760
    %9603 = vmatpush1.msra.mxu0 %v9602
    %9604 = vmatprep.subr.mxu0 0.0
    %v9605 = vand.u32 %v9496, 4294901760
    %v9606 = vsub.f32 %v9496, %v9605
    %v9607 = vand.u32 %v9606, 4294901760
    %v9608 = vsub.f32 %v9606, %v9607
    %v9609 = vand.u32 %v9608, 4294901760
    %9610 = vmatpush1.msra.mxu0 %v9609
    %9611 = vmatprep.subr.mxu0 0.0
    %v9612 = vand.u32 %v9497, 4294901760
    %v9613 = vsub.f32 %v9497, %v9612
    %v9614 = vand.u32 %v9613, 4294901760
    %v9615 = vsub.f32 %v9613, %v9614
    %v9616 = vand.u32 %v9615, 4294901760
    %9617 = vmatpush1.msra.mxu0 %v9616
    %9618 = vmatprep.subr.mxu0 0.0
    %9619 = vmatpush1.msra.mxu0 0.0
    %9620 = vmatprep.subr.mxu0 0.0
    %9621 = vmatpush1.msra.mxu0 0.0
    %9622 = vmatprep.subr.mxu0 0.0
    %9623 = vmatpush1.msra.mxu0 0.0
    %9624 = vmatprep.subr.mxu0 0.0
    %9625 = vmatpush1.msra.mxu0 0.0
    %9626 = vmatprep.subr.mxu0 0.0
    %9627 = vmatpush1.msra.mxu0 0.0
    %9628 = vmatprep.subr.mxu0 0.0
    %9629 = vmatpush1.msra.mxu0 0.0
    %9630 = vmatprep.subr.mxu0 0.0
    %9631 = vmatpush1.msra.mxu0 0.0
    %9632 = vmatprep.subr.mxu0 0.0
    %9633 = vmatpush1.msra.mxu0 0.0
    %9634 = vmatprep.subr.mxu0 0.0
    %9635 = vmatpush1.msra.mxu0 0.0
    %9636 = vmatprep.subr.mxu0 0.0
    %9637 = vmatpush1.msra.mxu0 0.0
    %9638 = vmatprep.subr.mxu0 0.0
    %9639 = vmatpush1.msra.mxu0 0.0
    %9640 = vmatprep.subr.mxu0 0.0
    %9641 = vmatpush1.msra.mxu0 0.0
    %9642 = vmatprep.subr.mxu0 0.0
    %9643 = vmatpush1.msra.mxu0 0.0
    %9644 = vmatprep.subr.mxu0 0.0
    %9645 = vmatpush1.msra.mxu0 0.0
    %9646 = vmatprep.subr.mxu0 0.0
    %9647 = vmatpush1.msra.mxu0 0.0
    %9648 = vmatprep.subr.mxu0 0.0
    %9649 = vmatpush1.msra.mxu0 0.0
    %9650 = vmatprep.subr.mxu0 0.0
    %9651 = vmatpush1.msra.mxu0 0.0
    %9652 = vmatprep.subr.mxu0 0.0
    %9653 = vmatpush1.msra.mxu0 0.0
    %9654 = vmatprep.subr.mxu0 0.0
    %9655 = vmatpush1.msra.mxu0 0.0
    %9656 = vmatprep.subr.mxu0 0.0
    %9657 = vmatpush1.msra.mxu0 0.0
    %9658 = vmatprep.subr.mxu0 0.0
    %9659 = vmatpush1.msra.mxu0 0.0
    %9660 = vmatprep.subr.mxu0 0.0
    %9661 = vmatpush1.msra.mxu0 0.0
    %9662 = vmatprep.subr.mxu0 0.0
    %9663 = vmatpush1.msra.mxu0 0.0
    %9664 = vmatprep.subr.mxu0 0.0
    %9665 = vmatpush1.msra.mxu0 0.0
    %9666 = vmatprep.subr.mxu0 0.0
    %9667 = vmatpush1.msra.mxu0 0.0
    %9668 = vmatprep.subr.mxu0 0.0
    %9669 = vmatpush1.msra.mxu0 0.0
    %9670 = vmatprep.subr.mxu0 0.0
    %9671 = vmatpush1.msra.mxu0 0.0
    %9672 = vmatprep.subr.mxu0 0.0
    %9673 = vmatpush1.msra.mxu0 0.0
    %9674 = vmatprep.mubr.f32.mxu0 0.0
    %v9675 = vand.u32 %v9509, 4294901760
    %9676 = vmatmul.mubr.f32.gmra.mrb[0].mxu0 %v9675
    %v9677 = vpop.f32.mrb[0].mxu0
    %v9678 = vadd.f32 %v9587, %v9677
    %v9679 = vpop.f32.mrb[0].mxu0
    %9680 = vdwg.mxu0
    %9681 = vmatprep.subr.mxu0 0.0
    %v9682 = vand.u32 %v9494, 4294901760
    %v9683 = vsub.f32 %v9494, %v9682
    %9684 = vmatpush1.msra.mxu0 %v9683
    %9685 = vmatprep.subr.mxu0 0.0
    %v9686 = vand.u32 %v9495, 4294901760
    %v9687 = vsub.f32 %v9495, %v9686
    %9688 = vmatpush1.msra.mxu0 %v9687
    %9689 = vmatprep.subr.mxu0 0.0
    %v9690 = vand.u32 %v9496, 4294901760
    %v9691 = vsub.f32 %v9496, %v9690
    %9692 = vmatpush1.msra.mxu0 %v9691
    %9693 = vmatprep.subr.mxu0 0.0
    %v9694 = vand.u32 %v9497, 4294901760
    %v9695 = vsub.f32 %v9497, %v9694
    %9696 = vmatpush1.msra.mxu0 %v9695
    %9697 = vmatprep.subr.mxu0 0.0
    %9698 = vmatpush1.msra.mxu0 0.0
    %9699 = vmatprep.subr.mxu0 0.0
    %9700 = vmatpush1.msra.mxu0 0.0
    %9701 = vmatprep.subr.mxu0 0.0
    %9702 = vmatpush1.msra.mxu0 0.0
    %9703 = vmatprep.subr.mxu0 0.0
    %9704 = vmatpush1.msra.mxu0 0.0
    %9705 = vmatprep.subr.mxu0 0.0
    %9706 = vmatpush1.msra.mxu0 0.0
    %9707 = vmatprep.subr.mxu0 0.0
    %9708 = vmatpush1.msra.mxu0 0.0
    %9709 = vmatprep.subr.mxu0 0.0
    %9710 = vmatpush1.msra.mxu0 0.0
    %9711 = vmatprep.subr.mxu0 0.0
    %9712 = vmatpush1.msra.mxu0 0.0
    %9713 = vmatprep.subr.mxu0 0.0
    %9714 = vmatpush1.msra.mxu0 0.0
    %9715 = vmatprep.subr.mxu0 0.0
    %9716 = vmatpush1.msra.mxu0 0.0
    %9717 = vmatprep.subr.mxu0 0.0
    %9718 = vmatpush1.msra.mxu0 0.0
    %9719 = vmatprep.subr.mxu0 0.0
    %9720 = vmatpush1.msra.mxu0 0.0
    %9721 = vmatprep.subr.mxu0 0.0
    %9722 = vmatpush1.msra.mxu0 0.0
    %9723 = vmatprep.subr.mxu0 0.0
    %9724 = vmatpush1.msra.mxu0 0.0
    %9725 = vmatprep.subr.mxu0 0.0
    %9726 = vmatpush1.msra.mxu0 0.0
    %9727 = vmatprep.subr.mxu0 0.0
    %9728 = vmatpush1.msra.mxu0 0.0
    %9729 = vmatprep.subr.mxu0 0.0
    %9730 = vmatpush1.msra.mxu0 0.0
    %9731 = vmatprep.subr.mxu0 0.0
    %9732 = vmatpush1.msra.mxu0 0.0
    %9733 = vmatprep.subr.mxu0 0.0
    %9734 = vmatpush1.msra.mxu0 0.0
    %9735 = vmatprep.subr.mxu0 0.0
    %9736 = vmatpush1.msra.mxu0 0.0
    %9737 = vmatprep.subr.mxu0 0.0
    %9738 = vmatpush1.msra.mxu0 0.0
    %9739 = vmatprep.subr.mxu0 0.0
    %9740 = vmatpush1.msra.mxu0 0.0
    %9741 = vmatprep.subr.mxu0 0.0
    %9742 = vmatpush1.msra.mxu0 0.0
    %9743 = vmatprep.subr.mxu0 0.0
    %9744 = vmatpush1.msra.mxu0 0.0
    %9745 = vmatprep.subr.mxu0 0.0
    %9746 = vmatpush1.msra.mxu0 0.0
    %9747 = vmatprep.subr.mxu0 0.0
    %9748 = vmatpush1.msra.mxu0 0.0
    %9749 = vmatprep.subr.mxu0 0.0
    %9750 = vmatpush1.msra.mxu0 0.0
    %9751 = vmatprep.subr.mxu0 0.0
    %9752 = vmatpush1.msra.mxu0 0.0
    %9753 = vmatprep.mubr.f32.mxu0 0.0
    %v9754 = vand.u32 %v9509, 4294901760
    %v9755 = vsub.f32 %v9509, %v9754
    %9756 = vmatmul.mubr.f32.gmra.mrb[0].mxu0 %v9755
    %v9757 = vpop.f32.mrb[0].mxu0
    %v9758 = vadd.f32 %v9678, %v9757
    %v9759 = vpop.f32.mrb[0].mxu0
    %9760 = vdwg.mxu0
    %9761 = vmatprep.subr.mxu0 0.0
    %v9762 = vand.u32 %v9494, 4294901760
    %9763 = vmatpush1.msra.mxu0 %v9762
    %9764 = vmatprep.subr.mxu0 0.0
    %v9765 = vand.u32 %v9495, 4294901760
    %9766 = vmatpush1.msra.mxu0 %v9765
    %9767 = vmatprep.subr.mxu0 0.0
    %v9768 = vand.u32 %v9496, 4294901760
    %9769 = vmatpush1.msra.mxu0 %v9768
    %9770 = vmatprep.subr.mxu0 0.0
    %v9771 = vand.u32 %v9497, 4294901760
    %9772 = vmatpush1.msra.mxu0 %v9771
    %9773 = vmatprep.subr.mxu0 0.0
    %9774 = vmatpush1.msra.mxu0 0.0
    %9775 = vmatprep.subr.mxu0 0.0
    %9776 = vmatpush1.msra.mxu0 0.0
    %9777 = vmatprep.subr.mxu0 0.0
    %9778 = vmatpush1.msra.mxu0 0.0
    %9779 = vmatprep.subr.mxu0 0.0
    %9780 = vmatpush1.msra.mxu0 0.0
    %9781 = vmatprep.subr.mxu0 0.0
    %9782 = vmatpush1.msra.mxu0 0.0
    %9783 = vmatprep.subr.mxu0 0.0
    %9784 = vmatpush1.msra.mxu0 0.0
    %9785 = vmatprep.subr.mxu0 0.0
    %9786 = vmatpush1.msra.mxu0 0.0
    %9787 = vmatprep.subr.mxu0 0.0
    %9788 = vmatpush1.msra.mxu0 0.0
    %9789 = vmatprep.subr.mxu0 0.0
    %9790 = vmatpush1.msra.mxu0 0.0
    %9791 = vmatprep.subr.mxu0 0.0
    %9792 = vmatpush1.msra.mxu0 0.0
    %9793 = vmatprep.subr.mxu0 0.0
    %9794 = vmatpush1.msra.mxu0 0.0
    %9795 = vmatprep.subr.mxu0 0.0
    %9796 = vmatpush1.msra.mxu0 0.0
    %9797 = vmatprep.subr.mxu0 0.0
    %9798 = vmatpush1.msra.mxu0 0.0
    %9799 = vmatprep.subr.mxu0 0.0
    %9800 = vmatpush1.msra.mxu0 0.0
    %9801 = vmatprep.subr.mxu0 0.0
    %9802 = vmatpush1.msra.mxu0 0.0
    %9803 = vmatprep.subr.mxu0 0.0
    %9804 = vmatpush1.msra.mxu0 0.0
    %9805 = vmatprep.subr.mxu0 0.0
    %9806 = vmatpush1.msra.mxu0 0.0
    %9807 = vmatprep.subr.mxu0 0.0
    %9808 = vmatpush1.msra.mxu0 0.0
    %9809 = vmatprep.subr.mxu0 0.0
    %9810 = vmatpush1.msra.mxu0 0.0
    %9811 = vmatprep.subr.mxu0 0.0
    %9812 = vmatpush1.msra.mxu0 0.0
    %9813 = vmatprep.subr.mxu0 0.0
    %9814 = vmatpush1.msra.mxu0 0.0
    %9815 = vmatprep.subr.mxu0 0.0
    %9816 = vmatpush1.msra.mxu0 0.0
    %9817 = vmatprep.subr.mxu0 0.0
    %9818 = vmatpush1.msra.mxu0 0.0
    %9819 = vmatprep.subr.mxu0 0.0
    %9820 = vmatpush1.msra.mxu0 0.0
    %9821 = vmatprep.subr.mxu0 0.0
    %9822 = vmatpush1.msra.mxu0 0.0
    %9823 = vmatprep.subr.mxu0 0.0
    %9824 = vmatpush1.msra.mxu0 0.0
    %9825 = vmatprep.subr.mxu0 0.0
    %9826 = vmatpush1.msra.mxu0 0.0
    %9827 = vmatprep.subr.mxu0 0.0
    %9828 = vmatpush1.msra.mxu0 0.0
    %9829 = vmatprep.mubr.f32.mxu0 0.0
    %v9830 = vand.u32 %v9509, 4294901760
    %v9831 = vsub.f32 %v9509, %v9830
    %v9832 = vand.u32 %v9831, 4294901760
    %9833 = vmatmul.mubr.f32.gmra.mrb[0].mxu0 %v9832
    %v9834 = vpop.f32.mrb[0].mxu0
    %v9835 = vadd.f32 %v9758, %v9834
    %v9836 = vpop.f32.mrb[0].mxu0
    %9837 = vdwg.mxu0
    %9838 = vmatprep.subr.mxu0 0.0
    %v9839 = vand.u32 %v9494, 4294901760
    %v9840 = vsub.f32 %v9494, %v9839
    %v9841 = vand.u32 %v9840, 4294901760
    %9842 = vmatpush1.msra.mxu0 %v9841
    %9843 = vmatprep.subr.mxu0 0.0
    %v9844 = vand.u32 %v9495, 4294901760
    %v9845 = vsub.f32 %v9495, %v9844
    %v9846 = vand.u32 %v9845, 4294901760
    %9847 = vmatpush1.msra.mxu0 %v9846
    %9848 = vmatprep.subr.mxu0 0.0
    %v9849 = vand.u32 %v9496, 4294901760
    %v9850 = vsub.f32 %v9496, %v9849
    %v9851 = vand.u32 %v9850, 4294901760
    %9852 = vmatpush1.msra.mxu0 %v9851
    %9853 = vmatprep.subr.mxu0 0.0
    %v9854 = vand.u32 %v9497, 4294901760
    %v9855 = vsub.f32 %v9497, %v9854
    %v9856 = vand.u32 %v9855, 4294901760
    %9857 = vmatpush1.msra.mxu0 %v9856
    %9858 = vmatprep.subr.mxu0 0.0
    %9859 = vmatpush1.msra.mxu0 0.0
    %9860 = vmatprep.subr.mxu0 0.0
    %9861 = vmatpush1.msra.mxu0 0.0
    %9862 = vmatprep.subr.mxu0 0.0
    %9863 = vmatpush1.msra.mxu0 0.0
    %9864 = vmatprep.subr.mxu0 0.0
    %9865 = vmatpush1.msra.mxu0 0.0
    %9866 = vmatprep.subr.mxu0 0.0
    %9867 = vmatpush1.msra.mxu0 0.0
    %9868 = vmatprep.subr.mxu0 0.0
    %9869 = vmatpush1.msra.mxu0 0.0
    %9870 = vmatprep.subr.mxu0 0.0
    %9871 = vmatpush1.msra.mxu0 0.0
    %9872 = vmatprep.subr.mxu0 0.0
    %9873 = vmatpush1.msra.mxu0 0.0
    %9874 = vmatprep.subr.mxu0 0.0
    %9875 = vmatpush1.msra.mxu0 0.0
    %9876 = vmatprep.subr.mxu0 0.0
    %9877 = vmatpush1.msra.mxu0 0.0
    %9878 = vmatprep.subr.mxu0 0.0
    %9879 = vmatpush1.msra.mxu0 0.0
    %9880 = vmatprep.subr.mxu0 0.0
    %9881 = vmatpush1.msra.mxu0 0.0
    %9882 = vmatprep.subr.mxu0 0.0
    %9883 = vmatpush1.msra.mxu0 0.0
    %9884 = vmatprep.subr.mxu0 0.0
    %9885 = vmatpush1.msra.mxu0 0.0
    %9886 = vmatprep.subr.mxu0 0.0
    %9887 = vmatpush1.msra.mxu0 0.0
    %9888 = vmatprep.subr.mxu0 0.0
    %9889 = vmatpush1.msra.mxu0 0.0
    %9890 = vmatprep.subr.mxu0 0.0
    %9891 = vmatpush1.msra.mxu0 0.0
    %9892 = vmatprep.subr.mxu0 0.0
    %9893 = vmatpush1.msra.mxu0 0.0
    %9894 = vmatprep.subr.mxu0 0.0
    %9895 = vmatpush1.msra.mxu0 0.0
    %9896 = vmatprep.subr.mxu0 0.0
    %9897 = vmatpush1.msra.mxu0 0.0
    %9898 = vmatprep.subr.mxu0 0.0
    %9899 = vmatpush1.msra.mxu0 0.0
    %9900 = vmatprep.subr.mxu0 0.0
    %9901 = vmatpush1.msra.mxu0 0.0
    %9902 = vmatprep.subr.mxu0 0.0
    %9903 = vmatpush1.msra.mxu0 0.0
    %9904 = vmatprep.subr.mxu0 0.0
    %9905 = vmatpush1.msra.mxu0 0.0
    %9906 = vmatprep.subr.mxu0 0.0
    %9907 = vmatpush1.msra.mxu0 0.0
    %9908 = vmatprep.subr.mxu0 0.0
    %9909 = vmatpush1.msra.mxu0 0.0
    %9910 = vmatprep.subr.mxu0 0.0
    %9911 = vmatpush1.msra.mxu0 0.0
    %9912 = vmatprep.subr.mxu0 0.0
    %9913 = vmatpush1.msra.mxu0 0.0
    %9914 = vmatprep.mubr.f32.mxu0 0.0
    %v9915 = vand.u32 %v9509, 4294901760
    %9916 = vmatmul.mubr.f32.gmra.mrb[0].mxu0 %v9915
    %v9917 = vpop.f32.mrb[0].mxu0
    %v9918 = vadd.f32 %v9835, %v9917
    %v9919 = vpop.f32.mrb[0].mxu0
    %9920 = vdwg.mxu0
    %9921 = vmatprep.subr.mxu0 0.0
    %v9922 = vand.u32 %v9494, 4294901760
    %9923 = vmatpush1.msra.mxu0 %v9922
    %9924 = vmatprep.subr.mxu0 0.0
    %v9925 = vand.u32 %v9495, 4294901760
    %9926 = vmatpush1.msra.mxu0 %v9925
    %9927 = vmatprep.subr.mxu0 0.0
    %v9928 = vand.u32 %v9496, 4294901760
    %9929 = vmatpush1.msra.mxu0 %v9928
    %9930 = vmatprep.subr.mxu0 0.0
    %v9931 = vand.u32 %v9497, 4294901760
    %9932 = vmatpush1.msra.mxu0 %v9931
    %9933 = vmatprep.subr.mxu0 0.0
    %9934 = vmatpush1.msra.mxu0 0.0
    %9935 = vmatprep.subr.mxu0 0.0
    %9936 = vmatpush1.msra.mxu0 0.0
    %9937 = vmatprep.subr.mxu0 0.0
    %9938 = vmatpush1.msra.mxu0 0.0
    %9939 = vmatprep.subr.mxu0 0.0
    %9940 = vmatpush1.msra.mxu0 0.0
    %9941 = vmatprep.subr.mxu0 0.0
    %9942 = vmatpush1.msra.mxu0 0.0
    %9943 = vmatprep.subr.mxu0 0.0
    %9944 = vmatpush1.msra.mxu0 0.0
    %9945 = vmatprep.subr.mxu0 0.0
    %9946 = vmatpush1.msra.mxu0 0.0
    %9947 = vmatprep.subr.mxu0 0.0
    %9948 = vmatpush1.msra.mxu0 0.0
    %9949 = vmatprep.subr.mxu0 0.0
    %9950 = vmatpush1.msra.mxu0 0.0
    %9951 = vmatprep.subr.mxu0 0.0
    %9952 = vmatpush1.msra.mxu0 0.0
    %9953 = vmatprep.subr.mxu0 0.0
    %9954 = vmatpush1.msra.mxu0 0.0
    %9955 = vmatprep.subr.mxu0 0.0
    %9956 = vmatpush1.msra.mxu0 0.0
    %9957 = vmatprep.subr.mxu0 0.0
    %9958 = vmatpush1.msra.mxu0 0.0
    %9959 = vmatprep.subr.mxu0 0.0
    %9960 = vmatpush1.msra.mxu0 0.0
    %9961 = vmatprep.subr.mxu0 0.0
    %9962 = vmatpush1.msra.mxu0 0.0
    %9963 = vmatprep.subr.mxu0 0.0
    %9964 = vmatpush1.msra.mxu0 0.0
    %9965 = vmatprep.subr.mxu0 0.0
    %9966 = vmatpush1.msra.mxu0 0.0
    %9967 = vmatprep.subr.mxu0 0.0
    %9968 = vmatpush1.msra.mxu0 0.0
    %9969 = vmatprep.subr.mxu0 0.0
    %9970 = vmatpush1.msra.mxu0 0.0
    %9971 = vmatprep.subr.mxu0 0.0
    %9972 = vmatpush1.msra.mxu0 0.0
    %9973 = vmatprep.subr.mxu0 0.0
    %9974 = vmatpush1.msra.mxu0 0.0
    %9975 = vmatprep.subr.mxu0 0.0
    %9976 = vmatpush1.msra.mxu0 0.0
    %9977 = vmatprep.subr.mxu0 0.0
    %9978 = vmatpush1.msra.mxu0 0.0
    %9979 = vmatprep.subr.mxu0 0.0
    %9980 = vmatpush1.msra.mxu0 0.0
    %9981 = vmatprep.subr.mxu0 0.0
    %9982 = vmatpush1.msra.mxu0 0.0
    %9983 = vmatprep.subr.mxu0 0.0
    %9984 = vmatpush1.msra.mxu0 0.0
    %9985 = vmatprep.subr.mxu0 0.0
    %9986 = vmatpush1.msra.mxu0 0.0
    %9987 = vmatprep.subr.mxu0 0.0
    %9988 = vmatpush1.msra.mxu0 0.0
    %9989 = vmatprep.mubr.f32.mxu0 0.0
    %v9990 = vand.u32 %v9509, 4294901760
    %9991 = vmatmul.mubr.f32.gmra.mrb[0].mxu0 %v9990
    %v9992 = vpop.f32.mrb[0].mxu0
    %v9993 = vadd.f32 %v9918, %v9992
    %v9994 = vpop.f32.mrb[0].mxu0
    %9995 = vdwg.mxu0
    %v9996 = vmul.f32 %v9993, 0.5
    %v9997 = vtanh.pop %v9996
    %v9998 = vadd.f32 %v9997, 1.0
    %v9999 = vmul.f32 %v9998, 0.5
    %vm10000 = vcmask 9216
    %10001 = vst.msk [vmem:[#allocation2] sm:$0x3] %vm10000, %v9999
    %v10002 = vmul.f32 %v9493, %v9493
    %10004 = vrot.lane.b32.xlu0 %v10002, 32
    %v10005 = vpop.permute.xlu0 %10004
    %vm10007 = vcmask 261126
    %v10008 = vsel %vm10007, %v10005, 0.0
    %10009 = vadd.xlane.f32.xlu0 %v10008
    %v10010 = vpop.xlane.xlu0 %10009
    %v10011 = vrsqrt.pop %v10010
    %v10012 = vmul.f32 %v10010, %v10011
    %vm10013 = vcmp.eq.f32.partialorder %v10010, inf
    %v10014 = vsel %vm10013, %v10010, %v10012
    %vm10015 = vcmp.eq.f32.partialorder %v10010, 0.0
    %v10016 = vand.u32 %v10010, 2147483648
    %v10017 = vsel %vm10015, %v10016, %v10014
    %v10018 = vmax.f32 %v10017, 1e-12
    %v10019 = vrcp.pop %v10018
    %v10020 = vmul.f32 1.0, %v10019
    %v10021 = vmul.f32 %v9493, %v10020
    %10023 = vrot.lane.b32.xlu0 %v10021, 32
    %v10024 = vpop.permute.xlu0 %10023
    %10026 = vst.msk [vmem:[#allocation4 - $0x6] sm:$0xc0] %vm10007, %v10024
    // Predicated region
    $region38: #{lstm_pt_forward.1} parent=1 // pred_check
      _
    $region39: #{lstm_pt_forward.1} parent=1 // pred_check_branch
      %10028 = sbr.rel (0) target = $region41
    $region40: #{lstm_pt_forward.1} parent=1 // pred_region
      %s10030 = ssub.s32 32, 32
      %10031 = vsyncadd [#allocation3], %s10030
      %s10033 = sshll.u32 [#allocation2], 4
      %s10034 = int_to_ptr.vmem [resolvable:$true] %s10033
      %10036 = dma.vmem_to_hbm [thread:$0]  %s10034, 32, %s9, [#allocation3]
    $region41: #{lstm_pt_forward.1} parent=1 // pred_fallthru
      _
    // Predicated region
    $region42: #{lstm_pt_forward.1} parent=1 // pred_check
      _
    $region43: #{lstm_pt_forward.1} parent=1 // pred_check_branch
      %10038 = sbr.rel (0) target = $region45
    $region44: #{lstm_pt_forward.1} parent=1 // pred_region
      %s10040 = ssub.s32 32, 32
      %10041 = vsyncadd [#allocation5], %s10040
      %s10043 = sshll.u32 [#allocation4], 4
      %s10044 = int_to_ptr.vmem [resolvable:$true] %s10043
      %10046 = dma.vmem_to_hbm [thread:$0]  %s10044, 32, %s10, [#allocation5]
    $region45: #{lstm_pt_forward.1} parent=1 // pred_fallthru
      _
    // Predicated region
    $region46: #{lstm_pt_forward.1} parent=1 // pred_check
      _
    $region47: #{lstm_pt_forward.1} parent=1 // pred_check_branch
      %10048 = sbr.rel (0) target = $region49
    $region48: #{lstm_pt_forward.1} parent=1 // pred_region
      %10049 = dma.done [#allocation3], 32
    $region49: #{lstm_pt_forward.1} parent=1 // pred_fallthru
      _
    // Predicated region
    $region50: #{lstm_pt_forward.1} parent=1 // pred_check
      _
    $region51: #{lstm_pt_forward.1} parent=1 // pred_check_branch
      %10051 = sbr.rel (0) target = $region53
    $region52: #{lstm_pt_forward.1} parent=1 // pred_region
      %10052 = dma.done [#allocation5], 32
    $region53: #{lstm_pt_forward.1} parent=1 // pred_fallthru
      _
    %10053 = vsyncpa [#allocation3], 1
    %10054 = vsyncpa [#allocation5], 1

</llo_original>
